<compile_context>
chip_gen: v6e
topology: v6e:2x2x1
jax: 0.10.0
libtpu: 0.0.40
codegen_flags: <defaults>
</compile_context>

<pallas_src>
import jax
import jax.numpy as jnp
from jax.experimental import pallas as pl
from jax.experimental.pallas import tpu as pltpu

BN_EPS = 1e-5
LEAKY_SLOPE = 0.2


def _make_kernel(N, H, W, Cin, Cout, has_proj):
    Hp, Wp = H + 2, W + 2
    NP = N * Hp * Wp              # rows of the padded, flattened feature map
    NHW = N * H * W               # number of valid pixels (BN population)
    PAD = Wp + 1                  # slack rows: max |row shift| of a 3x3 tap
    INV_NHW = 1.0 / float(NHW)
    # static row shift of tap k = ky*3 + kx (offsets oy = ky-1, ox = kx-1)
    SHIFTS = [(ky - 1) * Wp + (kx - 1) for ky in range(3) for kx in range(3)]

    def kernel(x_ref, m_ref, w1_ref, g1_ref, b1_ref, w2_ref, g2_ref, b2_ref,
               o_ref, buf2):
        mask = m_ref[...]          # (NP, 1): 1.0 on real pixels, 0.0 on pad ring

        def conv3x3(src_ref, w_ref):
            # One fused MXU call over all 9 taps: row-shifted patches are
            # concatenated along K -> (NP, 9*C) bf16 slab @ (9*C, Cout') bf16.
            slab = jnp.concatenate(
                [src_ref[PAD + s:PAD + s + NP, :] for s in SHIFTS], axis=1)
            return jnp.dot(slab.astype(jnp.bfloat16), w_ref[...],
                           preferred_element_type=jnp.float32)

        def bn_train(z_masked, gamma, beta):
            # Training-mode BatchNorm2d: biased batch statistics over the NHW
            # valid pixels (pad-ring rows of z_masked are zero so they drop out
            # of the sums), one-pass var = E[x^2] - E[x]^2, per-channel affine.
            s = jnp.sum(z_masked, axis=0, keepdims=True)
            ss = jnp.sum(z_masked * z_masked, axis=0, keepdims=True)
            mean = s * INV_NHW
            var = ss * INV_NHW - mean * mean
            scale = jax.lax.rsqrt(var + BN_EPS) * gamma
            shift = beta - mean * scale
            return z_masked * scale + shift

        # ---- conv1 (3x3, pad=1, no bias) [+ fused 1x1 shortcut projection] ---
        # has_proj: w1_ref is (9*Cin, 2*Cout); columns [Cout:) hold the 1x1
        # shortcut weight at the center tap only, so one matmul yields both the
        # conv1 pre-activation and x @ Ws.  Both halves share one BN-stats pass
        # (g1/b1 are the concatenated affine params).
        z = conv3x3(x_ref, w1_ref) * mask      # drop garbage pad-ring rows
        z = bn_train(z, g1_ref[...], b1_ref[...])

        if has_proj:
            z1 = z[:, :Cout]                    # conv1 + BN1
            sc = z[:, Cout:]                    # shortcut 1x1 conv + BN
        else:
            z1 = z
            sc = x_ref[PAD:PAD + NP, :]         # identity shortcut

        # LeakyReLU(0.2), then restore zero padding for conv2
        z1 = jnp.where(z1 > 0, z1, LEAKY_SLOPE * z1)
        z1 = z1 * mask

        # Stage conv2's padded input: only the 2*PAD slack rows need zeroing
        # (scratch VMEM is uninitialized), the NP-row interior is overwritten.
        buf2[0:PAD, :] = jnp.zeros((PAD, Cout), jnp.float32)
        buf2[PAD + NP:2 * PAD + NP, :] = jnp.zeros((PAD, Cout), jnp.float32)
        buf2[PAD:PAD + NP, :] = z1

        # ---- conv2 (3x3, pad=1, no bias) + BN -------------------------------
        z2 = conv3x3(buf2, w2_ref) * mask
        z2 = bn_train(z2, g2_ref[...], b2_ref[...])

        # ---- residual add + final ReLU --------------------------------------
        # Pad-ring rows hold garbage here; the wrapper slices out the interior.
        o_ref[...] = jnp.maximum(z2 + sc, 0.0).astype(o_ref.dtype)

    return kernel


def init_params(key, in_channels, out_channels):
    ks = jax.random.split(key, 9)
    p = {
        "w1": 0.1 * jax.random.normal(ks[0], (out_channels, in_channels, 3, 3), jnp.float32),
        "g1": 1.0 + 0.1 * jax.random.normal(ks[1], (out_channels,), jnp.float32),
        "b1": 0.05 * jax.random.normal(ks[2], (out_channels,), jnp.float32),
        "w2": 0.1 * jax.random.normal(ks[3], (out_channels, out_channels, 3, 3), jnp.float32),
        "g2": 1.0 + 0.1 * jax.random.normal(ks[4], (out_channels,), jnp.float32),
        "b2": 0.05 * jax.random.normal(ks[5], (out_channels,), jnp.float32),
    }
    if in_channels != out_channels:  # stride is fixed at 1 (see note below)
        p["ws"] = 0.1 * jax.random.normal(ks[6], (out_channels, in_channels, 1, 1), jnp.float32)
        p["gs"] = 1.0 + 0.1 * jax.random.normal(ks[7], (out_channels,), jnp.float32)
        p["bs"] = 0.05 * jax.random.normal(ks[8], (out_channels,), jnp.float32)
    return p


def basic_block_forward(x_nchw, params, stride=1):
    # TODO(synk): stride != 1 not supported -- the reference module applies the
    # stride to BOTH 3x3 convs but only once to the shortcut, so the residual
    # add is only shape-consistent for stride == 1.
    assert stride == 1
    N, Cin, H, W = x_nchw.shape
    Cout = params["w1"].shape[0]
    has_proj = "ws" in params
    Hp, Wp = H + 2, W + 2
    NP = N * Hp * Wp
    PAD = Wp + 1

    # ---- layout plumbing (XLA glue) ----------------------------------------
    # NCHW -> zero-padded flattened NHWC rows, with PAD slack rows at each end
    # so all 9 conv taps are in-bounds static row-shifted slices.
    x_nhwc = jnp.transpose(x_nchw, (0, 2, 3, 1)).astype(jnp.float32)
    x_pad = jnp.pad(x_nhwc, ((0, 0), (1, 1), (1, 1), (0, 0)))
    x_flat = jnp.pad(x_pad.reshape(NP, Cin), ((PAD, PAD), (0, 0)))

    # interior mask: 1.0 on real pixels, 0.0 on the padding ring
    mask = jnp.pad(jnp.ones((N, H, W, 1), jnp.float32),
                   ((0, 0), (1, 1), (1, 1), (0, 0))).reshape(NP, 1)

    # torch conv weight (Cout, Cin, kh, kw) -> (kh*kw*Cin, Cout), K order
    # matching the in-kernel tap concatenation (k = ky*3 + kx, then c).
    def conv_w_f32(w):
        co, ci = w.shape[0], w.shape[1]
        return jnp.transpose(w, (2, 3, 1, 0)).reshape(9 * ci, co)

    w1_f = conv_w_f32(params["w1"])                     # (9*Cin, Cout)
    if has_proj:
        # Fold the 1x1 shortcut projection into the conv1 weight: it only
        # touches the center tap (k = 4) of the K axis.
        ws = jnp.transpose(params["ws"][:, :, 0, 0], (1, 0))       # (Cin, Cout)
        ws_full = jnp.zeros((9 * Cin, Cout), jnp.float32)
        ws_full = ws_full.at[4 * Cin:5 * Cin, :].set(ws)
        w1_f = jnp.concatenate([w1_f, ws_full], axis=1)            # (9*Cin, 2*Cout)
        g1 = jnp.concatenate([params["g1"], params["gs"]]).reshape(1, 2 * Cout)
        b1 = jnp.concatenate([params["b1"], params["bs"]]).reshape(1, 2 * Cout)
    else:
        g1 = params["g1"].reshape(1, Cout)
        b1 = params["b1"].reshape(1, Cout)

    w1 = w1_f.astype(jnp.bfloat16)
    w2 = conv_w_f32(params["w2"]).astype(jnp.bfloat16)
    g2 = params["g2"].reshape(1, Cout)
    b2 = params["b2"].reshape(1, Cout)

    args = [x_flat, mask, w1, g1, b1, w2, g2, b2]

    kernel = _make_kernel(N, H, W, Cin, Cout, has_proj)
    vspec = pl.BlockSpec(memory_space=pltpu.MemorySpace.VMEM)

    # TODO(synk): for large N*H*W this single fused call must be tiled over
    # rows (BlockSpec grid + halo) with a two-pass / cross-tile-accumulated
    # BatchNorm, since the batch statistics are global; at that point mark the
    # row axis "parallel" (v7x has 2 TensorCores).  Not needed at these sizes
    # (everything fits comfortably in VMEM).
    out_flat = pl.pallas_call(
        kernel,
        out_shape=jax.ShapeDtypeStruct((NP, Cout), jnp.float32),
        in_specs=[vspec] * len(args),
        out_specs=vspec,
        scratch_shapes=[
            pltpu.VMEM((NP + 2 * PAD, Cout), jnp.float32),  # conv2 padded input
        ],
        compiler_params=pltpu.CompilerParams(vmem_limit_bytes=48 * 1024 * 1024),
    )(*args)

    # back to NCHW, dropping the padding ring (glue)
    out = out_flat.reshape(N, Hp, Wp, Cout)[:, 1:H + 1, 1:W + 1, :]
    return jnp.transpose(out, (0, 3, 1, 2))


if __name__ == "__main__":
    key = jax.random.PRNGKey(0)
    kx, kp = jax.random.split(key)
    N, Cin, H, W = 2, 4, 16, 16
    Cout = 8
    x = jax.random.normal(kx, (N, Cin, H, W), jnp.float32)
    params = init_params(kp, Cin, Cout)
    out = basic_block_forward(x, params, stride=1)
    jax.block_until_ready(out)
    assert out.shape == (N, Cout, H, W)
    assert bool(jnp.all(out >= 0))  # final ReLU
    print("KERNEL_OK")
</pallas_src>

<mosaic_0001>
module attributes {stable_mosaic.version = 11 : i64} {
  func.func @kernel(%arg0: memref<686x4xf32, #tpu.memory_space<vmem>>, %arg1: memref<648x1xf32, #tpu.memory_space<vmem>>, %arg2: memref<36x16xbf16, #tpu.memory_space<vmem>>, %arg3: memref<1x16xf32, #tpu.memory_space<vmem>>, %arg4: memref<1x16xf32, #tpu.memory_space<vmem>>, %arg5: memref<72x8xbf16, #tpu.memory_space<vmem>>, %arg6: memref<1x8xf32, #tpu.memory_space<vmem>>, %arg7: memref<1x8xf32, #tpu.memory_space<vmem>>, %arg8: memref<648x8xf32, #tpu.memory_space<vmem>>, %arg9: memref<686x8xf32, #tpu.memory_space<vmem>>) attributes {dimension_semantics = [], scalar_prefetch = 0 : i64, scratch_operands = 1 : i64, tpu.core_type = #tpu.core_type<tc>} {
    %c0 = arith.constant 0 : index
    %c0_0 = arith.constant 0 : index
    %0 = vector.load %arg1[%c0, %c0_0] : memref<648x1xf32, #tpu.memory_space<vmem>>, vector<648x1xf32>
    %c0_1 = arith.constant 0 : index
    %c0_2 = arith.constant 0 : index
    %1 = vector.load %arg0[%c0_1, %c0_2] : memref<686x4xf32, #tpu.memory_space<vmem>>, vector<648x4xf32>
    %c1 = arith.constant 1 : index
    %c0_3 = arith.constant 0 : index
    %2 = vector.load %arg0[%c1, %c0_3] : memref<686x4xf32, #tpu.memory_space<vmem>>, vector<648x4xf32>
    %c2 = arith.constant 2 : index
    %c0_4 = arith.constant 0 : index
    %3 = vector.load %arg0[%c2, %c0_4] : memref<686x4xf32, #tpu.memory_space<vmem>>, vector<648x4xf32>
    %c18 = arith.constant 18 : index
    %c0_5 = arith.constant 0 : index
    %4 = vector.load %arg0[%c18, %c0_5] : memref<686x4xf32, #tpu.memory_space<vmem>>, vector<648x4xf32>
    %c19 = arith.constant 19 : index
    %c0_6 = arith.constant 0 : index
    %5 = vector.load %arg0[%c19, %c0_6] : memref<686x4xf32, #tpu.memory_space<vmem>>, vector<648x4xf32>
    %c20 = arith.constant 20 : index
    %c0_7 = arith.constant 0 : index
    %6 = vector.load %arg0[%c20, %c0_7] : memref<686x4xf32, #tpu.memory_space<vmem>>, vector<648x4xf32>
    %c36 = arith.constant 36 : index
    %c0_8 = arith.constant 0 : index
    %7 = vector.load %arg0[%c36, %c0_8] : memref<686x4xf32, #tpu.memory_space<vmem>>, vector<648x4xf32>
    %c37 = arith.constant 37 : index
    %c0_9 = arith.constant 0 : index
    %8 = vector.load %arg0[%c37, %c0_9] : memref<686x4xf32, #tpu.memory_space<vmem>>, vector<648x4xf32>
    %c38 = arith.constant 38 : index
    %c0_10 = arith.constant 0 : index
    %9 = vector.load %arg0[%c38, %c0_10] : memref<686x4xf32, #tpu.memory_space<vmem>>, vector<648x4xf32>
    %10 = tpu.concatenate %1, %2, %3, %4, %5, %6, %7, %8, %9 in 1 : vector<648x4xf32>, vector<648x4xf32>, vector<648x4xf32>, vector<648x4xf32>, vector<648x4xf32>, vector<648x4xf32>, vector<648x4xf32>, vector<648x4xf32>, vector<648x4xf32> -> vector<648x36xf32>
    %11 = arith.truncf %10 : vector<648x36xf32> to vector<648x36xbf16>
    %c0_11 = arith.constant 0 : index
    %c0_12 = arith.constant 0 : index
    %12 = vector.load %arg2[%c0_11, %c0_12] : memref<36x16xbf16, #tpu.memory_space<vmem>>, vector<36x16xbf16>
    %cst = arith.constant dense<0.000000e+00> : vector<648x16xf32>
    %13 = tpu.matmul %11, %12, %cst {dimension_numbers = #tpu.dot_dimension_numbers<[1], [0], [0], [1], [0, 0, 1, 1], [], []>} : vector<648x36xbf16>, vector<36x16xbf16>, vector<648x16xf32> -> vector<648x16xf32>
    %14 = vector.broadcast %0 : vector<648x1xf32> to vector<648x16xf32>
    %15 = arith.mulf %13, %14 : vector<648x16xf32>
    %c0_13 = arith.constant 0 : index
    %c0_14 = arith.constant 0 : index
    %16 = vector.load %arg3[%c0_13, %c0_14] : memref<1x16xf32, #tpu.memory_space<vmem>>, vector<1x16xf32>
    %c0_15 = arith.constant 0 : index
    %c0_16 = arith.constant 0 : index
    %17 = vector.load %arg4[%c0_15, %c0_16] : memref<1x16xf32, #tpu.memory_space<vmem>>, vector<1x16xf32>
    %cst_17 = arith.constant dense<0.000000e+00> : vector<16xf32>
    %18 = vector.multi_reduction <add>, %15, %cst_17 [0] : vector<648x16xf32> to vector<16xf32>
    %19 = vector.shape_cast %18 : vector<16xf32> to vector<1x16xf32>
    %20 = arith.mulf %15, %15 : vector<648x16xf32>
    %cst_18 = arith.constant dense<0.000000e+00> : vector<16xf32>
    %21 = vector.multi_reduction <add>, %20, %cst_18 [0] : vector<648x16xf32> to vector<16xf32>
    %22 = vector.shape_cast %21 : vector<16xf32> to vector<1x16xf32>
    %cst_19 = arith.constant 0.001953125 : f32
    %23 = vector.broadcast %cst_19 : f32 to vector<1x16xf32>
    %24 = arith.mulf %19, %23 : vector<1x16xf32>
    %cst_20 = arith.constant 0.001953125 : f32
    %25 = vector.broadcast %cst_20 : f32 to vector<1x16xf32>
    %26 = arith.mulf %22, %25 : vector<1x16xf32>
    %27 = arith.mulf %24, %24 : vector<1x16xf32>
    %28 = arith.subf %26, %27 : vector<1x16xf32>
    %cst_21 = arith.constant 9.99999974E-6 : f32
    %29 = vector.broadcast %cst_21 : f32 to vector<1x16xf32>
    %30 = arith.addf %28, %29 : vector<1x16xf32>
    %31 = math.rsqrt %30 : vector<1x16xf32>
    %32 = arith.mulf %31, %16 : vector<1x16xf32>
    %33 = arith.mulf %24, %32 : vector<1x16xf32>
    %34 = arith.subf %17, %33 : vector<1x16xf32>
    %35 = vector.broadcast %32 : vector<1x16xf32> to vector<648x16xf32>
    %36 = arith.mulf %15, %35 : vector<648x16xf32>
    %37 = vector.broadcast %34 : vector<1x16xf32> to vector<648x16xf32>
    %38 = arith.addf %36, %37 : vector<648x16xf32>
    %39 = vector.extract_strided_slice %38 {offsets = [0, 0], sizes = [648, 8], strides = [1, 1]} : vector<648x16xf32> to vector<648x8xf32>
    %40 = vector.extract_strided_slice %38 {offsets = [0, 8], sizes = [648, 8], strides = [1, 1]} : vector<648x16xf32> to vector<648x8xf32>
    %cst_22 = arith.constant 0.000000e+00 : f32
    %41 = vector.broadcast %cst_22 : f32 to vector<648x8xf32>
    %42 = arith.cmpf ogt, %39, %41 : vector<648x8xf32>
    %cst_23 = arith.constant 2.000000e-01 : f32
    %43 = vector.broadcast %cst_23 : f32 to vector<648x8xf32>
    %44 = arith.mulf %43, %39 : vector<648x8xf32>
    %45 = arith.select %42, %39, %44 : vector<648x8xi1>, vector<648x8xf32>
    %46 = vector.broadcast %0 : vector<648x1xf32> to vector<648x8xf32>
    %47 = arith.mulf %45, %46 : vector<648x8xf32>
    %cst_24 = arith.constant 0.000000e+00 : f32
    %48 = vector.broadcast %cst_24 : f32 to vector<19x8xf32>
    %c0_25 = arith.constant 0 : index
    %c0_26 = arith.constant 0 : index
    %49 = vector.load %arg9[%c0_25, %c0_26] : memref<686x8xf32, #tpu.memory_space<vmem>>, vector<19x8xf32>
    tpu.vector_store %arg9[%c0_25, %c0_26], %48 {strides = array<i32>} : memref<686x8xf32, #tpu.memory_space<vmem>>, vector<19x8xf32>,
    %cst_27 = arith.constant 0.000000e+00 : f32
    %50 = vector.broadcast %cst_27 : f32 to vector<19x8xf32>
    %c667 = arith.constant 667 : index
    %c0_28 = arith.constant 0 : index
    %51 = vector.load %arg9[%c667, %c0_28] : memref<686x8xf32, #tpu.memory_space<vmem>>, vector<19x8xf32>
    tpu.vector_store %arg9[%c667, %c0_28], %50 {strides = array<i32>} : memref<686x8xf32, #tpu.memory_space<vmem>>, vector<19x8xf32>,
    %c19_29 = arith.constant 19 : index
    %c0_30 = arith.constant 0 : index
    %52 = vector.load %arg9[%c19_29, %c0_30] : memref<686x8xf32, #tpu.memory_space<vmem>>, vector<648x8xf32>
    tpu.vector_store %arg9[%c19_29, %c0_30], %47 {strides = array<i32>} : memref<686x8xf32, #tpu.memory_space<vmem>>, vector<648x8xf32>,
    %c0_31 = arith.constant 0 : index
    %c0_32 = arith.constant 0 : index
    %53 = vector.load %arg9[%c0_31, %c0_32] : memref<686x8xf32, #tpu.memory_space<vmem>>, vector<648x8xf32>
    %c1_33 = arith.constant 1 : index
    %c0_34 = arith.constant 0 : index
    %54 = vector.load %arg9[%c1_33, %c0_34] : memref<686x8xf32, #tpu.memory_space<vmem>>, vector<648x8xf32>
    %c2_35 = arith.constant 2 : index
    %c0_36 = arith.constant 0 : index
    %55 = vector.load %arg9[%c2_35, %c0_36] : memref<686x8xf32, #tpu.memory_space<vmem>>, vector<648x8xf32>
    %c18_37 = arith.constant 18 : index
    %c0_38 = arith.constant 0 : index
    %56 = vector.load %arg9[%c18_37, %c0_38] : memref<686x8xf32, #tpu.memory_space<vmem>>, vector<648x8xf32>
    %c19_39 = arith.constant 19 : index
    %c0_40 = arith.constant 0 : index
    %57 = vector.load %arg9[%c19_39, %c0_40] : memref<686x8xf32, #tpu.memory_space<vmem>>, vector<648x8xf32>
    %c20_41 = arith.constant 20 : index
    %c0_42 = arith.constant 0 : index
    %58 = vector.load %arg9[%c20_41, %c0_42] : memref<686x8xf32, #tpu.memory_space<vmem>>, vector<648x8xf32>
    %c36_43 = arith.constant 36 : index
    %c0_44 = arith.constant 0 : index
    %59 = vector.load %arg9[%c36_43, %c0_44] : memref<686x8xf32, #tpu.memory_space<vmem>>, vector<648x8xf32>
    %c37_45 = arith.constant 37 : index
    %c0_46 = arith.constant 0 : index
    %60 = vector.load %arg9[%c37_45, %c0_46] : memref<686x8xf32, #tpu.memory_space<vmem>>, vector<648x8xf32>
    %c38_47 = arith.constant 38 : index
    %c0_48 = arith.constant 0 : index
    %61 = vector.load %arg9[%c38_47, %c0_48] : memref<686x8xf32, #tpu.memory_space<vmem>>, vector<648x8xf32>
    %62 = tpu.concatenate %53, %54, %55, %56, %57, %58, %59, %60, %61 in 1 : vector<648x8xf32>, vector<648x8xf32>, vector<648x8xf32>, vector<648x8xf32>, vector<648x8xf32>, vector<648x8xf32>, vector<648x8xf32>, vector<648x8xf32>, vector<648x8xf32> -> vector<648x72xf32>
    %63 = arith.truncf %62 : vector<648x72xf32> to vector<648x72xbf16>
    %c0_49 = arith.constant 0 : index
    %c0_50 = arith.constant 0 : index
    %64 = vector.load %arg5[%c0_49, %c0_50] : memref<72x8xbf16, #tpu.memory_space<vmem>>, vector<72x8xbf16>
    %cst_51 = arith.constant dense<0.000000e+00> : vector<648x8xf32>
    %65 = tpu.matmul %63, %64, %cst_51 {dimension_numbers = #tpu.dot_dimension_numbers<[1], [0], [0], [1], [0, 0, 1, 1], [], []>} : vector<648x72xbf16>, vector<72x8xbf16>, vector<648x8xf32> -> vector<648x8xf32>
    %66 = vector.broadcast %0 : vector<648x1xf32> to vector<648x8xf32>
    %67 = arith.mulf %65, %66 : vector<648x8xf32>
    %c0_52 = arith.constant 0 : index
    %c0_53 = arith.constant 0 : index
    %68 = vector.load %arg6[%c0_52, %c0_53] : memref<1x8xf32, #tpu.memory_space<vmem>>, vector<1x8xf32>
    %c0_54 = arith.constant 0 : index
    %c0_55 = arith.constant 0 : index
    %69 = vector.load %arg7[%c0_54, %c0_55] : memref<1x8xf32, #tpu.memory_space<vmem>>, vector<1x8xf32>
    %cst_56 = arith.constant dense<0.000000e+00> : vector<8xf32>
    %70 = vector.multi_reduction <add>, %67, %cst_56 [0] : vector<648x8xf32> to vector<8xf32>
    %71 = vector.shape_cast %70 : vector<8xf32> to vector<1x8xf32>
    %72 = arith.mulf %67, %67 : vector<648x8xf32>
    %cst_57 = arith.constant dense<0.000000e+00> : vector<8xf32>
    %73 = vector.multi_reduction <add>, %72, %cst_57 [0] : vector<648x8xf32> to vector<8xf32>
    %74 = vector.shape_cast %73 : vector<8xf32> to vector<1x8xf32>
    %cst_58 = arith.constant 0.001953125 : f32
    %75 = vector.broadcast %cst_58 : f32 to vector<1x8xf32>
    %76 = arith.mulf %71, %75 : vector<1x8xf32>
    %cst_59 = arith.constant 0.001953125 : f32
    %77 = vector.broadcast %cst_59 : f32 to vector<1x8xf32>
    %78 = arith.mulf %74, %77 : vector<1x8xf32>
    %79 = arith.mulf %76, %76 : vector<1x8xf32>
    %80 = arith.subf %78, %79 : vector<1x8xf32>
    %cst_60 = arith.constant 9.99999974E-6 : f32
    %81 = vector.broadcast %cst_60 : f32 to vector<1x8xf32>
    %82 = arith.addf %80, %81 : vector<1x8xf32>
    %83 = math.rsqrt %82 : vector<1x8xf32>
    %84 = arith.mulf %83, %68 : vector<1x8xf32>
    %85 = arith.mulf %76, %84 : vector<1x8xf32>
    %86 = arith.subf %69, %85 : vector<1x8xf32>
    %87 = vector.broadcast %84 : vector<1x8xf32> to vector<648x8xf32>
    %88 = arith.mulf %67, %87 : vector<648x8xf32>
    %89 = vector.broadcast %86 : vector<1x8xf32> to vector<648x8xf32>
    %90 = arith.addf %88, %89 : vector<648x8xf32>
    %91 = arith.addf %90, %40 : vector<648x8xf32>
    %cst_61 = arith.constant 0.000000e+00 : f32
    %92 = vector.broadcast %cst_61 : f32 to vector<648x8xf32>
    %93 = arith.maximumf %91, %92 : vector<648x8xf32>
    %c0_62 = arith.constant 0 : index
    %c0_63 = arith.constant 0 : index
    %94 = vector.load %arg8[%c0_62, %c0_63] : memref<648x8xf32, #tpu.memory_space<vmem>>, vector<648x8xf32>
    tpu.vector_store %arg8[%c0_62, %c0_63], %93 {strides = array<i32>} : memref<648x8xf32, #tpu.memory_space<vmem>>, vector<648x8xf32>,
    return
  }
}

</mosaic_0001>

<llo_original>
// kernel: tpu_custom_call.1
$region0: #{tpu_custom_call.1}
  #allocation0 [shape = 'u32[]', space=smem, size = 0x4, offset = 0x4, fixed_abs, tag = 'smem constant byte address 0x4 - core index']
  #allocation1 [shape = 'u32[144,128]{1,0:T(1,128)}', space=vmem, size = 0x12000, scoped, tag = 'internal scratch']
  #allocation2 [shape = 'f32[686,8]{1,0:T(8,128)}', space=vmem, size = 0x56000, scoped, tag = 'scratch operand']
  %s0 = inlined_call_operand.vmem [shape: f32[686,4], index: 0, kind: input, shape index: {}]
  %s1 = inlined_call_operand.vmem [shape: f32[648,1], index: 1, kind: input, shape index: {}]
  %s2 = inlined_call_operand.vmem [shape: bf16[36,16], index: 2, kind: input, shape index: {}]
  %s3 = inlined_call_operand.vmem [shape: f32[1,16], index: 3, kind: input, shape index: {}]
  %s4 = inlined_call_operand.vmem [shape: f32[1,16], index: 4, kind: input, shape index: {}]
  %s5 = inlined_call_operand.vmem [shape: bf16[72,8], index: 5, kind: input, shape index: {}]
  %s6 = inlined_call_operand.vmem [shape: f32[1,8], index: 6, kind: input, shape index: {}]
  %s7 = inlined_call_operand.vmem [shape: f32[1,8], index: 7, kind: input, shape index: {}]
  %s8 = inlined_call_operand.vmem [shape: f32[648,8], index: 8, kind: output, shape index: {}]
  %s9 = sld [smem:[#allocation0]]
  $region42: #{tpu_custom_call.1} parent=0
    _
  %s11 = ssub.s32 1, %s9
  %s12 = scalar_select 0, %s11, %s9
  // Predicated region
  $region2: #{tpu_custom_call.1} parent=0 // pred_check
    _
  $region3: #{tpu_custom_call.1} parent=0 // pred_check_branch
    %14 = sbr.rel (0) target = $region5
  $region4: #{tpu_custom_call.1} parent=0 // pred_region
    _
  $region5: #{tpu_custom_call.1} parent=0 // pred_fallthru
    _
  // Predicated region
  $region6: #{tpu_custom_call.1} parent=0 // pred_check
    _
  $region7: #{tpu_custom_call.1} parent=0 // pred_check_branch
    %16 = sbr.rel (0) target = $region9
  $region8: #{tpu_custom_call.1} parent=0 // pred_region
    _
  $region9: #{tpu_custom_call.1} parent=0 // pred_fallthru
    _
  // Predicated region
  $region10: #{tpu_custom_call.1} parent=0 // pred_check
    _
  $region11: #{tpu_custom_call.1} parent=0 // pred_check_branch
    %18 = sbr.rel (0) target = $region13
  $region12: #{tpu_custom_call.1} parent=0 // pred_region
    _
  $region13: #{tpu_custom_call.1} parent=0 // pred_fallthru
    _
  // Predicated region
  $region14: #{tpu_custom_call.1} parent=0 // pred_check
    _
  $region15: #{tpu_custom_call.1} parent=0 // pred_check_branch
    %20 = sbr.rel (0) target = $region17
  $region16: #{tpu_custom_call.1} parent=0 // pred_region
    _
  $region17: #{tpu_custom_call.1} parent=0 // pred_fallthru
    _
  // Predicated region
  $region18: #{tpu_custom_call.1} parent=0 // pred_check
    _
  $region19: #{tpu_custom_call.1} parent=0 // pred_check_branch
    %22 = sbr.rel (0) target = $region21
  $region20: #{tpu_custom_call.1} parent=0 // pred_region
    _
  $region21: #{tpu_custom_call.1} parent=0 // pred_fallthru
    _
  // Predicated region
  $region22: #{tpu_custom_call.1} parent=0 // pred_check
    _
  $region23: #{tpu_custom_call.1} parent=0 // pred_check_branch
    %24 = sbr.rel (0) target = $region25
  $region24: #{tpu_custom_call.1} parent=0 // pred_region
    _
  $region25: #{tpu_custom_call.1} parent=0 // pred_fallthru
    _
  // Predicated region
  $region26: #{tpu_custom_call.1} parent=0 // pred_check
    _
  $region27: #{tpu_custom_call.1} parent=0 // pred_check_branch
    %26 = sbr.rel (0) target = $region29
  $region28: #{tpu_custom_call.1} parent=0 // pred_region
    _
  $region29: #{tpu_custom_call.1} parent=0 // pred_fallthru
    _
  // Predicated region
  $region30: #{tpu_custom_call.1} parent=0 // pred_check
    _
  $region31: #{tpu_custom_call.1} parent=0 // pred_check_branch
    %28 = sbr.rel (0) target = $region33
  $region32: #{tpu_custom_call.1} parent=0 // pred_region
    _
  $region33: #{tpu_custom_call.1} parent=0 // pred_fallthru
    _
  %v30 = vld [vmem:[%s1] sm:$0xff]
  %v31 = vld [vmem:[%s1 + $0x8] sm:$0xff]
  %v32 = vld [vmem:[%s1 + $0x10] sm:$0xff]
  %v33 = vld [vmem:[%s1 + $0x18] sm:$0xff]
  %v34 = vld [vmem:[%s1 + $0x20] sm:$0xff]
  %v35 = vld [vmem:[%s1 + $0x28] sm:$0xff]
  %v36 = vld [vmem:[%s1 + $0x30] sm:$0xff]
  %v37 = vld [vmem:[%s1 + $0x38] sm:$0xff]
  %v38 = vld [vmem:[%s1 + $0x40] sm:$0xff]
  %v39 = vld [vmem:[%s1 + $0x48] sm:$0xff]
  %v40 = vld [vmem:[%s1 + $0x50] sm:$0xff]
  %v41 = vld [vmem:[%s1 + $0x58] sm:$0xff]
  %v42 = vld [vmem:[%s1 + $0x60] sm:$0xff]
  %v43 = vld [vmem:[%s1 + $0x68] sm:$0xff]
  %v44 = vld [vmem:[%s1 + $0x70] sm:$0xff]
  %v45 = vld [vmem:[%s1 + $0x78] sm:$0xff]
  %v46 = vld [vmem:[%s1 + $0x80] sm:$0xff]
  %v47 = vld [vmem:[%s1 + $0x88] sm:$0xff]
  %v48 = vld [vmem:[%s1 + $0x90] sm:$0xff]
  %v49 = vld [vmem:[%s1 + $0x98] sm:$0xff]
  %v50 = vld [vmem:[%s1 + $0xa0] sm:$0xff]
  %v51 = vld [vmem:[%s1 + $0xa8] sm:$0xff]
  %v52 = vld [vmem:[%s1 + $0xb0] sm:$0xff]
  %v53 = vld [vmem:[%s1 + $0xb8] sm:$0xff]
  %v54 = vld [vmem:[%s1 + $0xc0] sm:$0xff]
  %v55 = vld [vmem:[%s1 + $0xc8] sm:$0xff]
  %v56 = vld [vmem:[%s1 + $0xd0] sm:$0xff]
  %v57 = vld [vmem:[%s1 + $0xd8] sm:$0xff]
  %v58 = vld [vmem:[%s1 + $0xe0] sm:$0xff]
  %v59 = vld [vmem:[%s1 + $0xe8] sm:$0xff]
  %v60 = vld [vmem:[%s1 + $0xf0] sm:$0xff]
  %v61 = vld [vmem:[%s1 + $0xf8] sm:$0xff]
  %v62 = vld [vmem:[%s1 + $0x100] sm:$0xff]
  %v63 = vld [vmem:[%s1 + $0x108] sm:$0xff]
  %v64 = vld [vmem:[%s1 + $0x110] sm:$0xff]
  %v65 = vld [vmem:[%s1 + $0x118] sm:$0xff]
  %v66 = vld [vmem:[%s1 + $0x120] sm:$0xff]
  %v67 = vld [vmem:[%s1 + $0x128] sm:$0xff]
  %v68 = vld [vmem:[%s1 + $0x130] sm:$0xff]
  %v69 = vld [vmem:[%s1 + $0x138] sm:$0xff]
  %v70 = vld [vmem:[%s1 + $0x140] sm:$0xff]
  %v71 = vld [vmem:[%s1 + $0x148] sm:$0xff]
  %v72 = vld [vmem:[%s1 + $0x150] sm:$0xff]
  %v73 = vld [vmem:[%s1 + $0x158] sm:$0xff]
  %v74 = vld [vmem:[%s1 + $0x160] sm:$0xff]
  %v75 = vld [vmem:[%s1 + $0x168] sm:$0xff]
  %v76 = vld [vmem:[%s1 + $0x170] sm:$0xff]
  %v77 = vld [vmem:[%s1 + $0x178] sm:$0xff]
  %v78 = vld [vmem:[%s1 + $0x180] sm:$0xff]
  %v79 = vld [vmem:[%s1 + $0x188] sm:$0xff]
  %v80 = vld [vmem:[%s1 + $0x190] sm:$0xff]
  %v81 = vld [vmem:[%s1 + $0x198] sm:$0xff]
  %v82 = vld [vmem:[%s1 + $0x1a0] sm:$0xff]
  %v83 = vld [vmem:[%s1 + $0x1a8] sm:$0xff]
  %v84 = vld [vmem:[%s1 + $0x1b0] sm:$0xff]
  %v85 = vld [vmem:[%s1 + $0x1b8] sm:$0xff]
  %v86 = vld [vmem:[%s1 + $0x1c0] sm:$0xff]
  %v87 = vld [vmem:[%s1 + $0x1c8] sm:$0xff]
  %v88 = vld [vmem:[%s1 + $0x1d0] sm:$0xff]
  %v89 = vld [vmem:[%s1 + $0x1d8] sm:$0xff]
  %v90 = vld [vmem:[%s1 + $0x1e0] sm:$0xff]
  %v91 = vld [vmem:[%s1 + $0x1e8] sm:$0xff]
  %v92 = vld [vmem:[%s1 + $0x1f0] sm:$0xff]
  %v93 = vld [vmem:[%s1 + $0x1f8] sm:$0xff]
  %v94 = vld [vmem:[%s1 + $0x200] sm:$0xff]
  %v95 = vld [vmem:[%s1 + $0x208] sm:$0xff]
  %v96 = vld [vmem:[%s1 + $0x210] sm:$0xff]
  %v97 = vld [vmem:[%s1 + $0x218] sm:$0xff]
  %v98 = vld [vmem:[%s1 + $0x220] sm:$0xff]
  %v99 = vld [vmem:[%s1 + $0x228] sm:$0xff]
  %v100 = vld [vmem:[%s1 + $0x230] sm:$0xff]
  %v101 = vld [vmem:[%s1 + $0x238] sm:$0xff]
  %v102 = vld [vmem:[%s1 + $0x240] sm:$0xff]
  %v103 = vld [vmem:[%s1 + $0x248] sm:$0xff]
  %v104 = vld [vmem:[%s1 + $0x250] sm:$0xff]
  %v105 = vld [vmem:[%s1 + $0x258] sm:$0xff]
  %v106 = vld [vmem:[%s1 + $0x260] sm:$0xff]
  %v107 = vld [vmem:[%s1 + $0x268] sm:$0xff]
  %v108 = vld [vmem:[%s1 + $0x270] sm:$0xff]
  %v109 = vld [vmem:[%s1 + $0x278] sm:$0xff]
  %v110 = vld [vmem:[%s1 + $0x280] sm:$0xff]
  %v111 = vld [vmem:[%s0] sm:$0xff]
  %v112 = vld [vmem:[%s0 + $0x8] sm:$0xff]
  %v113 = vld [vmem:[%s0 + $0x10] sm:$0xff]
  %v114 = vld [vmem:[%s0 + $0x18] sm:$0xff]
  %v115 = vld [vmem:[%s0 + $0x20] sm:$0xff]
  %v116 = vld [vmem:[%s0 + $0x28] sm:$0xff]
  %v117 = vld [vmem:[%s0 + $0x30] sm:$0xff]
  %v118 = vld [vmem:[%s0 + $0x38] sm:$0xff]
  %v119 = vld [vmem:[%s0 + $0x40] sm:$0xff]
  %v120 = vld [vmem:[%s0 + $0x48] sm:$0xff]
  %v121 = vld [vmem:[%s0 + $0x50] sm:$0xff]
  %v122 = vld [vmem:[%s0 + $0x58] sm:$0xff]
  %v123 = vld [vmem:[%s0 + $0x60] sm:$0xff]
  %v124 = vld [vmem:[%s0 + $0x68] sm:$0xff]
  %v125 = vld [vmem:[%s0 + $0x70] sm:$0xff]
  %v126 = vld [vmem:[%s0 + $0x78] sm:$0xff]
  %v127 = vld [vmem:[%s0 + $0x80] sm:$0xff]
  %v128 = vld [vmem:[%s0 + $0x88] sm:$0xff]
  %v129 = vld [vmem:[%s0 + $0x90] sm:$0xff]
  %v130 = vld [vmem:[%s0 + $0x98] sm:$0xff]
  %v131 = vld [vmem:[%s0 + $0xa0] sm:$0xff]
  %v132 = vld [vmem:[%s0 + $0xa8] sm:$0xff]
  %v133 = vld [vmem:[%s0 + $0xb0] sm:$0xff]
  %v134 = vld [vmem:[%s0 + $0xb8] sm:$0xff]
  %v135 = vld [vmem:[%s0 + $0xc0] sm:$0xff]
  %v136 = vld [vmem:[%s0 + $0xc8] sm:$0xff]
  %v137 = vld [vmem:[%s0 + $0xd0] sm:$0xff]
  %v138 = vld [vmem:[%s0 + $0xd8] sm:$0xff]
  %v139 = vld [vmem:[%s0 + $0xe0] sm:$0xff]
  %v140 = vld [vmem:[%s0 + $0xe8] sm:$0xff]
  %v141 = vld [vmem:[%s0 + $0xf0] sm:$0xff]
  %v142 = vld [vmem:[%s0 + $0xf8] sm:$0xff]
  %v143 = vld [vmem:[%s0 + $0x100] sm:$0xff]
  %v144 = vld [vmem:[%s0 + $0x108] sm:$0xff]
  %v145 = vld [vmem:[%s0 + $0x110] sm:$0xff]
  %v146 = vld [vmem:[%s0 + $0x118] sm:$0xff]
  %v147 = vld [vmem:[%s0 + $0x120] sm:$0xff]
  %v148 = vld [vmem:[%s0 + $0x128] sm:$0xff]
  %v149 = vld [vmem:[%s0 + $0x130] sm:$0xff]
  %v150 = vld [vmem:[%s0 + $0x138] sm:$0xff]
  %v151 = vld [vmem:[%s0 + $0x140] sm:$0xff]
  %v152 = vld [vmem:[%s0 + $0x148] sm:$0xff]
  %v153 = vld [vmem:[%s0 + $0x150] sm:$0xff]
  %v154 = vld [vmem:[%s0 + $0x158] sm:$0xff]
  %v155 = vld [vmem:[%s0 + $0x160] sm:$0xff]
  %v156 = vld [vmem:[%s0 + $0x168] sm:$0xff]
  %v157 = vld [vmem:[%s0 + $0x170] sm:$0xff]
  %v158 = vld [vmem:[%s0 + $0x178] sm:$0xff]
  %v159 = vld [vmem:[%s0 + $0x180] sm:$0xff]
  %v160 = vld [vmem:[%s0 + $0x188] sm:$0xff]
  %v161 = vld [vmem:[%s0 + $0x190] sm:$0xff]
  %v162 = vld [vmem:[%s0 + $0x198] sm:$0xff]
  %v163 = vld [vmem:[%s0 + $0x1a0] sm:$0xff]
  %v164 = vld [vmem:[%s0 + $0x1a8] sm:$0xff]
  %v165 = vld [vmem:[%s0 + $0x1b0] sm:$0xff]
  %v166 = vld [vmem:[%s0 + $0x1b8] sm:$0xff]
  %v167 = vld [vmem:[%s0 + $0x1c0] sm:$0xff]
  %v168 = vld [vmem:[%s0 + $0x1c8] sm:$0xff]
  %v169 = vld [vmem:[%s0 + $0x1d0] sm:$0xff]
  %v170 = vld [vmem:[%s0 + $0x1d8] sm:$0xff]
  %v171 = vld [vmem:[%s0 + $0x1e0] sm:$0xff]
  %v172 = vld [vmem:[%s0 + $0x1e8] sm:$0xff]
  %v173 = vld [vmem:[%s0 + $0x1f0] sm:$0xff]
  %v174 = vld [vmem:[%s0 + $0x1f8] sm:$0xff]
  %v175 = vld [vmem:[%s0 + $0x200] sm:$0xff]
  %v176 = vld [vmem:[%s0 + $0x208] sm:$0xff]
  %v177 = vld [vmem:[%s0 + $0x210] sm:$0xff]
  %v178 = vld [vmem:[%s0 + $0x218] sm:$0xff]
  %v179 = vld [vmem:[%s0 + $0x220] sm:$0xff]
  %v180 = vld [vmem:[%s0 + $0x228] sm:$0xff]
  %v181 = vld [vmem:[%s0 + $0x230] sm:$0xff]
  %v182 = vld [vmem:[%s0 + $0x238] sm:$0xff]
  %v183 = vld [vmem:[%s0 + $0x240] sm:$0xff]
  %v184 = vld [vmem:[%s0 + $0x248] sm:$0xff]
  %v185 = vld [vmem:[%s0 + $0x250] sm:$0xff]
  %v186 = vld [vmem:[%s0 + $0x258] sm:$0xff]
  %v187 = vld [vmem:[%s0 + $0x260] sm:$0xff]
  %v188 = vld [vmem:[%s0 + $0x268] sm:$0xff]
  %v189 = vld [vmem:[%s0 + $0x270] sm:$0xff]
  %v190 = vld [vmem:[%s0 + $0x278] sm:$0xff]
  %v191 = vld [vmem:[%s0 + $0x280] sm:$0xff]
  %v192 = vld [vmem:[%s0 + $0x1] sm:$0xff]
  %v193 = vld [vmem:[%s0 + $0x9] sm:$0xff]
  %v194 = vld [vmem:[%s0 + $0x11] sm:$0xff]
  %v195 = vld [vmem:[%s0 + $0x19] sm:$0xff]
  %v196 = vld [vmem:[%s0 + $0x21] sm:$0xff]
  %v197 = vld [vmem:[%s0 + $0x29] sm:$0xff]
  %v198 = vld [vmem:[%s0 + $0x31] sm:$0xff]
  %v199 = vld [vmem:[%s0 + $0x39] sm:$0xff]
  %v200 = vld [vmem:[%s0 + $0x41] sm:$0xff]
  %v201 = vld [vmem:[%s0 + $0x49] sm:$0xff]
  %v202 = vld [vmem:[%s0 + $0x51] sm:$0xff]
  %v203 = vld [vmem:[%s0 + $0x59] sm:$0xff]
  %v204 = vld [vmem:[%s0 + $0x61] sm:$0xff]
  %v205 = vld [vmem:[%s0 + $0x69] sm:$0xff]
  %v206 = vld [vmem:[%s0 + $0x71] sm:$0xff]
  %v207 = vld [vmem:[%s0 + $0x79] sm:$0xff]
  %v208 = vld [vmem:[%s0 + $0x81] sm:$0xff]
  %v209 = vld [vmem:[%s0 + $0x89] sm:$0xff]
  %v210 = vld [vmem:[%s0 + $0x91] sm:$0xff]
  %v211 = vld [vmem:[%s0 + $0x99] sm:$0xff]
  %v212 = vld [vmem:[%s0 + $0xa1] sm:$0xff]
  %v213 = vld [vmem:[%s0 + $0xa9] sm:$0xff]
  %v214 = vld [vmem:[%s0 + $0xb1] sm:$0xff]
  %v215 = vld [vmem:[%s0 + $0xb9] sm:$0xff]
  %v216 = vld [vmem:[%s0 + $0xc1] sm:$0xff]
  %v217 = vld [vmem:[%s0 + $0xc9] sm:$0xff]
  %v218 = vld [vmem:[%s0 + $0xd1] sm:$0xff]
  %v219 = vld [vmem:[%s0 + $0xd9] sm:$0xff]
  %v220 = vld [vmem:[%s0 + $0xe1] sm:$0xff]
  %v221 = vld [vmem:[%s0 + $0xe9] sm:$0xff]
  %v222 = vld [vmem:[%s0 + $0xf1] sm:$0xff]
  %v223 = vld [vmem:[%s0 + $0xf9] sm:$0xff]
  %v224 = vld [vmem:[%s0 + $0x101] sm:$0xff]
  %v225 = vld [vmem:[%s0 + $0x109] sm:$0xff]
  %v226 = vld [vmem:[%s0 + $0x111] sm:$0xff]
  %v227 = vld [vmem:[%s0 + $0x119] sm:$0xff]
  %v228 = vld [vmem:[%s0 + $0x121] sm:$0xff]
  %v229 = vld [vmem:[%s0 + $0x129] sm:$0xff]
  %v230 = vld [vmem:[%s0 + $0x131] sm:$0xff]
  %v231 = vld [vmem:[%s0 + $0x139] sm:$0xff]
  %v232 = vld [vmem:[%s0 + $0x141] sm:$0xff]
  %v233 = vld [vmem:[%s0 + $0x149] sm:$0xff]
  %v234 = vld [vmem:[%s0 + $0x151] sm:$0xff]
  %v235 = vld [vmem:[%s0 + $0x159] sm:$0xff]
  %v236 = vld [vmem:[%s0 + $0x161] sm:$0xff]
  %v237 = vld [vmem:[%s0 + $0x169] sm:$0xff]
  %v238 = vld [vmem:[%s0 + $0x171] sm:$0xff]
  %v239 = vld [vmem:[%s0 + $0x179] sm:$0xff]
  %v240 = vld [vmem:[%s0 + $0x181] sm:$0xff]
  %v241 = vld [vmem:[%s0 + $0x189] sm:$0xff]
  %v242 = vld [vmem:[%s0 + $0x191] sm:$0xff]
  %v243 = vld [vmem:[%s0 + $0x199] sm:$0xff]
  %v244 = vld [vmem:[%s0 + $0x1a1] sm:$0xff]
  %v245 = vld [vmem:[%s0 + $0x1a9] sm:$0xff]
  %v246 = vld [vmem:[%s0 + $0x1b1] sm:$0xff]
  %v247 = vld [vmem:[%s0 + $0x1b9] sm:$0xff]
  %v248 = vld [vmem:[%s0 + $0x1c1] sm:$0xff]
  %v249 = vld [vmem:[%s0 + $0x1c9] sm:$0xff]
  %v250 = vld [vmem:[%s0 + $0x1d1] sm:$0xff]
  %v251 = vld [vmem:[%s0 + $0x1d9] sm:$0xff]
  %v252 = vld [vmem:[%s0 + $0x1e1] sm:$0xff]
  %v253 = vld [vmem:[%s0 + $0x1e9] sm:$0xff]
  %v254 = vld [vmem:[%s0 + $0x1f1] sm:$0xff]
  %v255 = vld [vmem:[%s0 + $0x1f9] sm:$0xff]
  %v256 = vld [vmem:[%s0 + $0x201] sm:$0xff]
  %v257 = vld [vmem:[%s0 + $0x209] sm:$0xff]
  %v258 = vld [vmem:[%s0 + $0x211] sm:$0xff]
  %v259 = vld [vmem:[%s0 + $0x219] sm:$0xff]
  %v260 = vld [vmem:[%s0 + $0x221] sm:$0xff]
  %v261 = vld [vmem:[%s0 + $0x229] sm:$0xff]
  %v262 = vld [vmem:[%s0 + $0x231] sm:$0xff]
  %v263 = vld [vmem:[%s0 + $0x239] sm:$0xff]
  %v264 = vld [vmem:[%s0 + $0x241] sm:$0xff]
  %v265 = vld [vmem:[%s0 + $0x249] sm:$0xff]
  %v266 = vld [vmem:[%s0 + $0x251] sm:$0xff]
  %v267 = vld [vmem:[%s0 + $0x259] sm:$0xff]
  %v268 = vld [vmem:[%s0 + $0x261] sm:$0xff]
  %v269 = vld [vmem:[%s0 + $0x269] sm:$0xff]
  %v270 = vld [vmem:[%s0 + $0x271] sm:$0xff]
  %v271 = vld [vmem:[%s0 + $0x279] sm:$0xff]
  %v272 = vld [vmem:[%s0 + $0x281] sm:$0xff]
  %v273 = vld [vmem:[%s0 + $0x2] sm:$0xff]
  %v274 = vld [vmem:[%s0 + $0xa] sm:$0xff]
  %v275 = vld [vmem:[%s0 + $0x12] sm:$0xff]
  %v276 = vld [vmem:[%s0 + $0x1a] sm:$0xff]
  %v277 = vld [vmem:[%s0 + $0x22] sm:$0xff]
  %v278 = vld [vmem:[%s0 + $0x2a] sm:$0xff]
  %v279 = vld [vmem:[%s0 + $0x32] sm:$0xff]
  %v280 = vld [vmem:[%s0 + $0x3a] sm:$0xff]
  %v281 = vld [vmem:[%s0 + $0x42] sm:$0xff]
  %v282 = vld [vmem:[%s0 + $0x4a] sm:$0xff]
  %v283 = vld [vmem:[%s0 + $0x52] sm:$0xff]
  %v284 = vld [vmem:[%s0 + $0x5a] sm:$0xff]
  %v285 = vld [vmem:[%s0 + $0x62] sm:$0xff]
  %v286 = vld [vmem:[%s0 + $0x6a] sm:$0xff]
  %v287 = vld [vmem:[%s0 + $0x72] sm:$0xff]
  %v288 = vld [vmem:[%s0 + $0x7a] sm:$0xff]
  %v289 = vld [vmem:[%s0 + $0x82] sm:$0xff]
  %v290 = vld [vmem:[%s0 + $0x8a] sm:$0xff]
  %v291 = vld [vmem:[%s0 + $0x92] sm:$0xff]
  %v292 = vld [vmem:[%s0 + $0x9a] sm:$0xff]
  %v293 = vld [vmem:[%s0 + $0xa2] sm:$0xff]
  %v294 = vld [vmem:[%s0 + $0xaa] sm:$0xff]
  %v295 = vld [vmem:[%s0 + $0xb2] sm:$0xff]
  %v296 = vld [vmem:[%s0 + $0xba] sm:$0xff]
  %v297 = vld [vmem:[%s0 + $0xc2] sm:$0xff]
  %v298 = vld [vmem:[%s0 + $0xca] sm:$0xff]
  %v299 = vld [vmem:[%s0 + $0xd2] sm:$0xff]
  %v300 = vld [vmem:[%s0 + $0xda] sm:$0xff]
  %v301 = vld [vmem:[%s0 + $0xe2] sm:$0xff]
  %v302 = vld [vmem:[%s0 + $0xea] sm:$0xff]
  %v303 = vld [vmem:[%s0 + $0xf2] sm:$0xff]
  %v304 = vld [vmem:[%s0 + $0xfa] sm:$0xff]
  %v305 = vld [vmem:[%s0 + $0x102] sm:$0xff]
  %v306 = vld [vmem:[%s0 + $0x10a] sm:$0xff]
  %v307 = vld [vmem:[%s0 + $0x112] sm:$0xff]
  %v308 = vld [vmem:[%s0 + $0x11a] sm:$0xff]
  %v309 = vld [vmem:[%s0 + $0x122] sm:$0xff]
  %v310 = vld [vmem:[%s0 + $0x12a] sm:$0xff]
  %v311 = vld [vmem:[%s0 + $0x132] sm:$0xff]
  %v312 = vld [vmem:[%s0 + $0x13a] sm:$0xff]
  %v313 = vld [vmem:[%s0 + $0x142] sm:$0xff]
  %v314 = vld [vmem:[%s0 + $0x14a] sm:$0xff]
  %v315 = vld [vmem:[%s0 + $0x152] sm:$0xff]
  %v316 = vld [vmem:[%s0 + $0x15a] sm:$0xff]
  %v317 = vld [vmem:[%s0 + $0x162] sm:$0xff]
  %v318 = vld [vmem:[%s0 + $0x16a] sm:$0xff]
  %v319 = vld [vmem:[%s0 + $0x172] sm:$0xff]
  %v320 = vld [vmem:[%s0 + $0x17a] sm:$0xff]
  %v321 = vld [vmem:[%s0 + $0x182] sm:$0xff]
  %v322 = vld [vmem:[%s0 + $0x18a] sm:$0xff]
  %v323 = vld [vmem:[%s0 + $0x192] sm:$0xff]
  %v324 = vld [vmem:[%s0 + $0x19a] sm:$0xff]
  %v325 = vld [vmem:[%s0 + $0x1a2] sm:$0xff]
  %v326 = vld [vmem:[%s0 + $0x1aa] sm:$0xff]
  %v327 = vld [vmem:[%s0 + $0x1b2] sm:$0xff]
  %v328 = vld [vmem:[%s0 + $0x1ba] sm:$0xff]
  %v329 = vld [vmem:[%s0 + $0x1c2] sm:$0xff]
  %v330 = vld [vmem:[%s0 + $0x1ca] sm:$0xff]
  %v331 = vld [vmem:[%s0 + $0x1d2] sm:$0xff]
  %v332 = vld [vmem:[%s0 + $0x1da] sm:$0xff]
  %v333 = vld [vmem:[%s0 + $0x1e2] sm:$0xff]
  %v334 = vld [vmem:[%s0 + $0x1ea] sm:$0xff]
  %v335 = vld [vmem:[%s0 + $0x1f2] sm:$0xff]
  %v336 = vld [vmem:[%s0 + $0x1fa] sm:$0xff]
  %v337 = vld [vmem:[%s0 + $0x202] sm:$0xff]
  %v338 = vld [vmem:[%s0 + $0x20a] sm:$0xff]
  %v339 = vld [vmem:[%s0 + $0x212] sm:$0xff]
  %v340 = vld [vmem:[%s0 + $0x21a] sm:$0xff]
  %v341 = vld [vmem:[%s0 + $0x222] sm:$0xff]
  %v342 = vld [vmem:[%s0 + $0x22a] sm:$0xff]
  %v343 = vld [vmem:[%s0 + $0x232] sm:$0xff]
  %v344 = vld [vmem:[%s0 + $0x23a] sm:$0xff]
  %v345 = vld [vmem:[%s0 + $0x242] sm:$0xff]
  %v346 = vld [vmem:[%s0 + $0x24a] sm:$0xff]
  %v347 = vld [vmem:[%s0 + $0x252] sm:$0xff]
  %v348 = vld [vmem:[%s0 + $0x25a] sm:$0xff]
  %v349 = vld [vmem:[%s0 + $0x262] sm:$0xff]
  %v350 = vld [vmem:[%s0 + $0x26a] sm:$0xff]
  %v351 = vld [vmem:[%s0 + $0x272] sm:$0xff]
  %v352 = vld [vmem:[%s0 + $0x27a] sm:$0xff]
  %v353 = vld [vmem:[%s0 + $0x282] sm:$0xff]
  %v354 = vld [vmem:[%s0 + $0x28a] sm:$0xff]
  %v355 = vld [vmem:[%s0 + $0x292] sm:$0xff]
  %v356 = vld [vmem:[%s0 + $0x13] sm:$0xff]
  %v357 = vld [vmem:[%s0 + $0x1b] sm:$0xff]
  %v358 = vld [vmem:[%s0 + $0x23] sm:$0xff]
  %v359 = vld [vmem:[%s0 + $0x2b] sm:$0xff]
  %v360 = vld [vmem:[%s0 + $0x33] sm:$0xff]
  %v361 = vld [vmem:[%s0 + $0x3b] sm:$0xff]
  %v362 = vld [vmem:[%s0 + $0x43] sm:$0xff]
  %v363 = vld [vmem:[%s0 + $0x4b] sm:$0xff]
  %v364 = vld [vmem:[%s0 + $0x53] sm:$0xff]
  %v365 = vld [vmem:[%s0 + $0x5b] sm:$0xff]
  %v366 = vld [vmem:[%s0 + $0x63] sm:$0xff]
  %v367 = vld [vmem:[%s0 + $0x6b] sm:$0xff]
  %v368 = vld [vmem:[%s0 + $0x73] sm:$0xff]
  %v369 = vld [vmem:[%s0 + $0x7b] sm:$0xff]
  %v370 = vld [vmem:[%s0 + $0x83] sm:$0xff]
  %v371 = vld [vmem:[%s0 + $0x8b] sm:$0xff]
  %v372 = vld [vmem:[%s0 + $0x93] sm:$0xff]
  %v373 = vld [vmem:[%s0 + $0x9b] sm:$0xff]
  %v374 = vld [vmem:[%s0 + $0xa3] sm:$0xff]
  %v375 = vld [vmem:[%s0 + $0xab] sm:$0xff]
  %v376 = vld [vmem:[%s0 + $0xb3] sm:$0xff]
  %v377 = vld [vmem:[%s0 + $0xbb] sm:$0xff]
  %v378 = vld [vmem:[%s0 + $0xc3] sm:$0xff]
  %v379 = vld [vmem:[%s0 + $0xcb] sm:$0xff]
  %v380 = vld [vmem:[%s0 + $0xd3] sm:$0xff]
  %v381 = vld [vmem:[%s0 + $0xdb] sm:$0xff]
  %v382 = vld [vmem:[%s0 + $0xe3] sm:$0xff]
  %v383 = vld [vmem:[%s0 + $0xeb] sm:$0xff]
  %v384 = vld [vmem:[%s0 + $0xf3] sm:$0xff]
  %v385 = vld [vmem:[%s0 + $0xfb] sm:$0xff]
  %v386 = vld [vmem:[%s0 + $0x103] sm:$0xff]
  %v387 = vld [vmem:[%s0 + $0x10b] sm:$0xff]
  %v388 = vld [vmem:[%s0 + $0x113] sm:$0xff]
  %v389 = vld [vmem:[%s0 + $0x11b] sm:$0xff]
  %v390 = vld [vmem:[%s0 + $0x123] sm:$0xff]
  %v391 = vld [vmem:[%s0 + $0x12b] sm:$0xff]
  %v392 = vld [vmem:[%s0 + $0x133] sm:$0xff]
  %v393 = vld [vmem:[%s0 + $0x13b] sm:$0xff]
  %v394 = vld [vmem:[%s0 + $0x143] sm:$0xff]
  %v395 = vld [vmem:[%s0 + $0x14b] sm:$0xff]
  %v396 = vld [vmem:[%s0 + $0x153] sm:$0xff]
  %v397 = vld [vmem:[%s0 + $0x15b] sm:$0xff]
  %v398 = vld [vmem:[%s0 + $0x163] sm:$0xff]
  %v399 = vld [vmem:[%s0 + $0x16b] sm:$0xff]
  %v400 = vld [vmem:[%s0 + $0x173] sm:$0xff]
  %v401 = vld [vmem:[%s0 + $0x17b] sm:$0xff]
  %v402 = vld [vmem:[%s0 + $0x183] sm:$0xff]
  %v403 = vld [vmem:[%s0 + $0x18b] sm:$0xff]
  %v404 = vld [vmem:[%s0 + $0x193] sm:$0xff]
  %v405 = vld [vmem:[%s0 + $0x19b] sm:$0xff]
  %v406 = vld [vmem:[%s0 + $0x1a3] sm:$0xff]
  %v407 = vld [vmem:[%s0 + $0x1ab] sm:$0xff]
  %v408 = vld [vmem:[%s0 + $0x1b3] sm:$0xff]
  %v409 = vld [vmem:[%s0 + $0x1bb] sm:$0xff]
  %v410 = vld [vmem:[%s0 + $0x1c3] sm:$0xff]
  %v411 = vld [vmem:[%s0 + $0x1cb] sm:$0xff]
  %v412 = vld [vmem:[%s0 + $0x1d3] sm:$0xff]
  %v413 = vld [vmem:[%s0 + $0x1db] sm:$0xff]
  %v414 = vld [vmem:[%s0 + $0x1e3] sm:$0xff]
  %v415 = vld [vmem:[%s0 + $0x1eb] sm:$0xff]
  %v416 = vld [vmem:[%s0 + $0x1f3] sm:$0xff]
  %v417 = vld [vmem:[%s0 + $0x1fb] sm:$0xff]
  %v418 = vld [vmem:[%s0 + $0x203] sm:$0xff]
  %v419 = vld [vmem:[%s0 + $0x20b] sm:$0xff]
  %v420 = vld [vmem:[%s0 + $0x213] sm:$0xff]
  %v421 = vld [vmem:[%s0 + $0x21b] sm:$0xff]
  %v422 = vld [vmem:[%s0 + $0x223] sm:$0xff]
  %v423 = vld [vmem:[%s0 + $0x22b] sm:$0xff]
  %v424 = vld [vmem:[%s0 + $0x233] sm:$0xff]
  %v425 = vld [vmem:[%s0 + $0x23b] sm:$0xff]
  %v426 = vld [vmem:[%s0 + $0x243] sm:$0xff]
  %v427 = vld [vmem:[%s0 + $0x24b] sm:$0xff]
  %v428 = vld [vmem:[%s0 + $0x253] sm:$0xff]
  %v429 = vld [vmem:[%s0 + $0x25b] sm:$0xff]
  %v430 = vld [vmem:[%s0 + $0x263] sm:$0xff]
  %v431 = vld [vmem:[%s0 + $0x26b] sm:$0xff]
  %v432 = vld [vmem:[%s0 + $0x273] sm:$0xff]
  %v433 = vld [vmem:[%s0 + $0x27b] sm:$0xff]
  %v434 = vld [vmem:[%s0 + $0x283] sm:$0xff]
  %v435 = vld [vmem:[%s0 + $0x28b] sm:$0xff]
  %v436 = vld [vmem:[%s0 + $0x293] sm:$0xff]
  %v437 = vld [vmem:[%s0 + $0x14] sm:$0xff]
  %v438 = vld [vmem:[%s0 + $0x1c] sm:$0xff]
  %v439 = vld [vmem:[%s0 + $0x24] sm:$0xff]
  %v440 = vld [vmem:[%s0 + $0x2c] sm:$0xff]
  %v441 = vld [vmem:[%s0 + $0x34] sm:$0xff]
  %v442 = vld [vmem:[%s0 + $0x3c] sm:$0xff]
  %v443 = vld [vmem:[%s0 + $0x44] sm:$0xff]
  %v444 = vld [vmem:[%s0 + $0x4c] sm:$0xff]
  %v445 = vld [vmem:[%s0 + $0x54] sm:$0xff]
  %v446 = vld [vmem:[%s0 + $0x5c] sm:$0xff]
  %v447 = vld [vmem:[%s0 + $0x64] sm:$0xff]
  %v448 = vld [vmem:[%s0 + $0x6c] sm:$0xff]
  %v449 = vld [vmem:[%s0 + $0x74] sm:$0xff]
  %v450 = vld [vmem:[%s0 + $0x7c] sm:$0xff]
  %v451 = vld [vmem:[%s0 + $0x84] sm:$0xff]
  %v452 = vld [vmem:[%s0 + $0x8c] sm:$0xff]
  %v453 = vld [vmem:[%s0 + $0x94] sm:$0xff]
  %v454 = vld [vmem:[%s0 + $0x9c] sm:$0xff]
  %v455 = vld [vmem:[%s0 + $0xa4] sm:$0xff]
  %v456 = vld [vmem:[%s0 + $0xac] sm:$0xff]
  %v457 = vld [vmem:[%s0 + $0xb4] sm:$0xff]
  %v458 = vld [vmem:[%s0 + $0xbc] sm:$0xff]
  %v459 = vld [vmem:[%s0 + $0xc4] sm:$0xff]
  %v460 = vld [vmem:[%s0 + $0xcc] sm:$0xff]
  %v461 = vld [vmem:[%s0 + $0xd4] sm:$0xff]
  %v462 = vld [vmem:[%s0 + $0xdc] sm:$0xff]
  %v463 = vld [vmem:[%s0 + $0xe4] sm:$0xff]
  %v464 = vld [vmem:[%s0 + $0xec] sm:$0xff]
  %v465 = vld [vmem:[%s0 + $0xf4] sm:$0xff]
  %v466 = vld [vmem:[%s0 + $0xfc] sm:$0xff]
  %v467 = vld [vmem:[%s0 + $0x104] sm:$0xff]
  %v468 = vld [vmem:[%s0 + $0x10c] sm:$0xff]
  %v469 = vld [vmem:[%s0 + $0x114] sm:$0xff]
  %v470 = vld [vmem:[%s0 + $0x11c] sm:$0xff]
  %v471 = vld [vmem:[%s0 + $0x124] sm:$0xff]
  %v472 = vld [vmem:[%s0 + $0x12c] sm:$0xff]
  %v473 = vld [vmem:[%s0 + $0x134] sm:$0xff]
  %v474 = vld [vmem:[%s0 + $0x13c] sm:$0xff]
  %v475 = vld [vmem:[%s0 + $0x144] sm:$0xff]
  %v476 = vld [vmem:[%s0 + $0x14c] sm:$0xff]
  %v477 = vld [vmem:[%s0 + $0x154] sm:$0xff]
  %v478 = vld [vmem:[%s0 + $0x15c] sm:$0xff]
  %v479 = vld [vmem:[%s0 + $0x164] sm:$0xff]
  %v480 = vld [vmem:[%s0 + $0x16c] sm:$0xff]
  %v481 = vld [vmem:[%s0 + $0x174] sm:$0xff]
  %v482 = vld [vmem:[%s0 + $0x17c] sm:$0xff]
  %v483 = vld [vmem:[%s0 + $0x184] sm:$0xff]
  %v484 = vld [vmem:[%s0 + $0x18c] sm:$0xff]
  %v485 = vld [vmem:[%s0 + $0x194] sm:$0xff]
  %v486 = vld [vmem:[%s0 + $0x19c] sm:$0xff]
  %v487 = vld [vmem:[%s0 + $0x1a4] sm:$0xff]
  %v488 = vld [vmem:[%s0 + $0x1ac] sm:$0xff]
  %v489 = vld [vmem:[%s0 + $0x1b4] sm:$0xff]
  %v490 = vld [vmem:[%s0 + $0x1bc] sm:$0xff]
  %v491 = vld [vmem:[%s0 + $0x1c4] sm:$0xff]
  %v492 = vld [vmem:[%s0 + $0x1cc] sm:$0xff]
  %v493 = vld [vmem:[%s0 + $0x1d4] sm:$0xff]
  %v494 = vld [vmem:[%s0 + $0x1dc] sm:$0xff]
  %v495 = vld [vmem:[%s0 + $0x1e4] sm:$0xff]
  %v496 = vld [vmem:[%s0 + $0x1ec] sm:$0xff]
  %v497 = vld [vmem:[%s0 + $0x1f4] sm:$0xff]
  %v498 = vld [vmem:[%s0 + $0x1fc] sm:$0xff]
  %v499 = vld [vmem:[%s0 + $0x204] sm:$0xff]
  %v500 = vld [vmem:[%s0 + $0x20c] sm:$0xff]
  %v501 = vld [vmem:[%s0 + $0x214] sm:$0xff]
  %v502 = vld [vmem:[%s0 + $0x21c] sm:$0xff]
  %v503 = vld [vmem:[%s0 + $0x224] sm:$0xff]
  %v504 = vld [vmem:[%s0 + $0x22c] sm:$0xff]
  %v505 = vld [vmem:[%s0 + $0x234] sm:$0xff]
  %v506 = vld [vmem:[%s0 + $0x23c] sm:$0xff]
  %v507 = vld [vmem:[%s0 + $0x244] sm:$0xff]
  %v508 = vld [vmem:[%s0 + $0x24c] sm:$0xff]
  %v509 = vld [vmem:[%s0 + $0x254] sm:$0xff]
  %v510 = vld [vmem:[%s0 + $0x25c] sm:$0xff]
  %v511 = vld [vmem:[%s0 + $0x264] sm:$0xff]
  %v512 = vld [vmem:[%s0 + $0x26c] sm:$0xff]
  %v513 = vld [vmem:[%s0 + $0x274] sm:$0xff]
  %v514 = vld [vmem:[%s0 + $0x27c] sm:$0xff]
  %v515 = vld [vmem:[%s0 + $0x284] sm:$0xff]
  %v516 = vld [vmem:[%s0 + $0x28c] sm:$0xff]
  %v517 = vld [vmem:[%s0 + $0x294] sm:$0xff]
  %v518 = vld [vmem:[%s0 + $0x29c] sm:$0xff]
  %v519 = vld [vmem:[%s0 + $0x2a4] sm:$0xff]
  %v520 = vld [vmem:[%s0 + $0x25] sm:$0xff]
  %v521 = vld [vmem:[%s0 + $0x2d] sm:$0xff]
  %v522 = vld [vmem:[%s0 + $0x35] sm:$0xff]
  %v523 = vld [vmem:[%s0 + $0x3d] sm:$0xff]
  %v524 = vld [vmem:[%s0 + $0x45] sm:$0xff]
  %v525 = vld [vmem:[%s0 + $0x4d] sm:$0xff]
  %v526 = vld [vmem:[%s0 + $0x55] sm:$0xff]
  %v527 = vld [vmem:[%s0 + $0x5d] sm:$0xff]
  %v528 = vld [vmem:[%s0 + $0x65] sm:$0xff]
  %v529 = vld [vmem:[%s0 + $0x6d] sm:$0xff]
  %v530 = vld [vmem:[%s0 + $0x75] sm:$0xff]
  %v531 = vld [vmem:[%s0 + $0x7d] sm:$0xff]
  %v532 = vld [vmem:[%s0 + $0x85] sm:$0xff]
  %v533 = vld [vmem:[%s0 + $0x8d] sm:$0xff]
  %v534 = vld [vmem:[%s0 + $0x95] sm:$0xff]
  %v535 = vld [vmem:[%s0 + $0x9d] sm:$0xff]
  %v536 = vld [vmem:[%s0 + $0xa5] sm:$0xff]
  %v537 = vld [vmem:[%s0 + $0xad] sm:$0xff]
  %v538 = vld [vmem:[%s0 + $0xb5] sm:$0xff]
  %v539 = vld [vmem:[%s0 + $0xbd] sm:$0xff]
  %v540 = vld [vmem:[%s0 + $0xc5] sm:$0xff]
  %v541 = vld [vmem:[%s0 + $0xcd] sm:$0xff]
  %v542 = vld [vmem:[%s0 + $0xd5] sm:$0xff]
  %v543 = vld [vmem:[%s0 + $0xdd] sm:$0xff]
  %v544 = vld [vmem:[%s0 + $0xe5] sm:$0xff]
  %v545 = vld [vmem:[%s0 + $0xed] sm:$0xff]
  %v546 = vld [vmem:[%s0 + $0xf5] sm:$0xff]
  %v547 = vld [vmem:[%s0 + $0xfd] sm:$0xff]
  %v548 = vld [vmem:[%s0 + $0x105] sm:$0xff]
  %v549 = vld [vmem:[%s0 + $0x10d] sm:$0xff]
  %v550 = vld [vmem:[%s0 + $0x115] sm:$0xff]
  %v551 = vld [vmem:[%s0 + $0x11d] sm:$0xff]
  %v552 = vld [vmem:[%s0 + $0x125] sm:$0xff]
  %v553 = vld [vmem:[%s0 + $0x12d] sm:$0xff]
  %v554 = vld [vmem:[%s0 + $0x135] sm:$0xff]
  %v555 = vld [vmem:[%s0 + $0x13d] sm:$0xff]
  %v556 = vld [vmem:[%s0 + $0x145] sm:$0xff]
  %v557 = vld [vmem:[%s0 + $0x14d] sm:$0xff]
  %v558 = vld [vmem:[%s0 + $0x155] sm:$0xff]
  %v559 = vld [vmem:[%s0 + $0x15d] sm:$0xff]
  %v560 = vld [vmem:[%s0 + $0x165] sm:$0xff]
  %v561 = vld [vmem:[%s0 + $0x16d] sm:$0xff]
  %v562 = vld [vmem:[%s0 + $0x175] sm:$0xff]
  %v563 = vld [vmem:[%s0 + $0x17d] sm:$0xff]
  %v564 = vld [vmem:[%s0 + $0x185] sm:$0xff]
  %v565 = vld [vmem:[%s0 + $0x18d] sm:$0xff]
  %v566 = vld [vmem:[%s0 + $0x195] sm:$0xff]
  %v567 = vld [vmem:[%s0 + $0x19d] sm:$0xff]
  %v568 = vld [vmem:[%s0 + $0x1a5] sm:$0xff]
  %v569 = vld [vmem:[%s0 + $0x1ad] sm:$0xff]
  %v570 = vld [vmem:[%s0 + $0x1b5] sm:$0xff]
  %v571 = vld [vmem:[%s0 + $0x1bd] sm:$0xff]
  %v572 = vld [vmem:[%s0 + $0x1c5] sm:$0xff]
  %v573 = vld [vmem:[%s0 + $0x1cd] sm:$0xff]
  %v574 = vld [vmem:[%s0 + $0x1d5] sm:$0xff]
  %v575 = vld [vmem:[%s0 + $0x1dd] sm:$0xff]
  %v576 = vld [vmem:[%s0 + $0x1e5] sm:$0xff]
  %v577 = vld [vmem:[%s0 + $0x1ed] sm:$0xff]
  %v578 = vld [vmem:[%s0 + $0x1f5] sm:$0xff]
  %v579 = vld [vmem:[%s0 + $0x1fd] sm:$0xff]
  %v580 = vld [vmem:[%s0 + $0x205] sm:$0xff]
  %v581 = vld [vmem:[%s0 + $0x20d] sm:$0xff]
  %v582 = vld [vmem:[%s0 + $0x215] sm:$0xff]
  %v583 = vld [vmem:[%s0 + $0x21d] sm:$0xff]
  %v584 = vld [vmem:[%s0 + $0x225] sm:$0xff]
  %v585 = vld [vmem:[%s0 + $0x22d] sm:$0xff]
  %v586 = vld [vmem:[%s0 + $0x235] sm:$0xff]
  %v587 = vld [vmem:[%s0 + $0x23d] sm:$0xff]
  %v588 = vld [vmem:[%s0 + $0x245] sm:$0xff]
  %v589 = vld [vmem:[%s0 + $0x24d] sm:$0xff]
  %v590 = vld [vmem:[%s0 + $0x255] sm:$0xff]
  %v591 = vld [vmem:[%s0 + $0x25d] sm:$0xff]
  %v592 = vld [vmem:[%s0 + $0x265] sm:$0xff]
  %v593 = vld [vmem:[%s0 + $0x26d] sm:$0xff]
  %v594 = vld [vmem:[%s0 + $0x275] sm:$0xff]
  %v595 = vld [vmem:[%s0 + $0x27d] sm:$0xff]
  %v596 = vld [vmem:[%s0 + $0x285] sm:$0xff]
  %v597 = vld [vmem:[%s0 + $0x28d] sm:$0xff]
  %v598 = vld [vmem:[%s0 + $0x295] sm:$0xff]
  %v599 = vld [vmem:[%s0 + $0x29d] sm:$0xff]
  %v600 = vld [vmem:[%s0 + $0x2a5] sm:$0xff]
  %v601 = vld [vmem:[%s0 + $0x26] sm:$0xff]
  %v602 = vld [vmem:[%s0 + $0x2e] sm:$0xff]
  %v603 = vld [vmem:[%s0 + $0x36] sm:$0xff]
  %v604 = vld [vmem:[%s0 + $0x3e] sm:$0xff]
  %v605 = vld [vmem:[%s0 + $0x46] sm:$0xff]
  %v606 = vld [vmem:[%s0 + $0x4e] sm:$0xff]
  %v607 = vld [vmem:[%s0 + $0x56] sm:$0xff]
  %v608 = vld [vmem:[%s0 + $0x5e] sm:$0xff]
  %v609 = vld [vmem:[%s0 + $0x66] sm:$0xff]
  %v610 = vld [vmem:[%s0 + $0x6e] sm:$0xff]
  %v611 = vld [vmem:[%s0 + $0x76] sm:$0xff]
  %v612 = vld [vmem:[%s0 + $0x7e] sm:$0xff]
  %v613 = vld [vmem:[%s0 + $0x86] sm:$0xff]
  %v614 = vld [vmem:[%s0 + $0x8e] sm:$0xff]
  %v615 = vld [vmem:[%s0 + $0x96] sm:$0xff]
  %v616 = vld [vmem:[%s0 + $0x9e] sm:$0xff]
  %v617 = vld [vmem:[%s0 + $0xa6] sm:$0xff]
  %v618 = vld [vmem:[%s0 + $0xae] sm:$0xff]
  %v619 = vld [vmem:[%s0 + $0xb6] sm:$0xff]
  %v620 = vld [vmem:[%s0 + $0xbe] sm:$0xff]
  %v621 = vld [vmem:[%s0 + $0xc6] sm:$0xff]
  %v622 = vld [vmem:[%s0 + $0xce] sm:$0xff]
  %v623 = vld [vmem:[%s0 + $0xd6] sm:$0xff]
  %v624 = vld [vmem:[%s0 + $0xde] sm:$0xff]
  %v625 = vld [vmem:[%s0 + $0xe6] sm:$0xff]
  %v626 = vld [vmem:[%s0 + $0xee] sm:$0xff]
  %v627 = vld [vmem:[%s0 + $0xf6] sm:$0xff]
  %v628 = vld [vmem:[%s0 + $0xfe] sm:$0xff]
  %v629 = vld [vmem:[%s0 + $0x106] sm:$0xff]
  %v630 = vld [vmem:[%s0 + $0x10e] sm:$0xff]
  %v631 = vld [vmem:[%s0 + $0x116] sm:$0xff]
  %v632 = vld [vmem:[%s0 + $0x11e] sm:$0xff]
  %v633 = vld [vmem:[%s0 + $0x126] sm:$0xff]
  %v634 = vld [vmem:[%s0 + $0x12e] sm:$0xff]
  %v635 = vld [vmem:[%s0 + $0x136] sm:$0xff]
  %v636 = vld [vmem:[%s0 + $0x13e] sm:$0xff]
  %v637 = vld [vmem:[%s0 + $0x146] sm:$0xff]
  %v638 = vld [vmem:[%s0 + $0x14e] sm:$0xff]
  %v639 = vld [vmem:[%s0 + $0x156] sm:$0xff]
  %v640 = vld [vmem:[%s0 + $0x15e] sm:$0xff]
  %v641 = vld [vmem:[%s0 + $0x166] sm:$0xff]
  %v642 = vld [vmem:[%s0 + $0x16e] sm:$0xff]
  %v643 = vld [vmem:[%s0 + $0x176] sm:$0xff]
  %v644 = vld [vmem:[%s0 + $0x17e] sm:$0xff]
  %v645 = vld [vmem:[%s0 + $0x186] sm:$0xff]
  %v646 = vld [vmem:[%s0 + $0x18e] sm:$0xff]
  %v647 = vld [vmem:[%s0 + $0x196] sm:$0xff]
  %v648 = vld [vmem:[%s0 + $0x19e] sm:$0xff]
  %v649 = vld [vmem:[%s0 + $0x1a6] sm:$0xff]
  %v650 = vld [vmem:[%s0 + $0x1ae] sm:$0xff]
  %v651 = vld [vmem:[%s0 + $0x1b6] sm:$0xff]
  %v652 = vld [vmem:[%s0 + $0x1be] sm:$0xff]
  %v653 = vld [vmem:[%s0 + $0x1c6] sm:$0xff]
  %v654 = vld [vmem:[%s0 + $0x1ce] sm:$0xff]
  %v655 = vld [vmem:[%s0 + $0x1d6] sm:$0xff]
  %v656 = vld [vmem:[%s0 + $0x1de] sm:$0xff]
  %v657 = vld [vmem:[%s0 + $0x1e6] sm:$0xff]
  %v658 = vld [vmem:[%s0 + $0x1ee] sm:$0xff]
  %v659 = vld [vmem:[%s0 + $0x1f6] sm:$0xff]
  %v660 = vld [vmem:[%s0 + $0x1fe] sm:$0xff]
  %v661 = vld [vmem:[%s0 + $0x206] sm:$0xff]
  %v662 = vld [vmem:[%s0 + $0x20e] sm:$0xff]
  %v663 = vld [vmem:[%s0 + $0x216] sm:$0xff]
  %v664 = vld [vmem:[%s0 + $0x21e] sm:$0xff]
  %v665 = vld [vmem:[%s0 + $0x226] sm:$0xff]
  %v666 = vld [vmem:[%s0 + $0x22e] sm:$0xff]
  %v667 = vld [vmem:[%s0 + $0x236] sm:$0xff]
  %v668 = vld [vmem:[%s0 + $0x23e] sm:$0xff]
  %v669 = vld [vmem:[%s0 + $0x246] sm:$0xff]
  %v670 = vld [vmem:[%s0 + $0x24e] sm:$0xff]
  %v671 = vld [vmem:[%s0 + $0x256] sm:$0xff]
  %v672 = vld [vmem:[%s0 + $0x25e] sm:$0xff]
  %v673 = vld [vmem:[%s0 + $0x266] sm:$0xff]
  %v674 = vld [vmem:[%s0 + $0x26e] sm:$0xff]
  %v675 = vld [vmem:[%s0 + $0x276] sm:$0xff]
  %v676 = vld [vmem:[%s0 + $0x27e] sm:$0xff]
  %v677 = vld [vmem:[%s0 + $0x286] sm:$0xff]
  %v678 = vld [vmem:[%s0 + $0x28e] sm:$0xff]
  %v679 = vld [vmem:[%s0 + $0x296] sm:$0xff]
  %v680 = vld [vmem:[%s0 + $0x29e] sm:$0xff]
  %v681 = vld [vmem:[%s0 + $0x2a6] sm:$0xff]
  %763 = vrot.lane.b32.xlu0 %v192, 4
  %v764 = vpop.permute.xlu0 %763
  %765 = vrot.lane.b32.xlu0 %v193, 4
  %v766 = vpop.permute.xlu0 %765
  %767 = vrot.lane.b32.xlu0 %v194, 4
  %v768 = vpop.permute.xlu0 %767
  %769 = vrot.lane.b32.xlu0 %v195, 4
  %v770 = vpop.permute.xlu0 %769
  %771 = vrot.lane.b32.xlu0 %v196, 4
  %v772 = vpop.permute.xlu0 %771
  %773 = vrot.lane.b32.xlu0 %v197, 4
  %v774 = vpop.permute.xlu0 %773
  %775 = vrot.lane.b32.xlu0 %v198, 4
  %v776 = vpop.permute.xlu0 %775
  %777 = vrot.lane.b32.xlu0 %v199, 4
  %v778 = vpop.permute.xlu0 %777
  %779 = vrot.lane.b32.xlu0 %v200, 4
  %v780 = vpop.permute.xlu0 %779
  %781 = vrot.lane.b32.xlu0 %v201, 4
  %v782 = vpop.permute.xlu0 %781
  %783 = vrot.lane.b32.xlu0 %v202, 4
  %v784 = vpop.permute.xlu0 %783
  %785 = vrot.lane.b32.xlu0 %v203, 4
  %v786 = vpop.permute.xlu0 %785
  %787 = vrot.lane.b32.xlu0 %v204, 4
  %v788 = vpop.permute.xlu0 %787
  %789 = vrot.lane.b32.xlu0 %v205, 4
  %v790 = vpop.permute.xlu0 %789
  %791 = vrot.lane.b32.xlu0 %v206, 4
  %v792 = vpop.permute.xlu0 %791
  %793 = vrot.lane.b32.xlu0 %v207, 4
  %v794 = vpop.permute.xlu0 %793
  %795 = vrot.lane.b32.xlu0 %v208, 4
  %v796 = vpop.permute.xlu0 %795
  %797 = vrot.lane.b32.xlu0 %v209, 4
  %v798 = vpop.permute.xlu0 %797
  %799 = vrot.lane.b32.xlu0 %v210, 4
  %v800 = vpop.permute.xlu0 %799
  %801 = vrot.lane.b32.xlu0 %v211, 4
  %v802 = vpop.permute.xlu0 %801
  %803 = vrot.lane.b32.xlu0 %v212, 4
  %v804 = vpop.permute.xlu0 %803
  %805 = vrot.lane.b32.xlu0 %v213, 4
  %v806 = vpop.permute.xlu0 %805
  %807 = vrot.lane.b32.xlu0 %v214, 4
  %v808 = vpop.permute.xlu0 %807
  %809 = vrot.lane.b32.xlu0 %v215, 4
  %v810 = vpop.permute.xlu0 %809
  %811 = vrot.lane.b32.xlu0 %v216, 4
  %v812 = vpop.permute.xlu0 %811
  %813 = vrot.lane.b32.xlu0 %v217, 4
  %v814 = vpop.permute.xlu0 %813
  %815 = vrot.lane.b32.xlu0 %v218, 4
  %v816 = vpop.permute.xlu0 %815
  %817 = vrot.lane.b32.xlu0 %v219, 4
  %v818 = vpop.permute.xlu0 %817
  %819 = vrot.lane.b32.xlu0 %v220, 4
  %v820 = vpop.permute.xlu0 %819
  %821 = vrot.lane.b32.xlu0 %v221, 4
  %v822 = vpop.permute.xlu0 %821
  %823 = vrot.lane.b32.xlu0 %v222, 4
  %v824 = vpop.permute.xlu0 %823
  %825 = vrot.lane.b32.xlu0 %v223, 4
  %v826 = vpop.permute.xlu0 %825
  %827 = vrot.lane.b32.xlu0 %v224, 4
  %v828 = vpop.permute.xlu0 %827
  %829 = vrot.lane.b32.xlu0 %v225, 4
  %v830 = vpop.permute.xlu0 %829
  %831 = vrot.lane.b32.xlu0 %v226, 4
  %v832 = vpop.permute.xlu0 %831
  %833 = vrot.lane.b32.xlu0 %v227, 4
  %v834 = vpop.permute.xlu0 %833
  %835 = vrot.lane.b32.xlu0 %v228, 4
  %v836 = vpop.permute.xlu0 %835
  %837 = vrot.lane.b32.xlu0 %v229, 4
  %v838 = vpop.permute.xlu0 %837
  %839 = vrot.lane.b32.xlu0 %v230, 4
  %v840 = vpop.permute.xlu0 %839
  %841 = vrot.lane.b32.xlu0 %v231, 4
  %v842 = vpop.permute.xlu0 %841
  %843 = vrot.lane.b32.xlu0 %v232, 4
  %v844 = vpop.permute.xlu0 %843
  %845 = vrot.lane.b32.xlu0 %v233, 4
  %v846 = vpop.permute.xlu0 %845
  %847 = vrot.lane.b32.xlu0 %v234, 4
  %v848 = vpop.permute.xlu0 %847
  %849 = vrot.lane.b32.xlu0 %v235, 4
  %v850 = vpop.permute.xlu0 %849
  %851 = vrot.lane.b32.xlu0 %v236, 4
  %v852 = vpop.permute.xlu0 %851
  %853 = vrot.lane.b32.xlu0 %v237, 4
  %v854 = vpop.permute.xlu0 %853
  %855 = vrot.lane.b32.xlu0 %v238, 4
  %v856 = vpop.permute.xlu0 %855
  %857 = vrot.lane.b32.xlu0 %v239, 4
  %v858 = vpop.permute.xlu0 %857
  %859 = vrot.lane.b32.xlu0 %v240, 4
  %v860 = vpop.permute.xlu0 %859
  %861 = vrot.lane.b32.xlu0 %v241, 4
  %v862 = vpop.permute.xlu0 %861
  %863 = vrot.lane.b32.xlu0 %v242, 4
  %v864 = vpop.permute.xlu0 %863
  %865 = vrot.lane.b32.xlu0 %v243, 4
  %v866 = vpop.permute.xlu0 %865
  %867 = vrot.lane.b32.xlu0 %v244, 4
  %v868 = vpop.permute.xlu0 %867
  %869 = vrot.lane.b32.xlu0 %v245, 4
  %v870 = vpop.permute.xlu0 %869
  %871 = vrot.lane.b32.xlu0 %v246, 4
  %v872 = vpop.permute.xlu0 %871
  %873 = vrot.lane.b32.xlu0 %v247, 4
  %v874 = vpop.permute.xlu0 %873
  %875 = vrot.lane.b32.xlu0 %v248, 4
  %v876 = vpop.permute.xlu0 %875
  %877 = vrot.lane.b32.xlu0 %v249, 4
  %v878 = vpop.permute.xlu0 %877
  %879 = vrot.lane.b32.xlu0 %v250, 4
  %v880 = vpop.permute.xlu0 %879
  %881 = vrot.lane.b32.xlu0 %v251, 4
  %v882 = vpop.permute.xlu0 %881
  %883 = vrot.lane.b32.xlu0 %v252, 4
  %v884 = vpop.permute.xlu0 %883
  %885 = vrot.lane.b32.xlu0 %v253, 4
  %v886 = vpop.permute.xlu0 %885
  %887 = vrot.lane.b32.xlu0 %v254, 4
  %v888 = vpop.permute.xlu0 %887
  %889 = vrot.lane.b32.xlu0 %v255, 4
  %v890 = vpop.permute.xlu0 %889
  %891 = vrot.lane.b32.xlu0 %v256, 4
  %v892 = vpop.permute.xlu0 %891
  %893 = vrot.lane.b32.xlu0 %v257, 4
  %v894 = vpop.permute.xlu0 %893
  %895 = vrot.lane.b32.xlu0 %v258, 4
  %v896 = vpop.permute.xlu0 %895
  %897 = vrot.lane.b32.xlu0 %v259, 4
  %v898 = vpop.permute.xlu0 %897
  %899 = vrot.lane.b32.xlu0 %v260, 4
  %v900 = vpop.permute.xlu0 %899
  %901 = vrot.lane.b32.xlu0 %v261, 4
  %v902 = vpop.permute.xlu0 %901
  %903 = vrot.lane.b32.xlu0 %v262, 4
  %v904 = vpop.permute.xlu0 %903
  %905 = vrot.lane.b32.xlu0 %v263, 4
  %v906 = vpop.permute.xlu0 %905
  %907 = vrot.lane.b32.xlu0 %v264, 4
  %v908 = vpop.permute.xlu0 %907
  %909 = vrot.lane.b32.xlu0 %v265, 4
  %v910 = vpop.permute.xlu0 %909
  %911 = vrot.lane.b32.xlu0 %v266, 4
  %v912 = vpop.permute.xlu0 %911
  %913 = vrot.lane.b32.xlu0 %v267, 4
  %v914 = vpop.permute.xlu0 %913
  %915 = vrot.lane.b32.xlu0 %v268, 4
  %v916 = vpop.permute.xlu0 %915
  %917 = vrot.lane.b32.xlu0 %v269, 4
  %v918 = vpop.permute.xlu0 %917
  %919 = vrot.lane.b32.xlu0 %v270, 4
  %v920 = vpop.permute.xlu0 %919
  %921 = vrot.lane.b32.xlu0 %v271, 4
  %v922 = vpop.permute.xlu0 %921
  %923 = vrot.lane.b32.xlu0 %v272, 4
  %v924 = vpop.permute.xlu0 %923
  %1087 = vrot.lane.b32.xlu0 %v273, 8
  %v1088 = vpop.permute.xlu0 %1087
  %1089 = vrot.lane.b32.xlu0 %v274, 8
  %v1090 = vpop.permute.xlu0 %1089
  %1091 = vrot.lane.b32.xlu0 %v275, 8
  %v1092 = vpop.permute.xlu0 %1091
  %1093 = vrot.lane.b32.xlu0 %v276, 8
  %v1094 = vpop.permute.xlu0 %1093
  %1095 = vrot.lane.b32.xlu0 %v277, 8
  %v1096 = vpop.permute.xlu0 %1095
  %1097 = vrot.lane.b32.xlu0 %v278, 8
  %v1098 = vpop.permute.xlu0 %1097
  %1099 = vrot.lane.b32.xlu0 %v279, 8
  %v1100 = vpop.permute.xlu0 %1099
  %1101 = vrot.lane.b32.xlu0 %v280, 8
  %v1102 = vpop.permute.xlu0 %1101
  %1103 = vrot.lane.b32.xlu0 %v281, 8
  %v1104 = vpop.permute.xlu0 %1103
  %1105 = vrot.lane.b32.xlu0 %v282, 8
  %v1106 = vpop.permute.xlu0 %1105
  %1107 = vrot.lane.b32.xlu0 %v283, 8
  %v1108 = vpop.permute.xlu0 %1107
  %1109 = vrot.lane.b32.xlu0 %v284, 8
  %v1110 = vpop.permute.xlu0 %1109
  %1111 = vrot.lane.b32.xlu0 %v285, 8
  %v1112 = vpop.permute.xlu0 %1111
  %1113 = vrot.lane.b32.xlu0 %v286, 8
  %v1114 = vpop.permute.xlu0 %1113
  %1115 = vrot.lane.b32.xlu0 %v287, 8
  %v1116 = vpop.permute.xlu0 %1115
  %1117 = vrot.lane.b32.xlu0 %v288, 8
  %v1118 = vpop.permute.xlu0 %1117
  %1119 = vrot.lane.b32.xlu0 %v289, 8
  %v1120 = vpop.permute.xlu0 %1119
  %1121 = vrot.lane.b32.xlu0 %v290, 8
  %v1122 = vpop.permute.xlu0 %1121
  %1123 = vrot.lane.b32.xlu0 %v291, 8
  %v1124 = vpop.permute.xlu0 %1123
  %1125 = vrot.lane.b32.xlu0 %v292, 8
  %v1126 = vpop.permute.xlu0 %1125
  %1127 = vrot.lane.b32.xlu0 %v293, 8
  %v1128 = vpop.permute.xlu0 %1127
  %1129 = vrot.lane.b32.xlu0 %v294, 8
  %v1130 = vpop.permute.xlu0 %1129
  %1131 = vrot.lane.b32.xlu0 %v295, 8
  %v1132 = vpop.permute.xlu0 %1131
  %1133 = vrot.lane.b32.xlu0 %v296, 8
  %v1134 = vpop.permute.xlu0 %1133
  %1135 = vrot.lane.b32.xlu0 %v297, 8
  %v1136 = vpop.permute.xlu0 %1135
  %1137 = vrot.lane.b32.xlu0 %v298, 8
  %v1138 = vpop.permute.xlu0 %1137
  %1139 = vrot.lane.b32.xlu0 %v299, 8
  %v1140 = vpop.permute.xlu0 %1139
  %1141 = vrot.lane.b32.xlu0 %v300, 8
  %v1142 = vpop.permute.xlu0 %1141
  %1143 = vrot.lane.b32.xlu0 %v301, 8
  %v1144 = vpop.permute.xlu0 %1143
  %1145 = vrot.lane.b32.xlu0 %v302, 8
  %v1146 = vpop.permute.xlu0 %1145
  %1147 = vrot.lane.b32.xlu0 %v303, 8
  %v1148 = vpop.permute.xlu0 %1147
  %1149 = vrot.lane.b32.xlu0 %v304, 8
  %v1150 = vpop.permute.xlu0 %1149
  %1151 = vrot.lane.b32.xlu0 %v305, 8
  %v1152 = vpop.permute.xlu0 %1151
  %1153 = vrot.lane.b32.xlu0 %v306, 8
  %v1154 = vpop.permute.xlu0 %1153
  %1155 = vrot.lane.b32.xlu0 %v307, 8
  %v1156 = vpop.permute.xlu0 %1155
  %1157 = vrot.lane.b32.xlu0 %v308, 8
  %v1158 = vpop.permute.xlu0 %1157
  %1159 = vrot.lane.b32.xlu0 %v309, 8
  %v1160 = vpop.permute.xlu0 %1159
  %1161 = vrot.lane.b32.xlu0 %v310, 8
  %v1162 = vpop.permute.xlu0 %1161
  %1163 = vrot.lane.b32.xlu0 %v311, 8
  %v1164 = vpop.permute.xlu0 %1163
  %1165 = vrot.lane.b32.xlu0 %v312, 8
  %v1166 = vpop.permute.xlu0 %1165
  %1167 = vrot.lane.b32.xlu0 %v313, 8
  %v1168 = vpop.permute.xlu0 %1167
  %1169 = vrot.lane.b32.xlu0 %v314, 8
  %v1170 = vpop.permute.xlu0 %1169
  %1171 = vrot.lane.b32.xlu0 %v315, 8
  %v1172 = vpop.permute.xlu0 %1171
  %1173 = vrot.lane.b32.xlu0 %v316, 8
  %v1174 = vpop.permute.xlu0 %1173
  %1175 = vrot.lane.b32.xlu0 %v317, 8
  %v1176 = vpop.permute.xlu0 %1175
  %1177 = vrot.lane.b32.xlu0 %v318, 8
  %v1178 = vpop.permute.xlu0 %1177
  %1179 = vrot.lane.b32.xlu0 %v319, 8
  %v1180 = vpop.permute.xlu0 %1179
  %1181 = vrot.lane.b32.xlu0 %v320, 8
  %v1182 = vpop.permute.xlu0 %1181
  %1183 = vrot.lane.b32.xlu0 %v321, 8
  %v1184 = vpop.permute.xlu0 %1183
  %1185 = vrot.lane.b32.xlu0 %v322, 8
  %v1186 = vpop.permute.xlu0 %1185
  %1187 = vrot.lane.b32.xlu0 %v323, 8
  %v1188 = vpop.permute.xlu0 %1187
  %1189 = vrot.lane.b32.xlu0 %v324, 8
  %v1190 = vpop.permute.xlu0 %1189
  %1191 = vrot.lane.b32.xlu0 %v325, 8
  %v1192 = vpop.permute.xlu0 %1191
  %1193 = vrot.lane.b32.xlu0 %v326, 8
  %v1194 = vpop.permute.xlu0 %1193
  %1195 = vrot.lane.b32.xlu0 %v327, 8
  %v1196 = vpop.permute.xlu0 %1195
  %1197 = vrot.lane.b32.xlu0 %v328, 8
  %v1198 = vpop.permute.xlu0 %1197
  %1199 = vrot.lane.b32.xlu0 %v329, 8
  %v1200 = vpop.permute.xlu0 %1199
  %1201 = vrot.lane.b32.xlu0 %v330, 8
  %v1202 = vpop.permute.xlu0 %1201
  %1203 = vrot.lane.b32.xlu0 %v331, 8
  %v1204 = vpop.permute.xlu0 %1203
  %1205 = vrot.lane.b32.xlu0 %v332, 8
  %v1206 = vpop.permute.xlu0 %1205
  %1207 = vrot.lane.b32.xlu0 %v333, 8
  %v1208 = vpop.permute.xlu0 %1207
  %1209 = vrot.lane.b32.xlu0 %v334, 8
  %v1210 = vpop.permute.xlu0 %1209
  %1211 = vrot.lane.b32.xlu0 %v335, 8
  %v1212 = vpop.permute.xlu0 %1211
  %1213 = vrot.lane.b32.xlu0 %v336, 8
  %v1214 = vpop.permute.xlu0 %1213
  %1215 = vrot.lane.b32.xlu0 %v337, 8
  %v1216 = vpop.permute.xlu0 %1215
  %1217 = vrot.lane.b32.xlu0 %v338, 8
  %v1218 = vpop.permute.xlu0 %1217
  %1219 = vrot.lane.b32.xlu0 %v339, 8
  %v1220 = vpop.permute.xlu0 %1219
  %1221 = vrot.lane.b32.xlu0 %v340, 8
  %v1222 = vpop.permute.xlu0 %1221
  %1223 = vrot.lane.b32.xlu0 %v341, 8
  %v1224 = vpop.permute.xlu0 %1223
  %1225 = vrot.lane.b32.xlu0 %v342, 8
  %v1226 = vpop.permute.xlu0 %1225
  %1227 = vrot.lane.b32.xlu0 %v343, 8
  %v1228 = vpop.permute.xlu0 %1227
  %1229 = vrot.lane.b32.xlu0 %v344, 8
  %v1230 = vpop.permute.xlu0 %1229
  %1231 = vrot.lane.b32.xlu0 %v345, 8
  %v1232 = vpop.permute.xlu0 %1231
  %1233 = vrot.lane.b32.xlu0 %v346, 8
  %v1234 = vpop.permute.xlu0 %1233
  %1235 = vrot.lane.b32.xlu0 %v347, 8
  %v1236 = vpop.permute.xlu0 %1235
  %1237 = vrot.lane.b32.xlu0 %v348, 8
  %v1238 = vpop.permute.xlu0 %1237
  %1239 = vrot.lane.b32.xlu0 %v349, 8
  %v1240 = vpop.permute.xlu0 %1239
  %1241 = vrot.lane.b32.xlu0 %v350, 8
  %v1242 = vpop.permute.xlu0 %1241
  %1243 = vrot.lane.b32.xlu0 %v351, 8
  %v1244 = vpop.permute.xlu0 %1243
  %1245 = vrot.lane.b32.xlu0 %v352, 8
  %v1246 = vpop.permute.xlu0 %1245
  %1247 = vrot.lane.b32.xlu0 %v353, 8
  %v1248 = vpop.permute.xlu0 %1247
  %1332 = vrot.lane.b32.xlu0 %v275, 12
  %v1333 = vpop.permute.xlu0 %1332
  %1334 = vrot.lane.b32.xlu0 %v276, 12
  %v1335 = vpop.permute.xlu0 %1334
  %1336 = vrot.lane.b32.xlu0 %v277, 12
  %v1337 = vpop.permute.xlu0 %1336
  %1338 = vrot.lane.b32.xlu0 %v278, 12
  %v1339 = vpop.permute.xlu0 %1338
  %1340 = vrot.lane.b32.xlu0 %v279, 12
  %v1341 = vpop.permute.xlu0 %1340
  %1342 = vrot.lane.b32.xlu0 %v280, 12
  %v1343 = vpop.permute.xlu0 %1342
  %1344 = vrot.lane.b32.xlu0 %v281, 12
  %v1345 = vpop.permute.xlu0 %1344
  %1346 = vrot.lane.b32.xlu0 %v282, 12
  %v1347 = vpop.permute.xlu0 %1346
  %1348 = vrot.lane.b32.xlu0 %v283, 12
  %v1349 = vpop.permute.xlu0 %1348
  %1350 = vrot.lane.b32.xlu0 %v284, 12
  %v1351 = vpop.permute.xlu0 %1350
  %1352 = vrot.lane.b32.xlu0 %v285, 12
  %v1353 = vpop.permute.xlu0 %1352
  %1354 = vrot.lane.b32.xlu0 %v286, 12
  %v1355 = vpop.permute.xlu0 %1354
  %1356 = vrot.lane.b32.xlu0 %v287, 12
  %v1357 = vpop.permute.xlu0 %1356
  %1358 = vrot.lane.b32.xlu0 %v288, 12
  %v1359 = vpop.permute.xlu0 %1358
  %1360 = vrot.lane.b32.xlu0 %v289, 12
  %v1361 = vpop.permute.xlu0 %1360
  %1362 = vrot.lane.b32.xlu0 %v290, 12
  %v1363 = vpop.permute.xlu0 %1362
  %1364 = vrot.lane.b32.xlu0 %v291, 12
  %v1365 = vpop.permute.xlu0 %1364
  %1366 = vrot.lane.b32.xlu0 %v292, 12
  %v1367 = vpop.permute.xlu0 %1366
  %1368 = vrot.lane.b32.xlu0 %v293, 12
  %v1369 = vpop.permute.xlu0 %1368
  %1370 = vrot.lane.b32.xlu0 %v294, 12
  %v1371 = vpop.permute.xlu0 %1370
  %1372 = vrot.lane.b32.xlu0 %v295, 12
  %v1373 = vpop.permute.xlu0 %1372
  %1374 = vrot.lane.b32.xlu0 %v296, 12
  %v1375 = vpop.permute.xlu0 %1374
  %1376 = vrot.lane.b32.xlu0 %v297, 12
  %v1377 = vpop.permute.xlu0 %1376
  %1378 = vrot.lane.b32.xlu0 %v298, 12
  %v1379 = vpop.permute.xlu0 %1378
  %1380 = vrot.lane.b32.xlu0 %v299, 12
  %v1381 = vpop.permute.xlu0 %1380
  %1382 = vrot.lane.b32.xlu0 %v300, 12
  %v1383 = vpop.permute.xlu0 %1382
  %1384 = vrot.lane.b32.xlu0 %v301, 12
  %v1385 = vpop.permute.xlu0 %1384
  %1386 = vrot.lane.b32.xlu0 %v302, 12
  %v1387 = vpop.permute.xlu0 %1386
  %1388 = vrot.lane.b32.xlu0 %v303, 12
  %v1389 = vpop.permute.xlu0 %1388
  %1390 = vrot.lane.b32.xlu0 %v304, 12
  %v1391 = vpop.permute.xlu0 %1390
  %1392 = vrot.lane.b32.xlu0 %v305, 12
  %v1393 = vpop.permute.xlu0 %1392
  %1394 = vrot.lane.b32.xlu0 %v306, 12
  %v1395 = vpop.permute.xlu0 %1394
  %1396 = vrot.lane.b32.xlu0 %v307, 12
  %v1397 = vpop.permute.xlu0 %1396
  %1398 = vrot.lane.b32.xlu0 %v308, 12
  %v1399 = vpop.permute.xlu0 %1398
  %1400 = vrot.lane.b32.xlu0 %v309, 12
  %v1401 = vpop.permute.xlu0 %1400
  %1402 = vrot.lane.b32.xlu0 %v310, 12
  %v1403 = vpop.permute.xlu0 %1402
  %1404 = vrot.lane.b32.xlu0 %v311, 12
  %v1405 = vpop.permute.xlu0 %1404
  %1406 = vrot.lane.b32.xlu0 %v312, 12
  %v1407 = vpop.permute.xlu0 %1406
  %1408 = vrot.lane.b32.xlu0 %v313, 12
  %v1409 = vpop.permute.xlu0 %1408
  %1410 = vrot.lane.b32.xlu0 %v314, 12
  %v1411 = vpop.permute.xlu0 %1410
  %1412 = vrot.lane.b32.xlu0 %v315, 12
  %v1413 = vpop.permute.xlu0 %1412
  %1414 = vrot.lane.b32.xlu0 %v316, 12
  %v1415 = vpop.permute.xlu0 %1414
  %1416 = vrot.lane.b32.xlu0 %v317, 12
  %v1417 = vpop.permute.xlu0 %1416
  %1418 = vrot.lane.b32.xlu0 %v318, 12
  %v1419 = vpop.permute.xlu0 %1418
  %1420 = vrot.lane.b32.xlu0 %v319, 12
  %v1421 = vpop.permute.xlu0 %1420
  %1422 = vrot.lane.b32.xlu0 %v320, 12
  %v1423 = vpop.permute.xlu0 %1422
  %1424 = vrot.lane.b32.xlu0 %v321, 12
  %v1425 = vpop.permute.xlu0 %1424
  %1426 = vrot.lane.b32.xlu0 %v322, 12
  %v1427 = vpop.permute.xlu0 %1426
  %1428 = vrot.lane.b32.xlu0 %v323, 12
  %v1429 = vpop.permute.xlu0 %1428
  %1430 = vrot.lane.b32.xlu0 %v324, 12
  %v1431 = vpop.permute.xlu0 %1430
  %1432 = vrot.lane.b32.xlu0 %v325, 12
  %v1433 = vpop.permute.xlu0 %1432
  %1434 = vrot.lane.b32.xlu0 %v326, 12
  %v1435 = vpop.permute.xlu0 %1434
  %1436 = vrot.lane.b32.xlu0 %v327, 12
  %v1437 = vpop.permute.xlu0 %1436
  %1438 = vrot.lane.b32.xlu0 %v328, 12
  %v1439 = vpop.permute.xlu0 %1438
  %1440 = vrot.lane.b32.xlu0 %v329, 12
  %v1441 = vpop.permute.xlu0 %1440
  %1442 = vrot.lane.b32.xlu0 %v330, 12
  %v1443 = vpop.permute.xlu0 %1442
  %1444 = vrot.lane.b32.xlu0 %v331, 12
  %v1445 = vpop.permute.xlu0 %1444
  %1446 = vrot.lane.b32.xlu0 %v332, 12
  %v1447 = vpop.permute.xlu0 %1446
  %1448 = vrot.lane.b32.xlu0 %v333, 12
  %v1449 = vpop.permute.xlu0 %1448
  %1450 = vrot.lane.b32.xlu0 %v334, 12
  %v1451 = vpop.permute.xlu0 %1450
  %1452 = vrot.lane.b32.xlu0 %v335, 12
  %v1453 = vpop.permute.xlu0 %1452
  %1454 = vrot.lane.b32.xlu0 %v336, 12
  %v1455 = vpop.permute.xlu0 %1454
  %1456 = vrot.lane.b32.xlu0 %v337, 12
  %v1457 = vpop.permute.xlu0 %1456
  %1458 = vrot.lane.b32.xlu0 %v338, 12
  %v1459 = vpop.permute.xlu0 %1458
  %1460 = vrot.lane.b32.xlu0 %v339, 12
  %v1461 = vpop.permute.xlu0 %1460
  %1462 = vrot.lane.b32.xlu0 %v340, 12
  %v1463 = vpop.permute.xlu0 %1462
  %1464 = vrot.lane.b32.xlu0 %v341, 12
  %v1465 = vpop.permute.xlu0 %1464
  %1466 = vrot.lane.b32.xlu0 %v342, 12
  %v1467 = vpop.permute.xlu0 %1466
  %1468 = vrot.lane.b32.xlu0 %v343, 12
  %v1469 = vpop.permute.xlu0 %1468
  %1470 = vrot.lane.b32.xlu0 %v344, 12
  %v1471 = vpop.permute.xlu0 %1470
  %1472 = vrot.lane.b32.xlu0 %v345, 12
  %v1473 = vpop.permute.xlu0 %1472
  %1474 = vrot.lane.b32.xlu0 %v346, 12
  %v1475 = vpop.permute.xlu0 %1474
  %1476 = vrot.lane.b32.xlu0 %v347, 12
  %v1477 = vpop.permute.xlu0 %1476
  %1478 = vrot.lane.b32.xlu0 %v348, 12
  %v1479 = vpop.permute.xlu0 %1478
  %1480 = vrot.lane.b32.xlu0 %v349, 12
  %v1481 = vpop.permute.xlu0 %1480
  %1482 = vrot.lane.b32.xlu0 %v350, 12
  %v1483 = vpop.permute.xlu0 %1482
  %1484 = vrot.lane.b32.xlu0 %v351, 12
  %v1485 = vpop.permute.xlu0 %1484
  %1486 = vrot.lane.b32.xlu0 %v352, 12
  %v1487 = vpop.permute.xlu0 %1486
  %1488 = vrot.lane.b32.xlu0 %v353, 12
  %v1489 = vpop.permute.xlu0 %1488
  %1490 = vrot.lane.b32.xlu0 %v354, 12
  %v1491 = vpop.permute.xlu0 %1490
  %1492 = vrot.lane.b32.xlu0 %v355, 12
  %v1493 = vpop.permute.xlu0 %1492
  %1656 = vrot.lane.b32.xlu0 %v356, 16
  %v1657 = vpop.permute.xlu0 %1656
  %1658 = vrot.lane.b32.xlu0 %v357, 16
  %v1659 = vpop.permute.xlu0 %1658
  %1660 = vrot.lane.b32.xlu0 %v358, 16
  %v1661 = vpop.permute.xlu0 %1660
  %1662 = vrot.lane.b32.xlu0 %v359, 16
  %v1663 = vpop.permute.xlu0 %1662
  %1664 = vrot.lane.b32.xlu0 %v360, 16
  %v1665 = vpop.permute.xlu0 %1664
  %1666 = vrot.lane.b32.xlu0 %v361, 16
  %v1667 = vpop.permute.xlu0 %1666
  %1668 = vrot.lane.b32.xlu0 %v362, 16
  %v1669 = vpop.permute.xlu0 %1668
  %1670 = vrot.lane.b32.xlu0 %v363, 16
  %v1671 = vpop.permute.xlu0 %1670
  %1672 = vrot.lane.b32.xlu0 %v364, 16
  %v1673 = vpop.permute.xlu0 %1672
  %1674 = vrot.lane.b32.xlu0 %v365, 16
  %v1675 = vpop.permute.xlu0 %1674
  %1676 = vrot.lane.b32.xlu0 %v366, 16
  %v1677 = vpop.permute.xlu0 %1676
  %1678 = vrot.lane.b32.xlu0 %v367, 16
  %v1679 = vpop.permute.xlu0 %1678
  %1680 = vrot.lane.b32.xlu0 %v368, 16
  %v1681 = vpop.permute.xlu0 %1680
  %1682 = vrot.lane.b32.xlu0 %v369, 16
  %v1683 = vpop.permute.xlu0 %1682
  %1684 = vrot.lane.b32.xlu0 %v370, 16
  %v1685 = vpop.permute.xlu0 %1684
  %1686 = vrot.lane.b32.xlu0 %v371, 16
  %v1687 = vpop.permute.xlu0 %1686
  %1688 = vrot.lane.b32.xlu0 %v372, 16
  %v1689 = vpop.permute.xlu0 %1688
  %1690 = vrot.lane.b32.xlu0 %v373, 16
  %v1691 = vpop.permute.xlu0 %1690
  %1692 = vrot.lane.b32.xlu0 %v374, 16
  %v1693 = vpop.permute.xlu0 %1692
  %1694 = vrot.lane.b32.xlu0 %v375, 16
  %v1695 = vpop.permute.xlu0 %1694
  %1696 = vrot.lane.b32.xlu0 %v376, 16
  %v1697 = vpop.permute.xlu0 %1696
  %1698 = vrot.lane.b32.xlu0 %v377, 16
  %v1699 = vpop.permute.xlu0 %1698
  %1700 = vrot.lane.b32.xlu0 %v378, 16
  %v1701 = vpop.permute.xlu0 %1700
  %1702 = vrot.lane.b32.xlu0 %v379, 16
  %v1703 = vpop.permute.xlu0 %1702
  %1704 = vrot.lane.b32.xlu0 %v380, 16
  %v1705 = vpop.permute.xlu0 %1704
  %1706 = vrot.lane.b32.xlu0 %v381, 16
  %v1707 = vpop.permute.xlu0 %1706
  %1708 = vrot.lane.b32.xlu0 %v382, 16
  %v1709 = vpop.permute.xlu0 %1708
  %1710 = vrot.lane.b32.xlu0 %v383, 16
  %v1711 = vpop.permute.xlu0 %1710
  %1712 = vrot.lane.b32.xlu0 %v384, 16
  %v1713 = vpop.permute.xlu0 %1712
  %1714 = vrot.lane.b32.xlu0 %v385, 16
  %v1715 = vpop.permute.xlu0 %1714
  %1716 = vrot.lane.b32.xlu0 %v386, 16
  %v1717 = vpop.permute.xlu0 %1716
  %1718 = vrot.lane.b32.xlu0 %v387, 16
  %v1719 = vpop.permute.xlu0 %1718
  %1720 = vrot.lane.b32.xlu0 %v388, 16
  %v1721 = vpop.permute.xlu0 %1720
  %1722 = vrot.lane.b32.xlu0 %v389, 16
  %v1723 = vpop.permute.xlu0 %1722
  %1724 = vrot.lane.b32.xlu0 %v390, 16
  %v1725 = vpop.permute.xlu0 %1724
  %1726 = vrot.lane.b32.xlu0 %v391, 16
  %v1727 = vpop.permute.xlu0 %1726
  %1728 = vrot.lane.b32.xlu0 %v392, 16
  %v1729 = vpop.permute.xlu0 %1728
  %1730 = vrot.lane.b32.xlu0 %v393, 16
  %v1731 = vpop.permute.xlu0 %1730
  %1732 = vrot.lane.b32.xlu0 %v394, 16
  %v1733 = vpop.permute.xlu0 %1732
  %1734 = vrot.lane.b32.xlu0 %v395, 16
  %v1735 = vpop.permute.xlu0 %1734
  %1736 = vrot.lane.b32.xlu0 %v396, 16
  %v1737 = vpop.permute.xlu0 %1736
  %1738 = vrot.lane.b32.xlu0 %v397, 16
  %v1739 = vpop.permute.xlu0 %1738
  %1740 = vrot.lane.b32.xlu0 %v398, 16
  %v1741 = vpop.permute.xlu0 %1740
  %1742 = vrot.lane.b32.xlu0 %v399, 16
  %v1743 = vpop.permute.xlu0 %1742
  %1744 = vrot.lane.b32.xlu0 %v400, 16
  %v1745 = vpop.permute.xlu0 %1744
  %1746 = vrot.lane.b32.xlu0 %v401, 16
  %v1747 = vpop.permute.xlu0 %1746
  %1748 = vrot.lane.b32.xlu0 %v402, 16
  %v1749 = vpop.permute.xlu0 %1748
  %1750 = vrot.lane.b32.xlu0 %v403, 16
  %v1751 = vpop.permute.xlu0 %1750
  %1752 = vrot.lane.b32.xlu0 %v404, 16
  %v1753 = vpop.permute.xlu0 %1752
  %1754 = vrot.lane.b32.xlu0 %v405, 16
  %v1755 = vpop.permute.xlu0 %1754
  %1756 = vrot.lane.b32.xlu0 %v406, 16
  %v1757 = vpop.permute.xlu0 %1756
  %1758 = vrot.lane.b32.xlu0 %v407, 16
  %v1759 = vpop.permute.xlu0 %1758
  %1760 = vrot.lane.b32.xlu0 %v408, 16
  %v1761 = vpop.permute.xlu0 %1760
  %1762 = vrot.lane.b32.xlu0 %v409, 16
  %v1763 = vpop.permute.xlu0 %1762
  %1764 = vrot.lane.b32.xlu0 %v410, 16
  %v1765 = vpop.permute.xlu0 %1764
  %1766 = vrot.lane.b32.xlu0 %v411, 16
  %v1767 = vpop.permute.xlu0 %1766
  %1768 = vrot.lane.b32.xlu0 %v412, 16
  %v1769 = vpop.permute.xlu0 %1768
  %1770 = vrot.lane.b32.xlu0 %v413, 16
  %v1771 = vpop.permute.xlu0 %1770
  %1772 = vrot.lane.b32.xlu0 %v414, 16
  %v1773 = vpop.permute.xlu0 %1772
  %1774 = vrot.lane.b32.xlu0 %v415, 16
  %v1775 = vpop.permute.xlu0 %1774
  %1776 = vrot.lane.b32.xlu0 %v416, 16
  %v1777 = vpop.permute.xlu0 %1776
  %1778 = vrot.lane.b32.xlu0 %v417, 16
  %v1779 = vpop.permute.xlu0 %1778
  %1780 = vrot.lane.b32.xlu0 %v418, 16
  %v1781 = vpop.permute.xlu0 %1780
  %1782 = vrot.lane.b32.xlu0 %v419, 16
  %v1783 = vpop.permute.xlu0 %1782
  %1784 = vrot.lane.b32.xlu0 %v420, 16
  %v1785 = vpop.permute.xlu0 %1784
  %1786 = vrot.lane.b32.xlu0 %v421, 16
  %v1787 = vpop.permute.xlu0 %1786
  %1788 = vrot.lane.b32.xlu0 %v422, 16
  %v1789 = vpop.permute.xlu0 %1788
  %1790 = vrot.lane.b32.xlu0 %v423, 16
  %v1791 = vpop.permute.xlu0 %1790
  %1792 = vrot.lane.b32.xlu0 %v424, 16
  %v1793 = vpop.permute.xlu0 %1792
  %1794 = vrot.lane.b32.xlu0 %v425, 16
  %v1795 = vpop.permute.xlu0 %1794
  %1796 = vrot.lane.b32.xlu0 %v426, 16
  %v1797 = vpop.permute.xlu0 %1796
  %1798 = vrot.lane.b32.xlu0 %v427, 16
  %v1799 = vpop.permute.xlu0 %1798
  %1800 = vrot.lane.b32.xlu0 %v428, 16
  %v1801 = vpop.permute.xlu0 %1800
  %1802 = vrot.lane.b32.xlu0 %v429, 16
  %v1803 = vpop.permute.xlu0 %1802
  %1804 = vrot.lane.b32.xlu0 %v430, 16
  %v1805 = vpop.permute.xlu0 %1804
  %1806 = vrot.lane.b32.xlu0 %v431, 16
  %v1807 = vpop.permute.xlu0 %1806
  %1808 = vrot.lane.b32.xlu0 %v432, 16
  %v1809 = vpop.permute.xlu0 %1808
  %1810 = vrot.lane.b32.xlu0 %v433, 16
  %v1811 = vpop.permute.xlu0 %1810
  %1812 = vrot.lane.b32.xlu0 %v434, 16
  %v1813 = vpop.permute.xlu0 %1812
  %1814 = vrot.lane.b32.xlu0 %v435, 16
  %v1815 = vpop.permute.xlu0 %1814
  %1816 = vrot.lane.b32.xlu0 %v436, 16
  %v1817 = vpop.permute.xlu0 %1816
  %1980 = vrot.lane.b32.xlu0 %v437, 20
  %v1981 = vpop.permute.xlu0 %1980
  %1982 = vrot.lane.b32.xlu0 %v438, 20
  %v1983 = vpop.permute.xlu0 %1982
  %1984 = vrot.lane.b32.xlu0 %v439, 20
  %v1985 = vpop.permute.xlu0 %1984
  %1986 = vrot.lane.b32.xlu0 %v440, 20
  %v1987 = vpop.permute.xlu0 %1986
  %1988 = vrot.lane.b32.xlu0 %v441, 20
  %v1989 = vpop.permute.xlu0 %1988
  %1990 = vrot.lane.b32.xlu0 %v442, 20
  %v1991 = vpop.permute.xlu0 %1990
  %1992 = vrot.lane.b32.xlu0 %v443, 20
  %v1993 = vpop.permute.xlu0 %1992
  %1994 = vrot.lane.b32.xlu0 %v444, 20
  %v1995 = vpop.permute.xlu0 %1994
  %1996 = vrot.lane.b32.xlu0 %v445, 20
  %v1997 = vpop.permute.xlu0 %1996
  %1998 = vrot.lane.b32.xlu0 %v446, 20
  %v1999 = vpop.permute.xlu0 %1998
  %2000 = vrot.lane.b32.xlu0 %v447, 20
  %v2001 = vpop.permute.xlu0 %2000
  %2002 = vrot.lane.b32.xlu0 %v448, 20
  %v2003 = vpop.permute.xlu0 %2002
  %2004 = vrot.lane.b32.xlu0 %v449, 20
  %v2005 = vpop.permute.xlu0 %2004
  %2006 = vrot.lane.b32.xlu0 %v450, 20
  %v2007 = vpop.permute.xlu0 %2006
  %2008 = vrot.lane.b32.xlu0 %v451, 20
  %v2009 = vpop.permute.xlu0 %2008
  %2010 = vrot.lane.b32.xlu0 %v452, 20
  %v2011 = vpop.permute.xlu0 %2010
  %2012 = vrot.lane.b32.xlu0 %v453, 20
  %v2013 = vpop.permute.xlu0 %2012
  %2014 = vrot.lane.b32.xlu0 %v454, 20
  %v2015 = vpop.permute.xlu0 %2014
  %2016 = vrot.lane.b32.xlu0 %v455, 20
  %v2017 = vpop.permute.xlu0 %2016
  %2018 = vrot.lane.b32.xlu0 %v456, 20
  %v2019 = vpop.permute.xlu0 %2018
  %2020 = vrot.lane.b32.xlu0 %v457, 20
  %v2021 = vpop.permute.xlu0 %2020
  %2022 = vrot.lane.b32.xlu0 %v458, 20
  %v2023 = vpop.permute.xlu0 %2022
  %2024 = vrot.lane.b32.xlu0 %v459, 20
  %v2025 = vpop.permute.xlu0 %2024
  %2026 = vrot.lane.b32.xlu0 %v460, 20
  %v2027 = vpop.permute.xlu0 %2026
  %2028 = vrot.lane.b32.xlu0 %v461, 20
  %v2029 = vpop.permute.xlu0 %2028
  %2030 = vrot.lane.b32.xlu0 %v462, 20
  %v2031 = vpop.permute.xlu0 %2030
  %2032 = vrot.lane.b32.xlu0 %v463, 20
  %v2033 = vpop.permute.xlu0 %2032
  %2034 = vrot.lane.b32.xlu0 %v464, 20
  %v2035 = vpop.permute.xlu0 %2034
  %2036 = vrot.lane.b32.xlu0 %v465, 20
  %v2037 = vpop.permute.xlu0 %2036
  %2038 = vrot.lane.b32.xlu0 %v466, 20
  %v2039 = vpop.permute.xlu0 %2038
  %2040 = vrot.lane.b32.xlu0 %v467, 20
  %v2041 = vpop.permute.xlu0 %2040
  %2042 = vrot.lane.b32.xlu0 %v468, 20
  %v2043 = vpop.permute.xlu0 %2042
  %2044 = vrot.lane.b32.xlu0 %v469, 20
  %v2045 = vpop.permute.xlu0 %2044
  %2046 = vrot.lane.b32.xlu0 %v470, 20
  %v2047 = vpop.permute.xlu0 %2046
  %2048 = vrot.lane.b32.xlu0 %v471, 20
  %v2049 = vpop.permute.xlu0 %2048
  %2050 = vrot.lane.b32.xlu0 %v472, 20
  %v2051 = vpop.permute.xlu0 %2050
  %2052 = vrot.lane.b32.xlu0 %v473, 20
  %v2053 = vpop.permute.xlu0 %2052
  %2054 = vrot.lane.b32.xlu0 %v474, 20
  %v2055 = vpop.permute.xlu0 %2054
  %2056 = vrot.lane.b32.xlu0 %v475, 20
  %v2057 = vpop.permute.xlu0 %2056
  %2058 = vrot.lane.b32.xlu0 %v476, 20
  %v2059 = vpop.permute.xlu0 %2058
  %2060 = vrot.lane.b32.xlu0 %v477, 20
  %v2061 = vpop.permute.xlu0 %2060
  %2062 = vrot.lane.b32.xlu0 %v478, 20
  %v2063 = vpop.permute.xlu0 %2062
  %2064 = vrot.lane.b32.xlu0 %v479, 20
  %v2065 = vpop.permute.xlu0 %2064
  %2066 = vrot.lane.b32.xlu0 %v480, 20
  %v2067 = vpop.permute.xlu0 %2066
  %2068 = vrot.lane.b32.xlu0 %v481, 20
  %v2069 = vpop.permute.xlu0 %2068
  %2070 = vrot.lane.b32.xlu0 %v482, 20
  %v2071 = vpop.permute.xlu0 %2070
  %2072 = vrot.lane.b32.xlu0 %v483, 20
  %v2073 = vpop.permute.xlu0 %2072
  %2074 = vrot.lane.b32.xlu0 %v484, 20
  %v2075 = vpop.permute.xlu0 %2074
  %2076 = vrot.lane.b32.xlu0 %v485, 20
  %v2077 = vpop.permute.xlu0 %2076
  %2078 = vrot.lane.b32.xlu0 %v486, 20
  %v2079 = vpop.permute.xlu0 %2078
  %2080 = vrot.lane.b32.xlu0 %v487, 20
  %v2081 = vpop.permute.xlu0 %2080
  %2082 = vrot.lane.b32.xlu0 %v488, 20
  %v2083 = vpop.permute.xlu0 %2082
  %2084 = vrot.lane.b32.xlu0 %v489, 20
  %v2085 = vpop.permute.xlu0 %2084
  %2086 = vrot.lane.b32.xlu0 %v490, 20
  %v2087 = vpop.permute.xlu0 %2086
  %2088 = vrot.lane.b32.xlu0 %v491, 20
  %v2089 = vpop.permute.xlu0 %2088
  %2090 = vrot.lane.b32.xlu0 %v492, 20
  %v2091 = vpop.permute.xlu0 %2090
  %2092 = vrot.lane.b32.xlu0 %v493, 20
  %v2093 = vpop.permute.xlu0 %2092
  %2094 = vrot.lane.b32.xlu0 %v494, 20
  %v2095 = vpop.permute.xlu0 %2094
  %2096 = vrot.lane.b32.xlu0 %v495, 20
  %v2097 = vpop.permute.xlu0 %2096
  %2098 = vrot.lane.b32.xlu0 %v496, 20
  %v2099 = vpop.permute.xlu0 %2098
  %2100 = vrot.lane.b32.xlu0 %v497, 20
  %v2101 = vpop.permute.xlu0 %2100
  %2102 = vrot.lane.b32.xlu0 %v498, 20
  %v2103 = vpop.permute.xlu0 %2102
  %2104 = vrot.lane.b32.xlu0 %v499, 20
  %v2105 = vpop.permute.xlu0 %2104
  %2106 = vrot.lane.b32.xlu0 %v500, 20
  %v2107 = vpop.permute.xlu0 %2106
  %2108 = vrot.lane.b32.xlu0 %v501, 20
  %v2109 = vpop.permute.xlu0 %2108
  %2110 = vrot.lane.b32.xlu0 %v502, 20
  %v2111 = vpop.permute.xlu0 %2110
  %2112 = vrot.lane.b32.xlu0 %v503, 20
  %v2113 = vpop.permute.xlu0 %2112
  %2114 = vrot.lane.b32.xlu0 %v504, 20
  %v2115 = vpop.permute.xlu0 %2114
  %2116 = vrot.lane.b32.xlu0 %v505, 20
  %v2117 = vpop.permute.xlu0 %2116
  %2118 = vrot.lane.b32.xlu0 %v506, 20
  %v2119 = vpop.permute.xlu0 %2118
  %2120 = vrot.lane.b32.xlu0 %v507, 20
  %v2121 = vpop.permute.xlu0 %2120
  %2122 = vrot.lane.b32.xlu0 %v508, 20
  %v2123 = vpop.permute.xlu0 %2122
  %2124 = vrot.lane.b32.xlu0 %v509, 20
  %v2125 = vpop.permute.xlu0 %2124
  %2126 = vrot.lane.b32.xlu0 %v510, 20
  %v2127 = vpop.permute.xlu0 %2126
  %2128 = vrot.lane.b32.xlu0 %v511, 20
  %v2129 = vpop.permute.xlu0 %2128
  %2130 = vrot.lane.b32.xlu0 %v512, 20
  %v2131 = vpop.permute.xlu0 %2130
  %2132 = vrot.lane.b32.xlu0 %v513, 20
  %v2133 = vpop.permute.xlu0 %2132
  %2134 = vrot.lane.b32.xlu0 %v514, 20
  %v2135 = vpop.permute.xlu0 %2134
  %2136 = vrot.lane.b32.xlu0 %v515, 20
  %v2137 = vpop.permute.xlu0 %2136
  %2138 = vrot.lane.b32.xlu0 %v516, 20
  %v2139 = vpop.permute.xlu0 %2138
  %2140 = vrot.lane.b32.xlu0 %v517, 20
  %v2141 = vpop.permute.xlu0 %2140
  %2225 = vrot.lane.b32.xlu0 %v439, 24
  %v2226 = vpop.permute.xlu0 %2225
  %2227 = vrot.lane.b32.xlu0 %v440, 24
  %v2228 = vpop.permute.xlu0 %2227
  %2229 = vrot.lane.b32.xlu0 %v441, 24
  %v2230 = vpop.permute.xlu0 %2229
  %2231 = vrot.lane.b32.xlu0 %v442, 24
  %v2232 = vpop.permute.xlu0 %2231
  %2233 = vrot.lane.b32.xlu0 %v443, 24
  %v2234 = vpop.permute.xlu0 %2233
  %2235 = vrot.lane.b32.xlu0 %v444, 24
  %v2236 = vpop.permute.xlu0 %2235
  %2237 = vrot.lane.b32.xlu0 %v445, 24
  %v2238 = vpop.permute.xlu0 %2237
  %2239 = vrot.lane.b32.xlu0 %v446, 24
  %v2240 = vpop.permute.xlu0 %2239
  %2241 = vrot.lane.b32.xlu0 %v447, 24
  %v2242 = vpop.permute.xlu0 %2241
  %2243 = vrot.lane.b32.xlu0 %v448, 24
  %v2244 = vpop.permute.xlu0 %2243
  %2245 = vrot.lane.b32.xlu0 %v449, 24
  %v2246 = vpop.permute.xlu0 %2245
  %2247 = vrot.lane.b32.xlu0 %v450, 24
  %v2248 = vpop.permute.xlu0 %2247
  %2249 = vrot.lane.b32.xlu0 %v451, 24
  %v2250 = vpop.permute.xlu0 %2249
  %2251 = vrot.lane.b32.xlu0 %v452, 24
  %v2252 = vpop.permute.xlu0 %2251
  %2253 = vrot.lane.b32.xlu0 %v453, 24
  %v2254 = vpop.permute.xlu0 %2253
  %2255 = vrot.lane.b32.xlu0 %v454, 24
  %v2256 = vpop.permute.xlu0 %2255
  %2257 = vrot.lane.b32.xlu0 %v455, 24
  %v2258 = vpop.permute.xlu0 %2257
  %2259 = vrot.lane.b32.xlu0 %v456, 24
  %v2260 = vpop.permute.xlu0 %2259
  %2261 = vrot.lane.b32.xlu0 %v457, 24
  %v2262 = vpop.permute.xlu0 %2261
  %2263 = vrot.lane.b32.xlu0 %v458, 24
  %v2264 = vpop.permute.xlu0 %2263
  %2265 = vrot.lane.b32.xlu0 %v459, 24
  %v2266 = vpop.permute.xlu0 %2265
  %2267 = vrot.lane.b32.xlu0 %v460, 24
  %v2268 = vpop.permute.xlu0 %2267
  %2269 = vrot.lane.b32.xlu0 %v461, 24
  %v2270 = vpop.permute.xlu0 %2269
  %2271 = vrot.lane.b32.xlu0 %v462, 24
  %v2272 = vpop.permute.xlu0 %2271
  %2273 = vrot.lane.b32.xlu0 %v463, 24
  %v2274 = vpop.permute.xlu0 %2273
  %2275 = vrot.lane.b32.xlu0 %v464, 24
  %v2276 = vpop.permute.xlu0 %2275
  %2277 = vrot.lane.b32.xlu0 %v465, 24
  %v2278 = vpop.permute.xlu0 %2277
  %2279 = vrot.lane.b32.xlu0 %v466, 24
  %v2280 = vpop.permute.xlu0 %2279
  %2281 = vrot.lane.b32.xlu0 %v467, 24
  %v2282 = vpop.permute.xlu0 %2281
  %2283 = vrot.lane.b32.xlu0 %v468, 24
  %v2284 = vpop.permute.xlu0 %2283
  %2285 = vrot.lane.b32.xlu0 %v469, 24
  %v2286 = vpop.permute.xlu0 %2285
  %2287 = vrot.lane.b32.xlu0 %v470, 24
  %v2288 = vpop.permute.xlu0 %2287
  %2289 = vrot.lane.b32.xlu0 %v471, 24
  %v2290 = vpop.permute.xlu0 %2289
  %2291 = vrot.lane.b32.xlu0 %v472, 24
  %v2292 = vpop.permute.xlu0 %2291
  %2293 = vrot.lane.b32.xlu0 %v473, 24
  %v2294 = vpop.permute.xlu0 %2293
  %2295 = vrot.lane.b32.xlu0 %v474, 24
  %v2296 = vpop.permute.xlu0 %2295
  %2297 = vrot.lane.b32.xlu0 %v475, 24
  %v2298 = vpop.permute.xlu0 %2297
  %2299 = vrot.lane.b32.xlu0 %v476, 24
  %v2300 = vpop.permute.xlu0 %2299
  %2301 = vrot.lane.b32.xlu0 %v477, 24
  %v2302 = vpop.permute.xlu0 %2301
  %2303 = vrot.lane.b32.xlu0 %v478, 24
  %v2304 = vpop.permute.xlu0 %2303
  %2305 = vrot.lane.b32.xlu0 %v479, 24
  %v2306 = vpop.permute.xlu0 %2305
  %2307 = vrot.lane.b32.xlu0 %v480, 24
  %v2308 = vpop.permute.xlu0 %2307
  %2309 = vrot.lane.b32.xlu0 %v481, 24
  %v2310 = vpop.permute.xlu0 %2309
  %2311 = vrot.lane.b32.xlu0 %v482, 24
  %v2312 = vpop.permute.xlu0 %2311
  %2313 = vrot.lane.b32.xlu0 %v483, 24
  %v2314 = vpop.permute.xlu0 %2313
  %2315 = vrot.lane.b32.xlu0 %v484, 24
  %v2316 = vpop.permute.xlu0 %2315
  %2317 = vrot.lane.b32.xlu0 %v485, 24
  %v2318 = vpop.permute.xlu0 %2317
  %2319 = vrot.lane.b32.xlu0 %v486, 24
  %v2320 = vpop.permute.xlu0 %2319
  %2321 = vrot.lane.b32.xlu0 %v487, 24
  %v2322 = vpop.permute.xlu0 %2321
  %2323 = vrot.lane.b32.xlu0 %v488, 24
  %v2324 = vpop.permute.xlu0 %2323
  %2325 = vrot.lane.b32.xlu0 %v489, 24
  %v2326 = vpop.permute.xlu0 %2325
  %2327 = vrot.lane.b32.xlu0 %v490, 24
  %v2328 = vpop.permute.xlu0 %2327
  %2329 = vrot.lane.b32.xlu0 %v491, 24
  %v2330 = vpop.permute.xlu0 %2329
  %2331 = vrot.lane.b32.xlu0 %v492, 24
  %v2332 = vpop.permute.xlu0 %2331
  %2333 = vrot.lane.b32.xlu0 %v493, 24
  %v2334 = vpop.permute.xlu0 %2333
  %2335 = vrot.lane.b32.xlu0 %v494, 24
  %v2336 = vpop.permute.xlu0 %2335
  %2337 = vrot.lane.b32.xlu0 %v495, 24
  %v2338 = vpop.permute.xlu0 %2337
  %2339 = vrot.lane.b32.xlu0 %v496, 24
  %v2340 = vpop.permute.xlu0 %2339
  %2341 = vrot.lane.b32.xlu0 %v497, 24
  %v2342 = vpop.permute.xlu0 %2341
  %2343 = vrot.lane.b32.xlu0 %v498, 24
  %v2344 = vpop.permute.xlu0 %2343
  %2345 = vrot.lane.b32.xlu0 %v499, 24
  %v2346 = vpop.permute.xlu0 %2345
  %2347 = vrot.lane.b32.xlu0 %v500, 24
  %v2348 = vpop.permute.xlu0 %2347
  %2349 = vrot.lane.b32.xlu0 %v501, 24
  %v2350 = vpop.permute.xlu0 %2349
  %2351 = vrot.lane.b32.xlu0 %v502, 24
  %v2352 = vpop.permute.xlu0 %2351
  %2353 = vrot.lane.b32.xlu0 %v503, 24
  %v2354 = vpop.permute.xlu0 %2353
  %2355 = vrot.lane.b32.xlu0 %v504, 24
  %v2356 = vpop.permute.xlu0 %2355
  %2357 = vrot.lane.b32.xlu0 %v505, 24
  %v2358 = vpop.permute.xlu0 %2357
  %2359 = vrot.lane.b32.xlu0 %v506, 24
  %v2360 = vpop.permute.xlu0 %2359
  %2361 = vrot.lane.b32.xlu0 %v507, 24
  %v2362 = vpop.permute.xlu0 %2361
  %2363 = vrot.lane.b32.xlu0 %v508, 24
  %v2364 = vpop.permute.xlu0 %2363
  %2365 = vrot.lane.b32.xlu0 %v509, 24
  %v2366 = vpop.permute.xlu0 %2365
  %2367 = vrot.lane.b32.xlu0 %v510, 24
  %v2368 = vpop.permute.xlu0 %2367
  %2369 = vrot.lane.b32.xlu0 %v511, 24
  %v2370 = vpop.permute.xlu0 %2369
  %2371 = vrot.lane.b32.xlu0 %v512, 24
  %v2372 = vpop.permute.xlu0 %2371
  %2373 = vrot.lane.b32.xlu0 %v513, 24
  %v2374 = vpop.permute.xlu0 %2373
  %2375 = vrot.lane.b32.xlu0 %v514, 24
  %v2376 = vpop.permute.xlu0 %2375
  %2377 = vrot.lane.b32.xlu0 %v515, 24
  %v2378 = vpop.permute.xlu0 %2377
  %2379 = vrot.lane.b32.xlu0 %v516, 24
  %v2380 = vpop.permute.xlu0 %2379
  %2381 = vrot.lane.b32.xlu0 %v517, 24
  %v2382 = vpop.permute.xlu0 %2381
  %2383 = vrot.lane.b32.xlu0 %v518, 24
  %v2384 = vpop.permute.xlu0 %2383
  %2385 = vrot.lane.b32.xlu0 %v519, 24
  %v2386 = vpop.permute.xlu0 %2385
  %2549 = vrot.lane.b32.xlu0 %v520, 28
  %v2550 = vpop.permute.xlu0 %2549
  %2551 = vrot.lane.b32.xlu0 %v521, 28
  %v2552 = vpop.permute.xlu0 %2551
  %2553 = vrot.lane.b32.xlu0 %v522, 28
  %v2554 = vpop.permute.xlu0 %2553
  %2555 = vrot.lane.b32.xlu0 %v523, 28
  %v2556 = vpop.permute.xlu0 %2555
  %2557 = vrot.lane.b32.xlu0 %v524, 28
  %v2558 = vpop.permute.xlu0 %2557
  %2559 = vrot.lane.b32.xlu0 %v525, 28
  %v2560 = vpop.permute.xlu0 %2559
  %2561 = vrot.lane.b32.xlu0 %v526, 28
  %v2562 = vpop.permute.xlu0 %2561
  %2563 = vrot.lane.b32.xlu0 %v527, 28
  %v2564 = vpop.permute.xlu0 %2563
  %2565 = vrot.lane.b32.xlu0 %v528, 28
  %v2566 = vpop.permute.xlu0 %2565
  %2567 = vrot.lane.b32.xlu0 %v529, 28
  %v2568 = vpop.permute.xlu0 %2567
  %2569 = vrot.lane.b32.xlu0 %v530, 28
  %v2570 = vpop.permute.xlu0 %2569
  %2571 = vrot.lane.b32.xlu0 %v531, 28
  %v2572 = vpop.permute.xlu0 %2571
  %2573 = vrot.lane.b32.xlu0 %v532, 28
  %v2574 = vpop.permute.xlu0 %2573
  %2575 = vrot.lane.b32.xlu0 %v533, 28
  %v2576 = vpop.permute.xlu0 %2575
  %2577 = vrot.lane.b32.xlu0 %v534, 28
  %v2578 = vpop.permute.xlu0 %2577
  %2579 = vrot.lane.b32.xlu0 %v535, 28
  %v2580 = vpop.permute.xlu0 %2579
  %2581 = vrot.lane.b32.xlu0 %v536, 28
  %v2582 = vpop.permute.xlu0 %2581
  %2583 = vrot.lane.b32.xlu0 %v537, 28
  %v2584 = vpop.permute.xlu0 %2583
  %2585 = vrot.lane.b32.xlu0 %v538, 28
  %v2586 = vpop.permute.xlu0 %2585
  %2587 = vrot.lane.b32.xlu0 %v539, 28
  %v2588 = vpop.permute.xlu0 %2587
  %2589 = vrot.lane.b32.xlu0 %v540, 28
  %v2590 = vpop.permute.xlu0 %2589
  %2591 = vrot.lane.b32.xlu0 %v541, 28
  %v2592 = vpop.permute.xlu0 %2591
  %2593 = vrot.lane.b32.xlu0 %v542, 28
  %v2594 = vpop.permute.xlu0 %2593
  %2595 = vrot.lane.b32.xlu0 %v543, 28
  %v2596 = vpop.permute.xlu0 %2595
  %2597 = vrot.lane.b32.xlu0 %v544, 28
  %v2598 = vpop.permute.xlu0 %2597
  %2599 = vrot.lane.b32.xlu0 %v545, 28
  %v2600 = vpop.permute.xlu0 %2599
  %2601 = vrot.lane.b32.xlu0 %v546, 28
  %v2602 = vpop.permute.xlu0 %2601
  %2603 = vrot.lane.b32.xlu0 %v547, 28
  %v2604 = vpop.permute.xlu0 %2603
  %2605 = vrot.lane.b32.xlu0 %v548, 28
  %v2606 = vpop.permute.xlu0 %2605
  %2607 = vrot.lane.b32.xlu0 %v549, 28
  %v2608 = vpop.permute.xlu0 %2607
  %2609 = vrot.lane.b32.xlu0 %v550, 28
  %v2610 = vpop.permute.xlu0 %2609
  %2611 = vrot.lane.b32.xlu0 %v551, 28
  %v2612 = vpop.permute.xlu0 %2611
  %2613 = vrot.lane.b32.xlu0 %v552, 28
  %v2614 = vpop.permute.xlu0 %2613
  %2615 = vrot.lane.b32.xlu0 %v553, 28
  %v2616 = vpop.permute.xlu0 %2615
  %2617 = vrot.lane.b32.xlu0 %v554, 28
  %v2618 = vpop.permute.xlu0 %2617
  %2619 = vrot.lane.b32.xlu0 %v555, 28
  %v2620 = vpop.permute.xlu0 %2619
  %2621 = vrot.lane.b32.xlu0 %v556, 28
  %v2622 = vpop.permute.xlu0 %2621
  %2623 = vrot.lane.b32.xlu0 %v557, 28
  %v2624 = vpop.permute.xlu0 %2623
  %2625 = vrot.lane.b32.xlu0 %v558, 28
  %v2626 = vpop.permute.xlu0 %2625
  %2627 = vrot.lane.b32.xlu0 %v559, 28
  %v2628 = vpop.permute.xlu0 %2627
  %2629 = vrot.lane.b32.xlu0 %v560, 28
  %v2630 = vpop.permute.xlu0 %2629
  %2631 = vrot.lane.b32.xlu0 %v561, 28
  %v2632 = vpop.permute.xlu0 %2631
  %2633 = vrot.lane.b32.xlu0 %v562, 28
  %v2634 = vpop.permute.xlu0 %2633
  %2635 = vrot.lane.b32.xlu0 %v563, 28
  %v2636 = vpop.permute.xlu0 %2635
  %2637 = vrot.lane.b32.xlu0 %v564, 28
  %v2638 = vpop.permute.xlu0 %2637
  %2639 = vrot.lane.b32.xlu0 %v565, 28
  %v2640 = vpop.permute.xlu0 %2639
  %2641 = vrot.lane.b32.xlu0 %v566, 28
  %v2642 = vpop.permute.xlu0 %2641
  %2643 = vrot.lane.b32.xlu0 %v567, 28
  %v2644 = vpop.permute.xlu0 %2643
  %2645 = vrot.lane.b32.xlu0 %v568, 28
  %v2646 = vpop.permute.xlu0 %2645
  %2647 = vrot.lane.b32.xlu0 %v569, 28
  %v2648 = vpop.permute.xlu0 %2647
  %2649 = vrot.lane.b32.xlu0 %v570, 28
  %v2650 = vpop.permute.xlu0 %2649
  %2651 = vrot.lane.b32.xlu0 %v571, 28
  %v2652 = vpop.permute.xlu0 %2651
  %2653 = vrot.lane.b32.xlu0 %v572, 28
  %v2654 = vpop.permute.xlu0 %2653
  %2655 = vrot.lane.b32.xlu0 %v573, 28
  %v2656 = vpop.permute.xlu0 %2655
  %2657 = vrot.lane.b32.xlu0 %v574, 28
  %v2658 = vpop.permute.xlu0 %2657
  %2659 = vrot.lane.b32.xlu0 %v575, 28
  %v2660 = vpop.permute.xlu0 %2659
  %2661 = vrot.lane.b32.xlu0 %v576, 28
  %v2662 = vpop.permute.xlu0 %2661
  %2663 = vrot.lane.b32.xlu0 %v577, 28
  %v2664 = vpop.permute.xlu0 %2663
  %2665 = vrot.lane.b32.xlu0 %v578, 28
  %v2666 = vpop.permute.xlu0 %2665
  %2667 = vrot.lane.b32.xlu0 %v579, 28
  %v2668 = vpop.permute.xlu0 %2667
  %2669 = vrot.lane.b32.xlu0 %v580, 28
  %v2670 = vpop.permute.xlu0 %2669
  %2671 = vrot.lane.b32.xlu0 %v581, 28
  %v2672 = vpop.permute.xlu0 %2671
  %2673 = vrot.lane.b32.xlu0 %v582, 28
  %v2674 = vpop.permute.xlu0 %2673
  %2675 = vrot.lane.b32.xlu0 %v583, 28
  %v2676 = vpop.permute.xlu0 %2675
  %2677 = vrot.lane.b32.xlu0 %v584, 28
  %v2678 = vpop.permute.xlu0 %2677
  %2679 = vrot.lane.b32.xlu0 %v585, 28
  %v2680 = vpop.permute.xlu0 %2679
  %2681 = vrot.lane.b32.xlu0 %v586, 28
  %v2682 = vpop.permute.xlu0 %2681
  %2683 = vrot.lane.b32.xlu0 %v587, 28
  %v2684 = vpop.permute.xlu0 %2683
  %2685 = vrot.lane.b32.xlu0 %v588, 28
  %v2686 = vpop.permute.xlu0 %2685
  %2687 = vrot.lane.b32.xlu0 %v589, 28
  %v2688 = vpop.permute.xlu0 %2687
  %2689 = vrot.lane.b32.xlu0 %v590, 28
  %v2690 = vpop.permute.xlu0 %2689
  %2691 = vrot.lane.b32.xlu0 %v591, 28
  %v2692 = vpop.permute.xlu0 %2691
  %2693 = vrot.lane.b32.xlu0 %v592, 28
  %v2694 = vpop.permute.xlu0 %2693
  %2695 = vrot.lane.b32.xlu0 %v593, 28
  %v2696 = vpop.permute.xlu0 %2695
  %2697 = vrot.lane.b32.xlu0 %v594, 28
  %v2698 = vpop.permute.xlu0 %2697
  %2699 = vrot.lane.b32.xlu0 %v595, 28
  %v2700 = vpop.permute.xlu0 %2699
  %2701 = vrot.lane.b32.xlu0 %v596, 28
  %v2702 = vpop.permute.xlu0 %2701
  %2703 = vrot.lane.b32.xlu0 %v597, 28
  %v2704 = vpop.permute.xlu0 %2703
  %2705 = vrot.lane.b32.xlu0 %v598, 28
  %v2706 = vpop.permute.xlu0 %2705
  %2707 = vrot.lane.b32.xlu0 %v599, 28
  %v2708 = vpop.permute.xlu0 %2707
  %2709 = vrot.lane.b32.xlu0 %v600, 28
  %v2710 = vpop.permute.xlu0 %2709
  %2873 = vrot.lane.b32.xlu0 %v601, 32
  %v2874 = vpop.permute.xlu0 %2873
  %2875 = vrot.lane.b32.xlu0 %v602, 32
  %v2876 = vpop.permute.xlu0 %2875
  %2877 = vrot.lane.b32.xlu0 %v603, 32
  %v2878 = vpop.permute.xlu0 %2877
  %2879 = vrot.lane.b32.xlu0 %v604, 32
  %v2880 = vpop.permute.xlu0 %2879
  %2881 = vrot.lane.b32.xlu0 %v605, 32
  %v2882 = vpop.permute.xlu0 %2881
  %2883 = vrot.lane.b32.xlu0 %v606, 32
  %v2884 = vpop.permute.xlu0 %2883
  %2885 = vrot.lane.b32.xlu0 %v607, 32
  %v2886 = vpop.permute.xlu0 %2885
  %2887 = vrot.lane.b32.xlu0 %v608, 32
  %v2888 = vpop.permute.xlu0 %2887
  %2889 = vrot.lane.b32.xlu0 %v609, 32
  %v2890 = vpop.permute.xlu0 %2889
  %2891 = vrot.lane.b32.xlu0 %v610, 32
  %v2892 = vpop.permute.xlu0 %2891
  %2893 = vrot.lane.b32.xlu0 %v611, 32
  %v2894 = vpop.permute.xlu0 %2893
  %2895 = vrot.lane.b32.xlu0 %v612, 32
  %v2896 = vpop.permute.xlu0 %2895
  %2897 = vrot.lane.b32.xlu0 %v613, 32
  %v2898 = vpop.permute.xlu0 %2897
  %2899 = vrot.lane.b32.xlu0 %v614, 32
  %v2900 = vpop.permute.xlu0 %2899
  %2901 = vrot.lane.b32.xlu0 %v615, 32
  %v2902 = vpop.permute.xlu0 %2901
  %2903 = vrot.lane.b32.xlu0 %v616, 32
  %v2904 = vpop.permute.xlu0 %2903
  %2905 = vrot.lane.b32.xlu0 %v617, 32
  %v2906 = vpop.permute.xlu0 %2905
  %2907 = vrot.lane.b32.xlu0 %v618, 32
  %v2908 = vpop.permute.xlu0 %2907
  %2909 = vrot.lane.b32.xlu0 %v619, 32
  %v2910 = vpop.permute.xlu0 %2909
  %2911 = vrot.lane.b32.xlu0 %v620, 32
  %v2912 = vpop.permute.xlu0 %2911
  %2913 = vrot.lane.b32.xlu0 %v621, 32
  %v2914 = vpop.permute.xlu0 %2913
  %2915 = vrot.lane.b32.xlu0 %v622, 32
  %v2916 = vpop.permute.xlu0 %2915
  %2917 = vrot.lane.b32.xlu0 %v623, 32
  %v2918 = vpop.permute.xlu0 %2917
  %2919 = vrot.lane.b32.xlu0 %v624, 32
  %v2920 = vpop.permute.xlu0 %2919
  %2921 = vrot.lane.b32.xlu0 %v625, 32
  %v2922 = vpop.permute.xlu0 %2921
  %2923 = vrot.lane.b32.xlu0 %v626, 32
  %v2924 = vpop.permute.xlu0 %2923
  %2925 = vrot.lane.b32.xlu0 %v627, 32
  %v2926 = vpop.permute.xlu0 %2925
  %2927 = vrot.lane.b32.xlu0 %v628, 32
  %v2928 = vpop.permute.xlu0 %2927
  %2929 = vrot.lane.b32.xlu0 %v629, 32
  %v2930 = vpop.permute.xlu0 %2929
  %2931 = vrot.lane.b32.xlu0 %v630, 32
  %v2932 = vpop.permute.xlu0 %2931
  %2933 = vrot.lane.b32.xlu0 %v631, 32
  %v2934 = vpop.permute.xlu0 %2933
  %2935 = vrot.lane.b32.xlu0 %v632, 32
  %v2936 = vpop.permute.xlu0 %2935
  %2937 = vrot.lane.b32.xlu0 %v633, 32
  %v2938 = vpop.permute.xlu0 %2937
  %2939 = vrot.lane.b32.xlu0 %v634, 32
  %v2940 = vpop.permute.xlu0 %2939
  %2941 = vrot.lane.b32.xlu0 %v635, 32
  %v2942 = vpop.permute.xlu0 %2941
  %2943 = vrot.lane.b32.xlu0 %v636, 32
  %v2944 = vpop.permute.xlu0 %2943
  %2945 = vrot.lane.b32.xlu0 %v637, 32
  %v2946 = vpop.permute.xlu0 %2945
  %2947 = vrot.lane.b32.xlu0 %v638, 32
  %v2948 = vpop.permute.xlu0 %2947
  %2949 = vrot.lane.b32.xlu0 %v639, 32
  %v2950 = vpop.permute.xlu0 %2949
  %2951 = vrot.lane.b32.xlu0 %v640, 32
  %v2952 = vpop.permute.xlu0 %2951
  %2953 = vrot.lane.b32.xlu0 %v641, 32
  %v2954 = vpop.permute.xlu0 %2953
  %2955 = vrot.lane.b32.xlu0 %v642, 32
  %v2956 = vpop.permute.xlu0 %2955
  %2957 = vrot.lane.b32.xlu0 %v643, 32
  %v2958 = vpop.permute.xlu0 %2957
  %2959 = vrot.lane.b32.xlu0 %v644, 32
  %v2960 = vpop.permute.xlu0 %2959
  %2961 = vrot.lane.b32.xlu0 %v645, 32
  %v2962 = vpop.permute.xlu0 %2961
  %2963 = vrot.lane.b32.xlu0 %v646, 32
  %v2964 = vpop.permute.xlu0 %2963
  %2965 = vrot.lane.b32.xlu0 %v647, 32
  %v2966 = vpop.permute.xlu0 %2965
  %2967 = vrot.lane.b32.xlu0 %v648, 32
  %v2968 = vpop.permute.xlu0 %2967
  %2969 = vrot.lane.b32.xlu0 %v649, 32
  %v2970 = vpop.permute.xlu0 %2969
  %2971 = vrot.lane.b32.xlu0 %v650, 32
  %v2972 = vpop.permute.xlu0 %2971
  %2973 = vrot.lane.b32.xlu0 %v651, 32
  %v2974 = vpop.permute.xlu0 %2973
  %2975 = vrot.lane.b32.xlu0 %v652, 32
  %v2976 = vpop.permute.xlu0 %2975
  %2977 = vrot.lane.b32.xlu0 %v653, 32
  %v2978 = vpop.permute.xlu0 %2977
  %2979 = vrot.lane.b32.xlu0 %v654, 32
  %v2980 = vpop.permute.xlu0 %2979
  %2981 = vrot.lane.b32.xlu0 %v655, 32
  %v2982 = vpop.permute.xlu0 %2981
  %2983 = vrot.lane.b32.xlu0 %v656, 32
  %v2984 = vpop.permute.xlu0 %2983
  %2985 = vrot.lane.b32.xlu0 %v657, 32
  %v2986 = vpop.permute.xlu0 %2985
  %2987 = vrot.lane.b32.xlu0 %v658, 32
  %v2988 = vpop.permute.xlu0 %2987
  %2989 = vrot.lane.b32.xlu0 %v659, 32
  %v2990 = vpop.permute.xlu0 %2989
  %2991 = vrot.lane.b32.xlu0 %v660, 32
  %v2992 = vpop.permute.xlu0 %2991
  %2993 = vrot.lane.b32.xlu0 %v661, 32
  %v2994 = vpop.permute.xlu0 %2993
  %2995 = vrot.lane.b32.xlu0 %v662, 32
  %v2996 = vpop.permute.xlu0 %2995
  %2997 = vrot.lane.b32.xlu0 %v663, 32
  %v2998 = vpop.permute.xlu0 %2997
  %2999 = vrot.lane.b32.xlu0 %v664, 32
  %v3000 = vpop.permute.xlu0 %2999
  %3001 = vrot.lane.b32.xlu0 %v665, 32
  %v3002 = vpop.permute.xlu0 %3001
  %3003 = vrot.lane.b32.xlu0 %v666, 32
  %v3004 = vpop.permute.xlu0 %3003
  %3005 = vrot.lane.b32.xlu0 %v667, 32
  %v3006 = vpop.permute.xlu0 %3005
  %3007 = vrot.lane.b32.xlu0 %v668, 32
  %v3008 = vpop.permute.xlu0 %3007
  %3009 = vrot.lane.b32.xlu0 %v669, 32
  %v3010 = vpop.permute.xlu0 %3009
  %3011 = vrot.lane.b32.xlu0 %v670, 32
  %v3012 = vpop.permute.xlu0 %3011
  %3013 = vrot.lane.b32.xlu0 %v671, 32
  %v3014 = vpop.permute.xlu0 %3013
  %3015 = vrot.lane.b32.xlu0 %v672, 32
  %v3016 = vpop.permute.xlu0 %3015
  %3017 = vrot.lane.b32.xlu0 %v673, 32
  %v3018 = vpop.permute.xlu0 %3017
  %3019 = vrot.lane.b32.xlu0 %v674, 32
  %v3020 = vpop.permute.xlu0 %3019
  %3021 = vrot.lane.b32.xlu0 %v675, 32
  %v3022 = vpop.permute.xlu0 %3021
  %3023 = vrot.lane.b32.xlu0 %v676, 32
  %v3024 = vpop.permute.xlu0 %3023
  %3025 = vrot.lane.b32.xlu0 %v677, 32
  %v3026 = vpop.permute.xlu0 %3025
  %3027 = vrot.lane.b32.xlu0 %v678, 32
  %v3028 = vpop.permute.xlu0 %3027
  %3029 = vrot.lane.b32.xlu0 %v679, 32
  %v3030 = vpop.permute.xlu0 %3029
  %3031 = vrot.lane.b32.xlu0 %v680, 32
  %v3032 = vpop.permute.xlu0 %3031
  %3033 = vrot.lane.b32.xlu0 %v681, 32
  %v3034 = vpop.permute.xlu0 %3033
  %vm3116 = vcmask 31744
  %v3117 = vsel %vm3116, %v111, %v764
  %v3118 = vsel %vm3116, %v112, %v766
  %v3119 = vsel %vm3116, %v113, %v768
  %v3120 = vsel %vm3116, %v114, %v770
  %v3121 = vsel %vm3116, %v115, %v772
  %v3122 = vsel %vm3116, %v116, %v774
  %v3123 = vsel %vm3116, %v117, %v776
  %v3124 = vsel %vm3116, %v118, %v778
  %v3125 = vsel %vm3116, %v119, %v780
  %v3126 = vsel %vm3116, %v120, %v782
  %v3127 = vsel %vm3116, %v121, %v784
  %v3128 = vsel %vm3116, %v122, %v786
  %v3129 = vsel %vm3116, %v123, %v788
  %v3130 = vsel %vm3116, %v124, %v790
  %v3131 = vsel %vm3116, %v125, %v792
  %v3132 = vsel %vm3116, %v126, %v794
  %v3133 = vsel %vm3116, %v127, %v796
  %v3134 = vsel %vm3116, %v128, %v798
  %v3135 = vsel %vm3116, %v129, %v800
  %v3136 = vsel %vm3116, %v130, %v802
  %v3137 = vsel %vm3116, %v131, %v804
  %v3138 = vsel %vm3116, %v132, %v806
  %v3139 = vsel %vm3116, %v133, %v808
  %v3140 = vsel %vm3116, %v134, %v810
  %v3141 = vsel %vm3116, %v135, %v812
  %v3142 = vsel %vm3116, %v136, %v814
  %v3143 = vsel %vm3116, %v137, %v816
  %v3144 = vsel %vm3116, %v138, %v818
  %v3145 = vsel %vm3116, %v139, %v820
  %v3146 = vsel %vm3116, %v140, %v822
  %v3147 = vsel %vm3116, %v141, %v824
  %v3148 = vsel %vm3116, %v142, %v826
  %v3149 = vsel %vm3116, %v143, %v828
  %v3150 = vsel %vm3116, %v144, %v830
  %v3151 = vsel %vm3116, %v145, %v832
  %v3152 = vsel %vm3116, %v146, %v834
  %v3153 = vsel %vm3116, %v147, %v836
  %v3154 = vsel %vm3116, %v148, %v838
  %v3155 = vsel %vm3116, %v149, %v840
  %v3156 = vsel %vm3116, %v150, %v842
  %v3157 = vsel %vm3116, %v151, %v844
  %v3158 = vsel %vm3116, %v152, %v846
  %v3159 = vsel %vm3116, %v153, %v848
  %v3160 = vsel %vm3116, %v154, %v850
  %v3161 = vsel %vm3116, %v155, %v852
  %v3162 = vsel %vm3116, %v156, %v854
  %v3163 = vsel %vm3116, %v157, %v856
  %v3164 = vsel %vm3116, %v158, %v858
  %v3165 = vsel %vm3116, %v159, %v860
  %v3166 = vsel %vm3116, %v160, %v862
  %v3167 = vsel %vm3116, %v161, %v864
  %v3168 = vsel %vm3116, %v162, %v866
  %v3169 = vsel %vm3116, %v163, %v868
  %v3170 = vsel %vm3116, %v164, %v870
  %v3171 = vsel %vm3116, %v165, %v872
  %v3172 = vsel %vm3116, %v166, %v874
  %v3173 = vsel %vm3116, %v167, %v876
  %v3174 = vsel %vm3116, %v168, %v878
  %v3175 = vsel %vm3116, %v169, %v880
  %v3176 = vsel %vm3116, %v170, %v882
  %v3177 = vsel %vm3116, %v171, %v884
  %v3178 = vsel %vm3116, %v172, %v886
  %v3179 = vsel %vm3116, %v173, %v888
  %v3180 = vsel %vm3116, %v174, %v890
  %v3181 = vsel %vm3116, %v175, %v892
  %v3182 = vsel %vm3116, %v176, %v894
  %v3183 = vsel %vm3116, %v177, %v896
  %v3184 = vsel %vm3116, %v178, %v898
  %v3185 = vsel %vm3116, %v179, %v900
  %v3186 = vsel %vm3116, %v180, %v902
  %v3187 = vsel %vm3116, %v181, %v904
  %v3188 = vsel %vm3116, %v182, %v906
  %v3189 = vsel %vm3116, %v183, %v908
  %v3190 = vsel %vm3116, %v184, %v910
  %v3191 = vsel %vm3116, %v185, %v912
  %v3192 = vsel %vm3116, %v186, %v914
  %v3193 = vsel %vm3116, %v187, %v916
  %v3194 = vsel %vm3116, %v188, %v918
  %v3195 = vsel %vm3116, %v189, %v920
  %v3196 = vsel %vm3116, %v190, %v922
  %v3197 = vsel %vm3116, %v191, %v924
  %vm3198 = vcmask 64512
  %v3199 = vsel %vm3198, %v3117, %v1088
  %v3200 = vsel %vm3198, %v3118, %v1090
  %v3201 = vsel %vm3198, %v3119, %v1092
  %v3202 = vsel %vm3198, %v3120, %v1094
  %v3203 = vsel %vm3198, %v3121, %v1096
  %v3204 = vsel %vm3198, %v3122, %v1098
  %v3205 = vsel %vm3198, %v3123, %v1100
  %v3206 = vsel %vm3198, %v3124, %v1102
  %v3207 = vsel %vm3198, %v3125, %v1104
  %v3208 = vsel %vm3198, %v3126, %v1106
  %v3209 = vsel %vm3198, %v3127, %v1108
  %v3210 = vsel %vm3198, %v3128, %v1110
  %v3211 = vsel %vm3198, %v3129, %v1112
  %v3212 = vsel %vm3198, %v3130, %v1114
  %v3213 = vsel %vm3198, %v3131, %v1116
  %v3214 = vsel %vm3198, %v3132, %v1118
  %v3215 = vsel %vm3198, %v3133, %v1120
  %v3216 = vsel %vm3198, %v3134, %v1122
  %v3217 = vsel %vm3198, %v3135, %v1124
  %v3218 = vsel %vm3198, %v3136, %v1126
  %v3219 = vsel %vm3198, %v3137, %v1128
  %v3220 = vsel %vm3198, %v3138, %v1130
  %v3221 = vsel %vm3198, %v3139, %v1132
  %v3222 = vsel %vm3198, %v3140, %v1134
  %v3223 = vsel %vm3198, %v3141, %v1136
  %v3224 = vsel %vm3198, %v3142, %v1138
  %v3225 = vsel %vm3198, %v3143, %v1140
  %v3226 = vsel %vm3198, %v3144, %v1142
  %v3227 = vsel %vm3198, %v3145, %v1144
  %v3228 = vsel %vm3198, %v3146, %v1146
  %v3229 = vsel %vm3198, %v3147, %v1148
  %v3230 = vsel %vm3198, %v3148, %v1150
  %v3231 = vsel %vm3198, %v3149, %v1152
  %v3232 = vsel %vm3198, %v3150, %v1154
  %v3233 = vsel %vm3198, %v3151, %v1156
  %v3234 = vsel %vm3198, %v3152, %v1158
  %v3235 = vsel %vm3198, %v3153, %v1160
  %v3236 = vsel %vm3198, %v3154, %v1162
  %v3237 = vsel %vm3198, %v3155, %v1164
  %v3238 = vsel %vm3198, %v3156, %v1166
  %v3239 = vsel %vm3198, %v3157, %v1168
  %v3240 = vsel %vm3198, %v3158, %v1170
  %v3241 = vsel %vm3198, %v3159, %v1172
  %v3242 = vsel %vm3198, %v3160, %v1174
  %v3243 = vsel %vm3198, %v3161, %v1176
  %v3244 = vsel %vm3198, %v3162, %v1178
  %v3245 = vsel %vm3198, %v3163, %v1180
  %v3246 = vsel %vm3198, %v3164, %v1182
  %v3247 = vsel %vm3198, %v3165, %v1184
  %v3248 = vsel %vm3198, %v3166, %v1186
  %v3249 = vsel %vm3198, %v3167, %v1188
  %v3250 = vsel %vm3198, %v3168, %v1190
  %v3251 = vsel %vm3198, %v3169, %v1192
  %v3252 = vsel %vm3198, %v3170, %v1194
  %v3253 = vsel %vm3198, %v3171, %v1196
  %v3254 = vsel %vm3198, %v3172, %v1198
  %v3255 = vsel %vm3198, %v3173, %v1200
  %v3256 = vsel %vm3198, %v3174, %v1202
  %v3257 = vsel %vm3198, %v3175, %v1204
  %v3258 = vsel %vm3198, %v3176, %v1206
  %v3259 = vsel %vm3198, %v3177, %v1208
  %v3260 = vsel %vm3198, %v3178, %v1210
  %v3261 = vsel %vm3198, %v3179, %v1212
  %v3262 = vsel %vm3198, %v3180, %v1214
  %v3263 = vsel %vm3198, %v3181, %v1216
  %v3264 = vsel %vm3198, %v3182, %v1218
  %v3265 = vsel %vm3198, %v3183, %v1220
  %v3266 = vsel %vm3198, %v3184, %v1222
  %v3267 = vsel %vm3198, %v3185, %v1224
  %v3268 = vsel %vm3198, %v3186, %v1226
  %v3269 = vsel %vm3198, %v3187, %v1228
  %v3270 = vsel %vm3198, %v3188, %v1230
  %v3271 = vsel %vm3198, %v3189, %v1232
  %v3272 = vsel %vm3198, %v3190, %v1234
  %v3273 = vsel %vm3198, %v3191, %v1236
  %v3274 = vsel %vm3198, %v3192, %v1238
  %v3275 = vsel %vm3198, %v3193, %v1240
  %v3276 = vsel %vm3198, %v3194, %v1242
  %v3277 = vsel %vm3198, %v3195, %v1244
  %v3278 = vsel %vm3198, %v3196, %v1246
  %v3279 = vsel %vm3198, %v3197, %v1248
  %vm3280 = vcmask 97280
  %v3281 = vsel %vm3280, %v3199, %v1333
  %v3282 = vsel %vm3280, %v3200, %v1335
  %v3283 = vsel %vm3280, %v3201, %v1337
  %v3284 = vsel %vm3280, %v3202, %v1339
  %v3285 = vsel %vm3280, %v3203, %v1341
  %v3286 = vsel %vm3280, %v3204, %v1343
  %v3287 = vsel %vm3280, %v3205, %v1345
  %v3288 = vsel %vm3280, %v3206, %v1347
  %v3289 = vsel %vm3280, %v3207, %v1349
  %v3290 = vsel %vm3280, %v3208, %v1351
  %v3291 = vsel %vm3280, %v3209, %v1353
  %v3292 = vsel %vm3280, %v3210, %v1355
  %v3293 = vsel %vm3280, %v3211, %v1357
  %v3294 = vsel %vm3280, %v3212, %v1359
  %v3295 = vsel %vm3280, %v3213, %v1361
  %v3296 = vsel %vm3280, %v3214, %v1363
  %v3297 = vsel %vm3280, %v3215, %v1365
  %v3298 = vsel %vm3280, %v3216, %v1367
  %v3299 = vsel %vm3280, %v3217, %v1369
  %v3300 = vsel %vm3280, %v3218, %v1371
  %v3301 = vsel %vm3280, %v3219, %v1373
  %v3302 = vsel %vm3280, %v3220, %v1375
  %v3303 = vsel %vm3280, %v3221, %v1377
  %v3304 = vsel %vm3280, %v3222, %v1379
  %v3305 = vsel %vm3280, %v3223, %v1381
  %v3306 = vsel %vm3280, %v3224, %v1383
  %v3307 = vsel %vm3280, %v3225, %v1385
  %v3308 = vsel %vm3280, %v3226, %v1387
  %v3309 = vsel %vm3280, %v3227, %v1389
  %v3310 = vsel %vm3280, %v3228, %v1391
  %v3311 = vsel %vm3280, %v3229, %v1393
  %v3312 = vsel %vm3280, %v3230, %v1395
  %v3313 = vsel %vm3280, %v3231, %v1397
  %v3314 = vsel %vm3280, %v3232, %v1399
  %v3315 = vsel %vm3280, %v3233, %v1401
  %v3316 = vsel %vm3280, %v3234, %v1403
  %v3317 = vsel %vm3280, %v3235, %v1405
  %v3318 = vsel %vm3280, %v3236, %v1407
  %v3319 = vsel %vm3280, %v3237, %v1409
  %v3320 = vsel %vm3280, %v3238, %v1411
  %v3321 = vsel %vm3280, %v3239, %v1413
  %v3322 = vsel %vm3280, %v3240, %v1415
  %v3323 = vsel %vm3280, %v3241, %v1417
  %v3324 = vsel %vm3280, %v3242, %v1419
  %v3325 = vsel %vm3280, %v3243, %v1421
  %v3326 = vsel %vm3280, %v3244, %v1423
  %v3327 = vsel %vm3280, %v3245, %v1425
  %v3328 = vsel %vm3280, %v3246, %v1427
  %v3329 = vsel %vm3280, %v3247, %v1429
  %v3330 = vsel %vm3280, %v3248, %v1431
  %v3331 = vsel %vm3280, %v3249, %v1433
  %v3332 = vsel %vm3280, %v3250, %v1435
  %v3333 = vsel %vm3280, %v3251, %v1437
  %v3334 = vsel %vm3280, %v3252, %v1439
  %v3335 = vsel %vm3280, %v3253, %v1441
  %v3336 = vsel %vm3280, %v3254, %v1443
  %v3337 = vsel %vm3280, %v3255, %v1445
  %v3338 = vsel %vm3280, %v3256, %v1447
  %v3339 = vsel %vm3280, %v3257, %v1449
  %v3340 = vsel %vm3280, %v3258, %v1451
  %v3341 = vsel %vm3280, %v3259, %v1453
  %v3342 = vsel %vm3280, %v3260, %v1455
  %v3343 = vsel %vm3280, %v3261, %v1457
  %v3344 = vsel %vm3280, %v3262, %v1459
  %v3345 = vsel %vm3280, %v3263, %v1461
  %v3346 = vsel %vm3280, %v3264, %v1463
  %v3347 = vsel %vm3280, %v3265, %v1465
  %v3348 = vsel %vm3280, %v3266, %v1467
  %v3349 = vsel %vm3280, %v3267, %v1469
  %v3350 = vsel %vm3280, %v3268, %v1471
  %v3351 = vsel %vm3280, %v3269, %v1473
  %v3352 = vsel %vm3280, %v3270, %v1475
  %v3353 = vsel %vm3280, %v3271, %v1477
  %v3354 = vsel %vm3280, %v3272, %v1479
  %v3355 = vsel %vm3280, %v3273, %v1481
  %v3356 = vsel %vm3280, %v3274, %v1483
  %v3357 = vsel %vm3280, %v3275, %v1485
  %v3358 = vsel %vm3280, %v3276, %v1487
  %v3359 = vsel %vm3280, %v3277, %v1489
  %v3360 = vsel %vm3280, %v3278, %v1491
  %v3361 = vsel %vm3280, %v3279, %v1493
  %vm3362 = vcmask 130048
  %v3363 = vsel %vm3362, %v3281, %v1657
  %v3364 = vsel %vm3362, %v3282, %v1659
  %v3365 = vsel %vm3362, %v3283, %v1661
  %v3366 = vsel %vm3362, %v3284, %v1663
  %v3367 = vsel %vm3362, %v3285, %v1665
  %v3368 = vsel %vm3362, %v3286, %v1667
  %v3369 = vsel %vm3362, %v3287, %v1669
  %v3370 = vsel %vm3362, %v3288, %v1671
  %v3371 = vsel %vm3362, %v3289, %v1673
  %v3372 = vsel %vm3362, %v3290, %v1675
  %v3373 = vsel %vm3362, %v3291, %v1677
  %v3374 = vsel %vm3362, %v3292, %v1679
  %v3375 = vsel %vm3362, %v3293, %v1681
  %v3376 = vsel %vm3362, %v3294, %v1683
  %v3377 = vsel %vm3362, %v3295, %v1685
  %v3378 = vsel %vm3362, %v3296, %v1687
  %v3379 = vsel %vm3362, %v3297, %v1689
  %v3380 = vsel %vm3362, %v3298, %v1691
  %v3381 = vsel %vm3362, %v3299, %v1693
  %v3382 = vsel %vm3362, %v3300, %v1695
  %v3383 = vsel %vm3362, %v3301, %v1697
  %v3384 = vsel %vm3362, %v3302, %v1699
  %v3385 = vsel %vm3362, %v3303, %v1701
  %v3386 = vsel %vm3362, %v3304, %v1703
  %v3387 = vsel %vm3362, %v3305, %v1705
  %v3388 = vsel %vm3362, %v3306, %v1707
  %v3389 = vsel %vm3362, %v3307, %v1709
  %v3390 = vsel %vm3362, %v3308, %v1711
  %v3391 = vsel %vm3362, %v3309, %v1713
  %v3392 = vsel %vm3362, %v3310, %v1715
  %v3393 = vsel %vm3362, %v3311, %v1717
  %v3394 = vsel %vm3362, %v3312, %v1719
  %v3395 = vsel %vm3362, %v3313, %v1721
  %v3396 = vsel %vm3362, %v3314, %v1723
  %v3397 = vsel %vm3362, %v3315, %v1725
  %v3398 = vsel %vm3362, %v3316, %v1727
  %v3399 = vsel %vm3362, %v3317, %v1729
  %v3400 = vsel %vm3362, %v3318, %v1731
  %v3401 = vsel %vm3362, %v3319, %v1733
  %v3402 = vsel %vm3362, %v3320, %v1735
  %v3403 = vsel %vm3362, %v3321, %v1737
  %v3404 = vsel %vm3362, %v3322, %v1739
  %v3405 = vsel %vm3362, %v3323, %v1741
  %v3406 = vsel %vm3362, %v3324, %v1743
  %v3407 = vsel %vm3362, %v3325, %v1745
  %v3408 = vsel %vm3362, %v3326, %v1747
  %v3409 = vsel %vm3362, %v3327, %v1749
  %v3410 = vsel %vm3362, %v3328, %v1751
  %v3411 = vsel %vm3362, %v3329, %v1753
  %v3412 = vsel %vm3362, %v3330, %v1755
  %v3413 = vsel %vm3362, %v3331, %v1757
  %v3414 = vsel %vm3362, %v3332, %v1759
  %v3415 = vsel %vm3362, %v3333, %v1761
  %v3416 = vsel %vm3362, %v3334, %v1763
  %v3417 = vsel %vm3362, %v3335, %v1765
  %v3418 = vsel %vm3362, %v3336, %v1767
  %v3419 = vsel %vm3362, %v3337, %v1769
  %v3420 = vsel %vm3362, %v3338, %v1771
  %v3421 = vsel %vm3362, %v3339, %v1773
  %v3422 = vsel %vm3362, %v3340, %v1775
  %v3423 = vsel %vm3362, %v3341, %v1777
  %v3424 = vsel %vm3362, %v3342, %v1779
  %v3425 = vsel %vm3362, %v3343, %v1781
  %v3426 = vsel %vm3362, %v3344, %v1783
  %v3427 = vsel %vm3362, %v3345, %v1785
  %v3428 = vsel %vm3362, %v3346, %v1787
  %v3429 = vsel %vm3362, %v3347, %v1789
  %v3430 = vsel %vm3362, %v3348, %v1791
  %v3431 = vsel %vm3362, %v3349, %v1793
  %v3432 = vsel %vm3362, %v3350, %v1795
  %v3433 = vsel %vm3362, %v3351, %v1797
  %v3434 = vsel %vm3362, %v3352, %v1799
  %v3435 = vsel %vm3362, %v3353, %v1801
  %v3436 = vsel %vm3362, %v3354, %v1803
  %v3437 = vsel %vm3362, %v3355, %v1805
  %v3438 = vsel %vm3362, %v3356, %v1807
  %v3439 = vsel %vm3362, %v3357, %v1809
  %v3440 = vsel %vm3362, %v3358, %v1811
  %v3441 = vsel %vm3362, %v3359, %v1813
  %v3442 = vsel %vm3362, %v3360, %v1815
  %v3443 = vsel %vm3362, %v3361, %v1817
  %vm3444 = vcmask 162816
  %v3445 = vsel %vm3444, %v3363, %v1981
  %v3446 = vsel %vm3444, %v3364, %v1983
  %v3447 = vsel %vm3444, %v3365, %v1985
  %v3448 = vsel %vm3444, %v3366, %v1987
  %v3449 = vsel %vm3444, %v3367, %v1989
  %v3450 = vsel %vm3444, %v3368, %v1991
  %v3451 = vsel %vm3444, %v3369, %v1993
  %v3452 = vsel %vm3444, %v3370, %v1995
  %v3453 = vsel %vm3444, %v3371, %v1997
  %v3454 = vsel %vm3444, %v3372, %v1999
  %v3455 = vsel %vm3444, %v3373, %v2001
  %v3456 = vsel %vm3444, %v3374, %v2003
  %v3457 = vsel %vm3444, %v3375, %v2005
  %v3458 = vsel %vm3444, %v3376, %v2007
  %v3459 = vsel %vm3444, %v3377, %v2009
  %v3460 = vsel %vm3444, %v3378, %v2011
  %v3461 = vsel %vm3444, %v3379, %v2013
  %v3462 = vsel %vm3444, %v3380, %v2015
  %v3463 = vsel %vm3444, %v3381, %v2017
  %v3464 = vsel %vm3444, %v3382, %v2019
  %v3465 = vsel %vm3444, %v3383, %v2021
  %v3466 = vsel %vm3444, %v3384, %v2023
  %v3467 = vsel %vm3444, %v3385, %v2025
  %v3468 = vsel %vm3444, %v3386, %v2027
  %v3469 = vsel %vm3444, %v3387, %v2029
  %v3470 = vsel %vm3444, %v3388, %v2031
  %v3471 = vsel %vm3444, %v3389, %v2033
  %v3472 = vsel %vm3444, %v3390, %v2035
  %v3473 = vsel %vm3444, %v3391, %v2037
  %v3474 = vsel %vm3444, %v3392, %v2039
  %v3475 = vsel %vm3444, %v3393, %v2041
  %v3476 = vsel %vm3444, %v3394, %v2043
  %v3477 = vsel %vm3444, %v3395, %v2045
  %v3478 = vsel %vm3444, %v3396, %v2047
  %v3479 = vsel %vm3444, %v3397, %v2049
  %v3480 = vsel %vm3444, %v3398, %v2051
  %v3481 = vsel %vm3444, %v3399, %v2053
  %v3482 = vsel %vm3444, %v3400, %v2055
  %v3483 = vsel %vm3444, %v3401, %v2057
  %v3484 = vsel %vm3444, %v3402, %v2059
  %v3485 = vsel %vm3444, %v3403, %v2061
  %v3486 = vsel %vm3444, %v3404, %v2063
  %v3487 = vsel %vm3444, %v3405, %v2065
  %v3488 = vsel %vm3444, %v3406, %v2067
  %v3489 = vsel %vm3444, %v3407, %v2069
  %v3490 = vsel %vm3444, %v3408, %v2071
  %v3491 = vsel %vm3444, %v3409, %v2073
  %v3492 = vsel %vm3444, %v3410, %v2075
  %v3493 = vsel %vm3444, %v3411, %v2077
  %v3494 = vsel %vm3444, %v3412, %v2079
  %v3495 = vsel %vm3444, %v3413, %v2081
  %v3496 = vsel %vm3444, %v3414, %v2083
  %v3497 = vsel %vm3444, %v3415, %v2085
  %v3498 = vsel %vm3444, %v3416, %v2087
  %v3499 = vsel %vm3444, %v3417, %v2089
  %v3500 = vsel %vm3444, %v3418, %v2091
  %v3501 = vsel %vm3444, %v3419, %v2093
  %v3502 = vsel %vm3444, %v3420, %v2095
  %v3503 = vsel %vm3444, %v3421, %v2097
  %v3504 = vsel %vm3444, %v3422, %v2099
  %v3505 = vsel %vm3444, %v3423, %v2101
  %v3506 = vsel %vm3444, %v3424, %v2103
  %v3507 = vsel %vm3444, %v3425, %v2105
  %v3508 = vsel %vm3444, %v3426, %v2107
  %v3509 = vsel %vm3444, %v3427, %v2109
  %v3510 = vsel %vm3444, %v3428, %v2111
  %v3511 = vsel %vm3444, %v3429, %v2113
  %v3512 = vsel %vm3444, %v3430, %v2115
  %v3513 = vsel %vm3444, %v3431, %v2117
  %v3514 = vsel %vm3444, %v3432, %v2119
  %v3515 = vsel %vm3444, %v3433, %v2121
  %v3516 = vsel %vm3444, %v3434, %v2123
  %v3517 = vsel %vm3444, %v3435, %v2125
  %v3518 = vsel %vm3444, %v3436, %v2127
  %v3519 = vsel %vm3444, %v3437, %v2129
  %v3520 = vsel %vm3444, %v3438, %v2131
  %v3521 = vsel %vm3444, %v3439, %v2133
  %v3522 = vsel %vm3444, %v3440, %v2135
  %v3523 = vsel %vm3444, %v3441, %v2137
  %v3524 = vsel %vm3444, %v3442, %v2139
  %v3525 = vsel %vm3444, %v3443, %v2141
  %vm3526 = vcmask 195584
  %v3527 = vsel %vm3526, %v3445, %v2226
  %v3528 = vsel %vm3526, %v3446, %v2228
  %v3529 = vsel %vm3526, %v3447, %v2230
  %v3530 = vsel %vm3526, %v3448, %v2232
  %v3531 = vsel %vm3526, %v3449, %v2234
  %v3532 = vsel %vm3526, %v3450, %v2236
  %v3533 = vsel %vm3526, %v3451, %v2238
  %v3534 = vsel %vm3526, %v3452, %v2240
  %v3535 = vsel %vm3526, %v3453, %v2242
  %v3536 = vsel %vm3526, %v3454, %v2244
  %v3537 = vsel %vm3526, %v3455, %v2246
  %v3538 = vsel %vm3526, %v3456, %v2248
  %v3539 = vsel %vm3526, %v3457, %v2250
  %v3540 = vsel %vm3526, %v3458, %v2252
  %v3541 = vsel %vm3526, %v3459, %v2254
  %v3542 = vsel %vm3526, %v3460, %v2256
  %v3543 = vsel %vm3526, %v3461, %v2258
  %v3544 = vsel %vm3526, %v3462, %v2260
  %v3545 = vsel %vm3526, %v3463, %v2262
  %v3546 = vsel %vm3526, %v3464, %v2264
  %v3547 = vsel %vm3526, %v3465, %v2266
  %v3548 = vsel %vm3526, %v3466, %v2268
  %v3549 = vsel %vm3526, %v3467, %v2270
  %v3550 = vsel %vm3526, %v3468, %v2272
  %v3551 = vsel %vm3526, %v3469, %v2274
  %v3552 = vsel %vm3526, %v3470, %v2276
  %v3553 = vsel %vm3526, %v3471, %v2278
  %v3554 = vsel %vm3526, %v3472, %v2280
  %v3555 = vsel %vm3526, %v3473, %v2282
  %v3556 = vsel %vm3526, %v3474, %v2284
  %v3557 = vsel %vm3526, %v3475, %v2286
  %v3558 = vsel %vm3526, %v3476, %v2288
  %v3559 = vsel %vm3526, %v3477, %v2290
  %v3560 = vsel %vm3526, %v3478, %v2292
  %v3561 = vsel %vm3526, %v3479, %v2294
  %v3562 = vsel %vm3526, %v3480, %v2296
  %v3563 = vsel %vm3526, %v3481, %v2298
  %v3564 = vsel %vm3526, %v3482, %v2300
  %v3565 = vsel %vm3526, %v3483, %v2302
  %v3566 = vsel %vm3526, %v3484, %v2304
  %v3567 = vsel %vm3526, %v3485, %v2306
  %v3568 = vsel %vm3526, %v3486, %v2308
  %v3569 = vsel %vm3526, %v3487, %v2310
  %v3570 = vsel %vm3526, %v3488, %v2312
  %v3571 = vsel %vm3526, %v3489, %v2314
  %v3572 = vsel %vm3526, %v3490, %v2316
  %v3573 = vsel %vm3526, %v3491, %v2318
  %v3574 = vsel %vm3526, %v3492, %v2320
  %v3575 = vsel %vm3526, %v3493, %v2322
  %v3576 = vsel %vm3526, %v3494, %v2324
  %v3577 = vsel %vm3526, %v3495, %v2326
  %v3578 = vsel %vm3526, %v3496, %v2328
  %v3579 = vsel %vm3526, %v3497, %v2330
  %v3580 = vsel %vm3526, %v3498, %v2332
  %v3581 = vsel %vm3526, %v3499, %v2334
  %v3582 = vsel %vm3526, %v3500, %v2336
  %v3583 = vsel %vm3526, %v3501, %v2338
  %v3584 = vsel %vm3526, %v3502, %v2340
  %v3585 = vsel %vm3526, %v3503, %v2342
  %v3586 = vsel %vm3526, %v3504, %v2344
  %v3587 = vsel %vm3526, %v3505, %v2346
  %v3588 = vsel %vm3526, %v3506, %v2348
  %v3589 = vsel %vm3526, %v3507, %v2350
  %v3590 = vsel %vm3526, %v3508, %v2352
  %v3591 = vsel %vm3526, %v3509, %v2354
  %v3592 = vsel %vm3526, %v3510, %v2356
  %v3593 = vsel %vm3526, %v3511, %v2358
  %v3594 = vsel %vm3526, %v3512, %v2360
  %v3595 = vsel %vm3526, %v3513, %v2362
  %v3596 = vsel %vm3526, %v3514, %v2364
  %v3597 = vsel %vm3526, %v3515, %v2366
  %v3598 = vsel %vm3526, %v3516, %v2368
  %v3599 = vsel %vm3526, %v3517, %v2370
  %v3600 = vsel %vm3526, %v3518, %v2372
  %v3601 = vsel %vm3526, %v3519, %v2374
  %v3602 = vsel %vm3526, %v3520, %v2376
  %v3603 = vsel %vm3526, %v3521, %v2378
  %v3604 = vsel %vm3526, %v3522, %v2380
  %v3605 = vsel %vm3526, %v3523, %v2382
  %v3606 = vsel %vm3526, %v3524, %v2384
  %v3607 = vsel %vm3526, %v3525, %v2386
  %vm3608 = vcmask 228352
  %v3609 = vsel %vm3608, %v3527, %v2550
  %v3610 = vsel %vm3608, %v3528, %v2552
  %v3611 = vsel %vm3608, %v3529, %v2554
  %v3612 = vsel %vm3608, %v3530, %v2556
  %v3613 = vsel %vm3608, %v3531, %v2558
  %v3614 = vsel %vm3608, %v3532, %v2560
  %v3615 = vsel %vm3608, %v3533, %v2562
  %v3616 = vsel %vm3608, %v3534, %v2564
  %v3617 = vsel %vm3608, %v3535, %v2566
  %v3618 = vsel %vm3608, %v3536, %v2568
  %v3619 = vsel %vm3608, %v3537, %v2570
  %v3620 = vsel %vm3608, %v3538, %v2572
  %v3621 = vsel %vm3608, %v3539, %v2574
  %v3622 = vsel %vm3608, %v3540, %v2576
  %v3623 = vsel %vm3608, %v3541, %v2578
  %v3624 = vsel %vm3608, %v3542, %v2580
  %v3625 = vsel %vm3608, %v3543, %v2582
  %v3626 = vsel %vm3608, %v3544, %v2584
  %v3627 = vsel %vm3608, %v3545, %v2586
  %v3628 = vsel %vm3608, %v3546, %v2588
  %v3629 = vsel %vm3608, %v3547, %v2590
  %v3630 = vsel %vm3608, %v3548, %v2592
  %v3631 = vsel %vm3608, %v3549, %v2594
  %v3632 = vsel %vm3608, %v3550, %v2596
  %v3633 = vsel %vm3608, %v3551, %v2598
  %v3634 = vsel %vm3608, %v3552, %v2600
  %v3635 = vsel %vm3608, %v3553, %v2602
  %v3636 = vsel %vm3608, %v3554, %v2604
  %v3637 = vsel %vm3608, %v3555, %v2606
  %v3638 = vsel %vm3608, %v3556, %v2608
  %v3639 = vsel %vm3608, %v3557, %v2610
  %v3640 = vsel %vm3608, %v3558, %v2612
  %v3641 = vsel %vm3608, %v3559, %v2614
  %v3642 = vsel %vm3608, %v3560, %v2616
  %v3643 = vsel %vm3608, %v3561, %v2618
  %v3644 = vsel %vm3608, %v3562, %v2620
  %v3645 = vsel %vm3608, %v3563, %v2622
  %v3646 = vsel %vm3608, %v3564, %v2624
  %v3647 = vsel %vm3608, %v3565, %v2626
  %v3648 = vsel %vm3608, %v3566, %v2628
  %v3649 = vsel %vm3608, %v3567, %v2630
  %v3650 = vsel %vm3608, %v3568, %v2632
  %v3651 = vsel %vm3608, %v3569, %v2634
  %v3652 = vsel %vm3608, %v3570, %v2636
  %v3653 = vsel %vm3608, %v3571, %v2638
  %v3654 = vsel %vm3608, %v3572, %v2640
  %v3655 = vsel %vm3608, %v3573, %v2642
  %v3656 = vsel %vm3608, %v3574, %v2644
  %v3657 = vsel %vm3608, %v3575, %v2646
  %v3658 = vsel %vm3608, %v3576, %v2648
  %v3659 = vsel %vm3608, %v3577, %v2650
  %v3660 = vsel %vm3608, %v3578, %v2652
  %v3661 = vsel %vm3608, %v3579, %v2654
  %v3662 = vsel %vm3608, %v3580, %v2656
  %v3663 = vsel %vm3608, %v3581, %v2658
  %v3664 = vsel %vm3608, %v3582, %v2660
  %v3665 = vsel %vm3608, %v3583, %v2662
  %v3666 = vsel %vm3608, %v3584, %v2664
  %v3667 = vsel %vm3608, %v3585, %v2666
  %v3668 = vsel %vm3608, %v3586, %v2668
  %v3669 = vsel %vm3608, %v3587, %v2670
  %v3670 = vsel %vm3608, %v3588, %v2672
  %v3671 = vsel %vm3608, %v3589, %v2674
  %v3672 = vsel %vm3608, %v3590, %v2676
  %v3673 = vsel %vm3608, %v3591, %v2678
  %v3674 = vsel %vm3608, %v3592, %v2680
  %v3675 = vsel %vm3608, %v3593, %v2682
  %v3676 = vsel %vm3608, %v3594, %v2684
  %v3677 = vsel %vm3608, %v3595, %v2686
  %v3678 = vsel %vm3608, %v3596, %v2688
  %v3679 = vsel %vm3608, %v3597, %v2690
  %v3680 = vsel %vm3608, %v3598, %v2692
  %v3681 = vsel %vm3608, %v3599, %v2694
  %v3682 = vsel %vm3608, %v3600, %v2696
  %v3683 = vsel %vm3608, %v3601, %v2698
  %v3684 = vsel %vm3608, %v3602, %v2700
  %v3685 = vsel %vm3608, %v3603, %v2702
  %v3686 = vsel %vm3608, %v3604, %v2704
  %v3687 = vsel %vm3608, %v3605, %v2706
  %v3688 = vsel %vm3608, %v3606, %v2708
  %v3689 = vsel %vm3608, %v3607, %v2710
  %vm3690 = vcmask 261120
  %v3691 = vsel %vm3690, %v3609, %v2874
  %v3692 = vsel %vm3690, %v3610, %v2876
  %v3693 = vsel %vm3690, %v3611, %v2878
  %v3694 = vsel %vm3690, %v3612, %v2880
  %v3695 = vsel %vm3690, %v3613, %v2882
  %v3696 = vsel %vm3690, %v3614, %v2884
  %v3697 = vsel %vm3690, %v3615, %v2886
  %v3698 = vsel %vm3690, %v3616, %v2888
  %v3699 = vsel %vm3690, %v3617, %v2890
  %v3700 = vsel %vm3690, %v3618, %v2892
  %v3701 = vsel %vm3690, %v3619, %v2894
  %v3702 = vsel %vm3690, %v3620, %v2896
  %v3703 = vsel %vm3690, %v3621, %v2898
  %v3704 = vsel %vm3690, %v3622, %v2900
  %v3705 = vsel %vm3690, %v3623, %v2902
  %v3706 = vsel %vm3690, %v3624, %v2904
  %v3707 = vsel %vm3690, %v3625, %v2906
  %v3708 = vsel %vm3690, %v3626, %v2908
  %v3709 = vsel %vm3690, %v3627, %v2910
  %v3710 = vsel %vm3690, %v3628, %v2912
  %v3711 = vsel %vm3690, %v3629, %v2914
  %v3712 = vsel %vm3690, %v3630, %v2916
  %v3713 = vsel %vm3690, %v3631, %v2918
  %v3714 = vsel %vm3690, %v3632, %v2920
  %v3715 = vsel %vm3690, %v3633, %v2922
  %v3716 = vsel %vm3690, %v3634, %v2924
  %v3717 = vsel %vm3690, %v3635, %v2926
  %v3718 = vsel %vm3690, %v3636, %v2928
  %v3719 = vsel %vm3690, %v3637, %v2930
  %v3720 = vsel %vm3690, %v3638, %v2932
  %v3721 = vsel %vm3690, %v3639, %v2934
  %v3722 = vsel %vm3690, %v3640, %v2936
  %v3723 = vsel %vm3690, %v3641, %v2938
  %v3724 = vsel %vm3690, %v3642, %v2940
  %v3725 = vsel %vm3690, %v3643, %v2942
  %v3726 = vsel %vm3690, %v3644, %v2944
  %v3727 = vsel %vm3690, %v3645, %v2946
  %v3728 = vsel %vm3690, %v3646, %v2948
  %v3729 = vsel %vm3690, %v3647, %v2950
  %v3730 = vsel %vm3690, %v3648, %v2952
  %v3731 = vsel %vm3690, %v3649, %v2954
  %v3732 = vsel %vm3690, %v3650, %v2956
  %v3733 = vsel %vm3690, %v3651, %v2958
  %v3734 = vsel %vm3690, %v3652, %v2960
  %v3735 = vsel %vm3690, %v3653, %v2962
  %v3736 = vsel %vm3690, %v3654, %v2964
  %v3737 = vsel %vm3690, %v3655, %v2966
  %v3738 = vsel %vm3690, %v3656, %v2968
  %v3739 = vsel %vm3690, %v3657, %v2970
  %v3740 = vsel %vm3690, %v3658, %v2972
  %v3741 = vsel %vm3690, %v3659, %v2974
  %v3742 = vsel %vm3690, %v3660, %v2976
  %v3743 = vsel %vm3690, %v3661, %v2978
  %v3744 = vsel %vm3690, %v3662, %v2980
  %v3745 = vsel %vm3690, %v3663, %v2982
  %v3746 = vsel %vm3690, %v3664, %v2984
  %v3747 = vsel %vm3690, %v3665, %v2986
  %v3748 = vsel %vm3690, %v3666, %v2988
  %v3749 = vsel %vm3690, %v3667, %v2990
  %v3750 = vsel %vm3690, %v3668, %v2992
  %v3751 = vsel %vm3690, %v3669, %v2994
  %v3752 = vsel %vm3690, %v3670, %v2996
  %v3753 = vsel %vm3690, %v3671, %v2998
  %v3754 = vsel %vm3690, %v3672, %v3000
  %v3755 = vsel %vm3690, %v3673, %v3002
  %v3756 = vsel %vm3690, %v3674, %v3004
  %v3757 = vsel %vm3690, %v3675, %v3006
  %v3758 = vsel %vm3690, %v3676, %v3008
  %v3759 = vsel %vm3690, %v3677, %v3010
  %v3760 = vsel %vm3690, %v3678, %v3012
  %v3761 = vsel %vm3690, %v3679, %v3014
  %v3762 = vsel %vm3690, %v3680, %v3016
  %v3763 = vsel %vm3690, %v3681, %v3018
  %v3764 = vsel %vm3690, %v3682, %v3020
  %v3765 = vsel %vm3690, %v3683, %v3022
  %v3766 = vsel %vm3690, %v3684, %v3024
  %v3767 = vsel %vm3690, %v3685, %v3026
  %v3768 = vsel %vm3690, %v3686, %v3028
  %v3769 = vsel %vm3690, %v3687, %v3030
  %v3770 = vsel %vm3690, %v3688, %v3032
  %v3771 = vsel %vm3690, %v3689, %v3034
  %v3772 = vpack.c.bf16 %v3692, %v3691
  %v3773 = vpack.c.bf16 %v3694, %v3693
  %v3774 = vpack.c.bf16 %v3696, %v3695
  %v3775 = vpack.c.bf16 %v3698, %v3697
  %v3776 = vpack.c.bf16 %v3700, %v3699
  %v3777 = vpack.c.bf16 %v3702, %v3701
  %v3778 = vpack.c.bf16 %v3704, %v3703
  %v3779 = vpack.c.bf16 %v3706, %v3705
  %v3780 = vpack.c.bf16 %v3708, %v3707
  %v3781 = vpack.c.bf16 %v3710, %v3709
  %v3782 = vpack.c.bf16 %v3712, %v3711
  %v3783 = vpack.c.bf16 %v3714, %v3713
  %v3784 = vpack.c.bf16 %v3716, %v3715
  %v3785 = vpack.c.bf16 %v3718, %v3717
  %v3786 = vpack.c.bf16 %v3720, %v3719
  %v3787 = vpack.c.bf16 %v3722, %v3721
  %v3788 = vpack.c.bf16 %v3724, %v3723
  %v3789 = vpack.c.bf16 %v3726, %v3725
  %v3790 = vpack.c.bf16 %v3728, %v3727
  %v3791 = vpack.c.bf16 %v3730, %v3729
  %v3792 = vpack.c.bf16 %v3732, %v3731
  %v3793 = vpack.c.bf16 %v3734, %v3733
  %v3794 = vpack.c.bf16 %v3736, %v3735
  %v3795 = vpack.c.bf16 %v3738, %v3737
  %v3796 = vpack.c.bf16 %v3740, %v3739
  %v3797 = vpack.c.bf16 %v3742, %v3741
  %v3798 = vpack.c.bf16 %v3744, %v3743
  %v3799 = vpack.c.bf16 %v3746, %v3745
  %v3800 = vpack.c.bf16 %v3748, %v3747
  %v3801 = vpack.c.bf16 %v3750, %v3749
  %v3802 = vpack.c.bf16 %v3752, %v3751
  %v3803 = vpack.c.bf16 %v3754, %v3753
  %v3804 = vpack.c.bf16 %v3756, %v3755
  %v3805 = vpack.c.bf16 %v3758, %v3757
  %v3806 = vpack.c.bf16 %v3760, %v3759
  %v3807 = vpack.c.bf16 %v3762, %v3761
  %v3808 = vpack.c.bf16 %v3764, %v3763
  %v3809 = vpack.c.bf16 %v3766, %v3765
  %v3810 = vpack.c.bf16 %v3768, %v3767
  %v3811 = vpack.c.bf16 %v3770, %v3769
  %v3812 = vpack.c.bf16 %v3771, %v3771
  %v3813 = vld [vmem:[%s2] sm:$0xf]
  %v3814 = vld [vmem:[%s2 + $0x4] sm:$0xf]
  %v3815 = vld [vmem:[%s2 + $0x8] sm:$0xf]
  %v3816 = vld [vmem:[%s2 + $0xc] sm:$0xf]
  %v3817 = vld [vmem:[%s2 + $0x10] sm:$0x3]
  %v3823 = vunpack.c.l.b16 %v3813
  %v3824 = vunpack.c.l.b16 %v3814
  %v3825 = vunpack.c.l.b16 %v3815
  %v3826 = vunpack.c.l.b16 %v3816
  %v3827 = vunpack.c.l.b16 %v3817
  %v3828 = vpack.c.b16 %v3824, %v3823
  %v3829 = vpack.c.b16 %v3826, %v3825
  %v3830 = vpack.c.b16 %v3827, %v3827
  %vm3833 = vcmask 293888
  %v3835 = vsel %vm3833, %v3772, 0
  %v3838 = vsel %vm3833, %v3773, 0
  %v3841 = vsel %vm3833, %v3774, 0
  %v3844 = vsel %vm3833, %v3775, 0
  %v3847 = vsel %vm3833, %v3776, 0
  %v3850 = vsel %vm3833, %v3777, 0
  %v3853 = vsel %vm3833, %v3778, 0
  %v3856 = vsel %vm3833, %v3779, 0
  %v3859 = vsel %vm3833, %v3780, 0
  %v3862 = vsel %vm3833, %v3781, 0
  %v3865 = vsel %vm3833, %v3782, 0
  %v3868 = vsel %vm3833, %v3783, 0
  %v3871 = vsel %vm3833, %v3784, 0
  %v3874 = vsel %vm3833, %v3785, 0
  %v3877 = vsel %vm3833, %v3786, 0
  %v3880 = vsel %vm3833, %v3787, 0
  %v3883 = vsel %vm3833, %v3788, 0
  %v3886 = vsel %vm3833, %v3789, 0
  %v3889 = vsel %vm3833, %v3790, 0
  %v3892 = vsel %vm3833, %v3791, 0
  %v3895 = vsel %vm3833, %v3792, 0
  %v3898 = vsel %vm3833, %v3793, 0
  %v3901 = vsel %vm3833, %v3794, 0
  %v3904 = vsel %vm3833, %v3795, 0
  %v3907 = vsel %vm3833, %v3796, 0
  %v3910 = vsel %vm3833, %v3797, 0
  %v3913 = vsel %vm3833, %v3798, 0
  %v3916 = vsel %vm3833, %v3799, 0
  %v3919 = vsel %vm3833, %v3800, 0
  %v3922 = vsel %vm3833, %v3801, 0
  %v3925 = vsel %vm3833, %v3802, 0
  %v3928 = vsel %vm3833, %v3803, 0
  %v3931 = vsel %vm3833, %v3804, 0
  %v3934 = vsel %vm3833, %v3805, 0
  %v3937 = vsel %vm3833, %v3806, 0
  %v3940 = vsel %vm3833, %v3807, 0
  %v3943 = vsel %vm3833, %v3808, 0
  %v3946 = vsel %vm3833, %v3809, 0
  %v3949 = vsel %vm3833, %v3810, 0
  %v3952 = vsel %vm3833, %v3811, 0
  %v3955 = vsel %vm3833, %v3812, 0
  %vm3957 = vcmask 1041408
  %v3959 = vsel %vm3957, %v3830, 0
  %3961 = vmatprep.subr.bf16.mxu0 0
  %3962 = vmatpush1.bf16.msra.mxu0 0
  %3963 = vmatprep.subr.bf16.mxu0 0
  %3964 = vmatpush1.bf16.msra.mxu0 0
  %3965 = vmatprep.subr.bf16.mxu0 0
  %3966 = vmatpush1.bf16.msra.mxu0 0
  %3967 = vmatprep.subr.bf16.mxu0 0
  %3968 = vmatpush1.bf16.msra.mxu0 0
  %3969 = vmatprep.subr.bf16.mxu0 0
  %3970 = vmatpush1.bf16.msra.mxu0 0
  %3971 = vmatprep.subr.bf16.mxu0 0
  %3972 = vmatpush1.bf16.msra.mxu0 %v3959
  %3973 = vmatprep.subr.bf16.mxu0 0
  %3974 = vmatpush1.bf16.msra.mxu0 %v3829
  %3975 = vmatprep.subr.bf16.mxu0 0
  %3976 = vmatpush1.bf16.msra.mxu0 %v3828
  %3977 = vmatprep.subr.bf16.mxu0 0
  %3978 = vmatpush2.bf16.msra.mxu0 0
  %3979 = vmatprep.subr.bf16.mxu0 0
  %3980 = vmatpush2.bf16.msra.mxu0 0
  %3981 = vmatprep.subr.bf16.mxu0 0
  %3982 = vmatpush2.bf16.msra.mxu0 0
  %3983 = vmatprep.subr.bf16.mxu0 0
  %3984 = vmatpush2.bf16.msra.mxu0 0
  %3985 = vmatprep.subr.bf16.mxu0 0
  %3986 = vmatpush2.bf16.msra.mxu0 0
  %3987 = vmatprep.subr.bf16.mxu0 0
  %3988 = vmatpush2.bf16.msra.mxu0 0
  %3989 = vmatprep.subr.bf16.mxu0 0
  %3990 = vmatpush2.bf16.msra.mxu0 0
  %3991 = vmatprep.subr.bf16.mxu0 0
  %3992 = vmatpush2.bf16.msra.mxu0 0
  %3993 = vmatprep.mubr.bf16.mxu0 0
  %3994 = vmatmul.mubr.bf16.gmra.mxu0 %v3835
  %v3995 = vpop.f32.mrf.mxu0
  %v3996 = vadd.f32 0.0, %v3995
  %v3997 = vpop.f32.mrf.mxu0
  %v3998 = vpop.f32.mrf.mxu0
  %v3999 = vadd.f32 0.0, %v3998
  %v4000 = vpop.f32.mrf.mxu0
  %4001 = vmatprep.mubr.bf16.mxu0 0
  %4002 = vmatmul.mubr.bf16.gmra.mxu0 %v3838
  %v4003 = vpop.f32.mrf.mxu0
  %v4004 = vadd.f32 0.0, %v4003
  %v4005 = vpop.f32.mrf.mxu0
  %v4006 = vpop.f32.mrf.mxu0
  %v4007 = vadd.f32 0.0, %v4006
  %v4008 = vpop.f32.mrf.mxu0
  %4009 = vmatprep.mubr.bf16.mxu0 0
  %4010 = vmatmul.mubr.bf16.gmra.mxu0 %v3841
  %v4011 = vpop.f32.mrf.mxu0
  %v4012 = vadd.f32 0.0, %v4011
  %v4013 = vpop.f32.mrf.mxu0
  %v4014 = vpop.f32.mrf.mxu0
  %v4015 = vadd.f32 0.0, %v4014
  %v4016 = vpop.f32.mrf.mxu0
  %4017 = vmatprep.mubr.bf16.mxu0 0
  %4018 = vmatmul.mubr.bf16.gmra.mxu0 %v3844
  %v4019 = vpop.f32.mrf.mxu0
  %v4020 = vadd.f32 0.0, %v4019
  %v4021 = vpop.f32.mrf.mxu0
  %v4022 = vpop.f32.mrf.mxu0
  %v4023 = vadd.f32 0.0, %v4022
  %v4024 = vpop.f32.mrf.mxu0
  %4025 = vmatprep.mubr.bf16.mxu0 0
  %4026 = vmatmul.mubr.bf16.gmra.mxu0 %v3847
  %v4027 = vpop.f32.mrf.mxu0
  %v4028 = vadd.f32 0.0, %v4027
  %v4029 = vpop.f32.mrf.mxu0
  %v4030 = vpop.f32.mrf.mxu0
  %v4031 = vadd.f32 0.0, %v4030
  %v4032 = vpop.f32.mrf.mxu0
  %4033 = vmatprep.mubr.bf16.mxu0 0
  %4034 = vmatmul.mubr.bf16.gmra.mxu0 %v3850
  %v4035 = vpop.f32.mrf.mxu0
  %v4036 = vadd.f32 0.0, %v4035
  %v4037 = vpop.f32.mrf.mxu0
  %v4038 = vpop.f32.mrf.mxu0
  %v4039 = vadd.f32 0.0, %v4038
  %v4040 = vpop.f32.mrf.mxu0
  %4041 = vmatprep.mubr.bf16.mxu0 0
  %4042 = vmatmul.mubr.bf16.gmra.mxu0 %v3853
  %v4043 = vpop.f32.mrf.mxu0
  %v4044 = vadd.f32 0.0, %v4043
  %v4045 = vpop.f32.mrf.mxu0
  %v4046 = vpop.f32.mrf.mxu0
  %v4047 = vadd.f32 0.0, %v4046
  %v4048 = vpop.f32.mrf.mxu0
  %4049 = vmatprep.mubr.bf16.mxu0 0
  %4050 = vmatmul.mubr.bf16.gmra.mxu0 %v3856
  %v4051 = vpop.f32.mrf.mxu0
  %v4052 = vadd.f32 0.0, %v4051
  %v4053 = vpop.f32.mrf.mxu0
  %v4054 = vpop.f32.mrf.mxu0
  %v4055 = vadd.f32 0.0, %v4054
  %v4056 = vpop.f32.mrf.mxu0
  %4057 = vmatprep.mubr.bf16.mxu0 0
  %4058 = vmatmul.mubr.bf16.gmra.mxu0 %v3859
  %v4059 = vpop.f32.mrf.mxu0
  %v4060 = vadd.f32 0.0, %v4059
  %v4061 = vpop.f32.mrf.mxu0
  %v4062 = vpop.f32.mrf.mxu0
  %v4063 = vadd.f32 0.0, %v4062
  %v4064 = vpop.f32.mrf.mxu0
  %4065 = vmatprep.mubr.bf16.mxu0 0
  %4066 = vmatmul.mubr.bf16.gmra.mxu0 %v3862
  %v4067 = vpop.f32.mrf.mxu0
  %v4068 = vadd.f32 0.0, %v4067
  %v4069 = vpop.f32.mrf.mxu0
  %v4070 = vpop.f32.mrf.mxu0
  %v4071 = vadd.f32 0.0, %v4070
  %v4072 = vpop.f32.mrf.mxu0
  %4073 = vmatprep.mubr.bf16.mxu0 0
  %4074 = vmatmul.mubr.bf16.gmra.mxu0 %v3865
  %v4075 = vpop.f32.mrf.mxu0
  %v4076 = vadd.f32 0.0, %v4075
  %v4077 = vpop.f32.mrf.mxu0
  %v4078 = vpop.f32.mrf.mxu0
  %v4079 = vadd.f32 0.0, %v4078
  %v4080 = vpop.f32.mrf.mxu0
  %4081 = vmatprep.mubr.bf16.mxu0 0
  %4082 = vmatmul.mubr.bf16.gmra.mxu0 %v3868
  %v4083 = vpop.f32.mrf.mxu0
  %v4084 = vadd.f32 0.0, %v4083
  %v4085 = vpop.f32.mrf.mxu0
  %v4086 = vpop.f32.mrf.mxu0
  %v4087 = vadd.f32 0.0, %v4086
  %v4088 = vpop.f32.mrf.mxu0
  %4089 = vmatprep.mubr.bf16.mxu0 0
  %4090 = vmatmul.mubr.bf16.gmra.mxu0 %v3871
  %v4091 = vpop.f32.mrf.mxu0
  %v4092 = vadd.f32 0.0, %v4091
  %v4093 = vpop.f32.mrf.mxu0
  %v4094 = vpop.f32.mrf.mxu0
  %v4095 = vadd.f32 0.0, %v4094
  %v4096 = vpop.f32.mrf.mxu0
  %4097 = vmatprep.mubr.bf16.mxu0 0
  %4098 = vmatmul.mubr.bf16.gmra.mxu0 %v3874
  %v4099 = vpop.f32.mrf.mxu0
  %v4100 = vadd.f32 0.0, %v4099
  %v4101 = vpop.f32.mrf.mxu0
  %v4102 = vpop.f32.mrf.mxu0
  %v4103 = vadd.f32 0.0, %v4102
  %v4104 = vpop.f32.mrf.mxu0
  %4105 = vmatprep.mubr.bf16.mxu0 0
  %4106 = vmatmul.mubr.bf16.gmra.mxu0 %v3877
  %v4107 = vpop.f32.mrf.mxu0
  %v4108 = vadd.f32 0.0, %v4107
  %v4109 = vpop.f32.mrf.mxu0
  %v4110 = vpop.f32.mrf.mxu0
  %v4111 = vadd.f32 0.0, %v4110
  %v4112 = vpop.f32.mrf.mxu0
  %4113 = vmatprep.mubr.bf16.mxu0 0
  %4114 = vmatmul.mubr.bf16.gmra.mxu0 %v3880
  %v4115 = vpop.f32.mrf.mxu0
  %v4116 = vadd.f32 0.0, %v4115
  %v4117 = vpop.f32.mrf.mxu0
  %v4118 = vpop.f32.mrf.mxu0
  %v4119 = vadd.f32 0.0, %v4118
  %v4120 = vpop.f32.mrf.mxu0
  %4121 = vmatprep.mubr.bf16.mxu0 0
  %4122 = vmatmul.mubr.bf16.gmra.mxu0 %v3883
  %v4123 = vpop.f32.mrf.mxu0
  %v4124 = vadd.f32 0.0, %v4123
  %v4125 = vpop.f32.mrf.mxu0
  %v4126 = vpop.f32.mrf.mxu0
  %v4127 = vadd.f32 0.0, %v4126
  %v4128 = vpop.f32.mrf.mxu0
  %4129 = vmatprep.mubr.bf16.mxu0 0
  %4130 = vmatmul.mubr.bf16.gmra.mxu0 %v3886
  %v4131 = vpop.f32.mrf.mxu0
  %v4132 = vadd.f32 0.0, %v4131
  %v4133 = vpop.f32.mrf.mxu0
  %v4134 = vpop.f32.mrf.mxu0
  %v4135 = vadd.f32 0.0, %v4134
  %v4136 = vpop.f32.mrf.mxu0
  %4137 = vmatprep.mubr.bf16.mxu0 0
  %4138 = vmatmul.mubr.bf16.gmra.mxu0 %v3889
  %v4139 = vpop.f32.mrf.mxu0
  %v4140 = vadd.f32 0.0, %v4139
  %v4141 = vpop.f32.mrf.mxu0
  %v4142 = vpop.f32.mrf.mxu0
  %v4143 = vadd.f32 0.0, %v4142
  %v4144 = vpop.f32.mrf.mxu0
  %4145 = vmatprep.mubr.bf16.mxu0 0
  %4146 = vmatmul.mubr.bf16.gmra.mxu0 %v3892
  %v4147 = vpop.f32.mrf.mxu0
  %v4148 = vadd.f32 0.0, %v4147
  %v4149 = vpop.f32.mrf.mxu0
  %v4150 = vpop.f32.mrf.mxu0
  %v4151 = vadd.f32 0.0, %v4150
  %v4152 = vpop.f32.mrf.mxu0
  %4153 = vmatprep.mubr.bf16.mxu0 0
  %4154 = vmatmul.mubr.bf16.gmra.mxu0 %v3895
  %v4155 = vpop.f32.mrf.mxu0
  %v4156 = vadd.f32 0.0, %v4155
  %v4157 = vpop.f32.mrf.mxu0
  %v4158 = vpop.f32.mrf.mxu0
  %v4159 = vadd.f32 0.0, %v4158
  %v4160 = vpop.f32.mrf.mxu0
  %4161 = vmatprep.mubr.bf16.mxu0 0
  %4162 = vmatmul.mubr.bf16.gmra.mxu0 %v3898
  %v4163 = vpop.f32.mrf.mxu0
  %v4164 = vadd.f32 0.0, %v4163
  %v4165 = vpop.f32.mrf.mxu0
  %v4166 = vpop.f32.mrf.mxu0
  %v4167 = vadd.f32 0.0, %v4166
  %v4168 = vpop.f32.mrf.mxu0
  %4169 = vmatprep.mubr.bf16.mxu0 0
  %4170 = vmatmul.mubr.bf16.gmra.mxu0 %v3901
  %v4171 = vpop.f32.mrf.mxu0
  %v4172 = vadd.f32 0.0, %v4171
  %v4173 = vpop.f32.mrf.mxu0
  %v4174 = vpop.f32.mrf.mxu0
  %v4175 = vadd.f32 0.0, %v4174
  %v4176 = vpop.f32.mrf.mxu0
  %4177 = vmatprep.mubr.bf16.mxu0 0
  %4178 = vmatmul.mubr.bf16.gmra.mxu0 %v3904
  %v4179 = vpop.f32.mrf.mxu0
  %v4180 = vadd.f32 0.0, %v4179
  %v4181 = vpop.f32.mrf.mxu0
  %v4182 = vpop.f32.mrf.mxu0
  %v4183 = vadd.f32 0.0, %v4182
  %v4184 = vpop.f32.mrf.mxu0
  %4185 = vmatprep.mubr.bf16.mxu0 0
  %4186 = vmatmul.mubr.bf16.gmra.mxu0 %v3907
  %v4187 = vpop.f32.mrf.mxu0
  %v4188 = vadd.f32 0.0, %v4187
  %v4189 = vpop.f32.mrf.mxu0
  %v4190 = vpop.f32.mrf.mxu0
  %v4191 = vadd.f32 0.0, %v4190
  %v4192 = vpop.f32.mrf.mxu0
  %4193 = vmatprep.mubr.bf16.mxu0 0
  %4194 = vmatmul.mubr.bf16.gmra.mxu0 %v3910
  %v4195 = vpop.f32.mrf.mxu0
  %v4196 = vadd.f32 0.0, %v4195
  %v4197 = vpop.f32.mrf.mxu0
  %v4198 = vpop.f32.mrf.mxu0
  %v4199 = vadd.f32 0.0, %v4198
  %v4200 = vpop.f32.mrf.mxu0
  %4201 = vmatprep.mubr.bf16.mxu0 0
  %4202 = vmatmul.mubr.bf16.gmra.mxu0 %v3913
  %v4203 = vpop.f32.mrf.mxu0
  %v4204 = vadd.f32 0.0, %v4203
  %v4205 = vpop.f32.mrf.mxu0
  %v4206 = vpop.f32.mrf.mxu0
  %v4207 = vadd.f32 0.0, %v4206
  %v4208 = vpop.f32.mrf.mxu0
  %4209 = vmatprep.mubr.bf16.mxu0 0
  %4210 = vmatmul.mubr.bf16.gmra.mxu0 %v3916
  %v4211 = vpop.f32.mrf.mxu0
  %v4212 = vadd.f32 0.0, %v4211
  %v4213 = vpop.f32.mrf.mxu0
  %v4214 = vpop.f32.mrf.mxu0
  %v4215 = vadd.f32 0.0, %v4214
  %v4216 = vpop.f32.mrf.mxu0
  %4217 = vmatprep.mubr.bf16.mxu0 0
  %4218 = vmatmul.mubr.bf16.gmra.mxu0 %v3919
  %v4219 = vpop.f32.mrf.mxu0
  %v4220 = vadd.f32 0.0, %v4219
  %v4221 = vpop.f32.mrf.mxu0
  %v4222 = vpop.f32.mrf.mxu0
  %v4223 = vadd.f32 0.0, %v4222
  %v4224 = vpop.f32.mrf.mxu0
  %4225 = vmatprep.mubr.bf16.mxu0 0
  %4226 = vmatmul.mubr.bf16.gmra.mxu0 %v3922
  %v4227 = vpop.f32.mrf.mxu0
  %v4228 = vadd.f32 0.0, %v4227
  %v4229 = vpop.f32.mrf.mxu0
  %v4230 = vpop.f32.mrf.mxu0
  %v4231 = vadd.f32 0.0, %v4230
  %v4232 = vpop.f32.mrf.mxu0
  %4233 = vmatprep.mubr.bf16.mxu0 0
  %4234 = vmatmul.mubr.bf16.gmra.mxu0 %v3925
  %v4235 = vpop.f32.mrf.mxu0
  %v4236 = vadd.f32 0.0, %v4235
  %v4237 = vpop.f32.mrf.mxu0
  %v4238 = vpop.f32.mrf.mxu0
  %v4239 = vadd.f32 0.0, %v4238
  %v4240 = vpop.f32.mrf.mxu0
  %4241 = vmatprep.mubr.bf16.mxu0 0
  %4242 = vmatmul.mubr.bf16.gmra.mxu0 %v3928
  %v4243 = vpop.f32.mrf.mxu0
  %v4244 = vadd.f32 0.0, %v4243
  %v4245 = vpop.f32.mrf.mxu0
  %v4246 = vpop.f32.mrf.mxu0
  %v4247 = vadd.f32 0.0, %v4246
  %v4248 = vpop.f32.mrf.mxu0
  %4249 = vmatprep.mubr.bf16.mxu0 0
  %4250 = vmatmul.mubr.bf16.gmra.mxu0 %v3931
  %v4251 = vpop.f32.mrf.mxu0
  %v4252 = vadd.f32 0.0, %v4251
  %v4253 = vpop.f32.mrf.mxu0
  %v4254 = vpop.f32.mrf.mxu0
  %v4255 = vadd.f32 0.0, %v4254
  %v4256 = vpop.f32.mrf.mxu0
  %4257 = vmatprep.mubr.bf16.mxu0 0
  %4258 = vmatmul.mubr.bf16.gmra.mxu0 %v3934
  %v4259 = vpop.f32.mrf.mxu0
  %v4260 = vadd.f32 0.0, %v4259
  %v4261 = vpop.f32.mrf.mxu0
  %v4262 = vpop.f32.mrf.mxu0
  %v4263 = vadd.f32 0.0, %v4262
  %v4264 = vpop.f32.mrf.mxu0
  %4265 = vmatprep.mubr.bf16.mxu0 0
  %4266 = vmatmul.mubr.bf16.gmra.mxu0 %v3937
  %v4267 = vpop.f32.mrf.mxu0
  %v4268 = vadd.f32 0.0, %v4267
  %v4269 = vpop.f32.mrf.mxu0
  %v4270 = vpop.f32.mrf.mxu0
  %v4271 = vadd.f32 0.0, %v4270
  %v4272 = vpop.f32.mrf.mxu0
  %4273 = vmatprep.mubr.bf16.mxu0 0
  %4274 = vmatmul.mubr.bf16.gmra.mxu0 %v3940
  %v4275 = vpop.f32.mrf.mxu0
  %v4276 = vadd.f32 0.0, %v4275
  %v4277 = vpop.f32.mrf.mxu0
  %v4278 = vpop.f32.mrf.mxu0
  %v4279 = vadd.f32 0.0, %v4278
  %v4280 = vpop.f32.mrf.mxu0
  %4281 = vmatprep.mubr.bf16.mxu0 0
  %4282 = vmatmul.mubr.bf16.gmra.mxu0 %v3943
  %v4283 = vpop.f32.mrf.mxu0
  %v4284 = vadd.f32 0.0, %v4283
  %v4285 = vpop.f32.mrf.mxu0
  %v4286 = vpop.f32.mrf.mxu0
  %v4287 = vadd.f32 0.0, %v4286
  %v4288 = vpop.f32.mrf.mxu0
  %4289 = vmatprep.mubr.bf16.mxu0 0
  %4290 = vmatmul.mubr.bf16.gmra.mxu0 %v3946
  %v4291 = vpop.f32.mrf.mxu0
  %v4292 = vadd.f32 0.0, %v4291
  %v4293 = vpop.f32.mrf.mxu0
  %v4294 = vpop.f32.mrf.mxu0
  %v4295 = vadd.f32 0.0, %v4294
  %v4296 = vpop.f32.mrf.mxu0
  %4297 = vmatprep.mubr.bf16.mxu0 0
  %4298 = vmatmul.mubr.bf16.gmra.mxu0 %v3949
  %v4299 = vpop.f32.mrf.mxu0
  %v4300 = vadd.f32 0.0, %v4299
  %v4301 = vpop.f32.mrf.mxu0
  %v4302 = vpop.f32.mrf.mxu0
  %v4303 = vadd.f32 0.0, %v4302
  %v4304 = vpop.f32.mrf.mxu0
  %4305 = vmatprep.mubr.bf16.mxu0 0
  %4306 = vmatmul.mubr.bf16.gmra.mxu0 %v3952
  %v4307 = vpop.f32.mrf.mxu0
  %v4308 = vadd.f32 0.0, %v4307
  %v4309 = vpop.f32.mrf.mxu0
  %v4310 = vpop.f32.mrf.mxu0
  %v4311 = vadd.f32 0.0, %v4310
  %v4312 = vpop.f32.mrf.mxu0
  %4313 = vmatprep.mubr.bf16.mxu0 0
  %4314 = vmatmul.mubr.bf16.gmra.mxu0 %v3955
  %v4315 = vpop.f32.mrf.mxu0
  %v4316 = vadd.f32 0.0, %v4315
  %v4317 = vpop.f32.mrf.mxu0
  %v4318 = vpop.f32.mrf.mxu0
  %v4319 = vpop.f32.mrf.mxu0
  %4320 = vdwg.mxu0
  %4322 = vset.pattern.permute.xlu0 0
  %4323 = vperm.xlu0 %4322, %v30
  %v4324 = vpop.permute.xlu0 %4323
  %4327 = vset.pattern.permute.xlu0 0
  %4328 = vperm.xlu0 %4327, %v31
  %v4329 = vpop.permute.xlu0 %4328
  %4332 = vset.pattern.permute.xlu0 0
  %4333 = vperm.xlu0 %4332, %v32
  %v4334 = vpop.permute.xlu0 %4333
  %4337 = vset.pattern.permute.xlu0 0
  %4338 = vperm.xlu0 %4337, %v33
  %v4339 = vpop.permute.xlu0 %4338
  %4342 = vset.pattern.permute.xlu0 0
  %4343 = vperm.xlu0 %4342, %v34
  %v4344 = vpop.permute.xlu0 %4343
  %4347 = vset.pattern.permute.xlu0 0
  %4348 = vperm.xlu0 %4347, %v35
  %v4349 = vpop.permute.xlu0 %4348
  %4352 = vset.pattern.permute.xlu0 0
  %4353 = vperm.xlu0 %4352, %v36
  %v4354 = vpop.permute.xlu0 %4353
  %4357 = vset.pattern.permute.xlu0 0
  %4358 = vperm.xlu0 %4357, %v37
  %v4359 = vpop.permute.xlu0 %4358
  %4362 = vset.pattern.permute.xlu0 0
  %4363 = vperm.xlu0 %4362, %v38
  %v4364 = vpop.permute.xlu0 %4363
  %4367 = vset.pattern.permute.xlu0 0
  %4368 = vperm.xlu0 %4367, %v39
  %v4369 = vpop.permute.xlu0 %4368
  %4372 = vset.pattern.permute.xlu0 0
  %4373 = vperm.xlu0 %4372, %v40
  %v4374 = vpop.permute.xlu0 %4373
  %4377 = vset.pattern.permute.xlu0 0
  %4378 = vperm.xlu0 %4377, %v41
  %v4379 = vpop.permute.xlu0 %4378
  %4382 = vset.pattern.permute.xlu0 0
  %4383 = vperm.xlu0 %4382, %v42
  %v4384 = vpop.permute.xlu0 %4383
  %4387 = vset.pattern.permute.xlu0 0
  %4388 = vperm.xlu0 %4387, %v43
  %v4389 = vpop.permute.xlu0 %4388
  %4392 = vset.pattern.permute.xlu0 0
  %4393 = vperm.xlu0 %4392, %v44
  %v4394 = vpop.permute.xlu0 %4393
  %4397 = vset.pattern.permute.xlu0 0
  %4398 = vperm.xlu0 %4397, %v45
  %v4399 = vpop.permute.xlu0 %4398
  %4402 = vset.pattern.permute.xlu0 0
  %4403 = vperm.xlu0 %4402, %v46
  %v4404 = vpop.permute.xlu0 %4403
  %4407 = vset.pattern.permute.xlu0 0
  %4408 = vperm.xlu0 %4407, %v47
  %v4409 = vpop.permute.xlu0 %4408
  %4412 = vset.pattern.permute.xlu0 0
  %4413 = vperm.xlu0 %4412, %v48
  %v4414 = vpop.permute.xlu0 %4413
  %4417 = vset.pattern.permute.xlu0 0
  %4418 = vperm.xlu0 %4417, %v49
  %v4419 = vpop.permute.xlu0 %4418
  %4422 = vset.pattern.permute.xlu0 0
  %4423 = vperm.xlu0 %4422, %v50
  %v4424 = vpop.permute.xlu0 %4423
  %4427 = vset.pattern.permute.xlu0 0
  %4428 = vperm.xlu0 %4427, %v51
  %v4429 = vpop.permute.xlu0 %4428
  %4432 = vset.pattern.permute.xlu0 0
  %4433 = vperm.xlu0 %4432, %v52
  %v4434 = vpop.permute.xlu0 %4433
  %4437 = vset.pattern.permute.xlu0 0
  %4438 = vperm.xlu0 %4437, %v53
  %v4439 = vpop.permute.xlu0 %4438
  %4442 = vset.pattern.permute.xlu0 0
  %4443 = vperm.xlu0 %4442, %v54
  %v4444 = vpop.permute.xlu0 %4443
  %4447 = vset.pattern.permute.xlu0 0
  %4448 = vperm.xlu0 %4447, %v55
  %v4449 = vpop.permute.xlu0 %4448
  %4452 = vset.pattern.permute.xlu0 0
  %4453 = vperm.xlu0 %4452, %v56
  %v4454 = vpop.permute.xlu0 %4453
  %4457 = vset.pattern.permute.xlu0 0
  %4458 = vperm.xlu0 %4457, %v57
  %v4459 = vpop.permute.xlu0 %4458
  %4462 = vset.pattern.permute.xlu0 0
  %4463 = vperm.xlu0 %4462, %v58
  %v4464 = vpop.permute.xlu0 %4463
  %4467 = vset.pattern.permute.xlu0 0
  %4468 = vperm.xlu0 %4467, %v59
  %v4469 = vpop.permute.xlu0 %4468
  %4472 = vset.pattern.permute.xlu0 0
  %4473 = vperm.xlu0 %4472, %v60
  %v4474 = vpop.permute.xlu0 %4473
  %4477 = vset.pattern.permute.xlu0 0
  %4478 = vperm.xlu0 %4477, %v61
  %v4479 = vpop.permute.xlu0 %4478
  %4482 = vset.pattern.permute.xlu0 0
  %4483 = vperm.xlu0 %4482, %v62
  %v4484 = vpop.permute.xlu0 %4483
  %4487 = vset.pattern.permute.xlu0 0
  %4488 = vperm.xlu0 %4487, %v63
  %v4489 = vpop.permute.xlu0 %4488
  %4492 = vset.pattern.permute.xlu0 0
  %4493 = vperm.xlu0 %4492, %v64
  %v4494 = vpop.permute.xlu0 %4493
  %4497 = vset.pattern.permute.xlu0 0
  %4498 = vperm.xlu0 %4497, %v65
  %v4499 = vpop.permute.xlu0 %4498
  %4502 = vset.pattern.permute.xlu0 0
  %4503 = vperm.xlu0 %4502, %v66
  %v4504 = vpop.permute.xlu0 %4503
  %4507 = vset.pattern.permute.xlu0 0
  %4508 = vperm.xlu0 %4507, %v67
  %v4509 = vpop.permute.xlu0 %4508
  %4512 = vset.pattern.permute.xlu0 0
  %4513 = vperm.xlu0 %4512, %v68
  %v4514 = vpop.permute.xlu0 %4513
  %4517 = vset.pattern.permute.xlu0 0
  %4518 = vperm.xlu0 %4517, %v69
  %v4519 = vpop.permute.xlu0 %4518
  %4522 = vset.pattern.permute.xlu0 0
  %4523 = vperm.xlu0 %4522, %v70
  %v4524 = vpop.permute.xlu0 %4523
  %4527 = vset.pattern.permute.xlu0 0
  %4528 = vperm.xlu0 %4527, %v71
  %v4529 = vpop.permute.xlu0 %4528
  %4532 = vset.pattern.permute.xlu0 0
  %4533 = vperm.xlu0 %4532, %v72
  %v4534 = vpop.permute.xlu0 %4533
  %4537 = vset.pattern.permute.xlu0 0
  %4538 = vperm.xlu0 %4537, %v73
  %v4539 = vpop.permute.xlu0 %4538
  %4542 = vset.pattern.permute.xlu0 0
  %4543 = vperm.xlu0 %4542, %v74
  %v4544 = vpop.permute.xlu0 %4543
  %4547 = vset.pattern.permute.xlu0 0
  %4548 = vperm.xlu0 %4547, %v75
  %v4549 = vpop.permute.xlu0 %4548
  %4552 = vset.pattern.permute.xlu0 0
  %4553 = vperm.xlu0 %4552, %v76
  %v4554 = vpop.permute.xlu0 %4553
  %4557 = vset.pattern.permute.xlu0 0
  %4558 = vperm.xlu0 %4557, %v77
  %v4559 = vpop.permute.xlu0 %4558
  %4562 = vset.pattern.permute.xlu0 0
  %4563 = vperm.xlu0 %4562, %v78
  %v4564 = vpop.permute.xlu0 %4563
  %4567 = vset.pattern.permute.xlu0 0
  %4568 = vperm.xlu0 %4567, %v79
  %v4569 = vpop.permute.xlu0 %4568
  %4572 = vset.pattern.permute.xlu0 0
  %4573 = vperm.xlu0 %4572, %v80
  %v4574 = vpop.permute.xlu0 %4573
  %4577 = vset.pattern.permute.xlu0 0
  %4578 = vperm.xlu0 %4577, %v81
  %v4579 = vpop.permute.xlu0 %4578
  %4582 = vset.pattern.permute.xlu0 0
  %4583 = vperm.xlu0 %4582, %v82
  %v4584 = vpop.permute.xlu0 %4583
  %4587 = vset.pattern.permute.xlu0 0
  %4588 = vperm.xlu0 %4587, %v83
  %v4589 = vpop.permute.xlu0 %4588
  %4592 = vset.pattern.permute.xlu0 0
  %4593 = vperm.xlu0 %4592, %v84
  %v4594 = vpop.permute.xlu0 %4593
  %4597 = vset.pattern.permute.xlu0 0
  %4598 = vperm.xlu0 %4597, %v85
  %v4599 = vpop.permute.xlu0 %4598
  %4602 = vset.pattern.permute.xlu0 0
  %4603 = vperm.xlu0 %4602, %v86
  %v4604 = vpop.permute.xlu0 %4603
  %4607 = vset.pattern.permute.xlu0 0
  %4608 = vperm.xlu0 %4607, %v87
  %v4609 = vpop.permute.xlu0 %4608
  %4612 = vset.pattern.permute.xlu0 0
  %4613 = vperm.xlu0 %4612, %v88
  %v4614 = vpop.permute.xlu0 %4613
  %4617 = vset.pattern.permute.xlu0 0
  %4618 = vperm.xlu0 %4617, %v89
  %v4619 = vpop.permute.xlu0 %4618
  %4622 = vset.pattern.permute.xlu0 0
  %4623 = vperm.xlu0 %4622, %v90
  %v4624 = vpop.permute.xlu0 %4623
  %4627 = vset.pattern.permute.xlu0 0
  %4628 = vperm.xlu0 %4627, %v91
  %v4629 = vpop.permute.xlu0 %4628
  %4632 = vset.pattern.permute.xlu0 0
  %4633 = vperm.xlu0 %4632, %v92
  %v4634 = vpop.permute.xlu0 %4633
  %4637 = vset.pattern.permute.xlu0 0
  %4638 = vperm.xlu0 %4637, %v93
  %v4639 = vpop.permute.xlu0 %4638
  %4642 = vset.pattern.permute.xlu0 0
  %4643 = vperm.xlu0 %4642, %v94
  %v4644 = vpop.permute.xlu0 %4643
  %4647 = vset.pattern.permute.xlu0 0
  %4648 = vperm.xlu0 %4647, %v95
  %v4649 = vpop.permute.xlu0 %4648
  %4652 = vset.pattern.permute.xlu0 0
  %4653 = vperm.xlu0 %4652, %v96
  %v4654 = vpop.permute.xlu0 %4653
  %4657 = vset.pattern.permute.xlu0 0
  %4658 = vperm.xlu0 %4657, %v97
  %v4659 = vpop.permute.xlu0 %4658
  %4662 = vset.pattern.permute.xlu0 0
  %4663 = vperm.xlu0 %4662, %v98
  %v4664 = vpop.permute.xlu0 %4663
  %4667 = vset.pattern.permute.xlu0 0
  %4668 = vperm.xlu0 %4667, %v99
  %v4669 = vpop.permute.xlu0 %4668
  %4672 = vset.pattern.permute.xlu0 0
  %4673 = vperm.xlu0 %4672, %v100
  %v4674 = vpop.permute.xlu0 %4673
  %4677 = vset.pattern.permute.xlu0 0
  %4678 = vperm.xlu0 %4677, %v101
  %v4679 = vpop.permute.xlu0 %4678
  %4682 = vset.pattern.permute.xlu0 0
  %4683 = vperm.xlu0 %4682, %v102
  %v4684 = vpop.permute.xlu0 %4683
  %4687 = vset.pattern.permute.xlu0 0
  %4688 = vperm.xlu0 %4687, %v103
  %v4689 = vpop.permute.xlu0 %4688
  %4692 = vset.pattern.permute.xlu0 0
  %4693 = vperm.xlu0 %4692, %v104
  %v4694 = vpop.permute.xlu0 %4693
  %4697 = vset.pattern.permute.xlu0 0
  %4698 = vperm.xlu0 %4697, %v105
  %v4699 = vpop.permute.xlu0 %4698
  %4702 = vset.pattern.permute.xlu0 0
  %4703 = vperm.xlu0 %4702, %v106
  %v4704 = vpop.permute.xlu0 %4703
  %4707 = vset.pattern.permute.xlu0 0
  %4708 = vperm.xlu0 %4707, %v107
  %v4709 = vpop.permute.xlu0 %4708
  %4712 = vset.pattern.permute.xlu0 0
  %4713 = vperm.xlu0 %4712, %v108
  %v4714 = vpop.permute.xlu0 %4713
  %4717 = vset.pattern.permute.xlu0 0
  %4718 = vperm.xlu0 %4717, %v109
  %v4719 = vpop.permute.xlu0 %4718
  %4722 = vset.pattern.permute.xlu0 0
  %4723 = vperm.xlu0 %4722, %v110
  %v4724 = vpop.permute.xlu0 %4723
  %v4726 = vmul.f32 %v3996, %v4324
  %v4727 = vmul.f32 %v3999, %v4329
  %v4728 = vmul.f32 %v4004, %v4334
  %v4729 = vmul.f32 %v4007, %v4339
  %v4730 = vmul.f32 %v4012, %v4344
  %v4731 = vmul.f32 %v4015, %v4349
  %v4732 = vmul.f32 %v4020, %v4354
  %v4733 = vmul.f32 %v4023, %v4359
  %v4734 = vmul.f32 %v4028, %v4364
  %v4735 = vmul.f32 %v4031, %v4369
  %v4736 = vmul.f32 %v4036, %v4374
  %v4737 = vmul.f32 %v4039, %v4379
  %v4738 = vmul.f32 %v4044, %v4384
  %v4739 = vmul.f32 %v4047, %v4389
  %v4740 = vmul.f32 %v4052, %v4394
  %v4741 = vmul.f32 %v4055, %v4399
  %v4742 = vmul.f32 %v4060, %v4404
  %v4743 = vmul.f32 %v4063, %v4409
  %v4744 = vmul.f32 %v4068, %v4414
  %v4745 = vmul.f32 %v4071, %v4419
  %v4746 = vmul.f32 %v4076, %v4424
  %v4747 = vmul.f32 %v4079, %v4429
  %v4748 = vmul.f32 %v4084, %v4434
  %v4749 = vmul.f32 %v4087, %v4439
  %v4750 = vmul.f32 %v4092, %v4444
  %v4751 = vmul.f32 %v4095, %v4449
  %v4752 = vmul.f32 %v4100, %v4454
  %v4753 = vmul.f32 %v4103, %v4459
  %v4754 = vmul.f32 %v4108, %v4464
  %v4755 = vmul.f32 %v4111, %v4469
  %v4756 = vmul.f32 %v4116, %v4474
  %v4757 = vmul.f32 %v4119, %v4479
  %v4758 = vmul.f32 %v4124, %v4484
  %v4759 = vmul.f32 %v4127, %v4489
  %v4760 = vmul.f32 %v4132, %v4494
  %v4761 = vmul.f32 %v4135, %v4499
  %v4762 = vmul.f32 %v4140, %v4504
  %v4763 = vmul.f32 %v4143, %v4509
  %v4764 = vmul.f32 %v4148, %v4514
  %v4765 = vmul.f32 %v4151, %v4519
  %v4766 = vmul.f32 %v4156, %v4524
  %v4767 = vmul.f32 %v4159, %v4529
  %v4768 = vmul.f32 %v4164, %v4534
  %v4769 = vmul.f32 %v4167, %v4539
  %v4770 = vmul.f32 %v4172, %v4544
  %v4771 = vmul.f32 %v4175, %v4549
  %v4772 = vmul.f32 %v4180, %v4554
  %v4773 = vmul.f32 %v4183, %v4559
  %v4774 = vmul.f32 %v4188, %v4564
  %v4775 = vmul.f32 %v4191, %v4569
  %v4776 = vmul.f32 %v4196, %v4574
  %v4777 = vmul.f32 %v4199, %v4579
  %v4778 = vmul.f32 %v4204, %v4584
  %v4779 = vmul.f32 %v4207, %v4589
  %v4780 = vmul.f32 %v4212, %v4594
  %v4781 = vmul.f32 %v4215, %v4599
  %v4782 = vmul.f32 %v4220, %v4604
  %v4783 = vmul.f32 %v4223, %v4609
  %v4784 = vmul.f32 %v4228, %v4614
  %v4785 = vmul.f32 %v4231, %v4619
  %v4786 = vmul.f32 %v4236, %v4624
  %v4787 = vmul.f32 %v4239, %v4629
  %v4788 = vmul.f32 %v4244, %v4634
  %v4789 = vmul.f32 %v4247, %v4639
  %v4790 = vmul.f32 %v4252, %v4644
  %v4791 = vmul.f32 %v4255, %v4649
  %v4792 = vmul.f32 %v4260, %v4654
  %v4793 = vmul.f32 %v4263, %v4659
  %v4794 = vmul.f32 %v4268, %v4664
  %v4795 = vmul.f32 %v4271, %v4669
  %v4796 = vmul.f32 %v4276, %v4674
  %v4797 = vmul.f32 %v4279, %v4679
  %v4798 = vmul.f32 %v4284, %v4684
  %v4799 = vmul.f32 %v4287, %v4689
  %v4800 = vmul.f32 %v4292, %v4694
  %v4801 = vmul.f32 %v4295, %v4699
  %v4802 = vmul.f32 %v4300, %v4704
  %v4803 = vmul.f32 %v4303, %v4709
  %v4804 = vmul.f32 %v4308, %v4714
  %v4805 = vmul.f32 %v4311, %v4719
  %v4806 = vmul.f32 %v4316, %v4724
  %v4807 = vld [vmem:[%s3] sm:$0x1]
  %v4808 = vld [vmem:[%s4] sm:$0x1]
  %v4809 = vsel %vm3362, %v4726, 0.0
  %v4810 = vsel %vm3362, %v4727, 0.0
  %v4811 = vadd.f32 %v4809, %v4810
  %v4812 = vsel %vm3362, %v4728, 0.0
  %v4813 = vadd.f32 %v4811, %v4812
  %v4814 = vsel %vm3362, %v4729, 0.0
  %v4815 = vadd.f32 %v4813, %v4814
  %v4816 = vsel %vm3362, %v4730, 0.0
  %v4817 = vadd.f32 %v4815, %v4816
  %v4818 = vsel %vm3362, %v4731, 0.0
  %v4819 = vadd.f32 %v4817, %v4818
  %v4820 = vsel %vm3362, %v4732, 0.0
  %v4821 = vadd.f32 %v4819, %v4820
  %v4822 = vsel %vm3362, %v4733, 0.0
  %v4823 = vadd.f32 %v4821, %v4822
  %v4824 = vsel %vm3362, %v4734, 0.0
  %v4825 = vadd.f32 %v4823, %v4824
  %v4826 = vsel %vm3362, %v4735, 0.0
  %v4827 = vadd.f32 %v4825, %v4826
  %v4828 = vsel %vm3362, %v4736, 0.0
  %v4829 = vadd.f32 %v4827, %v4828
  %v4830 = vsel %vm3362, %v4737, 0.0
  %v4831 = vadd.f32 %v4829, %v4830
  %v4832 = vsel %vm3362, %v4738, 0.0
  %v4833 = vadd.f32 %v4831, %v4832
  %v4834 = vsel %vm3362, %v4739, 0.0
  %v4835 = vadd.f32 %v4833, %v4834
  %v4836 = vsel %vm3362, %v4740, 0.0
  %v4837 = vadd.f32 %v4835, %v4836
  %v4838 = vsel %vm3362, %v4741, 0.0
  %v4839 = vadd.f32 %v4837, %v4838
  %v4840 = vsel %vm3362, %v4742, 0.0
  %v4841 = vadd.f32 %v4839, %v4840
  %v4842 = vsel %vm3362, %v4743, 0.0
  %v4843 = vadd.f32 %v4841, %v4842
  %v4844 = vsel %vm3362, %v4744, 0.0
  %v4845 = vadd.f32 %v4843, %v4844
  %v4846 = vsel %vm3362, %v4745, 0.0
  %v4847 = vadd.f32 %v4845, %v4846
  %v4848 = vsel %vm3362, %v4746, 0.0
  %v4849 = vadd.f32 %v4847, %v4848
  %v4850 = vsel %vm3362, %v4747, 0.0
  %v4851 = vadd.f32 %v4849, %v4850
  %v4852 = vsel %vm3362, %v4748, 0.0
  %v4853 = vadd.f32 %v4851, %v4852
  %v4854 = vsel %vm3362, %v4749, 0.0
  %v4855 = vadd.f32 %v4853, %v4854
  %v4856 = vsel %vm3362, %v4750, 0.0
  %v4857 = vadd.f32 %v4855, %v4856
  %v4858 = vsel %vm3362, %v4751, 0.0
  %v4859 = vadd.f32 %v4857, %v4858
  %v4860 = vsel %vm3362, %v4752, 0.0
  %v4861 = vadd.f32 %v4859, %v4860
  %v4862 = vsel %vm3362, %v4753, 0.0
  %v4863 = vadd.f32 %v4861, %v4862
  %v4864 = vsel %vm3362, %v4754, 0.0
  %v4865 = vadd.f32 %v4863, %v4864
  %v4866 = vsel %vm3362, %v4755, 0.0
  %v4867 = vadd.f32 %v4865, %v4866
  %v4868 = vsel %vm3362, %v4756, 0.0
  %v4869 = vadd.f32 %v4867, %v4868
  %v4870 = vsel %vm3362, %v4757, 0.0
  %v4871 = vadd.f32 %v4869, %v4870
  %v4872 = vsel %vm3362, %v4758, 0.0
  %v4873 = vadd.f32 %v4871, %v4872
  %v4874 = vsel %vm3362, %v4759, 0.0
  %v4875 = vadd.f32 %v4873, %v4874
  %v4876 = vsel %vm3362, %v4760, 0.0
  %v4877 = vadd.f32 %v4875, %v4876
  %v4878 = vsel %vm3362, %v4761, 0.0
  %v4879 = vadd.f32 %v4877, %v4878
  %v4880 = vsel %vm3362, %v4762, 0.0
  %v4881 = vadd.f32 %v4879, %v4880
  %v4882 = vsel %vm3362, %v4763, 0.0
  %v4883 = vadd.f32 %v4881, %v4882
  %v4884 = vsel %vm3362, %v4764, 0.0
  %v4885 = vadd.f32 %v4883, %v4884
  %v4886 = vsel %vm3362, %v4765, 0.0
  %v4887 = vadd.f32 %v4885, %v4886
  %v4888 = vsel %vm3362, %v4766, 0.0
  %v4889 = vadd.f32 %v4887, %v4888
  %v4890 = vsel %vm3362, %v4767, 0.0
  %v4891 = vadd.f32 %v4889, %v4890
  %v4892 = vsel %vm3362, %v4768, 0.0
  %v4893 = vadd.f32 %v4891, %v4892
  %v4894 = vsel %vm3362, %v4769, 0.0
  %v4895 = vadd.f32 %v4893, %v4894
  %v4896 = vsel %vm3362, %v4770, 0.0
  %v4897 = vadd.f32 %v4895, %v4896
  %v4898 = vsel %vm3362, %v4771, 0.0
  %v4899 = vadd.f32 %v4897, %v4898
  %v4900 = vsel %vm3362, %v4772, 0.0
  %v4901 = vadd.f32 %v4899, %v4900
  %v4902 = vsel %vm3362, %v4773, 0.0
  %v4903 = vadd.f32 %v4901, %v4902
  %v4904 = vsel %vm3362, %v4774, 0.0
  %v4905 = vadd.f32 %v4903, %v4904
  %v4906 = vsel %vm3362, %v4775, 0.0
  %v4907 = vadd.f32 %v4905, %v4906
  %v4908 = vsel %vm3362, %v4776, 0.0
  %v4909 = vadd.f32 %v4907, %v4908
  %v4910 = vsel %vm3362, %v4777, 0.0
  %v4911 = vadd.f32 %v4909, %v4910
  %v4912 = vsel %vm3362, %v4778, 0.0
  %v4913 = vadd.f32 %v4911, %v4912
  %v4914 = vsel %vm3362, %v4779, 0.0
  %v4915 = vadd.f32 %v4913, %v4914
  %v4916 = vsel %vm3362, %v4780, 0.0
  %v4917 = vadd.f32 %v4915, %v4916
  %v4918 = vsel %vm3362, %v4781, 0.0
  %v4919 = vadd.f32 %v4917, %v4918
  %v4920 = vsel %vm3362, %v4782, 0.0
  %v4921 = vadd.f32 %v4919, %v4920
  %v4922 = vsel %vm3362, %v4783, 0.0
  %v4923 = vadd.f32 %v4921, %v4922
  %v4924 = vsel %vm3362, %v4784, 0.0
  %v4925 = vadd.f32 %v4923, %v4924
  %v4926 = vsel %vm3362, %v4785, 0.0
  %v4927 = vadd.f32 %v4925, %v4926
  %v4928 = vsel %vm3362, %v4786, 0.0
  %v4929 = vadd.f32 %v4927, %v4928
  %v4930 = vsel %vm3362, %v4787, 0.0
  %v4931 = vadd.f32 %v4929, %v4930
  %v4932 = vsel %vm3362, %v4788, 0.0
  %v4933 = vadd.f32 %v4931, %v4932
  %v4934 = vsel %vm3362, %v4789, 0.0
  %v4935 = vadd.f32 %v4933, %v4934
  %v4936 = vsel %vm3362, %v4790, 0.0
  %v4937 = vadd.f32 %v4935, %v4936
  %v4938 = vsel %vm3362, %v4791, 0.0
  %v4939 = vadd.f32 %v4937, %v4938
  %v4940 = vsel %vm3362, %v4792, 0.0
  %v4941 = vadd.f32 %v4939, %v4940
  %v4942 = vsel %vm3362, %v4793, 0.0
  %v4943 = vadd.f32 %v4941, %v4942
  %v4944 = vsel %vm3362, %v4794, 0.0
  %v4945 = vadd.f32 %v4943, %v4944
  %v4946 = vsel %vm3362, %v4795, 0.0
  %v4947 = vadd.f32 %v4945, %v4946
  %v4948 = vsel %vm3362, %v4796, 0.0
  %v4949 = vadd.f32 %v4947, %v4948
  %v4950 = vsel %vm3362, %v4797, 0.0
  %v4951 = vadd.f32 %v4949, %v4950
  %v4952 = vsel %vm3362, %v4798, 0.0
  %v4953 = vadd.f32 %v4951, %v4952
  %v4954 = vsel %vm3362, %v4799, 0.0
  %v4955 = vadd.f32 %v4953, %v4954
  %v4956 = vsel %vm3362, %v4800, 0.0
  %v4957 = vadd.f32 %v4955, %v4956
  %v4958 = vsel %vm3362, %v4801, 0.0
  %v4959 = vadd.f32 %v4957, %v4958
  %v4960 = vsel %vm3362, %v4802, 0.0
  %v4961 = vadd.f32 %v4959, %v4960
  %v4962 = vsel %vm3362, %v4803, 0.0
  %v4963 = vadd.f32 %v4961, %v4962
  %v4964 = vsel %vm3362, %v4804, 0.0
  %v4965 = vadd.f32 %v4963, %v4964
  %v4966 = vsel %vm3362, %v4805, 0.0
  %v4967 = vadd.f32 %v4965, %v4966
  %v4968 = vsel %vm3362, %v4806, 0.0
  %v4969 = vadd.f32 %v4967, %v4968
  %v4970 = vrot.slane %v4969, 4
  %v4971 = vadd.f32 %v4969, %v4970
  %v4972 = vrot.slane %v4971, 2
  %v4973 = vadd.f32 %v4971, %v4972
  %v4974 = vrot.slane %v4973, 1
  %v4975 = vadd.f32 %v4973, %v4974
  %v4976 = vmul.f32 %v4726, %v4726
  %v4977 = vmul.f32 %v4727, %v4727
  %v4978 = vmul.f32 %v4728, %v4728
  %v4979 = vmul.f32 %v4729, %v4729
  %v4980 = vmul.f32 %v4730, %v4730
  %v4981 = vmul.f32 %v4731, %v4731
  %v4982 = vmul.f32 %v4732, %v4732
  %v4983 = vmul.f32 %v4733, %v4733
  %v4984 = vmul.f32 %v4734, %v4734
  %v4985 = vmul.f32 %v4735, %v4735
  %v4986 = vmul.f32 %v4736, %v4736
  %v4987 = vmul.f32 %v4737, %v4737
  %v4988 = vmul.f32 %v4738, %v4738
  %v4989 = vmul.f32 %v4739, %v4739
  %v4990 = vmul.f32 %v4740, %v4740
  %v4991 = vmul.f32 %v4741, %v4741
  %v4992 = vmul.f32 %v4742, %v4742
  %v4993 = vmul.f32 %v4743, %v4743
  %v4994 = vmul.f32 %v4744, %v4744
  %v4995 = vmul.f32 %v4745, %v4745
  %v4996 = vmul.f32 %v4746, %v4746
  %v4997 = vmul.f32 %v4747, %v4747
  %v4998 = vmul.f32 %v4748, %v4748
  %v4999 = vmul.f32 %v4749, %v4749
  %v5000 = vmul.f32 %v4750, %v4750
  %v5001 = vmul.f32 %v4751, %v4751
  %v5002 = vmul.f32 %v4752, %v4752
  %v5003 = vmul.f32 %v4753, %v4753
  %v5004 = vmul.f32 %v4754, %v4754
  %v5005 = vmul.f32 %v4755, %v4755
  %v5006 = vmul.f32 %v4756, %v4756
  %v5007 = vmul.f32 %v4757, %v4757
  %v5008 = vmul.f32 %v4758, %v4758
  %v5009 = vmul.f32 %v4759, %v4759
  %v5010 = vmul.f32 %v4760, %v4760
  %v5011 = vmul.f32 %v4761, %v4761
  %v5012 = vmul.f32 %v4762, %v4762
  %v5013 = vmul.f32 %v4763, %v4763
  %v5014 = vmul.f32 %v4764, %v4764
  %v5015 = vmul.f32 %v4765, %v4765
  %v5016 = vmul.f32 %v4766, %v4766
  %v5017 = vmul.f32 %v4767, %v4767
  %v5018 = vmul.f32 %v4768, %v4768
  %v5019 = vmul.f32 %v4769, %v4769
  %v5020 = vmul.f32 %v4770, %v4770
  %v5021 = vmul.f32 %v4771, %v4771
  %v5022 = vmul.f32 %v4772, %v4772
  %v5023 = vmul.f32 %v4773, %v4773
  %v5024 = vmul.f32 %v4774, %v4774
  %v5025 = vmul.f32 %v4775, %v4775
  %v5026 = vmul.f32 %v4776, %v4776
  %v5027 = vmul.f32 %v4777, %v4777
  %v5028 = vmul.f32 %v4778, %v4778
  %v5029 = vmul.f32 %v4779, %v4779
  %v5030 = vmul.f32 %v4780, %v4780
  %v5031 = vmul.f32 %v4781, %v4781
  %v5032 = vmul.f32 %v4782, %v4782
  %v5033 = vmul.f32 %v4783, %v4783
  %v5034 = vmul.f32 %v4784, %v4784
  %v5035 = vmul.f32 %v4785, %v4785
  %v5036 = vmul.f32 %v4786, %v4786
  %v5037 = vmul.f32 %v4787, %v4787
  %v5038 = vmul.f32 %v4788, %v4788
  %v5039 = vmul.f32 %v4789, %v4789
  %v5040 = vmul.f32 %v4790, %v4790
  %v5041 = vmul.f32 %v4791, %v4791
  %v5042 = vmul.f32 %v4792, %v4792
  %v5043 = vmul.f32 %v4793, %v4793
  %v5044 = vmul.f32 %v4794, %v4794
  %v5045 = vmul.f32 %v4795, %v4795
  %v5046 = vmul.f32 %v4796, %v4796
  %v5047 = vmul.f32 %v4797, %v4797
  %v5048 = vmul.f32 %v4798, %v4798
  %v5049 = vmul.f32 %v4799, %v4799
  %v5050 = vmul.f32 %v4800, %v4800
  %v5051 = vmul.f32 %v4801, %v4801
  %v5052 = vmul.f32 %v4802, %v4802
  %v5053 = vmul.f32 %v4803, %v4803
  %v5054 = vmul.f32 %v4804, %v4804
  %v5055 = vmul.f32 %v4805, %v4805
  %v5056 = vmul.f32 %v4806, %v4806
  %v5057 = vsel %vm3362, %v4976, 0.0
  %v5058 = vsel %vm3362, %v4977, 0.0
  %v5059 = vadd.f32 %v5057, %v5058
  %v5060 = vsel %vm3362, %v4978, 0.0
  %v5061 = vadd.f32 %v5059, %v5060
  %v5062 = vsel %vm3362, %v4979, 0.0
  %v5063 = vadd.f32 %v5061, %v5062
  %v5064 = vsel %vm3362, %v4980, 0.0
  %v5065 = vadd.f32 %v5063, %v5064
  %v5066 = vsel %vm3362, %v4981, 0.0
  %v5067 = vadd.f32 %v5065, %v5066
  %v5068 = vsel %vm3362, %v4982, 0.0
  %v5069 = vadd.f32 %v5067, %v5068
  %v5070 = vsel %vm3362, %v4983, 0.0
  %v5071 = vadd.f32 %v5069, %v5070
  %v5072 = vsel %vm3362, %v4984, 0.0
  %v5073 = vadd.f32 %v5071, %v5072
  %v5074 = vsel %vm3362, %v4985, 0.0
  %v5075 = vadd.f32 %v5073, %v5074
  %v5076 = vsel %vm3362, %v4986, 0.0
  %v5077 = vadd.f32 %v5075, %v5076
  %v5078 = vsel %vm3362, %v4987, 0.0
  %v5079 = vadd.f32 %v5077, %v5078
  %v5080 = vsel %vm3362, %v4988, 0.0
  %v5081 = vadd.f32 %v5079, %v5080
  %v5082 = vsel %vm3362, %v4989, 0.0
  %v5083 = vadd.f32 %v5081, %v5082
  %v5084 = vsel %vm3362, %v4990, 0.0
  %v5085 = vadd.f32 %v5083, %v5084
  %v5086 = vsel %vm3362, %v4991, 0.0
  %v5087 = vadd.f32 %v5085, %v5086
  %v5088 = vsel %vm3362, %v4992, 0.0
  %v5089 = vadd.f32 %v5087, %v5088
  %v5090 = vsel %vm3362, %v4993, 0.0
  %v5091 = vadd.f32 %v5089, %v5090
  %v5092 = vsel %vm3362, %v4994, 0.0
  %v5093 = vadd.f32 %v5091, %v5092
  %v5094 = vsel %vm3362, %v4995, 0.0
  %v5095 = vadd.f32 %v5093, %v5094
  %v5096 = vsel %vm3362, %v4996, 0.0
  %v5097 = vadd.f32 %v5095, %v5096
  %v5098 = vsel %vm3362, %v4997, 0.0
  %v5099 = vadd.f32 %v5097, %v5098
  %v5100 = vsel %vm3362, %v4998, 0.0
  %v5101 = vadd.f32 %v5099, %v5100
  %v5102 = vsel %vm3362, %v4999, 0.0
  %v5103 = vadd.f32 %v5101, %v5102
  %v5104 = vsel %vm3362, %v5000, 0.0
  %v5105 = vadd.f32 %v5103, %v5104
  %v5106 = vsel %vm3362, %v5001, 0.0
  %v5107 = vadd.f32 %v5105, %v5106
  %v5108 = vsel %vm3362, %v5002, 0.0
  %v5109 = vadd.f32 %v5107, %v5108
  %v5110 = vsel %vm3362, %v5003, 0.0
  %v5111 = vadd.f32 %v5109, %v5110
  %v5112 = vsel %vm3362, %v5004, 0.0
  %v5113 = vadd.f32 %v5111, %v5112
  %v5114 = vsel %vm3362, %v5005, 0.0
  %v5115 = vadd.f32 %v5113, %v5114
  %v5116 = vsel %vm3362, %v5006, 0.0
  %v5117 = vadd.f32 %v5115, %v5116
  %v5118 = vsel %vm3362, %v5007, 0.0
  %v5119 = vadd.f32 %v5117, %v5118
  %v5120 = vsel %vm3362, %v5008, 0.0
  %v5121 = vadd.f32 %v5119, %v5120
  %v5122 = vsel %vm3362, %v5009, 0.0
  %v5123 = vadd.f32 %v5121, %v5122
  %v5124 = vsel %vm3362, %v5010, 0.0
  %v5125 = vadd.f32 %v5123, %v5124
  %v5126 = vsel %vm3362, %v5011, 0.0
  %v5127 = vadd.f32 %v5125, %v5126
  %v5128 = vsel %vm3362, %v5012, 0.0
  %v5129 = vadd.f32 %v5127, %v5128
  %v5130 = vsel %vm3362, %v5013, 0.0
  %v5131 = vadd.f32 %v5129, %v5130
  %v5132 = vsel %vm3362, %v5014, 0.0
  %v5133 = vadd.f32 %v5131, %v5132
  %v5134 = vsel %vm3362, %v5015, 0.0
  %v5135 = vadd.f32 %v5133, %v5134
  %v5136 = vsel %vm3362, %v5016, 0.0
  %v5137 = vadd.f32 %v5135, %v5136
  %v5138 = vsel %vm3362, %v5017, 0.0
  %v5139 = vadd.f32 %v5137, %v5138
  %v5140 = vsel %vm3362, %v5018, 0.0
  %v5141 = vadd.f32 %v5139, %v5140
  %v5142 = vsel %vm3362, %v5019, 0.0
  %v5143 = vadd.f32 %v5141, %v5142
  %v5144 = vsel %vm3362, %v5020, 0.0
  %v5145 = vadd.f32 %v5143, %v5144
  %v5146 = vsel %vm3362, %v5021, 0.0
  %v5147 = vadd.f32 %v5145, %v5146
  %v5148 = vsel %vm3362, %v5022, 0.0
  %v5149 = vadd.f32 %v5147, %v5148
  %v5150 = vsel %vm3362, %v5023, 0.0
  %v5151 = vadd.f32 %v5149, %v5150
  %v5152 = vsel %vm3362, %v5024, 0.0
  %v5153 = vadd.f32 %v5151, %v5152
  %v5154 = vsel %vm3362, %v5025, 0.0
  %v5155 = vadd.f32 %v5153, %v5154
  %v5156 = vsel %vm3362, %v5026, 0.0
  %v5157 = vadd.f32 %v5155, %v5156
  %v5158 = vsel %vm3362, %v5027, 0.0
  %v5159 = vadd.f32 %v5157, %v5158
  %v5160 = vsel %vm3362, %v5028, 0.0
  %v5161 = vadd.f32 %v5159, %v5160
  %v5162 = vsel %vm3362, %v5029, 0.0
  %v5163 = vadd.f32 %v5161, %v5162
  %v5164 = vsel %vm3362, %v5030, 0.0
  %v5165 = vadd.f32 %v5163, %v5164
  %v5166 = vsel %vm3362, %v5031, 0.0
  %v5167 = vadd.f32 %v5165, %v5166
  %v5168 = vsel %vm3362, %v5032, 0.0
  %v5169 = vadd.f32 %v5167, %v5168
  %v5170 = vsel %vm3362, %v5033, 0.0
  %v5171 = vadd.f32 %v5169, %v5170
  %v5172 = vsel %vm3362, %v5034, 0.0
  %v5173 = vadd.f32 %v5171, %v5172
  %v5174 = vsel %vm3362, %v5035, 0.0
  %v5175 = vadd.f32 %v5173, %v5174
  %v5176 = vsel %vm3362, %v5036, 0.0
  %v5177 = vadd.f32 %v5175, %v5176
  %v5178 = vsel %vm3362, %v5037, 0.0
  %v5179 = vadd.f32 %v5177, %v5178
  %v5180 = vsel %vm3362, %v5038, 0.0
  %v5181 = vadd.f32 %v5179, %v5180
  %v5182 = vsel %vm3362, %v5039, 0.0
  %v5183 = vadd.f32 %v5181, %v5182
  %v5184 = vsel %vm3362, %v5040, 0.0
  %v5185 = vadd.f32 %v5183, %v5184
  %v5186 = vsel %vm3362, %v5041, 0.0
  %v5187 = vadd.f32 %v5185, %v5186
  %v5188 = vsel %vm3362, %v5042, 0.0
  %v5189 = vadd.f32 %v5187, %v5188
  %v5190 = vsel %vm3362, %v5043, 0.0
  %v5191 = vadd.f32 %v5189, %v5190
  %v5192 = vsel %vm3362, %v5044, 0.0
  %v5193 = vadd.f32 %v5191, %v5192
  %v5194 = vsel %vm3362, %v5045, 0.0
  %v5195 = vadd.f32 %v5193, %v5194
  %v5196 = vsel %vm3362, %v5046, 0.0
  %v5197 = vadd.f32 %v5195, %v5196
  %v5198 = vsel %vm3362, %v5047, 0.0
  %v5199 = vadd.f32 %v5197, %v5198
  %v5200 = vsel %vm3362, %v5048, 0.0
  %v5201 = vadd.f32 %v5199, %v5200
  %v5202 = vsel %vm3362, %v5049, 0.0
  %v5203 = vadd.f32 %v5201, %v5202
  %v5204 = vsel %vm3362, %v5050, 0.0
  %v5205 = vadd.f32 %v5203, %v5204
  %v5206 = vsel %vm3362, %v5051, 0.0
  %v5207 = vadd.f32 %v5205, %v5206
  %v5208 = vsel %vm3362, %v5052, 0.0
  %v5209 = vadd.f32 %v5207, %v5208
  %v5210 = vsel %vm3362, %v5053, 0.0
  %v5211 = vadd.f32 %v5209, %v5210
  %v5212 = vsel %vm3362, %v5054, 0.0
  %v5213 = vadd.f32 %v5211, %v5212
  %v5214 = vsel %vm3362, %v5055, 0.0
  %v5215 = vadd.f32 %v5213, %v5214
  %v5216 = vsel %vm3362, %v5056, 0.0
  %v5217 = vadd.f32 %v5215, %v5216
  %v5218 = vrot.slane %v5217, 4
  %v5219 = vadd.f32 %v5217, %v5218
  %v5220 = vrot.slane %v5219, 2
  %v5221 = vadd.f32 %v5219, %v5220
  %v5222 = vrot.slane %v5221, 1
  %v5223 = vadd.f32 %v5221, %v5222
  %v5224 = vmul.f32 %v4975, 0.001953125
  %v5225 = vmul.f32 %v5223, 0.001953125
  %v5226 = vmul.f32 %v5224, %v5224
  %v5227 = vsub.f32 %v5225, %v5226
  %v5228 = vadd.f32 %v5227, 1e-05
  %v5229 = vrsqrt.pop %v5228
  %v5230 = vmul.f32 %v5229, %v4807
  %v5231 = vmul.f32 %v5224, %v5230
  %v5232 = vsub.f32 %v4808, %v5231
  %v5233 = vlaneseq
  %v5234 = vshrl.u32 %v5233, 7
  %v5235 = vsub.s32 0, %v5234
  %v5236 = vrot.slane %v5230, %v5235
  %v5237 = vmul.f32 %v4726, %v5236
  %v5238 = vmul.f32 %v4727, %v5236
  %v5239 = vmul.f32 %v4728, %v5236
  %v5240 = vmul.f32 %v4729, %v5236
  %v5241 = vmul.f32 %v4730, %v5236
  %v5242 = vmul.f32 %v4731, %v5236
  %v5243 = vmul.f32 %v4732, %v5236
  %v5244 = vmul.f32 %v4733, %v5236
  %v5245 = vmul.f32 %v4734, %v5236
  %v5246 = vmul.f32 %v4735, %v5236
  %v5247 = vmul.f32 %v4736, %v5236
  %v5248 = vmul.f32 %v4737, %v5236
  %v5249 = vmul.f32 %v4738, %v5236
  %v5250 = vmul.f32 %v4739, %v5236
  %v5251 = vmul.f32 %v4740, %v5236
  %v5252 = vmul.f32 %v4741, %v5236
  %v5253 = vmul.f32 %v4742, %v5236
  %v5254 = vmul.f32 %v4743, %v5236
  %v5255 = vmul.f32 %v4744, %v5236
  %v5256 = vmul.f32 %v4745, %v5236
  %v5257 = vmul.f32 %v4746, %v5236
  %v5258 = vmul.f32 %v4747, %v5236
  %v5259 = vmul.f32 %v4748, %v5236
  %v5260 = vmul.f32 %v4749, %v5236
  %v5261 = vmul.f32 %v4750, %v5236
  %v5262 = vmul.f32 %v4751, %v5236
  %v5263 = vmul.f32 %v4752, %v5236
  %v5264 = vmul.f32 %v4753, %v5236
  %v5265 = vmul.f32 %v4754, %v5236
  %v5266 = vmul.f32 %v4755, %v5236
  %v5267 = vmul.f32 %v4756, %v5236
  %v5268 = vmul.f32 %v4757, %v5236
  %v5269 = vmul.f32 %v4758, %v5236
  %v5270 = vmul.f32 %v4759, %v5236
  %v5271 = vmul.f32 %v4760, %v5236
  %v5272 = vmul.f32 %v4761, %v5236
  %v5273 = vmul.f32 %v4762, %v5236
  %v5274 = vmul.f32 %v4763, %v5236
  %v5275 = vmul.f32 %v4764, %v5236
  %v5276 = vmul.f32 %v4765, %v5236
  %v5277 = vmul.f32 %v4766, %v5236
  %v5278 = vmul.f32 %v4767, %v5236
  %v5279 = vmul.f32 %v4768, %v5236
  %v5280 = vmul.f32 %v4769, %v5236
  %v5281 = vmul.f32 %v4770, %v5236
  %v5282 = vmul.f32 %v4771, %v5236
  %v5283 = vmul.f32 %v4772, %v5236
  %v5284 = vmul.f32 %v4773, %v5236
  %v5285 = vmul.f32 %v4774, %v5236
  %v5286 = vmul.f32 %v4775, %v5236
  %v5287 = vmul.f32 %v4776, %v5236
  %v5288 = vmul.f32 %v4777, %v5236
  %v5289 = vmul.f32 %v4778, %v5236
  %v5290 = vmul.f32 %v4779, %v5236
  %v5291 = vmul.f32 %v4780, %v5236
  %v5292 = vmul.f32 %v4781, %v5236
  %v5293 = vmul.f32 %v4782, %v5236
  %v5294 = vmul.f32 %v4783, %v5236
  %v5295 = vmul.f32 %v4784, %v5236
  %v5296 = vmul.f32 %v4785, %v5236
  %v5297 = vmul.f32 %v4786, %v5236
  %v5298 = vmul.f32 %v4787, %v5236
  %v5299 = vmul.f32 %v4788, %v5236
  %v5300 = vmul.f32 %v4789, %v5236
  %v5301 = vmul.f32 %v4790, %v5236
  %v5302 = vmul.f32 %v4791, %v5236
  %v5303 = vmul.f32 %v4792, %v5236
  %v5304 = vmul.f32 %v4793, %v5236
  %v5305 = vmul.f32 %v4794, %v5236
  %v5306 = vmul.f32 %v4795, %v5236
  %v5307 = vmul.f32 %v4796, %v5236
  %v5308 = vmul.f32 %v4797, %v5236
  %v5309 = vmul.f32 %v4798, %v5236
  %v5310 = vmul.f32 %v4799, %v5236
  %v5311 = vmul.f32 %v4800, %v5236
  %v5312 = vmul.f32 %v4801, %v5236
  %v5313 = vmul.f32 %v4802, %v5236
  %v5314 = vmul.f32 %v4803, %v5236
  %v5315 = vmul.f32 %v4804, %v5236
  %v5316 = vmul.f32 %v4805, %v5236
  %v5317 = vmul.f32 %v4806, %v5236
  %v5319 = vlaneseq
  %v5320 = vshrl.u32 %v5319, 7
  %v5321 = vsub.s32 0, %v5320
  %v5322 = vrot.slane %v5232, %v5321
  %v5324 = vadd.f32 %v5237, %v5322
  %v5325 = vadd.f32 %v5238, %v5322
  %v5326 = vadd.f32 %v5239, %v5322
  %v5327 = vadd.f32 %v5240, %v5322
  %v5328 = vadd.f32 %v5241, %v5322
  %v5329 = vadd.f32 %v5242, %v5322
  %v5330 = vadd.f32 %v5243, %v5322
  %v5331 = vadd.f32 %v5244, %v5322
  %v5332 = vadd.f32 %v5245, %v5322
  %v5333 = vadd.f32 %v5246, %v5322
  %v5334 = vadd.f32 %v5247, %v5322
  %v5335 = vadd.f32 %v5248, %v5322
  %v5336 = vadd.f32 %v5249, %v5322
  %v5337 = vadd.f32 %v5250, %v5322
  %v5338 = vadd.f32 %v5251, %v5322
  %v5339 = vadd.f32 %v5252, %v5322
  %v5340 = vadd.f32 %v5253, %v5322
  %v5341 = vadd.f32 %v5254, %v5322
  %v5342 = vadd.f32 %v5255, %v5322
  %v5343 = vadd.f32 %v5256, %v5322
  %v5344 = vadd.f32 %v5257, %v5322
  %v5345 = vadd.f32 %v5258, %v5322
  %v5346 = vadd.f32 %v5259, %v5322
  %v5347 = vadd.f32 %v5260, %v5322
  %v5348 = vadd.f32 %v5261, %v5322
  %v5349 = vadd.f32 %v5262, %v5322
  %v5350 = vadd.f32 %v5263, %v5322
  %v5351 = vadd.f32 %v5264, %v5322
  %v5352 = vadd.f32 %v5265, %v5322
  %v5353 = vadd.f32 %v5266, %v5322
  %v5354 = vadd.f32 %v5267, %v5322
  %v5355 = vadd.f32 %v5268, %v5322
  %v5356 = vadd.f32 %v5269, %v5322
  %v5357 = vadd.f32 %v5270, %v5322
  %v5358 = vadd.f32 %v5271, %v5322
  %v5359 = vadd.f32 %v5272, %v5322
  %v5360 = vadd.f32 %v5273, %v5322
  %v5361 = vadd.f32 %v5274, %v5322
  %v5362 = vadd.f32 %v5275, %v5322
  %v5363 = vadd.f32 %v5276, %v5322
  %v5364 = vadd.f32 %v5277, %v5322
  %v5365 = vadd.f32 %v5278, %v5322
  %v5366 = vadd.f32 %v5279, %v5322
  %v5367 = vadd.f32 %v5280, %v5322
  %v5368 = vadd.f32 %v5281, %v5322
  %v5369 = vadd.f32 %v5282, %v5322
  %v5370 = vadd.f32 %v5283, %v5322
  %v5371 = vadd.f32 %v5284, %v5322
  %v5372 = vadd.f32 %v5285, %v5322
  %v5373 = vadd.f32 %v5286, %v5322
  %v5374 = vadd.f32 %v5287, %v5322
  %v5375 = vadd.f32 %v5288, %v5322
  %v5376 = vadd.f32 %v5289, %v5322
  %v5377 = vadd.f32 %v5290, %v5322
  %v5378 = vadd.f32 %v5291, %v5322
  %v5379 = vadd.f32 %v5292, %v5322
  %v5380 = vadd.f32 %v5293, %v5322
  %v5381 = vadd.f32 %v5294, %v5322
  %v5382 = vadd.f32 %v5295, %v5322
  %v5383 = vadd.f32 %v5296, %v5322
  %v5384 = vadd.f32 %v5297, %v5322
  %v5385 = vadd.f32 %v5298, %v5322
  %v5386 = vadd.f32 %v5299, %v5322
  %v5387 = vadd.f32 %v5300, %v5322
  %v5388 = vadd.f32 %v5301, %v5322
  %v5389 = vadd.f32 %v5302, %v5322
  %v5390 = vadd.f32 %v5303, %v5322
  %v5391 = vadd.f32 %v5304, %v5322
  %v5392 = vadd.f32 %v5305, %v5322
  %v5393 = vadd.f32 %v5306, %v5322
  %v5394 = vadd.f32 %v5307, %v5322
  %v5395 = vadd.f32 %v5308, %v5322
  %v5396 = vadd.f32 %v5309, %v5322
  %v5397 = vadd.f32 %v5310, %v5322
  %v5398 = vadd.f32 %v5311, %v5322
  %v5399 = vadd.f32 %v5312, %v5322
  %v5400 = vadd.f32 %v5313, %v5322
  %v5401 = vadd.f32 %v5314, %v5322
  %v5402 = vadd.f32 %v5315, %v5322
  %v5403 = vadd.f32 %v5316, %v5322
  %v5404 = vadd.f32 %v5317, %v5322
  %vm5405 = vcmp.gt.f32.partialorder %v5324, 0.0
  %vm5406 = vcmp.gt.f32.partialorder %v5325, 0.0
  %vm5407 = vcmp.gt.f32.partialorder %v5326, 0.0
  %vm5408 = vcmp.gt.f32.partialorder %v5327, 0.0
  %vm5409 = vcmp.gt.f32.partialorder %v5328, 0.0
  %vm5410 = vcmp.gt.f32.partialorder %v5329, 0.0
  %vm5411 = vcmp.gt.f32.partialorder %v5330, 0.0
  %vm5412 = vcmp.gt.f32.partialorder %v5331, 0.0
  %vm5413 = vcmp.gt.f32.partialorder %v5332, 0.0
  %vm5414 = vcmp.gt.f32.partialorder %v5333, 0.0
  %vm5415 = vcmp.gt.f32.partialorder %v5334, 0.0
  %vm5416 = vcmp.gt.f32.partialorder %v5335, 0.0
  %vm5417 = vcmp.gt.f32.partialorder %v5336, 0.0
  %vm5418 = vcmp.gt.f32.partialorder %v5337, 0.0
  %vm5419 = vcmp.gt.f32.partialorder %v5338, 0.0
  %vm5420 = vcmp.gt.f32.partialorder %v5339, 0.0
  %vm5421 = vcmp.gt.f32.partialorder %v5340, 0.0
  %vm5422 = vcmp.gt.f32.partialorder %v5341, 0.0
  %vm5423 = vcmp.gt.f32.partialorder %v5342, 0.0
  %vm5424 = vcmp.gt.f32.partialorder %v5343, 0.0
  %vm5425 = vcmp.gt.f32.partialorder %v5344, 0.0
  %vm5426 = vcmp.gt.f32.partialorder %v5345, 0.0
  %vm5427 = vcmp.gt.f32.partialorder %v5346, 0.0
  %vm5428 = vcmp.gt.f32.partialorder %v5347, 0.0
  %vm5429 = vcmp.gt.f32.partialorder %v5348, 0.0
  %vm5430 = vcmp.gt.f32.partialorder %v5349, 0.0
  %vm5431 = vcmp.gt.f32.partialorder %v5350, 0.0
  %vm5432 = vcmp.gt.f32.partialorder %v5351, 0.0
  %vm5433 = vcmp.gt.f32.partialorder %v5352, 0.0
  %vm5434 = vcmp.gt.f32.partialorder %v5353, 0.0
  %vm5435 = vcmp.gt.f32.partialorder %v5354, 0.0
  %vm5436 = vcmp.gt.f32.partialorder %v5355, 0.0
  %vm5437 = vcmp.gt.f32.partialorder %v5356, 0.0
  %vm5438 = vcmp.gt.f32.partialorder %v5357, 0.0
  %vm5439 = vcmp.gt.f32.partialorder %v5358, 0.0
  %vm5440 = vcmp.gt.f32.partialorder %v5359, 0.0
  %vm5441 = vcmp.gt.f32.partialorder %v5360, 0.0
  %vm5442 = vcmp.gt.f32.partialorder %v5361, 0.0
  %vm5443 = vcmp.gt.f32.partialorder %v5362, 0.0
  %vm5444 = vcmp.gt.f32.partialorder %v5363, 0.0
  %vm5445 = vcmp.gt.f32.partialorder %v5364, 0.0
  %vm5446 = vcmp.gt.f32.partialorder %v5365, 0.0
  %vm5447 = vcmp.gt.f32.partialorder %v5366, 0.0
  %vm5448 = vcmp.gt.f32.partialorder %v5367, 0.0
  %vm5449 = vcmp.gt.f32.partialorder %v5368, 0.0
  %vm5450 = vcmp.gt.f32.partialorder %v5369, 0.0
  %vm5451 = vcmp.gt.f32.partialorder %v5370, 0.0
  %vm5452 = vcmp.gt.f32.partialorder %v5371, 0.0
  %vm5453 = vcmp.gt.f32.partialorder %v5372, 0.0
  %vm5454 = vcmp.gt.f32.partialorder %v5373, 0.0
  %vm5455 = vcmp.gt.f32.partialorder %v5374, 0.0
  %vm5456 = vcmp.gt.f32.partialorder %v5375, 0.0
  %vm5457 = vcmp.gt.f32.partialorder %v5376, 0.0
  %vm5458 = vcmp.gt.f32.partialorder %v5377, 0.0
  %vm5459 = vcmp.gt.f32.partialorder %v5378, 0.0
  %vm5460 = vcmp.gt.f32.partialorder %v5379, 0.0
  %vm5461 = vcmp.gt.f32.partialorder %v5380, 0.0
  %vm5462 = vcmp.gt.f32.partialorder %v5381, 0.0
  %vm5463 = vcmp.gt.f32.partialorder %v5382, 0.0
  %vm5464 = vcmp.gt.f32.partialorder %v5383, 0.0
  %vm5465 = vcmp.gt.f32.partialorder %v5384, 0.0
  %vm5466 = vcmp.gt.f32.partialorder %v5385, 0.0
  %vm5467 = vcmp.gt.f32.partialorder %v5386, 0.0
  %vm5468 = vcmp.gt.f32.partialorder %v5387, 0.0
  %vm5469 = vcmp.gt.f32.partialorder %v5388, 0.0
  %vm5470 = vcmp.gt.f32.partialorder %v5389, 0.0
  %vm5471 = vcmp.gt.f32.partialorder %v5390, 0.0
  %vm5472 = vcmp.gt.f32.partialorder %v5391, 0.0
  %vm5473 = vcmp.gt.f32.partialorder %v5392, 0.0
  %vm5474 = vcmp.gt.f32.partialorder %v5393, 0.0
  %vm5475 = vcmp.gt.f32.partialorder %v5394, 0.0
  %vm5476 = vcmp.gt.f32.partialorder %v5395, 0.0
  %vm5477 = vcmp.gt.f32.partialorder %v5396, 0.0
  %vm5478 = vcmp.gt.f32.partialorder %v5397, 0.0
  %vm5479 = vcmp.gt.f32.partialorder %v5398, 0.0
  %vm5480 = vcmp.gt.f32.partialorder %v5399, 0.0
  %vm5481 = vcmp.gt.f32.partialorder %v5400, 0.0
  %vm5482 = vcmp.gt.f32.partialorder %v5401, 0.0
  %vm5483 = vcmp.gt.f32.partialorder %v5402, 0.0
  %vm5484 = vcmp.gt.f32.partialorder %v5403, 0.0
  %vm5485 = vcmp.gt.f32.partialorder %v5404, 0.0
  %v5486 = vmul.f32 %v5324, 0.2
  %v5487 = vmul.f32 %v5325, 0.2
  %v5488 = vmul.f32 %v5326, 0.2
  %v5489 = vmul.f32 %v5327, 0.2
  %v5490 = vmul.f32 %v5328, 0.2
  %v5491 = vmul.f32 %v5329, 0.2
  %v5492 = vmul.f32 %v5330, 0.2
  %v5493 = vmul.f32 %v5331, 0.2
  %v5494 = vmul.f32 %v5332, 0.2
  %v5495 = vmul.f32 %v5333, 0.2
  %v5496 = vmul.f32 %v5334, 0.2
  %v5497 = vmul.f32 %v5335, 0.2
  %v5498 = vmul.f32 %v5336, 0.2
  %v5499 = vmul.f32 %v5337, 0.2
  %v5500 = vmul.f32 %v5338, 0.2
  %v5501 = vmul.f32 %v5339, 0.2
  %v5502 = vmul.f32 %v5340, 0.2
  %v5503 = vmul.f32 %v5341, 0.2
  %v5504 = vmul.f32 %v5342, 0.2
  %v5505 = vmul.f32 %v5343, 0.2
  %v5506 = vmul.f32 %v5344, 0.2
  %v5507 = vmul.f32 %v5345, 0.2
  %v5508 = vmul.f32 %v5346, 0.2
  %v5509 = vmul.f32 %v5347, 0.2
  %v5510 = vmul.f32 %v5348, 0.2
  %v5511 = vmul.f32 %v5349, 0.2
  %v5512 = vmul.f32 %v5350, 0.2
  %v5513 = vmul.f32 %v5351, 0.2
  %v5514 = vmul.f32 %v5352, 0.2
  %v5515 = vmul.f32 %v5353, 0.2
  %v5516 = vmul.f32 %v5354, 0.2
  %v5517 = vmul.f32 %v5355, 0.2
  %v5518 = vmul.f32 %v5356, 0.2
  %v5519 = vmul.f32 %v5357, 0.2
  %v5520 = vmul.f32 %v5358, 0.2
  %v5521 = vmul.f32 %v5359, 0.2
  %v5522 = vmul.f32 %v5360, 0.2
  %v5523 = vmul.f32 %v5361, 0.2
  %v5524 = vmul.f32 %v5362, 0.2
  %v5525 = vmul.f32 %v5363, 0.2
  %v5526 = vmul.f32 %v5364, 0.2
  %v5527 = vmul.f32 %v5365, 0.2
  %v5528 = vmul.f32 %v5366, 0.2
  %v5529 = vmul.f32 %v5367, 0.2
  %v5530 = vmul.f32 %v5368, 0.2
  %v5531 = vmul.f32 %v5369, 0.2
  %v5532 = vmul.f32 %v5370, 0.2
  %v5533 = vmul.f32 %v5371, 0.2
  %v5534 = vmul.f32 %v5372, 0.2
  %v5535 = vmul.f32 %v5373, 0.2
  %v5536 = vmul.f32 %v5374, 0.2
  %v5537 = vmul.f32 %v5375, 0.2
  %v5538 = vmul.f32 %v5376, 0.2
  %v5539 = vmul.f32 %v5377, 0.2
  %v5540 = vmul.f32 %v5378, 0.2
  %v5541 = vmul.f32 %v5379, 0.2
  %v5542 = vmul.f32 %v5380, 0.2
  %v5543 = vmul.f32 %v5381, 0.2
  %v5544 = vmul.f32 %v5382, 0.2
  %v5545 = vmul.f32 %v5383, 0.2
  %v5546 = vmul.f32 %v5384, 0.2
  %v5547 = vmul.f32 %v5385, 0.2
  %v5548 = vmul.f32 %v5386, 0.2
  %v5549 = vmul.f32 %v5387, 0.2
  %v5550 = vmul.f32 %v5388, 0.2
  %v5551 = vmul.f32 %v5389, 0.2
  %v5552 = vmul.f32 %v5390, 0.2
  %v5553 = vmul.f32 %v5391, 0.2
  %v5554 = vmul.f32 %v5392, 0.2
  %v5555 = vmul.f32 %v5393, 0.2
  %v5556 = vmul.f32 %v5394, 0.2
  %v5557 = vmul.f32 %v5395, 0.2
  %v5558 = vmul.f32 %v5396, 0.2
  %v5559 = vmul.f32 %v5397, 0.2
  %v5560 = vmul.f32 %v5398, 0.2
  %v5561 = vmul.f32 %v5399, 0.2
  %v5562 = vmul.f32 %v5400, 0.2
  %v5563 = vmul.f32 %v5401, 0.2
  %v5564 = vmul.f32 %v5402, 0.2
  %v5565 = vmul.f32 %v5403, 0.2
  %v5566 = vmul.f32 %v5404, 0.2
  %v5567 = vsel %vm5405, %v5324, %v5486
  %v5568 = vsel %vm5406, %v5325, %v5487
  %v5569 = vsel %vm5407, %v5326, %v5488
  %v5570 = vsel %vm5408, %v5327, %v5489
  %v5571 = vsel %vm5409, %v5328, %v5490
  %v5572 = vsel %vm5410, %v5329, %v5491
  %v5573 = vsel %vm5411, %v5330, %v5492
  %v5574 = vsel %vm5412, %v5331, %v5493
  %v5575 = vsel %vm5413, %v5332, %v5494
  %v5576 = vsel %vm5414, %v5333, %v5495
  %v5577 = vsel %vm5415, %v5334, %v5496
  %v5578 = vsel %vm5416, %v5335, %v5497
  %v5579 = vsel %vm5417, %v5336, %v5498
  %v5580 = vsel %vm5418, %v5337, %v5499
  %v5581 = vsel %vm5419, %v5338, %v5500
  %v5582 = vsel %vm5420, %v5339, %v5501
  %v5583 = vsel %vm5421, %v5340, %v5502
  %v5584 = vsel %vm5422, %v5341, %v5503
  %v5585 = vsel %vm5423, %v5342, %v5504
  %v5586 = vsel %vm5424, %v5343, %v5505
  %v5587 = vsel %vm5425, %v5344, %v5506
  %v5588 = vsel %vm5426, %v5345, %v5507
  %v5589 = vsel %vm5427, %v5346, %v5508
  %v5590 = vsel %vm5428, %v5347, %v5509
  %v5591 = vsel %vm5429, %v5348, %v5510
  %v5592 = vsel %vm5430, %v5349, %v5511
  %v5593 = vsel %vm5431, %v5350, %v5512
  %v5594 = vsel %vm5432, %v5351, %v5513
  %v5595 = vsel %vm5433, %v5352, %v5514
  %v5596 = vsel %vm5434, %v5353, %v5515
  %v5597 = vsel %vm5435, %v5354, %v5516
  %v5598 = vsel %vm5436, %v5355, %v5517
  %v5599 = vsel %vm5437, %v5356, %v5518
  %v5600 = vsel %vm5438, %v5357, %v5519
  %v5601 = vsel %vm5439, %v5358, %v5520
  %v5602 = vsel %vm5440, %v5359, %v5521
  %v5603 = vsel %vm5441, %v5360, %v5522
  %v5604 = vsel %vm5442, %v5361, %v5523
  %v5605 = vsel %vm5443, %v5362, %v5524
  %v5606 = vsel %vm5444, %v5363, %v5525
  %v5607 = vsel %vm5445, %v5364, %v5526
  %v5608 = vsel %vm5446, %v5365, %v5527
  %v5609 = vsel %vm5447, %v5366, %v5528
  %v5610 = vsel %vm5448, %v5367, %v5529
  %v5611 = vsel %vm5449, %v5368, %v5530
  %v5612 = vsel %vm5450, %v5369, %v5531
  %v5613 = vsel %vm5451, %v5370, %v5532
  %v5614 = vsel %vm5452, %v5371, %v5533
  %v5615 = vsel %vm5453, %v5372, %v5534
  %v5616 = vsel %vm5454, %v5373, %v5535
  %v5617 = vsel %vm5455, %v5374, %v5536
  %v5618 = vsel %vm5456, %v5375, %v5537
  %v5619 = vsel %vm5457, %v5376, %v5538
  %v5620 = vsel %vm5458, %v5377, %v5539
  %v5621 = vsel %vm5459, %v5378, %v5540
  %v5622 = vsel %vm5460, %v5379, %v5541
  %v5623 = vsel %vm5461, %v5380, %v5542
  %v5624 = vsel %vm5462, %v5381, %v5543
  %v5625 = vsel %vm5463, %v5382, %v5544
  %v5626 = vsel %vm5464, %v5383, %v5545
  %v5627 = vsel %vm5465, %v5384, %v5546
  %v5628 = vsel %vm5466, %v5385, %v5547
  %v5629 = vsel %vm5467, %v5386, %v5548
  %v5630 = vsel %vm5468, %v5387, %v5549
  %v5631 = vsel %vm5469, %v5388, %v5550
  %v5632 = vsel %vm5470, %v5389, %v5551
  %v5633 = vsel %vm5471, %v5390, %v5552
  %v5634 = vsel %vm5472, %v5391, %v5553
  %v5635 = vsel %vm5473, %v5392, %v5554
  %v5636 = vsel %vm5474, %v5393, %v5555
  %v5637 = vsel %vm5475, %v5394, %v5556
  %v5638 = vsel %vm5476, %v5395, %v5557
  %v5639 = vsel %vm5477, %v5396, %v5558
  %v5640 = vsel %vm5478, %v5397, %v5559
  %v5641 = vsel %vm5479, %v5398, %v5560
  %v5642 = vsel %vm5480, %v5399, %v5561
  %v5643 = vsel %vm5481, %v5400, %v5562
  %v5644 = vsel %vm5482, %v5401, %v5563
  %v5645 = vsel %vm5483, %v5402, %v5564
  %v5646 = vsel %vm5484, %v5403, %v5565
  %v5647 = vsel %vm5485, %v5404, %v5566
  %v5648 = vmul.f32 %v5567, %v4324
  %v5649 = vmul.f32 %v5568, %v4329
  %v5650 = vmul.f32 %v5569, %v4334
  %v5651 = vmul.f32 %v5570, %v4339
  %v5652 = vmul.f32 %v5571, %v4344
  %v5653 = vmul.f32 %v5572, %v4349
  %v5654 = vmul.f32 %v5573, %v4354
  %v5655 = vmul.f32 %v5574, %v4359
  %v5656 = vmul.f32 %v5575, %v4364
  %v5657 = vmul.f32 %v5576, %v4369
  %v5658 = vmul.f32 %v5577, %v4374
  %v5659 = vmul.f32 %v5578, %v4379
  %v5660 = vmul.f32 %v5579, %v4384
  %v5661 = vmul.f32 %v5580, %v4389
  %v5662 = vmul.f32 %v5581, %v4394
  %v5663 = vmul.f32 %v5582, %v4399
  %v5664 = vmul.f32 %v5583, %v4404
  %v5665 = vmul.f32 %v5584, %v4409
  %v5666 = vmul.f32 %v5585, %v4414
  %v5667 = vmul.f32 %v5586, %v4419
  %v5668 = vmul.f32 %v5587, %v4424
  %v5669 = vmul.f32 %v5588, %v4429
  %v5670 = vmul.f32 %v5589, %v4434
  %v5671 = vmul.f32 %v5590, %v4439
  %v5672 = vmul.f32 %v5591, %v4444
  %v5673 = vmul.f32 %v5592, %v4449
  %v5674 = vmul.f32 %v5593, %v4454
  %v5675 = vmul.f32 %v5594, %v4459
  %v5676 = vmul.f32 %v5595, %v4464
  %v5677 = vmul.f32 %v5596, %v4469
  %v5678 = vmul.f32 %v5597, %v4474
  %v5679 = vmul.f32 %v5598, %v4479
  %v5680 = vmul.f32 %v5599, %v4484
  %v5681 = vmul.f32 %v5600, %v4489
  %v5682 = vmul.f32 %v5601, %v4494
  %v5683 = vmul.f32 %v5602, %v4499
  %v5684 = vmul.f32 %v5603, %v4504
  %v5685 = vmul.f32 %v5604, %v4509
  %v5686 = vmul.f32 %v5605, %v4514
  %v5687 = vmul.f32 %v5606, %v4519
  %v5688 = vmul.f32 %v5607, %v4524
  %v5689 = vmul.f32 %v5608, %v4529
  %v5690 = vmul.f32 %v5609, %v4534
  %v5691 = vmul.f32 %v5610, %v4539
  %v5692 = vmul.f32 %v5611, %v4544
  %v5693 = vmul.f32 %v5612, %v4549
  %v5694 = vmul.f32 %v5613, %v4554
  %v5695 = vmul.f32 %v5614, %v4559
  %v5696 = vmul.f32 %v5615, %v4564
  %v5697 = vmul.f32 %v5616, %v4569
  %v5698 = vmul.f32 %v5617, %v4574
  %v5699 = vmul.f32 %v5618, %v4579
  %v5700 = vmul.f32 %v5619, %v4584
  %v5701 = vmul.f32 %v5620, %v4589
  %v5702 = vmul.f32 %v5621, %v4594
  %v5703 = vmul.f32 %v5622, %v4599
  %v5704 = vmul.f32 %v5623, %v4604
  %v5705 = vmul.f32 %v5624, %v4609
  %v5706 = vmul.f32 %v5625, %v4614
  %v5707 = vmul.f32 %v5626, %v4619
  %v5708 = vmul.f32 %v5627, %v4624
  %v5709 = vmul.f32 %v5628, %v4629
  %v5710 = vmul.f32 %v5629, %v4634
  %v5711 = vmul.f32 %v5630, %v4639
  %v5712 = vmul.f32 %v5631, %v4644
  %v5713 = vmul.f32 %v5632, %v4649
  %v5714 = vmul.f32 %v5633, %v4654
  %v5715 = vmul.f32 %v5634, %v4659
  %v5716 = vmul.f32 %v5635, %v4664
  %v5717 = vmul.f32 %v5636, %v4669
  %v5718 = vmul.f32 %v5637, %v4674
  %v5719 = vmul.f32 %v5638, %v4679
  %v5720 = vmul.f32 %v5639, %v4684
  %v5721 = vmul.f32 %v5640, %v4689
  %v5722 = vmul.f32 %v5641, %v4694
  %v5723 = vmul.f32 %v5642, %v4699
  %v5724 = vmul.f32 %v5643, %v4704
  %v5725 = vmul.f32 %v5644, %v4709
  %v5726 = vmul.f32 %v5645, %v4714
  %v5727 = vmul.f32 %v5646, %v4719
  %v5728 = vmul.f32 %v5647, %v4724
  %5729 = vst.msk [vmem:[#allocation2] sm:$0xff] %vm3198, 0.0
  %5730 = vst.msk [vmem:[#allocation2 + $0x8] sm:$0xff] %vm3198, 0.0
  %vm5731 = vcmask 59392
  %5732 = vst.msk [vmem:[#allocation2 + $0x10] sm:$0x7] %vm5731, 0.0
  %5733 = vst.msk [vmem:[#allocation2 + $0x29b] sm:$0xff] %vm3198, 0.0
  %5734 = vst.msk [vmem:[#allocation2 + $0x2a3] sm:$0xff] %vm3198, 0.0
  %5735 = vst.msk [vmem:[#allocation2 + $0x2ab] sm:$0x7] %vm5731, 0.0
  %5736 = vst.msk [vmem:[#allocation2 + $0x13] sm:$0xff] %vm3198, %v5648
  %5737 = vst.msk [vmem:[#allocation2 + $0x1b] sm:$0xff] %vm3198, %v5649
  %5738 = vst.msk [vmem:[#allocation2 + $0x23] sm:$0xff] %vm3198, %v5650
  %5739 = vst.msk [vmem:[#allocation2 + $0x2b] sm:$0xff] %vm3198, %v5651
  %5740 = vst.msk [vmem:[#allocation2 + $0x33] sm:$0xff] %vm3198, %v5652
  %5741 = vst.msk [vmem:[#allocation2 + $0x3b] sm:$0xff] %vm3198, %v5653
  %5742 = vst.msk [vmem:[#allocation2 + $0x43] sm:$0xff] %vm3198, %v5654
  %5743 = vst.msk [vmem:[#allocation2 + $0x4b] sm:$0xff] %vm3198, %v5655
  %5744 = vst.msk [vmem:[#allocation2 + $0x53] sm:$0xff] %vm3198, %v5656
  %5745 = vst.msk [vmem:[#allocation2 + $0x5b] sm:$0xff] %vm3198, %v5657
  %5746 = vst.msk [vmem:[#allocation2 + $0x63] sm:$0xff] %vm3198, %v5658
  %5747 = vst.msk [vmem:[#allocation2 + $0x6b] sm:$0xff] %vm3198, %v5659
  %5748 = vst.msk [vmem:[#allocation2 + $0x73] sm:$0xff] %vm3198, %v5660
  %5749 = vst.msk [vmem:[#allocation2 + $0x7b] sm:$0xff] %vm3198, %v5661
  %5750 = vst.msk [vmem:[#allocation2 + $0x83] sm:$0xff] %vm3198, %v5662
  %5751 = vst.msk [vmem:[#allocation2 + $0x8b] sm:$0xff] %vm3198, %v5663
  %5752 = vst.msk [vmem:[#allocation2 + $0x93] sm:$0xff] %vm3198, %v5664
  %5753 = vst.msk [vmem:[#allocation2 + $0x9b] sm:$0xff] %vm3198, %v5665
  %5754 = vst.msk [vmem:[#allocation2 + $0xa3] sm:$0xff] %vm3198, %v5666
  %5755 = vst.msk [vmem:[#allocation2 + $0xab] sm:$0xff] %vm3198, %v5667
  %5756 = vst.msk [vmem:[#allocation2 + $0xb3] sm:$0xff] %vm3198, %v5668
  %5757 = vst.msk [vmem:[#allocation2 + $0xbb] sm:$0xff] %vm3198, %v5669
  %5758 = vst.msk [vmem:[#allocation2 + $0xc3] sm:$0xff] %vm3198, %v5670
  %5759 = vst.msk [vmem:[#allocation2 + $0xcb] sm:$0xff] %vm3198, %v5671
  %5760 = vst.msk [vmem:[#allocation2 + $0xd3] sm:$0xff] %vm3198, %v5672
  %5761 = vst.msk [vmem:[#allocation2 + $0xdb] sm:$0xff] %vm3198, %v5673
  %5762 = vst.msk [vmem:[#allocation2 + $0xe3] sm:$0xff] %vm3198, %v5674
  %5763 = vst.msk [vmem:[#allocation2 + $0xeb] sm:$0xff] %vm3198, %v5675
  %5764 = vst.msk [vmem:[#allocation2 + $0xf3] sm:$0xff] %vm3198, %v5676
  %5765 = vst.msk [vmem:[#allocation2 + $0xfb] sm:$0xff] %vm3198, %v5677
  %5766 = vst.msk [vmem:[#allocation2 + $0x103] sm:$0xff] %vm3198, %v5678
  %5767 = vst.msk [vmem:[#allocation2 + $0x10b] sm:$0xff] %vm3198, %v5679
  %5768 = vst.msk [vmem:[#allocation2 + $0x113] sm:$0xff] %vm3198, %v5680
  %5769 = vst.msk [vmem:[#allocation2 + $0x11b] sm:$0xff] %vm3198, %v5681
  %5770 = vst.msk [vmem:[#allocation2 + $0x123] sm:$0xff] %vm3198, %v5682
  %5771 = vst.msk [vmem:[#allocation2 + $0x12b] sm:$0xff] %vm3198, %v5683
  %5772 = vst.msk [vmem:[#allocation2 + $0x133] sm:$0xff] %vm3198, %v5684
  %5773 = vst.msk [vmem:[#allocation2 + $0x13b] sm:$0xff] %vm3198, %v5685
  %5774 = vst.msk [vmem:[#allocation2 + $0x143] sm:$0xff] %vm3198, %v5686
  %5775 = vst.msk [vmem:[#allocation2 + $0x14b] sm:$0xff] %vm3198, %v5687
  %5776 = vst.msk [vmem:[#allocation2 + $0x153] sm:$0xff] %vm3198, %v5688
  %5777 = vst.msk [vmem:[#allocation2 + $0x15b] sm:$0xff] %vm3198, %v5689
  %5778 = vst.msk [vmem:[#allocation2 + $0x163] sm:$0xff] %vm3198, %v5690
  %5779 = vst.msk [vmem:[#allocation2 + $0x16b] sm:$0xff] %vm3198, %v5691
  %5780 = vst.msk [vmem:[#allocation2 + $0x173] sm:$0xff] %vm3198, %v5692
  %5781 = vst.msk [vmem:[#allocation2 + $0x17b] sm:$0xff] %vm3198, %v5693
  %5782 = vst.msk [vmem:[#allocation2 + $0x183] sm:$0xff] %vm3198, %v5694
  %5783 = vst.msk [vmem:[#allocation2 + $0x18b] sm:$0xff] %vm3198, %v5695
  %5784 = vst.msk [vmem:[#allocation2 + $0x193] sm:$0xff] %vm3198, %v5696
  %5785 = vst.msk [vmem:[#allocation2 + $0x19b] sm:$0xff] %vm3198, %v5697
  %5786 = vst.msk [vmem:[#allocation2 + $0x1a3] sm:$0xff] %vm3198, %v5698
  %5787 = vst.msk [vmem:[#allocation2 + $0x1ab] sm:$0xff] %vm3198, %v5699
  %5788 = vst.msk [vmem:[#allocation2 + $0x1b3] sm:$0xff] %vm3198, %v5700
  %5789 = vst.msk [vmem:[#allocation2 + $0x1bb] sm:$0xff] %vm3198, %v5701
  %5790 = vst.msk [vmem:[#allocation2 + $0x1c3] sm:$0xff] %vm3198, %v5702
  %5791 = vst.msk [vmem:[#allocation2 + $0x1cb] sm:$0xff] %vm3198, %v5703
  %5792 = vst.msk [vmem:[#allocation2 + $0x1d3] sm:$0xff] %vm3198, %v5704
  %5793 = vst.msk [vmem:[#allocation2 + $0x1db] sm:$0xff] %vm3198, %v5705
  %5794 = vst.msk [vmem:[#allocation2 + $0x1e3] sm:$0xff] %vm3198, %v5706
  %5795 = vst.msk [vmem:[#allocation2 + $0x1eb] sm:$0xff] %vm3198, %v5707
  %5796 = vst.msk [vmem:[#allocation2 + $0x1f3] sm:$0xff] %vm3198, %v5708
  %5797 = vst.msk [vmem:[#allocation2 + $0x1fb] sm:$0xff] %vm3198, %v5709
  %5798 = vst.msk [vmem:[#allocation2 + $0x203] sm:$0xff] %vm3198, %v5710
  %5799 = vst.msk [vmem:[#allocation2 + $0x20b] sm:$0xff] %vm3198, %v5711
  %5800 = vst.msk [vmem:[#allocation2 + $0x213] sm:$0xff] %vm3198, %v5712
  %5801 = vst.msk [vmem:[#allocation2 + $0x21b] sm:$0xff] %vm3198, %v5713
  %5802 = vst.msk [vmem:[#allocation2 + $0x223] sm:$0xff] %vm3198, %v5714
  %5803 = vst.msk [vmem:[#allocation2 + $0x22b] sm:$0xff] %vm3198, %v5715
  %5804 = vst.msk [vmem:[#allocation2 + $0x233] sm:$0xff] %vm3198, %v5716
  %5805 = vst.msk [vmem:[#allocation2 + $0x23b] sm:$0xff] %vm3198, %v5717
  %5806 = vst.msk [vmem:[#allocation2 + $0x243] sm:$0xff] %vm3198, %v5718
  %5807 = vst.msk [vmem:[#allocation2 + $0x24b] sm:$0xff] %vm3198, %v5719
  %5808 = vst.msk [vmem:[#allocation2 + $0x253] sm:$0xff] %vm3198, %v5720
  %5809 = vst.msk [vmem:[#allocation2 + $0x25b] sm:$0xff] %vm3198, %v5721
  %5810 = vst.msk [vmem:[#allocation2 + $0x263] sm:$0xff] %vm3198, %v5722
  %5811 = vst.msk [vmem:[#allocation2 + $0x26b] sm:$0xff] %vm3198, %v5723
  %5812 = vst.msk [vmem:[#allocation2 + $0x273] sm:$0xff] %vm3198, %v5724
  %5813 = vst.msk [vmem:[#allocation2 + $0x27b] sm:$0xff] %vm3198, %v5725
  %5814 = vst.msk [vmem:[#allocation2 + $0x283] sm:$0xff] %vm3198, %v5726
  %5815 = vst.msk [vmem:[#allocation2 + $0x28b] sm:$0xff] %vm3198, %v5727
  %5816 = vst.msk [vmem:[#allocation2 + $0x293] sm:$0xff] %vm3198, %v5728
  %v5817 = vld [vmem:[#allocation2] sm:$0xff]
  %v5818 = vld [vmem:[#allocation2 + $0x8] sm:$0xff]
  %v5819 = vld [vmem:[#allocation2 + $0x10] sm:$0xff]
  %v5820 = vld [vmem:[#allocation2 + $0x18] sm:$0xff]
  %v5821 = vld [vmem:[#allocation2 + $0x20] sm:$0xff]
  %v5822 = vld [vmem:[#allocation2 + $0x28] sm:$0xff]
  %v5823 = vld [vmem:[#allocation2 + $0x30] sm:$0xff]
  %v5824 = vld [vmem:[#allocation2 + $0x38] sm:$0xff]
  %v5825 = vld [vmem:[#allocation2 + $0x40] sm:$0xff]
  %v5826 = vld [vmem:[#allocation2 + $0x48] sm:$0xff]
  %v5827 = vld [vmem:[#allocation2 + $0x50] sm:$0xff]
  %v5828 = vld [vmem:[#allocation2 + $0x58] sm:$0xff]
  %v5829 = vld [vmem:[#allocation2 + $0x60] sm:$0xff]
  %v5830 = vld [vmem:[#allocation2 + $0x68] sm:$0xff]
  %v5831 = vld [vmem:[#allocation2 + $0x70] sm:$0xff]
  %v5832 = vld [vmem:[#allocation2 + $0x78] sm:$0xff]
  %v5833 = vld [vmem:[#allocation2 + $0x80] sm:$0xff]
  %v5834 = vld [vmem:[#allocation2 + $0x88] sm:$0xff]
  %v5835 = vld [vmem:[#allocation2 + $0x90] sm:$0xff]
  %v5836 = vld [vmem:[#allocation2 + $0x98] sm:$0xff]
  %v5837 = vld [vmem:[#allocation2 + $0xa0] sm:$0xff]
  %v5838 = vld [vmem:[#allocation2 + $0xa8] sm:$0xff]
  %v5839 = vld [vmem:[#allocation2 + $0xb0] sm:$0xff]
  %v5840 = vld [vmem:[#allocation2 + $0xb8] sm:$0xff]
  %v5841 = vld [vmem:[#allocation2 + $0xc0] sm:$0xff]
  %v5842 = vld [vmem:[#allocation2 + $0xc8] sm:$0xff]
  %v5843 = vld [vmem:[#allocation2 + $0xd0] sm:$0xff]
  %v5844 = vld [vmem:[#allocation2 + $0xd8] sm:$0xff]
  %v5845 = vld [vmem:[#allocation2 + $0xe0] sm:$0xff]
  %v5846 = vld [vmem:[#allocation2 + $0xe8] sm:$0xff]
  %v5847 = vld [vmem:[#allocation2 + $0xf0] sm:$0xff]
  %v5848 = vld [vmem:[#allocation2 + $0xf8] sm:$0xff]
  %v5849 = vld [vmem:[#allocation2 + $0x100] sm:$0xff]
  %v5850 = vld [vmem:[#allocation2 + $0x108] sm:$0xff]
  %v5851 = vld [vmem:[#allocation2 + $0x110] sm:$0xff]
  %v5852 = vld [vmem:[#allocation2 + $0x118] sm:$0xff]
  %v5853 = vld [vmem:[#allocation2 + $0x120] sm:$0xff]
  %v5854 = vld [vmem:[#allocation2 + $0x128] sm:$0xff]
  %v5855 = vld [vmem:[#allocation2 + $0x130] sm:$0xff]
  %v5856 = vld [vmem:[#allocation2 + $0x138] sm:$0xff]
  %v5857 = vld [vmem:[#allocation2 + $0x140] sm:$0xff]
  %v5858 = vld [vmem:[#allocation2 + $0x148] sm:$0xff]
  %v5859 = vld [vmem:[#allocation2 + $0x150] sm:$0xff]
  %v5860 = vld [vmem:[#allocation2 + $0x158] sm:$0xff]
  %v5861 = vld [vmem:[#allocation2 + $0x160] sm:$0xff]
  %v5862 = vld [vmem:[#allocation2 + $0x168] sm:$0xff]
  %v5863 = vld [vmem:[#allocation2 + $0x170] sm:$0xff]
  %v5864 = vld [vmem:[#allocation2 + $0x178] sm:$0xff]
  %v5865 = vld [vmem:[#allocation2 + $0x180] sm:$0xff]
  %v5866 = vld [vmem:[#allocation2 + $0x188] sm:$0xff]
  %v5867 = vld [vmem:[#allocation2 + $0x190] sm:$0xff]
  %v5868 = vld [vmem:[#allocation2 + $0x198] sm:$0xff]
  %v5869 = vld [vmem:[#allocation2 + $0x1a0] sm:$0xff]
  %v5870 = vld [vmem:[#allocation2 + $0x1a8] sm:$0xff]
  %v5871 = vld [vmem:[#allocation2 + $0x1b0] sm:$0xff]
  %v5872 = vld [vmem:[#allocation2 + $0x1b8] sm:$0xff]
  %v5873 = vld [vmem:[#allocation2 + $0x1c0] sm:$0xff]
  %v5874 = vld [vmem:[#allocation2 + $0x1c8] sm:$0xff]
  %v5875 = vld [vmem:[#allocation2 + $0x1d0] sm:$0xff]
  %v5876 = vld [vmem:[#allocation2 + $0x1d8] sm:$0xff]
  %v5877 = vld [vmem:[#allocation2 + $0x1e0] sm:$0xff]
  %v5878 = vld [vmem:[#allocation2 + $0x1e8] sm:$0xff]
  %v5879 = vld [vmem:[#allocation2 + $0x1f0] sm:$0xff]
  %v5880 = vld [vmem:[#allocation2 + $0x1f8] sm:$0xff]
  %v5881 = vld [vmem:[#allocation2 + $0x200] sm:$0xff]
  %v5882 = vld [vmem:[#allocation2 + $0x208] sm:$0xff]
  %v5883 = vld [vmem:[#allocation2 + $0x210] sm:$0xff]
  %v5884 = vld [vmem:[#allocation2 + $0x218] sm:$0xff]
  %v5885 = vld [vmem:[#allocation2 + $0x220] sm:$0xff]
  %v5886 = vld [vmem:[#allocation2 + $0x228] sm:$0xff]
  %v5887 = vld [vmem:[#allocation2 + $0x230] sm:$0xff]
  %v5888 = vld [vmem:[#allocation2 + $0x238] sm:$0xff]
  %v5889 = vld [vmem:[#allocation2 + $0x240] sm:$0xff]
  %v5890 = vld [vmem:[#allocation2 + $0x248] sm:$0xff]
  %v5891 = vld [vmem:[#allocation2 + $0x250] sm:$0xff]
  %v5892 = vld [vmem:[#allocation2 + $0x258] sm:$0xff]
  %v5893 = vld [vmem:[#allocation2 + $0x260] sm:$0xff]
  %v5894 = vld [vmem:[#allocation2 + $0x268] sm:$0xff]
  %v5895 = vld [vmem:[#allocation2 + $0x270] sm:$0xff]
  %v5896 = vld [vmem:[#allocation2 + $0x278] sm:$0xff]
  %v5897 = vld [vmem:[#allocation2 + $0x280] sm:$0xff]
  %v5898 = vld [vmem:[#allocation2 + $0x1] sm:$0xff]
  %v5899 = vld [vmem:[#allocation2 + $0x9] sm:$0xff]
  %v5900 = vld [vmem:[#allocation2 + $0x11] sm:$0xff]
  %v5901 = vld [vmem:[#allocation2 + $0x19] sm:$0xff]
  %v5902 = vld [vmem:[#allocation2 + $0x21] sm:$0xff]
  %v5903 = vld [vmem:[#allocation2 + $0x29] sm:$0xff]
  %v5904 = vld [vmem:[#allocation2 + $0x31] sm:$0xff]
  %v5905 = vld [vmem:[#allocation2 + $0x39] sm:$0xff]
  %v5906 = vld [vmem:[#allocation2 + $0x41] sm:$0xff]
  %v5907 = vld [vmem:[#allocation2 + $0x49] sm:$0xff]
  %v5908 = vld [vmem:[#allocation2 + $0x51] sm:$0xff]
  %v5909 = vld [vmem:[#allocation2 + $0x59] sm:$0xff]
  %v5910 = vld [vmem:[#allocation2 + $0x61] sm:$0xff]
  %v5911 = vld [vmem:[#allocation2 + $0x69] sm:$0xff]
  %v5912 = vld [vmem:[#allocation2 + $0x71] sm:$0xff]
  %v5913 = vld [vmem:[#allocation2 + $0x79] sm:$0xff]
  %v5914 = vld [vmem:[#allocation2 + $0x81] sm:$0xff]
  %v5915 = vld [vmem:[#allocation2 + $0x89] sm:$0xff]
  %v5916 = vld [vmem:[#allocation2 + $0x91] sm:$0xff]
  %v5917 = vld [vmem:[#allocation2 + $0x99] sm:$0xff]
  %v5918 = vld [vmem:[#allocation2 + $0xa1] sm:$0xff]
  %v5919 = vld [vmem:[#allocation2 + $0xa9] sm:$0xff]
  %v5920 = vld [vmem:[#allocation2 + $0xb1] sm:$0xff]
  %v5921 = vld [vmem:[#allocation2 + $0xb9] sm:$0xff]
  %v5922 = vld [vmem:[#allocation2 + $0xc1] sm:$0xff]
  %v5923 = vld [vmem:[#allocation2 + $0xc9] sm:$0xff]
  %v5924 = vld [vmem:[#allocation2 + $0xd1] sm:$0xff]
  %v5925 = vld [vmem:[#allocation2 + $0xd9] sm:$0xff]
  %v5926 = vld [vmem:[#allocation2 + $0xe1] sm:$0xff]
  %v5927 = vld [vmem:[#allocation2 + $0xe9] sm:$0xff]
  %v5928 = vld [vmem:[#allocation2 + $0xf1] sm:$0xff]
  %v5929 = vld [vmem:[#allocation2 + $0xf9] sm:$0xff]
  %v5930 = vld [vmem:[#allocation2 + $0x101] sm:$0xff]
  %v5931 = vld [vmem:[#allocation2 + $0x109] sm:$0xff]
  %v5932 = vld [vmem:[#allocation2 + $0x111] sm:$0xff]
  %v5933 = vld [vmem:[#allocation2 + $0x119] sm:$0xff]
  %v5934 = vld [vmem:[#allocation2 + $0x121] sm:$0xff]
  %v5935 = vld [vmem:[#allocation2 + $0x129] sm:$0xff]
  %v5936 = vld [vmem:[#allocation2 + $0x131] sm:$0xff]
  %v5937 = vld [vmem:[#allocation2 + $0x139] sm:$0xff]
  %v5938 = vld [vmem:[#allocation2 + $0x141] sm:$0xff]
  %v5939 = vld [vmem:[#allocation2 + $0x149] sm:$0xff]
  %v5940 = vld [vmem:[#allocation2 + $0x151] sm:$0xff]
  %v5941 = vld [vmem:[#allocation2 + $0x159] sm:$0xff]
  %v5942 = vld [vmem:[#allocation2 + $0x161] sm:$0xff]
  %v5943 = vld [vmem:[#allocation2 + $0x169] sm:$0xff]
  %v5944 = vld [vmem:[#allocation2 + $0x171] sm:$0xff]
  %v5945 = vld [vmem:[#allocation2 + $0x179] sm:$0xff]
  %v5946 = vld [vmem:[#allocation2 + $0x181] sm:$0xff]
  %v5947 = vld [vmem:[#allocation2 + $0x189] sm:$0xff]
  %v5948 = vld [vmem:[#allocation2 + $0x191] sm:$0xff]
  %v5949 = vld [vmem:[#allocation2 + $0x199] sm:$0xff]
  %v5950 = vld [vmem:[#allocation2 + $0x1a1] sm:$0xff]
  %v5951 = vld [vmem:[#allocation2 + $0x1a9] sm:$0xff]
  %v5952 = vld [vmem:[#allocation2 + $0x1b1] sm:$0xff]
  %v5953 = vld [vmem:[#allocation2 + $0x1b9] sm:$0xff]
  %v5954 = vld [vmem:[#allocation2 + $0x1c1] sm:$0xff]
  %v5955 = vld [vmem:[#allocation2 + $0x1c9] sm:$0xff]
  %v5956 = vld [vmem:[#allocation2 + $0x1d1] sm:$0xff]
  %v5957 = vld [vmem:[#allocation2 + $0x1d9] sm:$0xff]
  %v5958 = vld [vmem:[#allocation2 + $0x1e1] sm:$0xff]
  %v5959 = vld [vmem:[#allocation2 + $0x1e9] sm:$0xff]
  %v5960 = vld [vmem:[#allocation2 + $0x1f1] sm:$0xff]
  %v5961 = vld [vmem:[#allocation2 + $0x1f9] sm:$0xff]
  %v5962 = vld [vmem:[#allocation2 + $0x201] sm:$0xff]
  %v5963 = vld [vmem:[#allocation2 + $0x209] sm:$0xff]
  %v5964 = vld [vmem:[#allocation2 + $0x211] sm:$0xff]
  %v5965 = vld [vmem:[#allocation2 + $0x219] sm:$0xff]
  %v5966 = vld [vmem:[#allocation2 + $0x221] sm:$0xff]
  %v5967 = vld [vmem:[#allocation2 + $0x229] sm:$0xff]
  %v5968 = vld [vmem:[#allocation2 + $0x231] sm:$0xff]
  %v5969 = vld [vmem:[#allocation2 + $0x239] sm:$0xff]
  %v5970 = vld [vmem:[#allocation2 + $0x241] sm:$0xff]
  %v5971 = vld [vmem:[#allocation2 + $0x249] sm:$0xff]
  %v5972 = vld [vmem:[#allocation2 + $0x251] sm:$0xff]
  %v5973 = vld [vmem:[#allocation2 + $0x259] sm:$0xff]
  %v5974 = vld [vmem:[#allocation2 + $0x261] sm:$0xff]
  %v5975 = vld [vmem:[#allocation2 + $0x269] sm:$0xff]
  %v5976 = vld [vmem:[#allocation2 + $0x271] sm:$0xff]
  %v5977 = vld [vmem:[#allocation2 + $0x279] sm:$0xff]
  %v5978 = vld [vmem:[#allocation2 + $0x281] sm:$0xff]
  %v5979 = vld [vmem:[#allocation2 + $0x2] sm:$0xff]
  %v5980 = vld [vmem:[#allocation2 + $0xa] sm:$0xff]
  %v5981 = vld [vmem:[#allocation2 + $0x12] sm:$0xff]
  %v5982 = vld [vmem:[#allocation2 + $0x1a] sm:$0xff]
  %v5983 = vld [vmem:[#allocation2 + $0x22] sm:$0xff]
  %v5984 = vld [vmem:[#allocation2 + $0x2a] sm:$0xff]
  %v5985 = vld [vmem:[#allocation2 + $0x32] sm:$0xff]
  %v5986 = vld [vmem:[#allocation2 + $0x3a] sm:$0xff]
  %v5987 = vld [vmem:[#allocation2 + $0x42] sm:$0xff]
  %v5988 = vld [vmem:[#allocation2 + $0x4a] sm:$0xff]
  %v5989 = vld [vmem:[#allocation2 + $0x52] sm:$0xff]
  %v5990 = vld [vmem:[#allocation2 + $0x5a] sm:$0xff]
  %v5991 = vld [vmem:[#allocation2 + $0x62] sm:$0xff]
  %v5992 = vld [vmem:[#allocation2 + $0x6a] sm:$0xff]
  %v5993 = vld [vmem:[#allocation2 + $0x72] sm:$0xff]
  %v5994 = vld [vmem:[#allocation2 + $0x7a] sm:$0xff]
  %v5995 = vld [vmem:[#allocation2 + $0x82] sm:$0xff]
  %v5996 = vld [vmem:[#allocation2 + $0x8a] sm:$0xff]
  %v5997 = vld [vmem:[#allocation2 + $0x92] sm:$0xff]
  %v5998 = vld [vmem:[#allocation2 + $0x9a] sm:$0xff]
  %v5999 = vld [vmem:[#allocation2 + $0xa2] sm:$0xff]
  %v6000 = vld [vmem:[#allocation2 + $0xaa] sm:$0xff]
  %v6001 = vld [vmem:[#allocation2 + $0xb2] sm:$0xff]
  %v6002 = vld [vmem:[#allocation2 + $0xba] sm:$0xff]
  %v6003 = vld [vmem:[#allocation2 + $0xc2] sm:$0xff]
  %v6004 = vld [vmem:[#allocation2 + $0xca] sm:$0xff]
  %v6005 = vld [vmem:[#allocation2 + $0xd2] sm:$0xff]
  %v6006 = vld [vmem:[#allocation2 + $0xda] sm:$0xff]
  %v6007 = vld [vmem:[#allocation2 + $0xe2] sm:$0xff]
  %v6008 = vld [vmem:[#allocation2 + $0xea] sm:$0xff]
  %v6009 = vld [vmem:[#allocation2 + $0xf2] sm:$0xff]
  %v6010 = vld [vmem:[#allocation2 + $0xfa] sm:$0xff]
  %v6011 = vld [vmem:[#allocation2 + $0x102] sm:$0xff]
  %v6012 = vld [vmem:[#allocation2 + $0x10a] sm:$0xff]
  %v6013 = vld [vmem:[#allocation2 + $0x112] sm:$0xff]
  %v6014 = vld [vmem:[#allocation2 + $0x11a] sm:$0xff]
  %v6015 = vld [vmem:[#allocation2 + $0x122] sm:$0xff]
  %v6016 = vld [vmem:[#allocation2 + $0x12a] sm:$0xff]
  %v6017 = vld [vmem:[#allocation2 + $0x132] sm:$0xff]
  %v6018 = vld [vmem:[#allocation2 + $0x13a] sm:$0xff]
  %v6019 = vld [vmem:[#allocation2 + $0x142] sm:$0xff]
  %v6020 = vld [vmem:[#allocation2 + $0x14a] sm:$0xff]
  %v6021 = vld [vmem:[#allocation2 + $0x152] sm:$0xff]
  %v6022 = vld [vmem:[#allocation2 + $0x15a] sm:$0xff]
  %v6023 = vld [vmem:[#allocation2 + $0x162] sm:$0xff]
  %v6024 = vld [vmem:[#allocation2 + $0x16a] sm:$0xff]
  %v6025 = vld [vmem:[#allocation2 + $0x172] sm:$0xff]
  %v6026 = vld [vmem:[#allocation2 + $0x17a] sm:$0xff]
  %v6027 = vld [vmem:[#allocation2 + $0x182] sm:$0xff]
  %v6028 = vld [vmem:[#allocation2 + $0x18a] sm:$0xff]
  %v6029 = vld [vmem:[#allocation2 + $0x192] sm:$0xff]
  %v6030 = vld [vmem:[#allocation2 + $0x19a] sm:$0xff]
  %v6031 = vld [vmem:[#allocation2 + $0x1a2] sm:$0xff]
  %v6032 = vld [vmem:[#allocation2 + $0x1aa] sm:$0xff]
  %v6033 = vld [vmem:[#allocation2 + $0x1b2] sm:$0xff]
  %v6034 = vld [vmem:[#allocation2 + $0x1ba] sm:$0xff]
  %v6035 = vld [vmem:[#allocation2 + $0x1c2] sm:$0xff]
  %v6036 = vld [vmem:[#allocation2 + $0x1ca] sm:$0xff]
  %v6037 = vld [vmem:[#allocation2 + $0x1d2] sm:$0xff]
  %v6038 = vld [vmem:[#allocation2 + $0x1da] sm:$0xff]
  %v6039 = vld [vmem:[#allocation2 + $0x1e2] sm:$0xff]
  %v6040 = vld [vmem:[#allocation2 + $0x1ea] sm:$0xff]
  %v6041 = vld [vmem:[#allocation2 + $0x1f2] sm:$0xff]
  %v6042 = vld [vmem:[#allocation2 + $0x1fa] sm:$0xff]
  %v6043 = vld [vmem:[#allocation2 + $0x202] sm:$0xff]
  %v6044 = vld [vmem:[#allocation2 + $0x20a] sm:$0xff]
  %v6045 = vld [vmem:[#allocation2 + $0x212] sm:$0xff]
  %v6046 = vld [vmem:[#allocation2 + $0x21a] sm:$0xff]
  %v6047 = vld [vmem:[#allocation2 + $0x222] sm:$0xff]
  %v6048 = vld [vmem:[#allocation2 + $0x22a] sm:$0xff]
  %v6049 = vld [vmem:[#allocation2 + $0x232] sm:$0xff]
  %v6050 = vld [vmem:[#allocation2 + $0x23a] sm:$0xff]
  %v6051 = vld [vmem:[#allocation2 + $0x242] sm:$0xff]
  %v6052 = vld [vmem:[#allocation2 + $0x24a] sm:$0xff]
  %v6053 = vld [vmem:[#allocation2 + $0x252] sm:$0xff]
  %v6054 = vld [vmem:[#allocation2 + $0x25a] sm:$0xff]
  %v6055 = vld [vmem:[#allocation2 + $0x262] sm:$0xff]
  %v6056 = vld [vmem:[#allocation2 + $0x26a] sm:$0xff]
  %v6057 = vld [vmem:[#allocation2 + $0x272] sm:$0xff]
  %v6058 = vld [vmem:[#allocation2 + $0x27a] sm:$0xff]
  %v6059 = vld [vmem:[#allocation2 + $0x282] sm:$0xff]
  %v6060 = vld [vmem:[#allocation2 + $0x28a] sm:$0xff]
  %v6061 = vld [vmem:[#allocation2 + $0x292] sm:$0xff]
  %v6062 = vld [vmem:[#allocation2 + $0x13] sm:$0xff]
  %v6063 = vld [vmem:[#allocation2 + $0x1b] sm:$0xff]
  %v6064 = vld [vmem:[#allocation2 + $0x23] sm:$0xff]
  %v6065 = vld [vmem:[#allocation2 + $0x2b] sm:$0xff]
  %v6066 = vld [vmem:[#allocation2 + $0x33] sm:$0xff]
  %v6067 = vld [vmem:[#allocation2 + $0x3b] sm:$0xff]
  %v6068 = vld [vmem:[#allocation2 + $0x43] sm:$0xff]
  %v6069 = vld [vmem:[#allocation2 + $0x4b] sm:$0xff]
  %v6070 = vld [vmem:[#allocation2 + $0x53] sm:$0xff]
  %v6071 = vld [vmem:[#allocation2 + $0x5b] sm:$0xff]
  %v6072 = vld [vmem:[#allocation2 + $0x63] sm:$0xff]
  %v6073 = vld [vmem:[#allocation2 + $0x6b] sm:$0xff]
  %v6074 = vld [vmem:[#allocation2 + $0x73] sm:$0xff]
  %v6075 = vld [vmem:[#allocation2 + $0x7b] sm:$0xff]
  %v6076 = vld [vmem:[#allocation2 + $0x83] sm:$0xff]
  %v6077 = vld [vmem:[#allocation2 + $0x8b] sm:$0xff]
  %v6078 = vld [vmem:[#allocation2 + $0x93] sm:$0xff]
  %v6079 = vld [vmem:[#allocation2 + $0x9b] sm:$0xff]
  %v6080 = vld [vmem:[#allocation2 + $0xa3] sm:$0xff]
  %v6081 = vld [vmem:[#allocation2 + $0xab] sm:$0xff]
  %v6082 = vld [vmem:[#allocation2 + $0xb3] sm:$0xff]
  %v6083 = vld [vmem:[#allocation2 + $0xbb] sm:$0xff]
  %v6084 = vld [vmem:[#allocation2 + $0xc3] sm:$0xff]
  %v6085 = vld [vmem:[#allocation2 + $0xcb] sm:$0xff]
  %v6086 = vld [vmem:[#allocation2 + $0xd3] sm:$0xff]
  %v6087 = vld [vmem:[#allocation2 + $0xdb] sm:$0xff]
  %v6088 = vld [vmem:[#allocation2 + $0xe3] sm:$0xff]
  %v6089 = vld [vmem:[#allocation2 + $0xeb] sm:$0xff]
  %v6090 = vld [vmem:[#allocation2 + $0xf3] sm:$0xff]
  %v6091 = vld [vmem:[#allocation2 + $0xfb] sm:$0xff]
  %v6092 = vld [vmem:[#allocation2 + $0x103] sm:$0xff]
  %v6093 = vld [vmem:[#allocation2 + $0x10b] sm:$0xff]
  %v6094 = vld [vmem:[#allocation2 + $0x113] sm:$0xff]
  %v6095 = vld [vmem:[#allocation2 + $0x11b] sm:$0xff]
  %v6096 = vld [vmem:[#allocation2 + $0x123] sm:$0xff]
  %v6097 = vld [vmem:[#allocation2 + $0x12b] sm:$0xff]
  %v6098 = vld [vmem:[#allocation2 + $0x133] sm:$0xff]
  %v6099 = vld [vmem:[#allocation2 + $0x13b] sm:$0xff]
  %v6100 = vld [vmem:[#allocation2 + $0x143] sm:$0xff]
  %v6101 = vld [vmem:[#allocation2 + $0x14b] sm:$0xff]
  %v6102 = vld [vmem:[#allocation2 + $0x153] sm:$0xff]
  %v6103 = vld [vmem:[#allocation2 + $0x15b] sm:$0xff]
  %v6104 = vld [vmem:[#allocation2 + $0x163] sm:$0xff]
  %v6105 = vld [vmem:[#allocation2 + $0x16b] sm:$0xff]
  %v6106 = vld [vmem:[#allocation2 + $0x173] sm:$0xff]
  %v6107 = vld [vmem:[#allocation2 + $0x17b] sm:$0xff]
  %v6108 = vld [vmem:[#allocation2 + $0x183] sm:$0xff]
  %v6109 = vld [vmem:[#allocation2 + $0x18b] sm:$0xff]
  %v6110 = vld [vmem:[#allocation2 + $0x193] sm:$0xff]
  %v6111 = vld [vmem:[#allocation2 + $0x19b] sm:$0xff]
  %v6112 = vld [vmem:[#allocation2 + $0x1a3] sm:$0xff]
  %v6113 = vld [vmem:[#allocation2 + $0x1ab] sm:$0xff]
  %v6114 = vld [vmem:[#allocation2 + $0x1b3] sm:$0xff]
  %v6115 = vld [vmem:[#allocation2 + $0x1bb] sm:$0xff]
  %v6116 = vld [vmem:[#allocation2 + $0x1c3] sm:$0xff]
  %v6117 = vld [vmem:[#allocation2 + $0x1cb] sm:$0xff]
  %v6118 = vld [vmem:[#allocation2 + $0x1d3] sm:$0xff]
  %v6119 = vld [vmem:[#allocation2 + $0x1db] sm:$0xff]
  %v6120 = vld [vmem:[#allocation2 + $0x1e3] sm:$0xff]
  %v6121 = vld [vmem:[#allocation2 + $0x1eb] sm:$0xff]
  %v6122 = vld [vmem:[#allocation2 + $0x1f3] sm:$0xff]
  %v6123 = vld [vmem:[#allocation2 + $0x1fb] sm:$0xff]
  %v6124 = vld [vmem:[#allocation2 + $0x203] sm:$0xff]
  %v6125 = vld [vmem:[#allocation2 + $0x20b] sm:$0xff]
  %v6126 = vld [vmem:[#allocation2 + $0x213] sm:$0xff]
  %v6127 = vld [vmem:[#allocation2 + $0x21b] sm:$0xff]
  %v6128 = vld [vmem:[#allocation2 + $0x223] sm:$0xff]
  %v6129 = vld [vmem:[#allocation2 + $0x22b] sm:$0xff]
  %v6130 = vld [vmem:[#allocation2 + $0x233] sm:$0xff]
  %v6131 = vld [vmem:[#allocation2 + $0x23b] sm:$0xff]
  %v6132 = vld [vmem:[#allocation2 + $0x243] sm:$0xff]
  %v6133 = vld [vmem:[#allocation2 + $0x24b] sm:$0xff]
  %v6134 = vld [vmem:[#allocation2 + $0x253] sm:$0xff]
  %v6135 = vld [vmem:[#allocation2 + $0x25b] sm:$0xff]
  %v6136 = vld [vmem:[#allocation2 + $0x263] sm:$0xff]
  %v6137 = vld [vmem:[#allocation2 + $0x26b] sm:$0xff]
  %v6138 = vld [vmem:[#allocation2 + $0x273] sm:$0xff]
  %v6139 = vld [vmem:[#allocation2 + $0x27b] sm:$0xff]
  %v6140 = vld [vmem:[#allocation2 + $0x283] sm:$0xff]
  %v6141 = vld [vmem:[#allocation2 + $0x28b] sm:$0xff]
  %v6142 = vld [vmem:[#allocation2 + $0x293] sm:$0xff]
  %v6143 = vld [vmem:[#allocation2 + $0x14] sm:$0xff]
  %v6144 = vld [vmem:[#allocation2 + $0x1c] sm:$0xff]
  %v6145 = vld [vmem:[#allocation2 + $0x24] sm:$0xff]
  %v6146 = vld [vmem:[#allocation2 + $0x2c] sm:$0xff]
  %v6147 = vld [vmem:[#allocation2 + $0x34] sm:$0xff]
  %v6148 = vld [vmem:[#allocation2 + $0x3c] sm:$0xff]
  %v6149 = vld [vmem:[#allocation2 + $0x44] sm:$0xff]
  %v6150 = vld [vmem:[#allocation2 + $0x4c] sm:$0xff]
  %v6151 = vld [vmem:[#allocation2 + $0x54] sm:$0xff]
  %v6152 = vld [vmem:[#allocation2 + $0x5c] sm:$0xff]
  %v6153 = vld [vmem:[#allocation2 + $0x64] sm:$0xff]
  %v6154 = vld [vmem:[#allocation2 + $0x6c] sm:$0xff]
  %v6155 = vld [vmem:[#allocation2 + $0x74] sm:$0xff]
  %v6156 = vld [vmem:[#allocation2 + $0x7c] sm:$0xff]
  %v6157 = vld [vmem:[#allocation2 + $0x84] sm:$0xff]
  %v6158 = vld [vmem:[#allocation2 + $0x8c] sm:$0xff]
  %v6159 = vld [vmem:[#allocation2 + $0x94] sm:$0xff]
  %v6160 = vld [vmem:[#allocation2 + $0x9c] sm:$0xff]
  %v6161 = vld [vmem:[#allocation2 + $0xa4] sm:$0xff]
  %v6162 = vld [vmem:[#allocation2 + $0xac] sm:$0xff]
  %v6163 = vld [vmem:[#allocation2 + $0xb4] sm:$0xff]
  %v6164 = vld [vmem:[#allocation2 + $0xbc] sm:$0xff]
  %v6165 = vld [vmem:[#allocation2 + $0xc4] sm:$0xff]
  %v6166 = vld [vmem:[#allocation2 + $0xcc] sm:$0xff]
  %v6167 = vld [vmem:[#allocation2 + $0xd4] sm:$0xff]
  %v6168 = vld [vmem:[#allocation2 + $0xdc] sm:$0xff]
  %v6169 = vld [vmem:[#allocation2 + $0xe4] sm:$0xff]
  %v6170 = vld [vmem:[#allocation2 + $0xec] sm:$0xff]
  %v6171 = vld [vmem:[#allocation2 + $0xf4] sm:$0xff]
  %v6172 = vld [vmem:[#allocation2 + $0xfc] sm:$0xff]
  %v6173 = vld [vmem:[#allocation2 + $0x104] sm:$0xff]
  %v6174 = vld [vmem:[#allocation2 + $0x10c] sm:$0xff]
  %v6175 = vld [vmem:[#allocation2 + $0x114] sm:$0xff]
  %v6176 = vld [vmem:[#allocation2 + $0x11c] sm:$0xff]
  %v6177 = vld [vmem:[#allocation2 + $0x124] sm:$0xff]
  %v6178 = vld [vmem:[#allocation2 + $0x12c] sm:$0xff]
  %v6179 = vld [vmem:[#allocation2 + $0x134] sm:$0xff]
  %v6180 = vld [vmem:[#allocation2 + $0x13c] sm:$0xff]
  %v6181 = vld [vmem:[#allocation2 + $0x144] sm:$0xff]
  %v6182 = vld [vmem:[#allocation2 + $0x14c] sm:$0xff]
  %v6183 = vld [vmem:[#allocation2 + $0x154] sm:$0xff]
  %v6184 = vld [vmem:[#allocation2 + $0x15c] sm:$0xff]
  %v6185 = vld [vmem:[#allocation2 + $0x164] sm:$0xff]
  %v6186 = vld [vmem:[#allocation2 + $0x16c] sm:$0xff]
  %v6187 = vld [vmem:[#allocation2 + $0x174] sm:$0xff]
  %v6188 = vld [vmem:[#allocation2 + $0x17c] sm:$0xff]
  %v6189 = vld [vmem:[#allocation2 + $0x184] sm:$0xff]
  %v6190 = vld [vmem:[#allocation2 + $0x18c] sm:$0xff]
  %v6191 = vld [vmem:[#allocation2 + $0x194] sm:$0xff]
  %v6192 = vld [vmem:[#allocation2 + $0x19c] sm:$0xff]
  %v6193 = vld [vmem:[#allocation2 + $0x1a4] sm:$0xff]
  %v6194 = vld [vmem:[#allocation2 + $0x1ac] sm:$0xff]
  %v6195 = vld [vmem:[#allocation2 + $0x1b4] sm:$0xff]
  %v6196 = vld [vmem:[#allocation2 + $0x1bc] sm:$0xff]
  %v6197 = vld [vmem:[#allocation2 + $0x1c4] sm:$0xff]
  %v6198 = vld [vmem:[#allocation2 + $0x1cc] sm:$0xff]
  %v6199 = vld [vmem:[#allocation2 + $0x1d4] sm:$0xff]
  %v6200 = vld [vmem:[#allocation2 + $0x1dc] sm:$0xff]
  %v6201 = vld [vmem:[#allocation2 + $0x1e4] sm:$0xff]
  %v6202 = vld [vmem:[#allocation2 + $0x1ec] sm:$0xff]
  %v6203 = vld [vmem:[#allocation2 + $0x1f4] sm:$0xff]
  %v6204 = vld [vmem:[#allocation2 + $0x1fc] sm:$0xff]
  %v6205 = vld [vmem:[#allocation2 + $0x204] sm:$0xff]
  %v6206 = vld [vmem:[#allocation2 + $0x20c] sm:$0xff]
  %v6207 = vld [vmem:[#allocation2 + $0x214] sm:$0xff]
  %v6208 = vld [vmem:[#allocation2 + $0x21c] sm:$0xff]
  %v6209 = vld [vmem:[#allocation2 + $0x224] sm:$0xff]
  %v6210 = vld [vmem:[#allocation2 + $0x22c] sm:$0xff]
  %v6211 = vld [vmem:[#allocation2 + $0x234] sm:$0xff]
  %v6212 = vld [vmem:[#allocation2 + $0x23c] sm:$0xff]
  %v6213 = vld [vmem:[#allocation2 + $0x244] sm:$0xff]
  %v6214 = vld [vmem:[#allocation2 + $0x24c] sm:$0xff]
  %v6215 = vld [vmem:[#allocation2 + $0x254] sm:$0xff]
  %v6216 = vld [vmem:[#allocation2 + $0x25c] sm:$0xff]
  %v6217 = vld [vmem:[#allocation2 + $0x264] sm:$0xff]
  %v6218 = vld [vmem:[#allocation2 + $0x26c] sm:$0xff]
  %v6219 = vld [vmem:[#allocation2 + $0x274] sm:$0xff]
  %v6220 = vld [vmem:[#allocation2 + $0x27c] sm:$0xff]
  %v6221 = vld [vmem:[#allocation2 + $0x284] sm:$0xff]
  %v6222 = vld [vmem:[#allocation2 + $0x28c] sm:$0xff]
  %v6223 = vld [vmem:[#allocation2 + $0x294] sm:$0xff]
  %v6224 = vld [vmem:[#allocation2 + $0x29c] sm:$0xff]
  %v6225 = vld [vmem:[#allocation2 + $0x2a4] sm:$0xff]
  %v6226 = vld [vmem:[#allocation2 + $0x25] sm:$0xff]
  %v6227 = vld [vmem:[#allocation2 + $0x2d] sm:$0xff]
  %v6228 = vld [vmem:[#allocation2 + $0x35] sm:$0xff]
  %v6229 = vld [vmem:[#allocation2 + $0x3d] sm:$0xff]
  %v6230 = vld [vmem:[#allocation2 + $0x45] sm:$0xff]
  %v6231 = vld [vmem:[#allocation2 + $0x4d] sm:$0xff]
  %v6232 = vld [vmem:[#allocation2 + $0x55] sm:$0xff]
  %v6233 = vld [vmem:[#allocation2 + $0x5d] sm:$0xff]
  %v6234 = vld [vmem:[#allocation2 + $0x65] sm:$0xff]
  %v6235 = vld [vmem:[#allocation2 + $0x6d] sm:$0xff]
  %v6236 = vld [vmem:[#allocation2 + $0x75] sm:$0xff]
  %v6237 = vld [vmem:[#allocation2 + $0x7d] sm:$0xff]
  %v6238 = vld [vmem:[#allocation2 + $0x85] sm:$0xff]
  %v6239 = vld [vmem:[#allocation2 + $0x8d] sm:$0xff]
  %v6240 = vld [vmem:[#allocation2 + $0x95] sm:$0xff]
  %v6241 = vld [vmem:[#allocation2 + $0x9d] sm:$0xff]
  %v6242 = vld [vmem:[#allocation2 + $0xa5] sm:$0xff]
  %v6243 = vld [vmem:[#allocation2 + $0xad] sm:$0xff]
  %v6244 = vld [vmem:[#allocation2 + $0xb5] sm:$0xff]
  %v6245 = vld [vmem:[#allocation2 + $0xbd] sm:$0xff]
  %v6246 = vld [vmem:[#allocation2 + $0xc5] sm:$0xff]
  %v6247 = vld [vmem:[#allocation2 + $0xcd] sm:$0xff]
  %v6248 = vld [vmem:[#allocation2 + $0xd5] sm:$0xff]
  %v6249 = vld [vmem:[#allocation2 + $0xdd] sm:$0xff]
  %v6250 = vld [vmem:[#allocation2 + $0xe5] sm:$0xff]
  %v6251 = vld [vmem:[#allocation2 + $0xed] sm:$0xff]
  %v6252 = vld [vmem:[#allocation2 + $0xf5] sm:$0xff]
  %v6253 = vld [vmem:[#allocation2 + $0xfd] sm:$0xff]
  %v6254 = vld [vmem:[#allocation2 + $0x105] sm:$0xff]
  %v6255 = vld [vmem:[#allocation2 + $0x10d] sm:$0xff]
  %v6256 = vld [vmem:[#allocation2 + $0x115] sm:$0xff]
  %v6257 = vld [vmem:[#allocation2 + $0x11d] sm:$0xff]
  %v6258 = vld [vmem:[#allocation2 + $0x125] sm:$0xff]
  %v6259 = vld [vmem:[#allocation2 + $0x12d] sm:$0xff]
  %v6260 = vld [vmem:[#allocation2 + $0x135] sm:$0xff]
  %v6261 = vld [vmem:[#allocation2 + $0x13d] sm:$0xff]
  %v6262 = vld [vmem:[#allocation2 + $0x145] sm:$0xff]
  %v6263 = vld [vmem:[#allocation2 + $0x14d] sm:$0xff]
  %v6264 = vld [vmem:[#allocation2 + $0x155] sm:$0xff]
  %v6265 = vld [vmem:[#allocation2 + $0x15d] sm:$0xff]
  %v6266 = vld [vmem:[#allocation2 + $0x165] sm:$0xff]
  %v6267 = vld [vmem:[#allocation2 + $0x16d] sm:$0xff]
  %v6268 = vld [vmem:[#allocation2 + $0x175] sm:$0xff]
  %v6269 = vld [vmem:[#allocation2 + $0x17d] sm:$0xff]
  %v6270 = vld [vmem:[#allocation2 + $0x185] sm:$0xff]
  %v6271 = vld [vmem:[#allocation2 + $0x18d] sm:$0xff]
  %v6272 = vld [vmem:[#allocation2 + $0x195] sm:$0xff]
  %v6273 = vld [vmem:[#allocation2 + $0x19d] sm:$0xff]
  %v6274 = vld [vmem:[#allocation2 + $0x1a5] sm:$0xff]
  %v6275 = vld [vmem:[#allocation2 + $0x1ad] sm:$0xff]
  %v6276 = vld [vmem:[#allocation2 + $0x1b5] sm:$0xff]
  %v6277 = vld [vmem:[#allocation2 + $0x1bd] sm:$0xff]
  %v6278 = vld [vmem:[#allocation2 + $0x1c5] sm:$0xff]
  %v6279 = vld [vmem:[#allocation2 + $0x1cd] sm:$0xff]
  %v6280 = vld [vmem:[#allocation2 + $0x1d5] sm:$0xff]
  %v6281 = vld [vmem:[#allocation2 + $0x1dd] sm:$0xff]
  %v6282 = vld [vmem:[#allocation2 + $0x1e5] sm:$0xff]
  %v6283 = vld [vmem:[#allocation2 + $0x1ed] sm:$0xff]
  %v6284 = vld [vmem:[#allocation2 + $0x1f5] sm:$0xff]
  %v6285 = vld [vmem:[#allocation2 + $0x1fd] sm:$0xff]
  %v6286 = vld [vmem:[#allocation2 + $0x205] sm:$0xff]
  %v6287 = vld [vmem:[#allocation2 + $0x20d] sm:$0xff]
  %v6288 = vld [vmem:[#allocation2 + $0x215] sm:$0xff]
  %v6289 = vld [vmem:[#allocation2 + $0x21d] sm:$0xff]
  %v6290 = vld [vmem:[#allocation2 + $0x225] sm:$0xff]
  %v6291 = vld [vmem:[#allocation2 + $0x22d] sm:$0xff]
  %v6292 = vld [vmem:[#allocation2 + $0x235] sm:$0xff]
  %v6293 = vld [vmem:[#allocation2 + $0x23d] sm:$0xff]
  %v6294 = vld [vmem:[#allocation2 + $0x245] sm:$0xff]
  %v6295 = vld [vmem:[#allocation2 + $0x24d] sm:$0xff]
  %v6296 = vld [vmem:[#allocation2 + $0x255] sm:$0xff]
  %v6297 = vld [vmem:[#allocation2 + $0x25d] sm:$0xff]
  %v6298 = vld [vmem:[#allocation2 + $0x265] sm:$0xff]
  %v6299 = vld [vmem:[#allocation2 + $0x26d] sm:$0xff]
  %v6300 = vld [vmem:[#allocation2 + $0x275] sm:$0xff]
  %v6301 = vld [vmem:[#allocation2 + $0x27d] sm:$0xff]
  %v6302 = vld [vmem:[#allocation2 + $0x285] sm:$0xff]
  %v6303 = vld [vmem:[#allocation2 + $0x28d] sm:$0xff]
  %v6304 = vld [vmem:[#allocation2 + $0x295] sm:$0xff]
  %v6305 = vld [vmem:[#allocation2 + $0x29d] sm:$0xff]
  %v6306 = vld [vmem:[#allocation2 + $0x2a5] sm:$0xff]
  %v6307 = vld [vmem:[#allocation2 + $0x26] sm:$0xff]
  %v6308 = vld [vmem:[#allocation2 + $0x2e] sm:$0xff]
  %v6309 = vld [vmem:[#allocation2 + $0x36] sm:$0xff]
  %v6310 = vld [vmem:[#allocation2 + $0x3e] sm:$0xff]
  %v6311 = vld [vmem:[#allocation2 + $0x46] sm:$0xff]
  %v6312 = vld [vmem:[#allocation2 + $0x4e] sm:$0xff]
  %v6313 = vld [vmem:[#allocation2 + $0x56] sm:$0xff]
  %v6314 = vld [vmem:[#allocation2 + $0x5e] sm:$0xff]
  %v6315 = vld [vmem:[#allocation2 + $0x66] sm:$0xff]
  %v6316 = vld [vmem:[#allocation2 + $0x6e] sm:$0xff]
  %v6317 = vld [vmem:[#allocation2 + $0x76] sm:$0xff]
  %v6318 = vld [vmem:[#allocation2 + $0x7e] sm:$0xff]
  %v6319 = vld [vmem:[#allocation2 + $0x86] sm:$0xff]
  %v6320 = vld [vmem:[#allocation2 + $0x8e] sm:$0xff]
  %v6321 = vld [vmem:[#allocation2 + $0x96] sm:$0xff]
  %v6322 = vld [vmem:[#allocation2 + $0x9e] sm:$0xff]
  %v6323 = vld [vmem:[#allocation2 + $0xa6] sm:$0xff]
  %v6324 = vld [vmem:[#allocation2 + $0xae] sm:$0xff]
  %v6325 = vld [vmem:[#allocation2 + $0xb6] sm:$0xff]
  %v6326 = vld [vmem:[#allocation2 + $0xbe] sm:$0xff]
  %v6327 = vld [vmem:[#allocation2 + $0xc6] sm:$0xff]
  %v6328 = vld [vmem:[#allocation2 + $0xce] sm:$0xff]
  %v6329 = vld [vmem:[#allocation2 + $0xd6] sm:$0xff]
  %v6330 = vld [vmem:[#allocation2 + $0xde] sm:$0xff]
  %v6331 = vld [vmem:[#allocation2 + $0xe6] sm:$0xff]
  %v6332 = vld [vmem:[#allocation2 + $0xee] sm:$0xff]
  %v6333 = vld [vmem:[#allocation2 + $0xf6] sm:$0xff]
  %v6334 = vld [vmem:[#allocation2 + $0xfe] sm:$0xff]
  %v6335 = vld [vmem:[#allocation2 + $0x106] sm:$0xff]
  %v6336 = vld [vmem:[#allocation2 + $0x10e] sm:$0xff]
  %v6337 = vld [vmem:[#allocation2 + $0x116] sm:$0xff]
  %v6338 = vld [vmem:[#allocation2 + $0x11e] sm:$0xff]
  %v6339 = vld [vmem:[#allocation2 + $0x126] sm:$0xff]
  %v6340 = vld [vmem:[#allocation2 + $0x12e] sm:$0xff]
  %v6341 = vld [vmem:[#allocation2 + $0x136] sm:$0xff]
  %v6342 = vld [vmem:[#allocation2 + $0x13e] sm:$0xff]
  %v6343 = vld [vmem:[#allocation2 + $0x146] sm:$0xff]
  %v6344 = vld [vmem:[#allocation2 + $0x14e] sm:$0xff]
  %v6345 = vld [vmem:[#allocation2 + $0x156] sm:$0xff]
  %v6346 = vld [vmem:[#allocation2 + $0x15e] sm:$0xff]
  %v6347 = vld [vmem:[#allocation2 + $0x166] sm:$0xff]
  %v6348 = vld [vmem:[#allocation2 + $0x16e] sm:$0xff]
  %v6349 = vld [vmem:[#allocation2 + $0x176] sm:$0xff]
  %v6350 = vld [vmem:[#allocation2 + $0x17e] sm:$0xff]
  %v6351 = vld [vmem:[#allocation2 + $0x186] sm:$0xff]
  %v6352 = vld [vmem:[#allocation2 + $0x18e] sm:$0xff]
  %v6353 = vld [vmem:[#allocation2 + $0x196] sm:$0xff]
  %v6354 = vld [vmem:[#allocation2 + $0x19e] sm:$0xff]
  %v6355 = vld [vmem:[#allocation2 + $0x1a6] sm:$0xff]
  %v6356 = vld [vmem:[#allocation2 + $0x1ae] sm:$0xff]
  %v6357 = vld [vmem:[#allocation2 + $0x1b6] sm:$0xff]
  %v6358 = vld [vmem:[#allocation2 + $0x1be] sm:$0xff]
  %v6359 = vld [vmem:[#allocation2 + $0x1c6] sm:$0xff]
  %v6360 = vld [vmem:[#allocation2 + $0x1ce] sm:$0xff]
  %v6361 = vld [vmem:[#allocation2 + $0x1d6] sm:$0xff]
  %v6362 = vld [vmem:[#allocation2 + $0x1de] sm:$0xff]
  %v6363 = vld [vmem:[#allocation2 + $0x1e6] sm:$0xff]
  %v6364 = vld [vmem:[#allocation2 + $0x1ee] sm:$0xff]
  %v6365 = vld [vmem:[#allocation2 + $0x1f6] sm:$0xff]
  %v6366 = vld [vmem:[#allocation2 + $0x1fe] sm:$0xff]
  %v6367 = vld [vmem:[#allocation2 + $0x206] sm:$0xff]
  %v6368 = vld [vmem:[#allocation2 + $0x20e] sm:$0xff]
  %v6369 = vld [vmem:[#allocation2 + $0x216] sm:$0xff]
  %v6370 = vld [vmem:[#allocation2 + $0x21e] sm:$0xff]
  %v6371 = vld [vmem:[#allocation2 + $0x226] sm:$0xff]
  %v6372 = vld [vmem:[#allocation2 + $0x22e] sm:$0xff]
  %v6373 = vld [vmem:[#allocation2 + $0x236] sm:$0xff]
  %v6374 = vld [vmem:[#allocation2 + $0x23e] sm:$0xff]
  %v6375 = vld [vmem:[#allocation2 + $0x246] sm:$0xff]
  %v6376 = vld [vmem:[#allocation2 + $0x24e] sm:$0xff]
  %v6377 = vld [vmem:[#allocation2 + $0x256] sm:$0xff]
  %v6378 = vld [vmem:[#allocation2 + $0x25e] sm:$0xff]
  %v6379 = vld [vmem:[#allocation2 + $0x266] sm:$0xff]
  %v6380 = vld [vmem:[#allocation2 + $0x26e] sm:$0xff]
  %v6381 = vld [vmem:[#allocation2 + $0x276] sm:$0xff]
  %v6382 = vld [vmem:[#allocation2 + $0x27e] sm:$0xff]
  %v6383 = vld [vmem:[#allocation2 + $0x286] sm:$0xff]
  %v6384 = vld [vmem:[#allocation2 + $0x28e] sm:$0xff]
  %v6385 = vld [vmem:[#allocation2 + $0x296] sm:$0xff]
  %v6386 = vld [vmem:[#allocation2 + $0x29e] sm:$0xff]
  %v6387 = vld [vmem:[#allocation2 + $0x2a6] sm:$0xff]
  %6469 = vrot.lane.b32.xlu0 %v5898, 8
  %v6470 = vpop.permute.xlu0 %6469
  %6471 = vrot.lane.b32.xlu0 %v5899, 8
  %v6472 = vpop.permute.xlu0 %6471
  %6473 = vrot.lane.b32.xlu0 %v5900, 8
  %v6474 = vpop.permute.xlu0 %6473
  %6475 = vrot.lane.b32.xlu0 %v5901, 8
  %v6476 = vpop.permute.xlu0 %6475
  %6477 = vrot.lane.b32.xlu0 %v5902, 8
  %v6478 = vpop.permute.xlu0 %6477
  %6479 = vrot.lane.b32.xlu0 %v5903, 8
  %v6480 = vpop.permute.xlu0 %6479
  %6481 = vrot.lane.b32.xlu0 %v5904, 8
  %v6482 = vpop.permute.xlu0 %6481
  %6483 = vrot.lane.b32.xlu0 %v5905, 8
  %v6484 = vpop.permute.xlu0 %6483
  %6485 = vrot.lane.b32.xlu0 %v5906, 8
  %v6486 = vpop.permute.xlu0 %6485
  %6487 = vrot.lane.b32.xlu0 %v5907, 8
  %v6488 = vpop.permute.xlu0 %6487
  %6489 = vrot.lane.b32.xlu0 %v5908, 8
  %v6490 = vpop.permute.xlu0 %6489
  %6491 = vrot.lane.b32.xlu0 %v5909, 8
  %v6492 = vpop.permute.xlu0 %6491
  %6493 = vrot.lane.b32.xlu0 %v5910, 8
  %v6494 = vpop.permute.xlu0 %6493
  %6495 = vrot.lane.b32.xlu0 %v5911, 8
  %v6496 = vpop.permute.xlu0 %6495
  %6497 = vrot.lane.b32.xlu0 %v5912, 8
  %v6498 = vpop.permute.xlu0 %6497
  %6499 = vrot.lane.b32.xlu0 %v5913, 8
  %v6500 = vpop.permute.xlu0 %6499
  %6501 = vrot.lane.b32.xlu0 %v5914, 8
  %v6502 = vpop.permute.xlu0 %6501
  %6503 = vrot.lane.b32.xlu0 %v5915, 8
  %v6504 = vpop.permute.xlu0 %6503
  %6505 = vrot.lane.b32.xlu0 %v5916, 8
  %v6506 = vpop.permute.xlu0 %6505
  %6507 = vrot.lane.b32.xlu0 %v5917, 8
  %v6508 = vpop.permute.xlu0 %6507
  %6509 = vrot.lane.b32.xlu0 %v5918, 8
  %v6510 = vpop.permute.xlu0 %6509
  %6511 = vrot.lane.b32.xlu0 %v5919, 8
  %v6512 = vpop.permute.xlu0 %6511
  %6513 = vrot.lane.b32.xlu0 %v5920, 8
  %v6514 = vpop.permute.xlu0 %6513
  %6515 = vrot.lane.b32.xlu0 %v5921, 8
  %v6516 = vpop.permute.xlu0 %6515
  %6517 = vrot.lane.b32.xlu0 %v5922, 8
  %v6518 = vpop.permute.xlu0 %6517
  %6519 = vrot.lane.b32.xlu0 %v5923, 8
  %v6520 = vpop.permute.xlu0 %6519
  %6521 = vrot.lane.b32.xlu0 %v5924, 8
  %v6522 = vpop.permute.xlu0 %6521
  %6523 = vrot.lane.b32.xlu0 %v5925, 8
  %v6524 = vpop.permute.xlu0 %6523
  %6525 = vrot.lane.b32.xlu0 %v5926, 8
  %v6526 = vpop.permute.xlu0 %6525
  %6527 = vrot.lane.b32.xlu0 %v5927, 8
  %v6528 = vpop.permute.xlu0 %6527
  %6529 = vrot.lane.b32.xlu0 %v5928, 8
  %v6530 = vpop.permute.xlu0 %6529
  %6531 = vrot.lane.b32.xlu0 %v5929, 8
  %v6532 = vpop.permute.xlu0 %6531
  %6533 = vrot.lane.b32.xlu0 %v5930, 8
  %v6534 = vpop.permute.xlu0 %6533
  %6535 = vrot.lane.b32.xlu0 %v5931, 8
  %v6536 = vpop.permute.xlu0 %6535
  %6537 = vrot.lane.b32.xlu0 %v5932, 8
  %v6538 = vpop.permute.xlu0 %6537
  %6539 = vrot.lane.b32.xlu0 %v5933, 8
  %v6540 = vpop.permute.xlu0 %6539
  %6541 = vrot.lane.b32.xlu0 %v5934, 8
  %v6542 = vpop.permute.xlu0 %6541
  %6543 = vrot.lane.b32.xlu0 %v5935, 8
  %v6544 = vpop.permute.xlu0 %6543
  %6545 = vrot.lane.b32.xlu0 %v5936, 8
  %v6546 = vpop.permute.xlu0 %6545
  %6547 = vrot.lane.b32.xlu0 %v5937, 8
  %v6548 = vpop.permute.xlu0 %6547
  %6549 = vrot.lane.b32.xlu0 %v5938, 8
  %v6550 = vpop.permute.xlu0 %6549
  %6551 = vrot.lane.b32.xlu0 %v5939, 8
  %v6552 = vpop.permute.xlu0 %6551
  %6553 = vrot.lane.b32.xlu0 %v5940, 8
  %v6554 = vpop.permute.xlu0 %6553
  %6555 = vrot.lane.b32.xlu0 %v5941, 8
  %v6556 = vpop.permute.xlu0 %6555
  %6557 = vrot.lane.b32.xlu0 %v5942, 8
  %v6558 = vpop.permute.xlu0 %6557
  %6559 = vrot.lane.b32.xlu0 %v5943, 8
  %v6560 = vpop.permute.xlu0 %6559
  %6561 = vrot.lane.b32.xlu0 %v5944, 8
  %v6562 = vpop.permute.xlu0 %6561
  %6563 = vrot.lane.b32.xlu0 %v5945, 8
  %v6564 = vpop.permute.xlu0 %6563
  %6565 = vrot.lane.b32.xlu0 %v5946, 8
  %v6566 = vpop.permute.xlu0 %6565
  %6567 = vrot.lane.b32.xlu0 %v5947, 8
  %v6568 = vpop.permute.xlu0 %6567
  %6569 = vrot.lane.b32.xlu0 %v5948, 8
  %v6570 = vpop.permute.xlu0 %6569
  %6571 = vrot.lane.b32.xlu0 %v5949, 8
  %v6572 = vpop.permute.xlu0 %6571
  %6573 = vrot.lane.b32.xlu0 %v5950, 8
  %v6574 = vpop.permute.xlu0 %6573
  %6575 = vrot.lane.b32.xlu0 %v5951, 8
  %v6576 = vpop.permute.xlu0 %6575
  %6577 = vrot.lane.b32.xlu0 %v5952, 8
  %v6578 = vpop.permute.xlu0 %6577
  %6579 = vrot.lane.b32.xlu0 %v5953, 8
  %v6580 = vpop.permute.xlu0 %6579
  %6581 = vrot.lane.b32.xlu0 %v5954, 8
  %v6582 = vpop.permute.xlu0 %6581
  %6583 = vrot.lane.b32.xlu0 %v5955, 8
  %v6584 = vpop.permute.xlu0 %6583
  %6585 = vrot.lane.b32.xlu0 %v5956, 8
  %v6586 = vpop.permute.xlu0 %6585
  %6587 = vrot.lane.b32.xlu0 %v5957, 8
  %v6588 = vpop.permute.xlu0 %6587
  %6589 = vrot.lane.b32.xlu0 %v5958, 8
  %v6590 = vpop.permute.xlu0 %6589
  %6591 = vrot.lane.b32.xlu0 %v5959, 8
  %v6592 = vpop.permute.xlu0 %6591
  %6593 = vrot.lane.b32.xlu0 %v5960, 8
  %v6594 = vpop.permute.xlu0 %6593
  %6595 = vrot.lane.b32.xlu0 %v5961, 8
  %v6596 = vpop.permute.xlu0 %6595
  %6597 = vrot.lane.b32.xlu0 %v5962, 8
  %v6598 = vpop.permute.xlu0 %6597
  %6599 = vrot.lane.b32.xlu0 %v5963, 8
  %v6600 = vpop.permute.xlu0 %6599
  %6601 = vrot.lane.b32.xlu0 %v5964, 8
  %v6602 = vpop.permute.xlu0 %6601
  %6603 = vrot.lane.b32.xlu0 %v5965, 8
  %v6604 = vpop.permute.xlu0 %6603
  %6605 = vrot.lane.b32.xlu0 %v5966, 8
  %v6606 = vpop.permute.xlu0 %6605
  %6607 = vrot.lane.b32.xlu0 %v5967, 8
  %v6608 = vpop.permute.xlu0 %6607
  %6609 = vrot.lane.b32.xlu0 %v5968, 8
  %v6610 = vpop.permute.xlu0 %6609
  %6611 = vrot.lane.b32.xlu0 %v5969, 8
  %v6612 = vpop.permute.xlu0 %6611
  %6613 = vrot.lane.b32.xlu0 %v5970, 8
  %v6614 = vpop.permute.xlu0 %6613
  %6615 = vrot.lane.b32.xlu0 %v5971, 8
  %v6616 = vpop.permute.xlu0 %6615
  %6617 = vrot.lane.b32.xlu0 %v5972, 8
  %v6618 = vpop.permute.xlu0 %6617
  %6619 = vrot.lane.b32.xlu0 %v5973, 8
  %v6620 = vpop.permute.xlu0 %6619
  %6621 = vrot.lane.b32.xlu0 %v5974, 8
  %v6622 = vpop.permute.xlu0 %6621
  %6623 = vrot.lane.b32.xlu0 %v5975, 8
  %v6624 = vpop.permute.xlu0 %6623
  %6625 = vrot.lane.b32.xlu0 %v5976, 8
  %v6626 = vpop.permute.xlu0 %6625
  %6627 = vrot.lane.b32.xlu0 %v5977, 8
  %v6628 = vpop.permute.xlu0 %6627
  %6629 = vrot.lane.b32.xlu0 %v5978, 8
  %v6630 = vpop.permute.xlu0 %6629
  %6793 = vrot.lane.b32.xlu0 %v5979, 16
  %v6794 = vpop.permute.xlu0 %6793
  %6795 = vrot.lane.b32.xlu0 %v5980, 16
  %v6796 = vpop.permute.xlu0 %6795
  %6797 = vrot.lane.b32.xlu0 %v5981, 16
  %v6798 = vpop.permute.xlu0 %6797
  %6799 = vrot.lane.b32.xlu0 %v5982, 16
  %v6800 = vpop.permute.xlu0 %6799
  %6801 = vrot.lane.b32.xlu0 %v5983, 16
  %v6802 = vpop.permute.xlu0 %6801
  %6803 = vrot.lane.b32.xlu0 %v5984, 16
  %v6804 = vpop.permute.xlu0 %6803
  %6805 = vrot.lane.b32.xlu0 %v5985, 16
  %v6806 = vpop.permute.xlu0 %6805
  %6807 = vrot.lane.b32.xlu0 %v5986, 16
  %v6808 = vpop.permute.xlu0 %6807
  %6809 = vrot.lane.b32.xlu0 %v5987, 16
  %v6810 = vpop.permute.xlu0 %6809
  %6811 = vrot.lane.b32.xlu0 %v5988, 16
  %v6812 = vpop.permute.xlu0 %6811
  %6813 = vrot.lane.b32.xlu0 %v5989, 16
  %v6814 = vpop.permute.xlu0 %6813
  %6815 = vrot.lane.b32.xlu0 %v5990, 16
  %v6816 = vpop.permute.xlu0 %6815
  %6817 = vrot.lane.b32.xlu0 %v5991, 16
  %v6818 = vpop.permute.xlu0 %6817
  %6819 = vrot.lane.b32.xlu0 %v5992, 16
  %v6820 = vpop.permute.xlu0 %6819
  %6821 = vrot.lane.b32.xlu0 %v5993, 16
  %v6822 = vpop.permute.xlu0 %6821
  %6823 = vrot.lane.b32.xlu0 %v5994, 16
  %v6824 = vpop.permute.xlu0 %6823
  %6825 = vrot.lane.b32.xlu0 %v5995, 16
  %v6826 = vpop.permute.xlu0 %6825
  %6827 = vrot.lane.b32.xlu0 %v5996, 16
  %v6828 = vpop.permute.xlu0 %6827
  %6829 = vrot.lane.b32.xlu0 %v5997, 16
  %v6830 = vpop.permute.xlu0 %6829
  %6831 = vrot.lane.b32.xlu0 %v5998, 16
  %v6832 = vpop.permute.xlu0 %6831
  %6833 = vrot.lane.b32.xlu0 %v5999, 16
  %v6834 = vpop.permute.xlu0 %6833
  %6835 = vrot.lane.b32.xlu0 %v6000, 16
  %v6836 = vpop.permute.xlu0 %6835
  %6837 = vrot.lane.b32.xlu0 %v6001, 16
  %v6838 = vpop.permute.xlu0 %6837
  %6839 = vrot.lane.b32.xlu0 %v6002, 16
  %v6840 = vpop.permute.xlu0 %6839
  %6841 = vrot.lane.b32.xlu0 %v6003, 16
  %v6842 = vpop.permute.xlu0 %6841
  %6843 = vrot.lane.b32.xlu0 %v6004, 16
  %v6844 = vpop.permute.xlu0 %6843
  %6845 = vrot.lane.b32.xlu0 %v6005, 16
  %v6846 = vpop.permute.xlu0 %6845
  %6847 = vrot.lane.b32.xlu0 %v6006, 16
  %v6848 = vpop.permute.xlu0 %6847
  %6849 = vrot.lane.b32.xlu0 %v6007, 16
  %v6850 = vpop.permute.xlu0 %6849
  %6851 = vrot.lane.b32.xlu0 %v6008, 16
  %v6852 = vpop.permute.xlu0 %6851
  %6853 = vrot.lane.b32.xlu0 %v6009, 16
  %v6854 = vpop.permute.xlu0 %6853
  %6855 = vrot.lane.b32.xlu0 %v6010, 16
  %v6856 = vpop.permute.xlu0 %6855
  %6857 = vrot.lane.b32.xlu0 %v6011, 16
  %v6858 = vpop.permute.xlu0 %6857
  %6859 = vrot.lane.b32.xlu0 %v6012, 16
  %v6860 = vpop.permute.xlu0 %6859
  %6861 = vrot.lane.b32.xlu0 %v6013, 16
  %v6862 = vpop.permute.xlu0 %6861
  %6863 = vrot.lane.b32.xlu0 %v6014, 16
  %v6864 = vpop.permute.xlu0 %6863
  %6865 = vrot.lane.b32.xlu0 %v6015, 16
  %v6866 = vpop.permute.xlu0 %6865
  %6867 = vrot.lane.b32.xlu0 %v6016, 16
  %v6868 = vpop.permute.xlu0 %6867
  %6869 = vrot.lane.b32.xlu0 %v6017, 16
  %v6870 = vpop.permute.xlu0 %6869
  %6871 = vrot.lane.b32.xlu0 %v6018, 16
  %v6872 = vpop.permute.xlu0 %6871
  %6873 = vrot.lane.b32.xlu0 %v6019, 16
  %v6874 = vpop.permute.xlu0 %6873
  %6875 = vrot.lane.b32.xlu0 %v6020, 16
  %v6876 = vpop.permute.xlu0 %6875
  %6877 = vrot.lane.b32.xlu0 %v6021, 16
  %v6878 = vpop.permute.xlu0 %6877
  %6879 = vrot.lane.b32.xlu0 %v6022, 16
  %v6880 = vpop.permute.xlu0 %6879
  %6881 = vrot.lane.b32.xlu0 %v6023, 16
  %v6882 = vpop.permute.xlu0 %6881
  %6883 = vrot.lane.b32.xlu0 %v6024, 16
  %v6884 = vpop.permute.xlu0 %6883
  %6885 = vrot.lane.b32.xlu0 %v6025, 16
  %v6886 = vpop.permute.xlu0 %6885
  %6887 = vrot.lane.b32.xlu0 %v6026, 16
  %v6888 = vpop.permute.xlu0 %6887
  %6889 = vrot.lane.b32.xlu0 %v6027, 16
  %v6890 = vpop.permute.xlu0 %6889
  %6891 = vrot.lane.b32.xlu0 %v6028, 16
  %v6892 = vpop.permute.xlu0 %6891
  %6893 = vrot.lane.b32.xlu0 %v6029, 16
  %v6894 = vpop.permute.xlu0 %6893
  %6895 = vrot.lane.b32.xlu0 %v6030, 16
  %v6896 = vpop.permute.xlu0 %6895
  %6897 = vrot.lane.b32.xlu0 %v6031, 16
  %v6898 = vpop.permute.xlu0 %6897
  %6899 = vrot.lane.b32.xlu0 %v6032, 16
  %v6900 = vpop.permute.xlu0 %6899
  %6901 = vrot.lane.b32.xlu0 %v6033, 16
  %v6902 = vpop.permute.xlu0 %6901
  %6903 = vrot.lane.b32.xlu0 %v6034, 16
  %v6904 = vpop.permute.xlu0 %6903
  %6905 = vrot.lane.b32.xlu0 %v6035, 16
  %v6906 = vpop.permute.xlu0 %6905
  %6907 = vrot.lane.b32.xlu0 %v6036, 16
  %v6908 = vpop.permute.xlu0 %6907
  %6909 = vrot.lane.b32.xlu0 %v6037, 16
  %v6910 = vpop.permute.xlu0 %6909
  %6911 = vrot.lane.b32.xlu0 %v6038, 16
  %v6912 = vpop.permute.xlu0 %6911
  %6913 = vrot.lane.b32.xlu0 %v6039, 16
  %v6914 = vpop.permute.xlu0 %6913
  %6915 = vrot.lane.b32.xlu0 %v6040, 16
  %v6916 = vpop.permute.xlu0 %6915
  %6917 = vrot.lane.b32.xlu0 %v6041, 16
  %v6918 = vpop.permute.xlu0 %6917
  %6919 = vrot.lane.b32.xlu0 %v6042, 16
  %v6920 = vpop.permute.xlu0 %6919
  %6921 = vrot.lane.b32.xlu0 %v6043, 16
  %v6922 = vpop.permute.xlu0 %6921
  %6923 = vrot.lane.b32.xlu0 %v6044, 16
  %v6924 = vpop.permute.xlu0 %6923
  %6925 = vrot.lane.b32.xlu0 %v6045, 16
  %v6926 = vpop.permute.xlu0 %6925
  %6927 = vrot.lane.b32.xlu0 %v6046, 16
  %v6928 = vpop.permute.xlu0 %6927
  %6929 = vrot.lane.b32.xlu0 %v6047, 16
  %v6930 = vpop.permute.xlu0 %6929
  %6931 = vrot.lane.b32.xlu0 %v6048, 16
  %v6932 = vpop.permute.xlu0 %6931
  %6933 = vrot.lane.b32.xlu0 %v6049, 16
  %v6934 = vpop.permute.xlu0 %6933
  %6935 = vrot.lane.b32.xlu0 %v6050, 16
  %v6936 = vpop.permute.xlu0 %6935
  %6937 = vrot.lane.b32.xlu0 %v6051, 16
  %v6938 = vpop.permute.xlu0 %6937
  %6939 = vrot.lane.b32.xlu0 %v6052, 16
  %v6940 = vpop.permute.xlu0 %6939
  %6941 = vrot.lane.b32.xlu0 %v6053, 16
  %v6942 = vpop.permute.xlu0 %6941
  %6943 = vrot.lane.b32.xlu0 %v6054, 16
  %v6944 = vpop.permute.xlu0 %6943
  %6945 = vrot.lane.b32.xlu0 %v6055, 16
  %v6946 = vpop.permute.xlu0 %6945
  %6947 = vrot.lane.b32.xlu0 %v6056, 16
  %v6948 = vpop.permute.xlu0 %6947
  %6949 = vrot.lane.b32.xlu0 %v6057, 16
  %v6950 = vpop.permute.xlu0 %6949
  %6951 = vrot.lane.b32.xlu0 %v6058, 16
  %v6952 = vpop.permute.xlu0 %6951
  %6953 = vrot.lane.b32.xlu0 %v6059, 16
  %v6954 = vpop.permute.xlu0 %6953
  %7038 = vrot.lane.b32.xlu0 %v5981, 24
  %v7039 = vpop.permute.xlu0 %7038
  %7040 = vrot.lane.b32.xlu0 %v5982, 24
  %v7041 = vpop.permute.xlu0 %7040
  %7042 = vrot.lane.b32.xlu0 %v5983, 24
  %v7043 = vpop.permute.xlu0 %7042
  %7044 = vrot.lane.b32.xlu0 %v5984, 24
  %v7045 = vpop.permute.xlu0 %7044
  %7046 = vrot.lane.b32.xlu0 %v5985, 24
  %v7047 = vpop.permute.xlu0 %7046
  %7048 = vrot.lane.b32.xlu0 %v5986, 24
  %v7049 = vpop.permute.xlu0 %7048
  %7050 = vrot.lane.b32.xlu0 %v5987, 24
  %v7051 = vpop.permute.xlu0 %7050
  %7052 = vrot.lane.b32.xlu0 %v5988, 24
  %v7053 = vpop.permute.xlu0 %7052
  %7054 = vrot.lane.b32.xlu0 %v5989, 24
  %v7055 = vpop.permute.xlu0 %7054
  %7056 = vrot.lane.b32.xlu0 %v5990, 24
  %v7057 = vpop.permute.xlu0 %7056
  %7058 = vrot.lane.b32.xlu0 %v5991, 24
  %v7059 = vpop.permute.xlu0 %7058
  %7060 = vrot.lane.b32.xlu0 %v5992, 24
  %v7061 = vpop.permute.xlu0 %7060
  %7062 = vrot.lane.b32.xlu0 %v5993, 24
  %v7063 = vpop.permute.xlu0 %7062
  %7064 = vrot.lane.b32.xlu0 %v5994, 24
  %v7065 = vpop.permute.xlu0 %7064
  %7066 = vrot.lane.b32.xlu0 %v5995, 24
  %v7067 = vpop.permute.xlu0 %7066
  %7068 = vrot.lane.b32.xlu0 %v5996, 24
  %v7069 = vpop.permute.xlu0 %7068
  %7070 = vrot.lane.b32.xlu0 %v5997, 24
  %v7071 = vpop.permute.xlu0 %7070
  %7072 = vrot.lane.b32.xlu0 %v5998, 24
  %v7073 = vpop.permute.xlu0 %7072
  %7074 = vrot.lane.b32.xlu0 %v5999, 24
  %v7075 = vpop.permute.xlu0 %7074
  %7076 = vrot.lane.b32.xlu0 %v6000, 24
  %v7077 = vpop.permute.xlu0 %7076
  %7078 = vrot.lane.b32.xlu0 %v6001, 24
  %v7079 = vpop.permute.xlu0 %7078
  %7080 = vrot.lane.b32.xlu0 %v6002, 24
  %v7081 = vpop.permute.xlu0 %7080
  %7082 = vrot.lane.b32.xlu0 %v6003, 24
  %v7083 = vpop.permute.xlu0 %7082
  %7084 = vrot.lane.b32.xlu0 %v6004, 24
  %v7085 = vpop.permute.xlu0 %7084
  %7086 = vrot.lane.b32.xlu0 %v6005, 24
  %v7087 = vpop.permute.xlu0 %7086
  %7088 = vrot.lane.b32.xlu0 %v6006, 24
  %v7089 = vpop.permute.xlu0 %7088
  %7090 = vrot.lane.b32.xlu0 %v6007, 24
  %v7091 = vpop.permute.xlu0 %7090
  %7092 = vrot.lane.b32.xlu0 %v6008, 24
  %v7093 = vpop.permute.xlu0 %7092
  %7094 = vrot.lane.b32.xlu0 %v6009, 24
  %v7095 = vpop.permute.xlu0 %7094
  %7096 = vrot.lane.b32.xlu0 %v6010, 24
  %v7097 = vpop.permute.xlu0 %7096
  %7098 = vrot.lane.b32.xlu0 %v6011, 24
  %v7099 = vpop.permute.xlu0 %7098
  %7100 = vrot.lane.b32.xlu0 %v6012, 24
  %v7101 = vpop.permute.xlu0 %7100
  %7102 = vrot.lane.b32.xlu0 %v6013, 24
  %v7103 = vpop.permute.xlu0 %7102
  %7104 = vrot.lane.b32.xlu0 %v6014, 24
  %v7105 = vpop.permute.xlu0 %7104
  %7106 = vrot.lane.b32.xlu0 %v6015, 24
  %v7107 = vpop.permute.xlu0 %7106
  %7108 = vrot.lane.b32.xlu0 %v6016, 24
  %v7109 = vpop.permute.xlu0 %7108
  %7110 = vrot.lane.b32.xlu0 %v6017, 24
  %v7111 = vpop.permute.xlu0 %7110
  %7112 = vrot.lane.b32.xlu0 %v6018, 24
  %v7113 = vpop.permute.xlu0 %7112
  %7114 = vrot.lane.b32.xlu0 %v6019, 24
  %v7115 = vpop.permute.xlu0 %7114
  %7116 = vrot.lane.b32.xlu0 %v6020, 24
  %v7117 = vpop.permute.xlu0 %7116
  %7118 = vrot.lane.b32.xlu0 %v6021, 24
  %v7119 = vpop.permute.xlu0 %7118
  %7120 = vrot.lane.b32.xlu0 %v6022, 24
  %v7121 = vpop.permute.xlu0 %7120
  %7122 = vrot.lane.b32.xlu0 %v6023, 24
  %v7123 = vpop.permute.xlu0 %7122
  %7124 = vrot.lane.b32.xlu0 %v6024, 24
  %v7125 = vpop.permute.xlu0 %7124
  %7126 = vrot.lane.b32.xlu0 %v6025, 24
  %v7127 = vpop.permute.xlu0 %7126
  %7128 = vrot.lane.b32.xlu0 %v6026, 24
  %v7129 = vpop.permute.xlu0 %7128
  %7130 = vrot.lane.b32.xlu0 %v6027, 24
  %v7131 = vpop.permute.xlu0 %7130
  %7132 = vrot.lane.b32.xlu0 %v6028, 24
  %v7133 = vpop.permute.xlu0 %7132
  %7134 = vrot.lane.b32.xlu0 %v6029, 24
  %v7135 = vpop.permute.xlu0 %7134
  %7136 = vrot.lane.b32.xlu0 %v6030, 24
  %v7137 = vpop.permute.xlu0 %7136
  %7138 = vrot.lane.b32.xlu0 %v6031, 24
  %v7139 = vpop.permute.xlu0 %7138
  %7140 = vrot.lane.b32.xlu0 %v6032, 24
  %v7141 = vpop.permute.xlu0 %7140
  %7142 = vrot.lane.b32.xlu0 %v6033, 24
  %v7143 = vpop.permute.xlu0 %7142
  %7144 = vrot.lane.b32.xlu0 %v6034, 24
  %v7145 = vpop.permute.xlu0 %7144
  %7146 = vrot.lane.b32.xlu0 %v6035, 24
  %v7147 = vpop.permute.xlu0 %7146
  %7148 = vrot.lane.b32.xlu0 %v6036, 24
  %v7149 = vpop.permute.xlu0 %7148
  %7150 = vrot.lane.b32.xlu0 %v6037, 24
  %v7151 = vpop.permute.xlu0 %7150
  %7152 = vrot.lane.b32.xlu0 %v6038, 24
  %v7153 = vpop.permute.xlu0 %7152
  %7154 = vrot.lane.b32.xlu0 %v6039, 24
  %v7155 = vpop.permute.xlu0 %7154
  %7156 = vrot.lane.b32.xlu0 %v6040, 24
  %v7157 = vpop.permute.xlu0 %7156
  %7158 = vrot.lane.b32.xlu0 %v6041, 24
  %v7159 = vpop.permute.xlu0 %7158
  %7160 = vrot.lane.b32.xlu0 %v6042, 24
  %v7161 = vpop.permute.xlu0 %7160
  %7162 = vrot.lane.b32.xlu0 %v6043, 24
  %v7163 = vpop.permute.xlu0 %7162
  %7164 = vrot.lane.b32.xlu0 %v6044, 24
  %v7165 = vpop.permute.xlu0 %7164
  %7166 = vrot.lane.b32.xlu0 %v6045, 24
  %v7167 = vpop.permute.xlu0 %7166
  %7168 = vrot.lane.b32.xlu0 %v6046, 24
  %v7169 = vpop.permute.xlu0 %7168
  %7170 = vrot.lane.b32.xlu0 %v6047, 24
  %v7171 = vpop.permute.xlu0 %7170
  %7172 = vrot.lane.b32.xlu0 %v6048, 24
  %v7173 = vpop.permute.xlu0 %7172
  %7174 = vrot.lane.b32.xlu0 %v6049, 24
  %v7175 = vpop.permute.xlu0 %7174
  %7176 = vrot.lane.b32.xlu0 %v6050, 24
  %v7177 = vpop.permute.xlu0 %7176
  %7178 = vrot.lane.b32.xlu0 %v6051, 24
  %v7179 = vpop.permute.xlu0 %7178
  %7180 = vrot.lane.b32.xlu0 %v6052, 24
  %v7181 = vpop.permute.xlu0 %7180
  %7182 = vrot.lane.b32.xlu0 %v6053, 24
  %v7183 = vpop.permute.xlu0 %7182
  %7184 = vrot.lane.b32.xlu0 %v6054, 24
  %v7185 = vpop.permute.xlu0 %7184
  %7186 = vrot.lane.b32.xlu0 %v6055, 24
  %v7187 = vpop.permute.xlu0 %7186
  %7188 = vrot.lane.b32.xlu0 %v6056, 24
  %v7189 = vpop.permute.xlu0 %7188
  %7190 = vrot.lane.b32.xlu0 %v6057, 24
  %v7191 = vpop.permute.xlu0 %7190
  %7192 = vrot.lane.b32.xlu0 %v6058, 24
  %v7193 = vpop.permute.xlu0 %7192
  %7194 = vrot.lane.b32.xlu0 %v6059, 24
  %v7195 = vpop.permute.xlu0 %7194
  %7196 = vrot.lane.b32.xlu0 %v6060, 24
  %v7197 = vpop.permute.xlu0 %7196
  %7198 = vrot.lane.b32.xlu0 %v6061, 24
  %v7199 = vpop.permute.xlu0 %7198
  %7362 = vrot.lane.b32.xlu0 %v6062, 32
  %v7363 = vpop.permute.xlu0 %7362
  %7364 = vrot.lane.b32.xlu0 %v6063, 32
  %v7365 = vpop.permute.xlu0 %7364
  %7366 = vrot.lane.b32.xlu0 %v6064, 32
  %v7367 = vpop.permute.xlu0 %7366
  %7368 = vrot.lane.b32.xlu0 %v6065, 32
  %v7369 = vpop.permute.xlu0 %7368
  %7370 = vrot.lane.b32.xlu0 %v6066, 32
  %v7371 = vpop.permute.xlu0 %7370
  %7372 = vrot.lane.b32.xlu0 %v6067, 32
  %v7373 = vpop.permute.xlu0 %7372
  %7374 = vrot.lane.b32.xlu0 %v6068, 32
  %v7375 = vpop.permute.xlu0 %7374
  %7376 = vrot.lane.b32.xlu0 %v6069, 32
  %v7377 = vpop.permute.xlu0 %7376
  %7378 = vrot.lane.b32.xlu0 %v6070, 32
  %v7379 = vpop.permute.xlu0 %7378
  %7380 = vrot.lane.b32.xlu0 %v6071, 32
  %v7381 = vpop.permute.xlu0 %7380
  %7382 = vrot.lane.b32.xlu0 %v6072, 32
  %v7383 = vpop.permute.xlu0 %7382
  %7384 = vrot.lane.b32.xlu0 %v6073, 32
  %v7385 = vpop.permute.xlu0 %7384
  %7386 = vrot.lane.b32.xlu0 %v6074, 32
  %v7387 = vpop.permute.xlu0 %7386
  %7388 = vrot.lane.b32.xlu0 %v6075, 32
  %v7389 = vpop.permute.xlu0 %7388
  %7390 = vrot.lane.b32.xlu0 %v6076, 32
  %v7391 = vpop.permute.xlu0 %7390
  %7392 = vrot.lane.b32.xlu0 %v6077, 32
  %v7393 = vpop.permute.xlu0 %7392
  %7394 = vrot.lane.b32.xlu0 %v6078, 32
  %v7395 = vpop.permute.xlu0 %7394
  %7396 = vrot.lane.b32.xlu0 %v6079, 32
  %v7397 = vpop.permute.xlu0 %7396
  %7398 = vrot.lane.b32.xlu0 %v6080, 32
  %v7399 = vpop.permute.xlu0 %7398
  %7400 = vrot.lane.b32.xlu0 %v6081, 32
  %v7401 = vpop.permute.xlu0 %7400
  %7402 = vrot.lane.b32.xlu0 %v6082, 32
  %v7403 = vpop.permute.xlu0 %7402
  %7404 = vrot.lane.b32.xlu0 %v6083, 32
  %v7405 = vpop.permute.xlu0 %7404
  %7406 = vrot.lane.b32.xlu0 %v6084, 32
  %v7407 = vpop.permute.xlu0 %7406
  %7408 = vrot.lane.b32.xlu0 %v6085, 32
  %v7409 = vpop.permute.xlu0 %7408
  %7410 = vrot.lane.b32.xlu0 %v6086, 32
  %v7411 = vpop.permute.xlu0 %7410
  %7412 = vrot.lane.b32.xlu0 %v6087, 32
  %v7413 = vpop.permute.xlu0 %7412
  %7414 = vrot.lane.b32.xlu0 %v6088, 32
  %v7415 = vpop.permute.xlu0 %7414
  %7416 = vrot.lane.b32.xlu0 %v6089, 32
  %v7417 = vpop.permute.xlu0 %7416
  %7418 = vrot.lane.b32.xlu0 %v6090, 32
  %v7419 = vpop.permute.xlu0 %7418
  %7420 = vrot.lane.b32.xlu0 %v6091, 32
  %v7421 = vpop.permute.xlu0 %7420
  %7422 = vrot.lane.b32.xlu0 %v6092, 32
  %v7423 = vpop.permute.xlu0 %7422
  %7424 = vrot.lane.b32.xlu0 %v6093, 32
  %v7425 = vpop.permute.xlu0 %7424
  %7426 = vrot.lane.b32.xlu0 %v6094, 32
  %v7427 = vpop.permute.xlu0 %7426
  %7428 = vrot.lane.b32.xlu0 %v6095, 32
  %v7429 = vpop.permute.xlu0 %7428
  %7430 = vrot.lane.b32.xlu0 %v6096, 32
  %v7431 = vpop.permute.xlu0 %7430
  %7432 = vrot.lane.b32.xlu0 %v6097, 32
  %v7433 = vpop.permute.xlu0 %7432
  %7434 = vrot.lane.b32.xlu0 %v6098, 32
  %v7435 = vpop.permute.xlu0 %7434
  %7436 = vrot.lane.b32.xlu0 %v6099, 32
  %v7437 = vpop.permute.xlu0 %7436
  %7438 = vrot.lane.b32.xlu0 %v6100, 32
  %v7439 = vpop.permute.xlu0 %7438
  %7440 = vrot.lane.b32.xlu0 %v6101, 32
  %v7441 = vpop.permute.xlu0 %7440
  %7442 = vrot.lane.b32.xlu0 %v6102, 32
  %v7443 = vpop.permute.xlu0 %7442
  %7444 = vrot.lane.b32.xlu0 %v6103, 32
  %v7445 = vpop.permute.xlu0 %7444
  %7446 = vrot.lane.b32.xlu0 %v6104, 32
  %v7447 = vpop.permute.xlu0 %7446
  %7448 = vrot.lane.b32.xlu0 %v6105, 32
  %v7449 = vpop.permute.xlu0 %7448
  %7450 = vrot.lane.b32.xlu0 %v6106, 32
  %v7451 = vpop.permute.xlu0 %7450
  %7452 = vrot.lane.b32.xlu0 %v6107, 32
  %v7453 = vpop.permute.xlu0 %7452
  %7454 = vrot.lane.b32.xlu0 %v6108, 32
  %v7455 = vpop.permute.xlu0 %7454
  %7456 = vrot.lane.b32.xlu0 %v6109, 32
  %v7457 = vpop.permute.xlu0 %7456
  %7458 = vrot.lane.b32.xlu0 %v6110, 32
  %v7459 = vpop.permute.xlu0 %7458
  %7460 = vrot.lane.b32.xlu0 %v6111, 32
  %v7461 = vpop.permute.xlu0 %7460
  %7462 = vrot.lane.b32.xlu0 %v6112, 32
  %v7463 = vpop.permute.xlu0 %7462
  %7464 = vrot.lane.b32.xlu0 %v6113, 32
  %v7465 = vpop.permute.xlu0 %7464
  %7466 = vrot.lane.b32.xlu0 %v6114, 32
  %v7467 = vpop.permute.xlu0 %7466
  %7468 = vrot.lane.b32.xlu0 %v6115, 32
  %v7469 = vpop.permute.xlu0 %7468
  %7470 = vrot.lane.b32.xlu0 %v6116, 32
  %v7471 = vpop.permute.xlu0 %7470
  %7472 = vrot.lane.b32.xlu0 %v6117, 32
  %v7473 = vpop.permute.xlu0 %7472
  %7474 = vrot.lane.b32.xlu0 %v6118, 32
  %v7475 = vpop.permute.xlu0 %7474
  %7476 = vrot.lane.b32.xlu0 %v6119, 32
  %v7477 = vpop.permute.xlu0 %7476
  %7478 = vrot.lane.b32.xlu0 %v6120, 32
  %v7479 = vpop.permute.xlu0 %7478
  %7480 = vrot.lane.b32.xlu0 %v6121, 32
  %v7481 = vpop.permute.xlu0 %7480
  %7482 = vrot.lane.b32.xlu0 %v6122, 32
  %v7483 = vpop.permute.xlu0 %7482
  %7484 = vrot.lane.b32.xlu0 %v6123, 32
  %v7485 = vpop.permute.xlu0 %7484
  %7486 = vrot.lane.b32.xlu0 %v6124, 32
  %v7487 = vpop.permute.xlu0 %7486
  %7488 = vrot.lane.b32.xlu0 %v6125, 32
  %v7489 = vpop.permute.xlu0 %7488
  %7490 = vrot.lane.b32.xlu0 %v6126, 32
  %v7491 = vpop.permute.xlu0 %7490
  %7492 = vrot.lane.b32.xlu0 %v6127, 32
  %v7493 = vpop.permute.xlu0 %7492
  %7494 = vrot.lane.b32.xlu0 %v6128, 32
  %v7495 = vpop.permute.xlu0 %7494
  %7496 = vrot.lane.b32.xlu0 %v6129, 32
  %v7497 = vpop.permute.xlu0 %7496
  %7498 = vrot.lane.b32.xlu0 %v6130, 32
  %v7499 = vpop.permute.xlu0 %7498
  %7500 = vrot.lane.b32.xlu0 %v6131, 32
  %v7501 = vpop.permute.xlu0 %7500
  %7502 = vrot.lane.b32.xlu0 %v6132, 32
  %v7503 = vpop.permute.xlu0 %7502
  %7504 = vrot.lane.b32.xlu0 %v6133, 32
  %v7505 = vpop.permute.xlu0 %7504
  %7506 = vrot.lane.b32.xlu0 %v6134, 32
  %v7507 = vpop.permute.xlu0 %7506
  %7508 = vrot.lane.b32.xlu0 %v6135, 32
  %v7509 = vpop.permute.xlu0 %7508
  %7510 = vrot.lane.b32.xlu0 %v6136, 32
  %v7511 = vpop.permute.xlu0 %7510
  %7512 = vrot.lane.b32.xlu0 %v6137, 32
  %v7513 = vpop.permute.xlu0 %7512
  %7514 = vrot.lane.b32.xlu0 %v6138, 32
  %v7515 = vpop.permute.xlu0 %7514
  %7516 = vrot.lane.b32.xlu0 %v6139, 32
  %v7517 = vpop.permute.xlu0 %7516
  %7518 = vrot.lane.b32.xlu0 %v6140, 32
  %v7519 = vpop.permute.xlu0 %7518
  %7520 = vrot.lane.b32.xlu0 %v6141, 32
  %v7521 = vpop.permute.xlu0 %7520
  %7522 = vrot.lane.b32.xlu0 %v6142, 32
  %v7523 = vpop.permute.xlu0 %7522
  %7686 = vrot.lane.b32.xlu0 %v6143, 40
  %v7687 = vpop.permute.xlu0 %7686
  %7688 = vrot.lane.b32.xlu0 %v6144, 40
  %v7689 = vpop.permute.xlu0 %7688
  %7690 = vrot.lane.b32.xlu0 %v6145, 40
  %v7691 = vpop.permute.xlu0 %7690
  %7692 = vrot.lane.b32.xlu0 %v6146, 40
  %v7693 = vpop.permute.xlu0 %7692
  %7694 = vrot.lane.b32.xlu0 %v6147, 40
  %v7695 = vpop.permute.xlu0 %7694
  %7696 = vrot.lane.b32.xlu0 %v6148, 40
  %v7697 = vpop.permute.xlu0 %7696
  %7698 = vrot.lane.b32.xlu0 %v6149, 40
  %v7699 = vpop.permute.xlu0 %7698
  %7700 = vrot.lane.b32.xlu0 %v6150, 40
  %v7701 = vpop.permute.xlu0 %7700
  %7702 = vrot.lane.b32.xlu0 %v6151, 40
  %v7703 = vpop.permute.xlu0 %7702
  %7704 = vrot.lane.b32.xlu0 %v6152, 40
  %v7705 = vpop.permute.xlu0 %7704
  %7706 = vrot.lane.b32.xlu0 %v6153, 40
  %v7707 = vpop.permute.xlu0 %7706
  %7708 = vrot.lane.b32.xlu0 %v6154, 40
  %v7709 = vpop.permute.xlu0 %7708
  %7710 = vrot.lane.b32.xlu0 %v6155, 40
  %v7711 = vpop.permute.xlu0 %7710
  %7712 = vrot.lane.b32.xlu0 %v6156, 40
  %v7713 = vpop.permute.xlu0 %7712
  %7714 = vrot.lane.b32.xlu0 %v6157, 40
  %v7715 = vpop.permute.xlu0 %7714
  %7716 = vrot.lane.b32.xlu0 %v6158, 40
  %v7717 = vpop.permute.xlu0 %7716
  %7718 = vrot.lane.b32.xlu0 %v6159, 40
  %v7719 = vpop.permute.xlu0 %7718
  %7720 = vrot.lane.b32.xlu0 %v6160, 40
  %v7721 = vpop.permute.xlu0 %7720
  %7722 = vrot.lane.b32.xlu0 %v6161, 40
  %v7723 = vpop.permute.xlu0 %7722
  %7724 = vrot.lane.b32.xlu0 %v6162, 40
  %v7725 = vpop.permute.xlu0 %7724
  %7726 = vrot.lane.b32.xlu0 %v6163, 40
  %v7727 = vpop.permute.xlu0 %7726
  %7728 = vrot.lane.b32.xlu0 %v6164, 40
  %v7729 = vpop.permute.xlu0 %7728
  %7730 = vrot.lane.b32.xlu0 %v6165, 40
  %v7731 = vpop.permute.xlu0 %7730
  %7732 = vrot.lane.b32.xlu0 %v6166, 40
  %v7733 = vpop.permute.xlu0 %7732
  %7734 = vrot.lane.b32.xlu0 %v6167, 40
  %v7735 = vpop.permute.xlu0 %7734
  %7736 = vrot.lane.b32.xlu0 %v6168, 40
  %v7737 = vpop.permute.xlu0 %7736
  %7738 = vrot.lane.b32.xlu0 %v6169, 40
  %v7739 = vpop.permute.xlu0 %7738
  %7740 = vrot.lane.b32.xlu0 %v6170, 40
  %v7741 = vpop.permute.xlu0 %7740
  %7742 = vrot.lane.b32.xlu0 %v6171, 40
  %v7743 = vpop.permute.xlu0 %7742
  %7744 = vrot.lane.b32.xlu0 %v6172, 40
  %v7745 = vpop.permute.xlu0 %7744
  %7746 = vrot.lane.b32.xlu0 %v6173, 40
  %v7747 = vpop.permute.xlu0 %7746
  %7748 = vrot.lane.b32.xlu0 %v6174, 40
  %v7749 = vpop.permute.xlu0 %7748
  %7750 = vrot.lane.b32.xlu0 %v6175, 40
  %v7751 = vpop.permute.xlu0 %7750
  %7752 = vrot.lane.b32.xlu0 %v6176, 40
  %v7753 = vpop.permute.xlu0 %7752
  %7754 = vrot.lane.b32.xlu0 %v6177, 40
  %v7755 = vpop.permute.xlu0 %7754
  %7756 = vrot.lane.b32.xlu0 %v6178, 40
  %v7757 = vpop.permute.xlu0 %7756
  %7758 = vrot.lane.b32.xlu0 %v6179, 40
  %v7759 = vpop.permute.xlu0 %7758
  %7760 = vrot.lane.b32.xlu0 %v6180, 40
  %v7761 = vpop.permute.xlu0 %7760
  %7762 = vrot.lane.b32.xlu0 %v6181, 40
  %v7763 = vpop.permute.xlu0 %7762
  %7764 = vrot.lane.b32.xlu0 %v6182, 40
  %v7765 = vpop.permute.xlu0 %7764
  %7766 = vrot.lane.b32.xlu0 %v6183, 40
  %v7767 = vpop.permute.xlu0 %7766
  %7768 = vrot.lane.b32.xlu0 %v6184, 40
  %v7769 = vpop.permute.xlu0 %7768
  %7770 = vrot.lane.b32.xlu0 %v6185, 40
  %v7771 = vpop.permute.xlu0 %7770
  %7772 = vrot.lane.b32.xlu0 %v6186, 40
  %v7773 = vpop.permute.xlu0 %7772
  %7774 = vrot.lane.b32.xlu0 %v6187, 40
  %v7775 = vpop.permute.xlu0 %7774
  %7776 = vrot.lane.b32.xlu0 %v6188, 40
  %v7777 = vpop.permute.xlu0 %7776
  %7778 = vrot.lane.b32.xlu0 %v6189, 40
  %v7779 = vpop.permute.xlu0 %7778
  %7780 = vrot.lane.b32.xlu0 %v6190, 40
  %v7781 = vpop.permute.xlu0 %7780
  %7782 = vrot.lane.b32.xlu0 %v6191, 40
  %v7783 = vpop.permute.xlu0 %7782
  %7784 = vrot.lane.b32.xlu0 %v6192, 40
  %v7785 = vpop.permute.xlu0 %7784
  %7786 = vrot.lane.b32.xlu0 %v6193, 40
  %v7787 = vpop.permute.xlu0 %7786
  %7788 = vrot.lane.b32.xlu0 %v6194, 40
  %v7789 = vpop.permute.xlu0 %7788
  %7790 = vrot.lane.b32.xlu0 %v6195, 40
  %v7791 = vpop.permute.xlu0 %7790
  %7792 = vrot.lane.b32.xlu0 %v6196, 40
  %v7793 = vpop.permute.xlu0 %7792
  %7794 = vrot.lane.b32.xlu0 %v6197, 40
  %v7795 = vpop.permute.xlu0 %7794
  %7796 = vrot.lane.b32.xlu0 %v6198, 40
  %v7797 = vpop.permute.xlu0 %7796
  %7798 = vrot.lane.b32.xlu0 %v6199, 40
  %v7799 = vpop.permute.xlu0 %7798
  %7800 = vrot.lane.b32.xlu0 %v6200, 40
  %v7801 = vpop.permute.xlu0 %7800
  %7802 = vrot.lane.b32.xlu0 %v6201, 40
  %v7803 = vpop.permute.xlu0 %7802
  %7804 = vrot.lane.b32.xlu0 %v6202, 40
  %v7805 = vpop.permute.xlu0 %7804
  %7806 = vrot.lane.b32.xlu0 %v6203, 40
  %v7807 = vpop.permute.xlu0 %7806
  %7808 = vrot.lane.b32.xlu0 %v6204, 40
  %v7809 = vpop.permute.xlu0 %7808
  %7810 = vrot.lane.b32.xlu0 %v6205, 40
  %v7811 = vpop.permute.xlu0 %7810
  %7812 = vrot.lane.b32.xlu0 %v6206, 40
  %v7813 = vpop.permute.xlu0 %7812
  %7814 = vrot.lane.b32.xlu0 %v6207, 40
  %v7815 = vpop.permute.xlu0 %7814
  %7816 = vrot.lane.b32.xlu0 %v6208, 40
  %v7817 = vpop.permute.xlu0 %7816
  %7818 = vrot.lane.b32.xlu0 %v6209, 40
  %v7819 = vpop.permute.xlu0 %7818
  %7820 = vrot.lane.b32.xlu0 %v6210, 40
  %v7821 = vpop.permute.xlu0 %7820
  %7822 = vrot.lane.b32.xlu0 %v6211, 40
  %v7823 = vpop.permute.xlu0 %7822
  %7824 = vrot.lane.b32.xlu0 %v6212, 40
  %v7825 = vpop.permute.xlu0 %7824
  %7826 = vrot.lane.b32.xlu0 %v6213, 40
  %v7827 = vpop.permute.xlu0 %7826
  %7828 = vrot.lane.b32.xlu0 %v6214, 40
  %v7829 = vpop.permute.xlu0 %7828
  %7830 = vrot.lane.b32.xlu0 %v6215, 40
  %v7831 = vpop.permute.xlu0 %7830
  %7832 = vrot.lane.b32.xlu0 %v6216, 40
  %v7833 = vpop.permute.xlu0 %7832
  %7834 = vrot.lane.b32.xlu0 %v6217, 40
  %v7835 = vpop.permute.xlu0 %7834
  %7836 = vrot.lane.b32.xlu0 %v6218, 40
  %v7837 = vpop.permute.xlu0 %7836
  %7838 = vrot.lane.b32.xlu0 %v6219, 40
  %v7839 = vpop.permute.xlu0 %7838
  %7840 = vrot.lane.b32.xlu0 %v6220, 40
  %v7841 = vpop.permute.xlu0 %7840
  %7842 = vrot.lane.b32.xlu0 %v6221, 40
  %v7843 = vpop.permute.xlu0 %7842
  %7844 = vrot.lane.b32.xlu0 %v6222, 40
  %v7845 = vpop.permute.xlu0 %7844
  %7846 = vrot.lane.b32.xlu0 %v6223, 40
  %v7847 = vpop.permute.xlu0 %7846
  %7931 = vrot.lane.b32.xlu0 %v6145, 48
  %v7932 = vpop.permute.xlu0 %7931
  %7933 = vrot.lane.b32.xlu0 %v6146, 48
  %v7934 = vpop.permute.xlu0 %7933
  %7935 = vrot.lane.b32.xlu0 %v6147, 48
  %v7936 = vpop.permute.xlu0 %7935
  %7937 = vrot.lane.b32.xlu0 %v6148, 48
  %v7938 = vpop.permute.xlu0 %7937
  %7939 = vrot.lane.b32.xlu0 %v6149, 48
  %v7940 = vpop.permute.xlu0 %7939
  %7941 = vrot.lane.b32.xlu0 %v6150, 48
  %v7942 = vpop.permute.xlu0 %7941
  %7943 = vrot.lane.b32.xlu0 %v6151, 48
  %v7944 = vpop.permute.xlu0 %7943
  %7945 = vrot.lane.b32.xlu0 %v6152, 48
  %v7946 = vpop.permute.xlu0 %7945
  %7947 = vrot.lane.b32.xlu0 %v6153, 48
  %v7948 = vpop.permute.xlu0 %7947
  %7949 = vrot.lane.b32.xlu0 %v6154, 48
  %v7950 = vpop.permute.xlu0 %7949
  %7951 = vrot.lane.b32.xlu0 %v6155, 48
  %v7952 = vpop.permute.xlu0 %7951
  %7953 = vrot.lane.b32.xlu0 %v6156, 48
  %v7954 = vpop.permute.xlu0 %7953
  %7955 = vrot.lane.b32.xlu0 %v6157, 48
  %v7956 = vpop.permute.xlu0 %7955
  %7957 = vrot.lane.b32.xlu0 %v6158, 48
  %v7958 = vpop.permute.xlu0 %7957
  %7959 = vrot.lane.b32.xlu0 %v6159, 48
  %v7960 = vpop.permute.xlu0 %7959
  %7961 = vrot.lane.b32.xlu0 %v6160, 48
  %v7962 = vpop.permute.xlu0 %7961
  %7963 = vrot.lane.b32.xlu0 %v6161, 48
  %v7964 = vpop.permute.xlu0 %7963
  %7965 = vrot.lane.b32.xlu0 %v6162, 48
  %v7966 = vpop.permute.xlu0 %7965
  %7967 = vrot.lane.b32.xlu0 %v6163, 48
  %v7968 = vpop.permute.xlu0 %7967
  %7969 = vrot.lane.b32.xlu0 %v6164, 48
  %v7970 = vpop.permute.xlu0 %7969
  %7971 = vrot.lane.b32.xlu0 %v6165, 48
  %v7972 = vpop.permute.xlu0 %7971
  %7973 = vrot.lane.b32.xlu0 %v6166, 48
  %v7974 = vpop.permute.xlu0 %7973
  %7975 = vrot.lane.b32.xlu0 %v6167, 48
  %v7976 = vpop.permute.xlu0 %7975
  %7977 = vrot.lane.b32.xlu0 %v6168, 48
  %v7978 = vpop.permute.xlu0 %7977
  %7979 = vrot.lane.b32.xlu0 %v6169, 48
  %v7980 = vpop.permute.xlu0 %7979
  %7981 = vrot.lane.b32.xlu0 %v6170, 48
  %v7982 = vpop.permute.xlu0 %7981
  %7983 = vrot.lane.b32.xlu0 %v6171, 48
  %v7984 = vpop.permute.xlu0 %7983
  %7985 = vrot.lane.b32.xlu0 %v6172, 48
  %v7986 = vpop.permute.xlu0 %7985
  %7987 = vrot.lane.b32.xlu0 %v6173, 48
  %v7988 = vpop.permute.xlu0 %7987
  %7989 = vrot.lane.b32.xlu0 %v6174, 48
  %v7990 = vpop.permute.xlu0 %7989
  %7991 = vrot.lane.b32.xlu0 %v6175, 48
  %v7992 = vpop.permute.xlu0 %7991
  %7993 = vrot.lane.b32.xlu0 %v6176, 48
  %v7994 = vpop.permute.xlu0 %7993
  %7995 = vrot.lane.b32.xlu0 %v6177, 48
  %v7996 = vpop.permute.xlu0 %7995
  %7997 = vrot.lane.b32.xlu0 %v6178, 48
  %v7998 = vpop.permute.xlu0 %7997
  %7999 = vrot.lane.b32.xlu0 %v6179, 48
  %v8000 = vpop.permute.xlu0 %7999
  %8001 = vrot.lane.b32.xlu0 %v6180, 48
  %v8002 = vpop.permute.xlu0 %8001
  %8003 = vrot.lane.b32.xlu0 %v6181, 48
  %v8004 = vpop.permute.xlu0 %8003
  %8005 = vrot.lane.b32.xlu0 %v6182, 48
  %v8006 = vpop.permute.xlu0 %8005
  %8007 = vrot.lane.b32.xlu0 %v6183, 48
  %v8008 = vpop.permute.xlu0 %8007
  %8009 = vrot.lane.b32.xlu0 %v6184, 48
  %v8010 = vpop.permute.xlu0 %8009
  %8011 = vrot.lane.b32.xlu0 %v6185, 48
  %v8012 = vpop.permute.xlu0 %8011
  %8013 = vrot.lane.b32.xlu0 %v6186, 48
  %v8014 = vpop.permute.xlu0 %8013
  %8015 = vrot.lane.b32.xlu0 %v6187, 48
  %v8016 = vpop.permute.xlu0 %8015
  %8017 = vrot.lane.b32.xlu0 %v6188, 48
  %v8018 = vpop.permute.xlu0 %8017
  %8019 = vrot.lane.b32.xlu0 %v6189, 48
  %v8020 = vpop.permute.xlu0 %8019
  %8021 = vrot.lane.b32.xlu0 %v6190, 48
  %v8022 = vpop.permute.xlu0 %8021
  %8023 = vrot.lane.b32.xlu0 %v6191, 48
  %v8024 = vpop.permute.xlu0 %8023
  %8025 = vrot.lane.b32.xlu0 %v6192, 48
  %v8026 = vpop.permute.xlu0 %8025
  %8027 = vrot.lane.b32.xlu0 %v6193, 48
  %v8028 = vpop.permute.xlu0 %8027
  %8029 = vrot.lane.b32.xlu0 %v6194, 48
  %v8030 = vpop.permute.xlu0 %8029
  %8031 = vrot.lane.b32.xlu0 %v6195, 48
  %v8032 = vpop.permute.xlu0 %8031
  %8033 = vrot.lane.b32.xlu0 %v6196, 48
  %v8034 = vpop.permute.xlu0 %8033
  %8035 = vrot.lane.b32.xlu0 %v6197, 48
  %v8036 = vpop.permute.xlu0 %8035
  %8037 = vrot.lane.b32.xlu0 %v6198, 48
  %v8038 = vpop.permute.xlu0 %8037
  %8039 = vrot.lane.b32.xlu0 %v6199, 48
  %v8040 = vpop.permute.xlu0 %8039
  %8041 = vrot.lane.b32.xlu0 %v6200, 48
  %v8042 = vpop.permute.xlu0 %8041
  %8043 = vrot.lane.b32.xlu0 %v6201, 48
  %v8044 = vpop.permute.xlu0 %8043
  %8045 = vrot.lane.b32.xlu0 %v6202, 48
  %v8046 = vpop.permute.xlu0 %8045
  %8047 = vrot.lane.b32.xlu0 %v6203, 48
  %v8048 = vpop.permute.xlu0 %8047
  %8049 = vrot.lane.b32.xlu0 %v6204, 48
  %v8050 = vpop.permute.xlu0 %8049
  %8051 = vrot.lane.b32.xlu0 %v6205, 48
  %v8052 = vpop.permute.xlu0 %8051
  %8053 = vrot.lane.b32.xlu0 %v6206, 48
  %v8054 = vpop.permute.xlu0 %8053
  %8055 = vrot.lane.b32.xlu0 %v6207, 48
  %v8056 = vpop.permute.xlu0 %8055
  %8057 = vrot.lane.b32.xlu0 %v6208, 48
  %v8058 = vpop.permute.xlu0 %8057
  %8059 = vrot.lane.b32.xlu0 %v6209, 48
  %v8060 = vpop.permute.xlu0 %8059
  %8061 = vrot.lane.b32.xlu0 %v6210, 48
  %v8062 = vpop.permute.xlu0 %8061
  %8063 = vrot.lane.b32.xlu0 %v6211, 48
  %v8064 = vpop.permute.xlu0 %8063
  %8065 = vrot.lane.b32.xlu0 %v6212, 48
  %v8066 = vpop.permute.xlu0 %8065
  %8067 = vrot.lane.b32.xlu0 %v6213, 48
  %v8068 = vpop.permute.xlu0 %8067
  %8069 = vrot.lane.b32.xlu0 %v6214, 48
  %v8070 = vpop.permute.xlu0 %8069
  %8071 = vrot.lane.b32.xlu0 %v6215, 48
  %v8072 = vpop.permute.xlu0 %8071
  %8073 = vrot.lane.b32.xlu0 %v6216, 48
  %v8074 = vpop.permute.xlu0 %8073
  %8075 = vrot.lane.b32.xlu0 %v6217, 48
  %v8076 = vpop.permute.xlu0 %8075
  %8077 = vrot.lane.b32.xlu0 %v6218, 48
  %v8078 = vpop.permute.xlu0 %8077
  %8079 = vrot.lane.b32.xlu0 %v6219, 48
  %v8080 = vpop.permute.xlu0 %8079
  %8081 = vrot.lane.b32.xlu0 %v6220, 48
  %v8082 = vpop.permute.xlu0 %8081
  %8083 = vrot.lane.b32.xlu0 %v6221, 48
  %v8084 = vpop.permute.xlu0 %8083
  %8085 = vrot.lane.b32.xlu0 %v6222, 48
  %v8086 = vpop.permute.xlu0 %8085
  %8087 = vrot.lane.b32.xlu0 %v6223, 48
  %v8088 = vpop.permute.xlu0 %8087
  %8089 = vrot.lane.b32.xlu0 %v6224, 48
  %v8090 = vpop.permute.xlu0 %8089
  %8091 = vrot.lane.b32.xlu0 %v6225, 48
  %v8092 = vpop.permute.xlu0 %8091
  %8255 = vrot.lane.b32.xlu0 %v6226, 56
  %v8256 = vpop.permute.xlu0 %8255
  %8257 = vrot.lane.b32.xlu0 %v6227, 56
  %v8258 = vpop.permute.xlu0 %8257
  %8259 = vrot.lane.b32.xlu0 %v6228, 56
  %v8260 = vpop.permute.xlu0 %8259
  %8261 = vrot.lane.b32.xlu0 %v6229, 56
  %v8262 = vpop.permute.xlu0 %8261
  %8263 = vrot.lane.b32.xlu0 %v6230, 56
  %v8264 = vpop.permute.xlu0 %8263
  %8265 = vrot.lane.b32.xlu0 %v6231, 56
  %v8266 = vpop.permute.xlu0 %8265
  %8267 = vrot.lane.b32.xlu0 %v6232, 56
  %v8268 = vpop.permute.xlu0 %8267
  %8269 = vrot.lane.b32.xlu0 %v6233, 56
  %v8270 = vpop.permute.xlu0 %8269
  %8271 = vrot.lane.b32.xlu0 %v6234, 56
  %v8272 = vpop.permute.xlu0 %8271
  %8273 = vrot.lane.b32.xlu0 %v6235, 56
  %v8274 = vpop.permute.xlu0 %8273
  %8275 = vrot.lane.b32.xlu0 %v6236, 56
  %v8276 = vpop.permute.xlu0 %8275
  %8277 = vrot.lane.b32.xlu0 %v6237, 56
  %v8278 = vpop.permute.xlu0 %8277
  %8279 = vrot.lane.b32.xlu0 %v6238, 56
  %v8280 = vpop.permute.xlu0 %8279
  %8281 = vrot.lane.b32.xlu0 %v6239, 56
  %v8282 = vpop.permute.xlu0 %8281
  %8283 = vrot.lane.b32.xlu0 %v6240, 56
  %v8284 = vpop.permute.xlu0 %8283
  %8285 = vrot.lane.b32.xlu0 %v6241, 56
  %v8286 = vpop.permute.xlu0 %8285
  %8287 = vrot.lane.b32.xlu0 %v6242, 56
  %v8288 = vpop.permute.xlu0 %8287
  %8289 = vrot.lane.b32.xlu0 %v6243, 56
  %v8290 = vpop.permute.xlu0 %8289
  %8291 = vrot.lane.b32.xlu0 %v6244, 56
  %v8292 = vpop.permute.xlu0 %8291
  %8293 = vrot.lane.b32.xlu0 %v6245, 56
  %v8294 = vpop.permute.xlu0 %8293
  %8295 = vrot.lane.b32.xlu0 %v6246, 56
  %v8296 = vpop.permute.xlu0 %8295
  %8297 = vrot.lane.b32.xlu0 %v6247, 56
  %v8298 = vpop.permute.xlu0 %8297
  %8299 = vrot.lane.b32.xlu0 %v6248, 56
  %v8300 = vpop.permute.xlu0 %8299
  %8301 = vrot.lane.b32.xlu0 %v6249, 56
  %v8302 = vpop.permute.xlu0 %8301
  %8303 = vrot.lane.b32.xlu0 %v6250, 56
  %v8304 = vpop.permute.xlu0 %8303
  %8305 = vrot.lane.b32.xlu0 %v6251, 56
  %v8306 = vpop.permute.xlu0 %8305
  %8307 = vrot.lane.b32.xlu0 %v6252, 56
  %v8308 = vpop.permute.xlu0 %8307
  %8309 = vrot.lane.b32.xlu0 %v6253, 56
  %v8310 = vpop.permute.xlu0 %8309
  %8311 = vrot.lane.b32.xlu0 %v6254, 56
  %v8312 = vpop.permute.xlu0 %8311
  %8313 = vrot.lane.b32.xlu0 %v6255, 56
  %v8314 = vpop.permute.xlu0 %8313
  %8315 = vrot.lane.b32.xlu0 %v6256, 56
  %v8316 = vpop.permute.xlu0 %8315
  %8317 = vrot.lane.b32.xlu0 %v6257, 56
  %v8318 = vpop.permute.xlu0 %8317
  %8319 = vrot.lane.b32.xlu0 %v6258, 56
  %v8320 = vpop.permute.xlu0 %8319
  %8321 = vrot.lane.b32.xlu0 %v6259, 56
  %v8322 = vpop.permute.xlu0 %8321
  %8323 = vrot.lane.b32.xlu0 %v6260, 56
  %v8324 = vpop.permute.xlu0 %8323
  %8325 = vrot.lane.b32.xlu0 %v6261, 56
  %v8326 = vpop.permute.xlu0 %8325
  %8327 = vrot.lane.b32.xlu0 %v6262, 56
  %v8328 = vpop.permute.xlu0 %8327
  %8329 = vrot.lane.b32.xlu0 %v6263, 56
  %v8330 = vpop.permute.xlu0 %8329
  %8331 = vrot.lane.b32.xlu0 %v6264, 56
  %v8332 = vpop.permute.xlu0 %8331
  %8333 = vrot.lane.b32.xlu0 %v6265, 56
  %v8334 = vpop.permute.xlu0 %8333
  %8335 = vrot.lane.b32.xlu0 %v6266, 56
  %v8336 = vpop.permute.xlu0 %8335
  %8337 = vrot.lane.b32.xlu0 %v6267, 56
  %v8338 = vpop.permute.xlu0 %8337
  %8339 = vrot.lane.b32.xlu0 %v6268, 56
  %v8340 = vpop.permute.xlu0 %8339
  %8341 = vrot.lane.b32.xlu0 %v6269, 56
  %v8342 = vpop.permute.xlu0 %8341
  %8343 = vrot.lane.b32.xlu0 %v6270, 56
  %v8344 = vpop.permute.xlu0 %8343
  %8345 = vrot.lane.b32.xlu0 %v6271, 56
  %v8346 = vpop.permute.xlu0 %8345
  %8347 = vrot.lane.b32.xlu0 %v6272, 56
  %v8348 = vpop.permute.xlu0 %8347
  %8349 = vrot.lane.b32.xlu0 %v6273, 56
  %v8350 = vpop.permute.xlu0 %8349
  %8351 = vrot.lane.b32.xlu0 %v6274, 56
  %v8352 = vpop.permute.xlu0 %8351
  %8353 = vrot.lane.b32.xlu0 %v6275, 56
  %v8354 = vpop.permute.xlu0 %8353
  %8355 = vrot.lane.b32.xlu0 %v6276, 56
  %v8356 = vpop.permute.xlu0 %8355
  %8357 = vrot.lane.b32.xlu0 %v6277, 56
  %v8358 = vpop.permute.xlu0 %8357
  %8359 = vrot.lane.b32.xlu0 %v6278, 56
  %v8360 = vpop.permute.xlu0 %8359
  %8361 = vrot.lane.b32.xlu0 %v6279, 56
  %v8362 = vpop.permute.xlu0 %8361
  %8363 = vrot.lane.b32.xlu0 %v6280, 56
  %v8364 = vpop.permute.xlu0 %8363
  %8365 = vrot.lane.b32.xlu0 %v6281, 56
  %v8366 = vpop.permute.xlu0 %8365
  %8367 = vrot.lane.b32.xlu0 %v6282, 56
  %v8368 = vpop.permute.xlu0 %8367
  %8369 = vrot.lane.b32.xlu0 %v6283, 56
  %v8370 = vpop.permute.xlu0 %8369
  %8371 = vrot.lane.b32.xlu0 %v6284, 56
  %v8372 = vpop.permute.xlu0 %8371
  %8373 = vrot.lane.b32.xlu0 %v6285, 56
  %v8374 = vpop.permute.xlu0 %8373
  %8375 = vrot.lane.b32.xlu0 %v6286, 56
  %v8376 = vpop.permute.xlu0 %8375
  %8377 = vrot.lane.b32.xlu0 %v6287, 56
  %v8378 = vpop.permute.xlu0 %8377
  %8379 = vrot.lane.b32.xlu0 %v6288, 56
  %v8380 = vpop.permute.xlu0 %8379
  %8381 = vrot.lane.b32.xlu0 %v6289, 56
  %v8382 = vpop.permute.xlu0 %8381
  %8383 = vrot.lane.b32.xlu0 %v6290, 56
  %v8384 = vpop.permute.xlu0 %8383
  %8385 = vrot.lane.b32.xlu0 %v6291, 56
  %v8386 = vpop.permute.xlu0 %8385
  %8387 = vrot.lane.b32.xlu0 %v6292, 56
  %v8388 = vpop.permute.xlu0 %8387
  %8389 = vrot.lane.b32.xlu0 %v6293, 56
  %v8390 = vpop.permute.xlu0 %8389
  %8391 = vrot.lane.b32.xlu0 %v6294, 56
  %v8392 = vpop.permute.xlu0 %8391
  %8393 = vrot.lane.b32.xlu0 %v6295, 56
  %v8394 = vpop.permute.xlu0 %8393
  %8395 = vrot.lane.b32.xlu0 %v6296, 56
  %v8396 = vpop.permute.xlu0 %8395
  %8397 = vrot.lane.b32.xlu0 %v6297, 56
  %v8398 = vpop.permute.xlu0 %8397
  %8399 = vrot.lane.b32.xlu0 %v6298, 56
  %v8400 = vpop.permute.xlu0 %8399
  %8401 = vrot.lane.b32.xlu0 %v6299, 56
  %v8402 = vpop.permute.xlu0 %8401
  %8403 = vrot.lane.b32.xlu0 %v6300, 56
  %v8404 = vpop.permute.xlu0 %8403
  %8405 = vrot.lane.b32.xlu0 %v6301, 56
  %v8406 = vpop.permute.xlu0 %8405
  %8407 = vrot.lane.b32.xlu0 %v6302, 56
  %v8408 = vpop.permute.xlu0 %8407
  %8409 = vrot.lane.b32.xlu0 %v6303, 56
  %v8410 = vpop.permute.xlu0 %8409
  %8411 = vrot.lane.b32.xlu0 %v6304, 56
  %v8412 = vpop.permute.xlu0 %8411
  %8413 = vrot.lane.b32.xlu0 %v6305, 56
  %v8414 = vpop.permute.xlu0 %8413
  %8415 = vrot.lane.b32.xlu0 %v6306, 56
  %v8416 = vpop.permute.xlu0 %8415
  %8579 = vrot.lane.b32.xlu0 %v6307, 64
  %v8580 = vpop.permute.xlu0 %8579
  %8581 = vrot.lane.b32.xlu0 %v6308, 64
  %v8582 = vpop.permute.xlu0 %8581
  %8583 = vrot.lane.b32.xlu0 %v6309, 64
  %v8584 = vpop.permute.xlu0 %8583
  %8585 = vrot.lane.b32.xlu0 %v6310, 64
  %v8586 = vpop.permute.xlu0 %8585
  %8587 = vrot.lane.b32.xlu0 %v6311, 64
  %v8588 = vpop.permute.xlu0 %8587
  %8589 = vrot.lane.b32.xlu0 %v6312, 64
  %v8590 = vpop.permute.xlu0 %8589
  %8591 = vrot.lane.b32.xlu0 %v6313, 64
  %v8592 = vpop.permute.xlu0 %8591
  %8593 = vrot.lane.b32.xlu0 %v6314, 64
  %v8594 = vpop.permute.xlu0 %8593
  %8595 = vrot.lane.b32.xlu0 %v6315, 64
  %v8596 = vpop.permute.xlu0 %8595
  %8597 = vrot.lane.b32.xlu0 %v6316, 64
  %v8598 = vpop.permute.xlu0 %8597
  %8599 = vrot.lane.b32.xlu0 %v6317, 64
  %v8600 = vpop.permute.xlu0 %8599
  %8601 = vrot.lane.b32.xlu0 %v6318, 64
  %v8602 = vpop.permute.xlu0 %8601
  %8603 = vrot.lane.b32.xlu0 %v6319, 64
  %v8604 = vpop.permute.xlu0 %8603
  %8605 = vrot.lane.b32.xlu0 %v6320, 64
  %v8606 = vpop.permute.xlu0 %8605
  %8607 = vrot.lane.b32.xlu0 %v6321, 64
  %v8608 = vpop.permute.xlu0 %8607
  %8609 = vrot.lane.b32.xlu0 %v6322, 64
  %v8610 = vpop.permute.xlu0 %8609
  %8611 = vrot.lane.b32.xlu0 %v6323, 64
  %v8612 = vpop.permute.xlu0 %8611
  %8613 = vrot.lane.b32.xlu0 %v6324, 64
  %v8614 = vpop.permute.xlu0 %8613
  %8615 = vrot.lane.b32.xlu0 %v6325, 64
  %v8616 = vpop.permute.xlu0 %8615
  %8617 = vrot.lane.b32.xlu0 %v6326, 64
  %v8618 = vpop.permute.xlu0 %8617
  %8619 = vrot.lane.b32.xlu0 %v6327, 64
  %v8620 = vpop.permute.xlu0 %8619
  %8621 = vrot.lane.b32.xlu0 %v6328, 64
  %v8622 = vpop.permute.xlu0 %8621
  %8623 = vrot.lane.b32.xlu0 %v6329, 64
  %v8624 = vpop.permute.xlu0 %8623
  %8625 = vrot.lane.b32.xlu0 %v6330, 64
  %v8626 = vpop.permute.xlu0 %8625
  %8627 = vrot.lane.b32.xlu0 %v6331, 64
  %v8628 = vpop.permute.xlu0 %8627
  %8629 = vrot.lane.b32.xlu0 %v6332, 64
  %v8630 = vpop.permute.xlu0 %8629
  %8631 = vrot.lane.b32.xlu0 %v6333, 64
  %v8632 = vpop.permute.xlu0 %8631
  %8633 = vrot.lane.b32.xlu0 %v6334, 64
  %v8634 = vpop.permute.xlu0 %8633
  %8635 = vrot.lane.b32.xlu0 %v6335, 64
  %v8636 = vpop.permute.xlu0 %8635
  %8637 = vrot.lane.b32.xlu0 %v6336, 64
  %v8638 = vpop.permute.xlu0 %8637
  %8639 = vrot.lane.b32.xlu0 %v6337, 64
  %v8640 = vpop.permute.xlu0 %8639
  %8641 = vrot.lane.b32.xlu0 %v6338, 64
  %v8642 = vpop.permute.xlu0 %8641
  %8643 = vrot.lane.b32.xlu0 %v6339, 64
  %v8644 = vpop.permute.xlu0 %8643
  %8645 = vrot.lane.b32.xlu0 %v6340, 64
  %v8646 = vpop.permute.xlu0 %8645
  %8647 = vrot.lane.b32.xlu0 %v6341, 64
  %v8648 = vpop.permute.xlu0 %8647
  %8649 = vrot.lane.b32.xlu0 %v6342, 64
  %v8650 = vpop.permute.xlu0 %8649
  %8651 = vrot.lane.b32.xlu0 %v6343, 64
  %v8652 = vpop.permute.xlu0 %8651
  %8653 = vrot.lane.b32.xlu0 %v6344, 64
  %v8654 = vpop.permute.xlu0 %8653
  %8655 = vrot.lane.b32.xlu0 %v6345, 64
  %v8656 = vpop.permute.xlu0 %8655
  %8657 = vrot.lane.b32.xlu0 %v6346, 64
  %v8658 = vpop.permute.xlu0 %8657
  %8659 = vrot.lane.b32.xlu0 %v6347, 64
  %v8660 = vpop.permute.xlu0 %8659
  %8661 = vrot.lane.b32.xlu0 %v6348, 64
  %v8662 = vpop.permute.xlu0 %8661
  %8663 = vrot.lane.b32.xlu0 %v6349, 64
  %v8664 = vpop.permute.xlu0 %8663
  %8665 = vrot.lane.b32.xlu0 %v6350, 64
  %v8666 = vpop.permute.xlu0 %8665
  %8667 = vrot.lane.b32.xlu0 %v6351, 64
  %v8668 = vpop.permute.xlu0 %8667
  %8669 = vrot.lane.b32.xlu0 %v6352, 64
  %v8670 = vpop.permute.xlu0 %8669
  %8671 = vrot.lane.b32.xlu0 %v6353, 64
  %v8672 = vpop.permute.xlu0 %8671
  %8673 = vrot.lane.b32.xlu0 %v6354, 64
  %v8674 = vpop.permute.xlu0 %8673
  %8675 = vrot.lane.b32.xlu0 %v6355, 64
  %v8676 = vpop.permute.xlu0 %8675
  %8677 = vrot.lane.b32.xlu0 %v6356, 64
  %v8678 = vpop.permute.xlu0 %8677
  %8679 = vrot.lane.b32.xlu0 %v6357, 64
  %v8680 = vpop.permute.xlu0 %8679
  %8681 = vrot.lane.b32.xlu0 %v6358, 64
  %v8682 = vpop.permute.xlu0 %8681
  %8683 = vrot.lane.b32.xlu0 %v6359, 64
  %v8684 = vpop.permute.xlu0 %8683
  %8685 = vrot.lane.b32.xlu0 %v6360, 64
  %v8686 = vpop.permute.xlu0 %8685
  %8687 = vrot.lane.b32.xlu0 %v6361, 64
  %v8688 = vpop.permute.xlu0 %8687
  %8689 = vrot.lane.b32.xlu0 %v6362, 64
  %v8690 = vpop.permute.xlu0 %8689
  %8691 = vrot.lane.b32.xlu0 %v6363, 64
  %v8692 = vpop.permute.xlu0 %8691
  %8693 = vrot.lane.b32.xlu0 %v6364, 64
  %v8694 = vpop.permute.xlu0 %8693
  %8695 = vrot.lane.b32.xlu0 %v6365, 64
  %v8696 = vpop.permute.xlu0 %8695
  %8697 = vrot.lane.b32.xlu0 %v6366, 64
  %v8698 = vpop.permute.xlu0 %8697
  %8699 = vrot.lane.b32.xlu0 %v6367, 64
  %v8700 = vpop.permute.xlu0 %8699
  %8701 = vrot.lane.b32.xlu0 %v6368, 64
  %v8702 = vpop.permute.xlu0 %8701
  %8703 = vrot.lane.b32.xlu0 %v6369, 64
  %v8704 = vpop.permute.xlu0 %8703
  %8705 = vrot.lane.b32.xlu0 %v6370, 64
  %v8706 = vpop.permute.xlu0 %8705
  %8707 = vrot.lane.b32.xlu0 %v6371, 64
  %v8708 = vpop.permute.xlu0 %8707
  %8709 = vrot.lane.b32.xlu0 %v6372, 64
  %v8710 = vpop.permute.xlu0 %8709
  %8711 = vrot.lane.b32.xlu0 %v6373, 64
  %v8712 = vpop.permute.xlu0 %8711
  %8713 = vrot.lane.b32.xlu0 %v6374, 64
  %v8714 = vpop.permute.xlu0 %8713
  %8715 = vrot.lane.b32.xlu0 %v6375, 64
  %v8716 = vpop.permute.xlu0 %8715
  %8717 = vrot.lane.b32.xlu0 %v6376, 64
  %v8718 = vpop.permute.xlu0 %8717
  %8719 = vrot.lane.b32.xlu0 %v6377, 64
  %v8720 = vpop.permute.xlu0 %8719
  %8721 = vrot.lane.b32.xlu0 %v6378, 64
  %v8722 = vpop.permute.xlu0 %8721
  %8723 = vrot.lane.b32.xlu0 %v6379, 64
  %v8724 = vpop.permute.xlu0 %8723
  %8725 = vrot.lane.b32.xlu0 %v6380, 64
  %v8726 = vpop.permute.xlu0 %8725
  %8727 = vrot.lane.b32.xlu0 %v6381, 64
  %v8728 = vpop.permute.xlu0 %8727
  %8729 = vrot.lane.b32.xlu0 %v6382, 64
  %v8730 = vpop.permute.xlu0 %8729
  %8731 = vrot.lane.b32.xlu0 %v6383, 64
  %v8732 = vpop.permute.xlu0 %8731
  %8733 = vrot.lane.b32.xlu0 %v6384, 64
  %v8734 = vpop.permute.xlu0 %8733
  %8735 = vrot.lane.b32.xlu0 %v6385, 64
  %v8736 = vpop.permute.xlu0 %8735
  %8737 = vrot.lane.b32.xlu0 %v6386, 64
  %v8738 = vpop.permute.xlu0 %8737
  %8739 = vrot.lane.b32.xlu0 %v6387, 64
  %v8740 = vpop.permute.xlu0 %8739
  %v8822 = vsel %vm3198, %v5817, %v6470
  %v8823 = vsel %vm3198, %v5818, %v6472
  %v8824 = vsel %vm3198, %v5819, %v6474
  %v8825 = vsel %vm3198, %v5820, %v6476
  %v8826 = vsel %vm3198, %v5821, %v6478
  %v8827 = vsel %vm3198, %v5822, %v6480
  %v8828 = vsel %vm3198, %v5823, %v6482
  %v8829 = vsel %vm3198, %v5824, %v6484
  %v8830 = vsel %vm3198, %v5825, %v6486
  %v8831 = vsel %vm3198, %v5826, %v6488
  %v8832 = vsel %vm3198, %v5827, %v6490
  %v8833 = vsel %vm3198, %v5828, %v6492
  %v8834 = vsel %vm3198, %v5829, %v6494
  %v8835 = vsel %vm3198, %v5830, %v6496
  %v8836 = vsel %vm3198, %v5831, %v6498
  %v8837 = vsel %vm3198, %v5832, %v6500
  %v8838 = vsel %vm3198, %v5833, %v6502
  %v8839 = vsel %vm3198, %v5834, %v6504
  %v8840 = vsel %vm3198, %v5835, %v6506
  %v8841 = vsel %vm3198, %v5836, %v6508
  %v8842 = vsel %vm3198, %v5837, %v6510
  %v8843 = vsel %vm3198, %v5838, %v6512
  %v8844 = vsel %vm3198, %v5839, %v6514
  %v8845 = vsel %vm3198, %v5840, %v6516
  %v8846 = vsel %vm3198, %v5841, %v6518
  %v8847 = vsel %vm3198, %v5842, %v6520
  %v8848 = vsel %vm3198, %v5843, %v6522
  %v8849 = vsel %vm3198, %v5844, %v6524
  %v8850 = vsel %vm3198, %v5845, %v6526
  %v8851 = vsel %vm3198, %v5846, %v6528
  %v8852 = vsel %vm3198, %v5847, %v6530
  %v8853 = vsel %vm3198, %v5848, %v6532
  %v8854 = vsel %vm3198, %v5849, %v6534
  %v8855 = vsel %vm3198, %v5850, %v6536
  %v8856 = vsel %vm3198, %v5851, %v6538
  %v8857 = vsel %vm3198, %v5852, %v6540
  %v8858 = vsel %vm3198, %v5853, %v6542
  %v8859 = vsel %vm3198, %v5854, %v6544
  %v8860 = vsel %vm3198, %v5855, %v6546
  %v8861 = vsel %vm3198, %v5856, %v6548
  %v8862 = vsel %vm3198, %v5857, %v6550
  %v8863 = vsel %vm3198, %v5858, %v6552
  %v8864 = vsel %vm3198, %v5859, %v6554
  %v8865 = vsel %vm3198, %v5860, %v6556
  %v8866 = vsel %vm3198, %v5861, %v6558
  %v8867 = vsel %vm3198, %v5862, %v6560
  %v8868 = vsel %vm3198, %v5863, %v6562
  %v8869 = vsel %vm3198, %v5864, %v6564
  %v8870 = vsel %vm3198, %v5865, %v6566
  %v8871 = vsel %vm3198, %v5866, %v6568
  %v8872 = vsel %vm3198, %v5867, %v6570
  %v8873 = vsel %vm3198, %v5868, %v6572
  %v8874 = vsel %vm3198, %v5869, %v6574
  %v8875 = vsel %vm3198, %v5870, %v6576
  %v8876 = vsel %vm3198, %v5871, %v6578
  %v8877 = vsel %vm3198, %v5872, %v6580
  %v8878 = vsel %vm3198, %v5873, %v6582
  %v8879 = vsel %vm3198, %v5874, %v6584
  %v8880 = vsel %vm3198, %v5875, %v6586
  %v8881 = vsel %vm3198, %v5876, %v6588
  %v8882 = vsel %vm3198, %v5877, %v6590
  %v8883 = vsel %vm3198, %v5878, %v6592
  %v8884 = vsel %vm3198, %v5879, %v6594
  %v8885 = vsel %vm3198, %v5880, %v6596
  %v8886 = vsel %vm3198, %v5881, %v6598
  %v8887 = vsel %vm3198, %v5882, %v6600
  %v8888 = vsel %vm3198, %v5883, %v6602
  %v8889 = vsel %vm3198, %v5884, %v6604
  %v8890 = vsel %vm3198, %v5885, %v6606
  %v8891 = vsel %vm3198, %v5886, %v6608
  %v8892 = vsel %vm3198, %v5887, %v6610
  %v8893 = vsel %vm3198, %v5888, %v6612
  %v8894 = vsel %vm3198, %v5889, %v6614
  %v8895 = vsel %vm3198, %v5890, %v6616
  %v8896 = vsel %vm3198, %v5891, %v6618
  %v8897 = vsel %vm3198, %v5892, %v6620
  %v8898 = vsel %vm3198, %v5893, %v6622
  %v8899 = vsel %vm3198, %v5894, %v6624
  %v8900 = vsel %vm3198, %v5895, %v6626
  %v8901 = vsel %vm3198, %v5896, %v6628
  %v8902 = vsel %vm3198, %v5897, %v6630
  %v8903 = vsel %vm3362, %v8822, %v6794
  %v8904 = vsel %vm3362, %v8823, %v6796
  %v8905 = vsel %vm3362, %v8824, %v6798
  %v8906 = vsel %vm3362, %v8825, %v6800
  %v8907 = vsel %vm3362, %v8826, %v6802
  %v8908 = vsel %vm3362, %v8827, %v6804
  %v8909 = vsel %vm3362, %v8828, %v6806
  %v8910 = vsel %vm3362, %v8829, %v6808
  %v8911 = vsel %vm3362, %v8830, %v6810
  %v8912 = vsel %vm3362, %v8831, %v6812
  %v8913 = vsel %vm3362, %v8832, %v6814
  %v8914 = vsel %vm3362, %v8833, %v6816
  %v8915 = vsel %vm3362, %v8834, %v6818
  %v8916 = vsel %vm3362, %v8835, %v6820
  %v8917 = vsel %vm3362, %v8836, %v6822
  %v8918 = vsel %vm3362, %v8837, %v6824
  %v8919 = vsel %vm3362, %v8838, %v6826
  %v8920 = vsel %vm3362, %v8839, %v6828
  %v8921 = vsel %vm3362, %v8840, %v6830
  %v8922 = vsel %vm3362, %v8841, %v6832
  %v8923 = vsel %vm3362, %v8842, %v6834
  %v8924 = vsel %vm3362, %v8843, %v6836
  %v8925 = vsel %vm3362, %v8844, %v6838
  %v8926 = vsel %vm3362, %v8845, %v6840
  %v8927 = vsel %vm3362, %v8846, %v6842
  %v8928 = vsel %vm3362, %v8847, %v6844
  %v8929 = vsel %vm3362, %v8848, %v6846
  %v8930 = vsel %vm3362, %v8849, %v6848
  %v8931 = vsel %vm3362, %v8850, %v6850
  %v8932 = vsel %vm3362, %v8851, %v6852
  %v8933 = vsel %vm3362, %v8852, %v6854
  %v8934 = vsel %vm3362, %v8853, %v6856
  %v8935 = vsel %vm3362, %v8854, %v6858
  %v8936 = vsel %vm3362, %v8855, %v6860
  %v8937 = vsel %vm3362, %v8856, %v6862
  %v8938 = vsel %vm3362, %v8857, %v6864
  %v8939 = vsel %vm3362, %v8858, %v6866
  %v8940 = vsel %vm3362, %v8859, %v6868
  %v8941 = vsel %vm3362, %v8860, %v6870
  %v8942 = vsel %vm3362, %v8861, %v6872
  %v8943 = vsel %vm3362, %v8862, %v6874
  %v8944 = vsel %vm3362, %v8863, %v6876
  %v8945 = vsel %vm3362, %v8864, %v6878
  %v8946 = vsel %vm3362, %v8865, %v6880
  %v8947 = vsel %vm3362, %v8866, %v6882
  %v8948 = vsel %vm3362, %v8867, %v6884
  %v8949 = vsel %vm3362, %v8868, %v6886
  %v8950 = vsel %vm3362, %v8869, %v6888
  %v8951 = vsel %vm3362, %v8870, %v6890
  %v8952 = vsel %vm3362, %v8871, %v6892
  %v8953 = vsel %vm3362, %v8872, %v6894
  %v8954 = vsel %vm3362, %v8873, %v6896
  %v8955 = vsel %vm3362, %v8874, %v6898
  %v8956 = vsel %vm3362, %v8875, %v6900
  %v8957 = vsel %vm3362, %v8876, %v6902
  %v8958 = vsel %vm3362, %v8877, %v6904
  %v8959 = vsel %vm3362, %v8878, %v6906
  %v8960 = vsel %vm3362, %v8879, %v6908
  %v8961 = vsel %vm3362, %v8880, %v6910
  %v8962 = vsel %vm3362, %v8881, %v6912
  %v8963 = vsel %vm3362, %v8882, %v6914
  %v8964 = vsel %vm3362, %v8883, %v6916
  %v8965 = vsel %vm3362, %v8884, %v6918
  %v8966 = vsel %vm3362, %v8885, %v6920
  %v8967 = vsel %vm3362, %v8886, %v6922
  %v8968 = vsel %vm3362, %v8887, %v6924
  %v8969 = vsel %vm3362, %v8888, %v6926
  %v8970 = vsel %vm3362, %v8889, %v6928
  %v8971 = vsel %vm3362, %v8890, %v6930
  %v8972 = vsel %vm3362, %v8891, %v6932
  %v8973 = vsel %vm3362, %v8892, %v6934
  %v8974 = vsel %vm3362, %v8893, %v6936
  %v8975 = vsel %vm3362, %v8894, %v6938
  %v8976 = vsel %vm3362, %v8895, %v6940
  %v8977 = vsel %vm3362, %v8896, %v6942
  %v8978 = vsel %vm3362, %v8897, %v6944
  %v8979 = vsel %vm3362, %v8898, %v6946
  %v8980 = vsel %vm3362, %v8899, %v6948
  %v8981 = vsel %vm3362, %v8900, %v6950
  %v8982 = vsel %vm3362, %v8901, %v6952
  %v8983 = vsel %vm3362, %v8902, %v6954
  %v8984 = vsel %vm3526, %v8903, %v7039
  %v8985 = vsel %vm3526, %v8904, %v7041
  %v8986 = vsel %vm3526, %v8905, %v7043
  %v8987 = vsel %vm3526, %v8906, %v7045
  %v8988 = vsel %vm3526, %v8907, %v7047
  %v8989 = vsel %vm3526, %v8908, %v7049
  %v8990 = vsel %vm3526, %v8909, %v7051
  %v8991 = vsel %vm3526, %v8910, %v7053
  %v8992 = vsel %vm3526, %v8911, %v7055
  %v8993 = vsel %vm3526, %v8912, %v7057
  %v8994 = vsel %vm3526, %v8913, %v7059
  %v8995 = vsel %vm3526, %v8914, %v7061
  %v8996 = vsel %vm3526, %v8915, %v7063
  %v8997 = vsel %vm3526, %v8916, %v7065
  %v8998 = vsel %vm3526, %v8917, %v7067
  %v8999 = vsel %vm3526, %v8918, %v7069
  %v9000 = vsel %vm3526, %v8919, %v7071
  %v9001 = vsel %vm3526, %v8920, %v7073
  %v9002 = vsel %vm3526, %v8921, %v7075
  %v9003 = vsel %vm3526, %v8922, %v7077
  %v9004 = vsel %vm3526, %v8923, %v7079
  %v9005 = vsel %vm3526, %v8924, %v7081
  %v9006 = vsel %vm3526, %v8925, %v7083
  %v9007 = vsel %vm3526, %v8926, %v7085
  %v9008 = vsel %vm3526, %v8927, %v7087
  %v9009 = vsel %vm3526, %v8928, %v7089
  %v9010 = vsel %vm3526, %v8929, %v7091
  %v9011 = vsel %vm3526, %v8930, %v7093
  %v9012 = vsel %vm3526, %v8931, %v7095
  %v9013 = vsel %vm3526, %v8932, %v7097
  %v9014 = vsel %vm3526, %v8933, %v7099
  %v9015 = vsel %vm3526, %v8934, %v7101
  %v9016 = vsel %vm3526, %v8935, %v7103
  %v9017 = vsel %vm3526, %v8936, %v7105
  %v9018 = vsel %vm3526, %v8937, %v7107
  %v9019 = vsel %vm3526, %v8938, %v7109
  %v9020 = vsel %vm3526, %v8939, %v7111
  %v9021 = vsel %vm3526, %v8940, %v7113
  %v9022 = vsel %vm3526, %v8941, %v7115
  %v9023 = vsel %vm3526, %v8942, %v7117
  %v9024 = vsel %vm3526, %v8943, %v7119
  %v9025 = vsel %vm3526, %v8944, %v7121
  %v9026 = vsel %vm3526, %v8945, %v7123
  %v9027 = vsel %vm3526, %v8946, %v7125
  %v9028 = vsel %vm3526, %v8947, %v7127
  %v9029 = vsel %vm3526, %v8948, %v7129
  %v9030 = vsel %vm3526, %v8949, %v7131
  %v9031 = vsel %vm3526, %v8950, %v7133
  %v9032 = vsel %vm3526, %v8951, %v7135
  %v9033 = vsel %vm3526, %v8952, %v7137
  %v9034 = vsel %vm3526, %v8953, %v7139
  %v9035 = vsel %vm3526, %v8954, %v7141
  %v9036 = vsel %vm3526, %v8955, %v7143
  %v9037 = vsel %vm3526, %v8956, %v7145
  %v9038 = vsel %vm3526, %v8957, %v7147
  %v9039 = vsel %vm3526, %v8958, %v7149
  %v9040 = vsel %vm3526, %v8959, %v7151
  %v9041 = vsel %vm3526, %v8960, %v7153
  %v9042 = vsel %vm3526, %v8961, %v7155
  %v9043 = vsel %vm3526, %v8962, %v7157
  %v9044 = vsel %vm3526, %v8963, %v7159
  %v9045 = vsel %vm3526, %v8964, %v7161
  %v9046 = vsel %vm3526, %v8965, %v7163
  %v9047 = vsel %vm3526, %v8966, %v7165
  %v9048 = vsel %vm3526, %v8967, %v7167
  %v9049 = vsel %vm3526, %v8968, %v7169
  %v9050 = vsel %vm3526, %v8969, %v7171
  %v9051 = vsel %vm3526, %v8970, %v7173
  %v9052 = vsel %vm3526, %v8971, %v7175
  %v9053 = vsel %vm3526, %v8972, %v7177
  %v9054 = vsel %vm3526, %v8973, %v7179
  %v9055 = vsel %vm3526, %v8974, %v7181
  %v9056 = vsel %vm3526, %v8975, %v7183
  %v9057 = vsel %vm3526, %v8976, %v7185
  %v9058 = vsel %vm3526, %v8977, %v7187
  %v9059 = vsel %vm3526, %v8978, %v7189
  %v9060 = vsel %vm3526, %v8979, %v7191
  %v9061 = vsel %vm3526, %v8980, %v7193
  %v9062 = vsel %vm3526, %v8981, %v7195
  %v9063 = vsel %vm3526, %v8982, %v7197
  %v9064 = vsel %vm3526, %v8983, %v7199
  %v9065 = vsel %vm3690, %v8984, %v7363
  %v9066 = vsel %vm3690, %v8985, %v7365
  %v9067 = vsel %vm3690, %v8986, %v7367
  %v9068 = vsel %vm3690, %v8987, %v7369
  %v9069 = vsel %vm3690, %v8988, %v7371
  %v9070 = vsel %vm3690, %v8989, %v7373
  %v9071 = vsel %vm3690, %v8990, %v7375
  %v9072 = vsel %vm3690, %v8991, %v7377
  %v9073 = vsel %vm3690, %v8992, %v7379
  %v9074 = vsel %vm3690, %v8993, %v7381
  %v9075 = vsel %vm3690, %v8994, %v7383
  %v9076 = vsel %vm3690, %v8995, %v7385
  %v9077 = vsel %vm3690, %v8996, %v7387
  %v9078 = vsel %vm3690, %v8997, %v7389
  %v9079 = vsel %vm3690, %v8998, %v7391
  %v9080 = vsel %vm3690, %v8999, %v7393
  %v9081 = vsel %vm3690, %v9000, %v7395
  %v9082 = vsel %vm3690, %v9001, %v7397
  %v9083 = vsel %vm3690, %v9002, %v7399
  %v9084 = vsel %vm3690, %v9003, %v7401
  %v9085 = vsel %vm3690, %v9004, %v7403
  %v9086 = vsel %vm3690, %v9005, %v7405
  %v9087 = vsel %vm3690, %v9006, %v7407
  %v9088 = vsel %vm3690, %v9007, %v7409
  %v9089 = vsel %vm3690, %v9008, %v7411
  %v9090 = vsel %vm3690, %v9009, %v7413
  %v9091 = vsel %vm3690, %v9010, %v7415
  %v9092 = vsel %vm3690, %v9011, %v7417
  %v9093 = vsel %vm3690, %v9012, %v7419
  %v9094 = vsel %vm3690, %v9013, %v7421
  %v9095 = vsel %vm3690, %v9014, %v7423
  %v9096 = vsel %vm3690, %v9015, %v7425
  %v9097 = vsel %vm3690, %v9016, %v7427
  %v9098 = vsel %vm3690, %v9017, %v7429
  %v9099 = vsel %vm3690, %v9018, %v7431
  %v9100 = vsel %vm3690, %v9019, %v7433
  %v9101 = vsel %vm3690, %v9020, %v7435
  %v9102 = vsel %vm3690, %v9021, %v7437
  %v9103 = vsel %vm3690, %v9022, %v7439
  %v9104 = vsel %vm3690, %v9023, %v7441
  %v9105 = vsel %vm3690, %v9024, %v7443
  %v9106 = vsel %vm3690, %v9025, %v7445
  %v9107 = vsel %vm3690, %v9026, %v7447
  %v9108 = vsel %vm3690, %v9027, %v7449
  %v9109 = vsel %vm3690, %v9028, %v7451
  %v9110 = vsel %vm3690, %v9029, %v7453
  %v9111 = vsel %vm3690, %v9030, %v7455
  %v9112 = vsel %vm3690, %v9031, %v7457
  %v9113 = vsel %vm3690, %v9032, %v7459
  %v9114 = vsel %vm3690, %v9033, %v7461
  %v9115 = vsel %vm3690, %v9034, %v7463
  %v9116 = vsel %vm3690, %v9035, %v7465
  %v9117 = vsel %vm3690, %v9036, %v7467
  %v9118 = vsel %vm3690, %v9037, %v7469
  %v9119 = vsel %vm3690, %v9038, %v7471
  %v9120 = vsel %vm3690, %v9039, %v7473
  %v9121 = vsel %vm3690, %v9040, %v7475
  %v9122 = vsel %vm3690, %v9041, %v7477
  %v9123 = vsel %vm3690, %v9042, %v7479
  %v9124 = vsel %vm3690, %v9043, %v7481
  %v9125 = vsel %vm3690, %v9044, %v7483
  %v9126 = vsel %vm3690, %v9045, %v7485
  %v9127 = vsel %vm3690, %v9046, %v7487
  %v9128 = vsel %vm3690, %v9047, %v7489
  %v9129 = vsel %vm3690, %v9048, %v7491
  %v9130 = vsel %vm3690, %v9049, %v7493
  %v9131 = vsel %vm3690, %v9050, %v7495
  %v9132 = vsel %vm3690, %v9051, %v7497
  %v9133 = vsel %vm3690, %v9052, %v7499
  %v9134 = vsel %vm3690, %v9053, %v7501
  %v9135 = vsel %vm3690, %v9054, %v7503
  %v9136 = vsel %vm3690, %v9055, %v7505
  %v9137 = vsel %vm3690, %v9056, %v7507
  %v9138 = vsel %vm3690, %v9057, %v7509
  %v9139 = vsel %vm3690, %v9058, %v7511
  %v9140 = vsel %vm3690, %v9059, %v7513
  %v9141 = vsel %vm3690, %v9060, %v7515
  %v9142 = vsel %vm3690, %v9061, %v7517
  %v9143 = vsel %vm3690, %v9062, %v7519
  %v9144 = vsel %vm3690, %v9063, %v7521
  %v9145 = vsel %vm3690, %v9064, %v7523
  %vm9146 = vcmask 326656
  %v9147 = vsel %vm9146, %v9065, %v7687
  %v9148 = vsel %vm9146, %v9066, %v7689
  %v9149 = vsel %vm9146, %v9067, %v7691
  %v9150 = vsel %vm9146, %v9068, %v7693
  %v9151 = vsel %vm9146, %v9069, %v7695
  %v9152 = vsel %vm9146, %v9070, %v7697
  %v9153 = vsel %vm9146, %v9071, %v7699
  %v9154 = vsel %vm9146, %v9072, %v7701
  %v9155 = vsel %vm9146, %v9073, %v7703
  %v9156 = vsel %vm9146, %v9074, %v7705
  %v9157 = vsel %vm9146, %v9075, %v7707
  %v9158 = vsel %vm9146, %v9076, %v7709
  %v9159 = vsel %vm9146, %v9077, %v7711
  %v9160 = vsel %vm9146, %v9078, %v7713
  %v9161 = vsel %vm9146, %v9079, %v7715
  %v9162 = vsel %vm9146, %v9080, %v7717
  %v9163 = vsel %vm9146, %v9081, %v7719
  %v9164 = vsel %vm9146, %v9082, %v7721
  %v9165 = vsel %vm9146, %v9083, %v7723
  %v9166 = vsel %vm9146, %v9084, %v7725
  %v9167 = vsel %vm9146, %v9085, %v7727
  %v9168 = vsel %vm9146, %v9086, %v7729
  %v9169 = vsel %vm9146, %v9087, %v7731
  %v9170 = vsel %vm9146, %v9088, %v7733
  %v9171 = vsel %vm9146, %v9089, %v7735
  %v9172 = vsel %vm9146, %v9090, %v7737
  %v9173 = vsel %vm9146, %v9091, %v7739
  %v9174 = vsel %vm9146, %v9092, %v7741
  %v9175 = vsel %vm9146, %v9093, %v7743
  %v9176 = vsel %vm9146, %v9094, %v7745
  %v9177 = vsel %vm9146, %v9095, %v7747
  %v9178 = vsel %vm9146, %v9096, %v7749
  %v9179 = vsel %vm9146, %v9097, %v7751
  %v9180 = vsel %vm9146, %v9098, %v7753
  %v9181 = vsel %vm9146, %v9099, %v7755
  %v9182 = vsel %vm9146, %v9100, %v7757
  %v9183 = vsel %vm9146, %v9101, %v7759
  %v9184 = vsel %vm9146, %v9102, %v7761
  %v9185 = vsel %vm9146, %v9103, %v7763
  %v9186 = vsel %vm9146, %v9104, %v7765
  %v9187 = vsel %vm9146, %v9105, %v7767
  %v9188 = vsel %vm9146, %v9106, %v7769
  %v9189 = vsel %vm9146, %v9107, %v7771
  %v9190 = vsel %vm9146, %v9108, %v7773
  %v9191 = vsel %vm9146, %v9109, %v7775
  %v9192 = vsel %vm9146, %v9110, %v7777
  %v9193 = vsel %vm9146, %v9111, %v7779
  %v9194 = vsel %vm9146, %v9112, %v7781
  %v9195 = vsel %vm9146, %v9113, %v7783
  %v9196 = vsel %vm9146, %v9114, %v7785
  %v9197 = vsel %vm9146, %v9115, %v7787
  %v9198 = vsel %vm9146, %v9116, %v7789
  %v9199 = vsel %vm9146, %v9117, %v7791
  %v9200 = vsel %vm9146, %v9118, %v7793
  %v9201 = vsel %vm9146, %v9119, %v7795
  %v9202 = vsel %vm9146, %v9120, %v7797
  %v9203 = vsel %vm9146, %v9121, %v7799
  %v9204 = vsel %vm9146, %v9122, %v7801
  %v9205 = vsel %vm9146, %v9123, %v7803
  %v9206 = vsel %vm9146, %v9124, %v7805
  %v9207 = vsel %vm9146, %v9125, %v7807
  %v9208 = vsel %vm9146, %v9126, %v7809
  %v9209 = vsel %vm9146, %v9127, %v7811
  %v9210 = vsel %vm9146, %v9128, %v7813
  %v9211 = vsel %vm9146, %v9129, %v7815
  %v9212 = vsel %vm9146, %v9130, %v7817
  %v9213 = vsel %vm9146, %v9131, %v7819
  %v9214 = vsel %vm9146, %v9132, %v7821
  %v9215 = vsel %vm9146, %v9133, %v7823
  %v9216 = vsel %vm9146, %v9134, %v7825
  %v9217 = vsel %vm9146, %v9135, %v7827
  %v9218 = vsel %vm9146, %v9136, %v7829
  %v9219 = vsel %vm9146, %v9137, %v7831
  %v9220 = vsel %vm9146, %v9138, %v7833
  %v9221 = vsel %vm9146, %v9139, %v7835
  %v9222 = vsel %vm9146, %v9140, %v7837
  %v9223 = vsel %vm9146, %v9141, %v7839
  %v9224 = vsel %vm9146, %v9142, %v7841
  %v9225 = vsel %vm9146, %v9143, %v7843
  %v9226 = vsel %vm9146, %v9144, %v7845
  %v9227 = vsel %vm9146, %v9145, %v7847
  %vm9228 = vcmask 392192
  %v9229 = vsel %vm9228, %v9147, %v7932
  %v9230 = vsel %vm9228, %v9148, %v7934
  %v9231 = vsel %vm9228, %v9149, %v7936
  %v9232 = vsel %vm9228, %v9150, %v7938
  %v9233 = vsel %vm9228, %v9151, %v7940
  %v9234 = vsel %vm9228, %v9152, %v7942
  %v9235 = vsel %vm9228, %v9153, %v7944
  %v9236 = vsel %vm9228, %v9154, %v7946
  %v9237 = vsel %vm9228, %v9155, %v7948
  %v9238 = vsel %vm9228, %v9156, %v7950
  %v9239 = vsel %vm9228, %v9157, %v7952
  %v9240 = vsel %vm9228, %v9158, %v7954
  %v9241 = vsel %vm9228, %v9159, %v7956
  %v9242 = vsel %vm9228, %v9160, %v7958
  %v9243 = vsel %vm9228, %v9161, %v7960
  %v9244 = vsel %vm9228, %v9162, %v7962
  %v9245 = vsel %vm9228, %v9163, %v7964
  %v9246 = vsel %vm9228, %v9164, %v7966
  %v9247 = vsel %vm9228, %v9165, %v7968
  %v9248 = vsel %vm9228, %v9166, %v7970
  %v9249 = vsel %vm9228, %v9167, %v7972
  %v9250 = vsel %vm9228, %v9168, %v7974
  %v9251 = vsel %vm9228, %v9169, %v7976
  %v9252 = vsel %vm9228, %v9170, %v7978
  %v9253 = vsel %vm9228, %v9171, %v7980
  %v9254 = vsel %vm9228, %v9172, %v7982
  %v9255 = vsel %vm9228, %v9173, %v7984
  %v9256 = vsel %vm9228, %v9174, %v7986
  %v9257 = vsel %vm9228, %v9175, %v7988
  %v9258 = vsel %vm9228, %v9176, %v7990
  %v9259 = vsel %vm9228, %v9177, %v7992
  %v9260 = vsel %vm9228, %v9178, %v7994
  %v9261 = vsel %vm9228, %v9179, %v7996
  %v9262 = vsel %vm9228, %v9180, %v7998
  %v9263 = vsel %vm9228, %v9181, %v8000
  %v9264 = vsel %vm9228, %v9182, %v8002
  %v9265 = vsel %vm9228, %v9183, %v8004
  %v9266 = vsel %vm9228, %v9184, %v8006
  %v9267 = vsel %vm9228, %v9185, %v8008
  %v9268 = vsel %vm9228, %v9186, %v8010
  %v9269 = vsel %vm9228, %v9187, %v8012
  %v9270 = vsel %vm9228, %v9188, %v8014
  %v9271 = vsel %vm9228, %v9189, %v8016
  %v9272 = vsel %vm9228, %v9190, %v8018
  %v9273 = vsel %vm9228, %v9191, %v8020
  %v9274 = vsel %vm9228, %v9192, %v8022
  %v9275 = vsel %vm9228, %v9193, %v8024
  %v9276 = vsel %vm9228, %v9194, %v8026
  %v9277 = vsel %vm9228, %v9195, %v8028
  %v9278 = vsel %vm9228, %v9196, %v8030
  %v9279 = vsel %vm9228, %v9197, %v8032
  %v9280 = vsel %vm9228, %v9198, %v8034
  %v9281 = vsel %vm9228, %v9199, %v8036
  %v9282 = vsel %vm9228, %v9200, %v8038
  %v9283 = vsel %vm9228, %v9201, %v8040
  %v9284 = vsel %vm9228, %v9202, %v8042
  %v9285 = vsel %vm9228, %v9203, %v8044
  %v9286 = vsel %vm9228, %v9204, %v8046
  %v9287 = vsel %vm9228, %v9205, %v8048
  %v9288 = vsel %vm9228, %v9206, %v8050
  %v9289 = vsel %vm9228, %v9207, %v8052
  %v9290 = vsel %vm9228, %v9208, %v8054
  %v9291 = vsel %vm9228, %v9209, %v8056
  %v9292 = vsel %vm9228, %v9210, %v8058
  %v9293 = vsel %vm9228, %v9211, %v8060
  %v9294 = vsel %vm9228, %v9212, %v8062
  %v9295 = vsel %vm9228, %v9213, %v8064
  %v9296 = vsel %vm9228, %v9214, %v8066
  %v9297 = vsel %vm9228, %v9215, %v8068
  %v9298 = vsel %vm9228, %v9216, %v8070
  %v9299 = vsel %vm9228, %v9217, %v8072
  %v9300 = vsel %vm9228, %v9218, %v8074
  %v9301 = vsel %vm9228, %v9219, %v8076
  %v9302 = vsel %vm9228, %v9220, %v8078
  %v9303 = vsel %vm9228, %v9221, %v8080
  %v9304 = vsel %vm9228, %v9222, %v8082
  %v9305 = vsel %vm9228, %v9223, %v8084
  %v9306 = vsel %vm9228, %v9224, %v8086
  %v9307 = vsel %vm9228, %v9225, %v8088
  %v9308 = vsel %vm9228, %v9226, %v8090
  %v9309 = vsel %vm9228, %v9227, %v8092
  %vm9310 = vcmask 457728
  %v9311 = vsel %vm9310, %v9229, %v8256
  %v9312 = vsel %vm9310, %v9230, %v8258
  %v9313 = vsel %vm9310, %v9231, %v8260
  %v9314 = vsel %vm9310, %v9232, %v8262
  %v9315 = vsel %vm9310, %v9233, %v8264
  %v9316 = vsel %vm9310, %v9234, %v8266
  %v9317 = vsel %vm9310, %v9235, %v8268
  %v9318 = vsel %vm9310, %v9236, %v8270
  %v9319 = vsel %vm9310, %v9237, %v8272
  %v9320 = vsel %vm9310, %v9238, %v8274
  %v9321 = vsel %vm9310, %v9239, %v8276
  %v9322 = vsel %vm9310, %v9240, %v8278
  %v9323 = vsel %vm9310, %v9241, %v8280
  %v9324 = vsel %vm9310, %v9242, %v8282
  %v9325 = vsel %vm9310, %v9243, %v8284
  %v9326 = vsel %vm9310, %v9244, %v8286
  %v9327 = vsel %vm9310, %v9245, %v8288
  %v9328 = vsel %vm9310, %v9246, %v8290
  %v9329 = vsel %vm9310, %v9247, %v8292
  %v9330 = vsel %vm9310, %v9248, %v8294
  %v9331 = vsel %vm9310, %v9249, %v8296
  %v9332 = vsel %vm9310, %v9250, %v8298
  %v9333 = vsel %vm9310, %v9251, %v8300
  %v9334 = vsel %vm9310, %v9252, %v8302
  %v9335 = vsel %vm9310, %v9253, %v8304
  %v9336 = vsel %vm9310, %v9254, %v8306
  %v9337 = vsel %vm9310, %v9255, %v8308
  %v9338 = vsel %vm9310, %v9256, %v8310
  %v9339 = vsel %vm9310, %v9257, %v8312
  %v9340 = vsel %vm9310, %v9258, %v8314
  %v9341 = vsel %vm9310, %v9259, %v8316
  %v9342 = vsel %vm9310, %v9260, %v8318
  %v9343 = vsel %vm9310, %v9261, %v8320
  %v9344 = vsel %vm9310, %v9262, %v8322
  %v9345 = vsel %vm9310, %v9263, %v8324
  %v9346 = vsel %vm9310, %v9264, %v8326
  %v9347 = vsel %vm9310, %v9265, %v8328
  %v9348 = vsel %vm9310, %v9266, %v8330
  %v9349 = vsel %vm9310, %v9267, %v8332
  %v9350 = vsel %vm9310, %v9268, %v8334
  %v9351 = vsel %vm9310, %v9269, %v8336
  %v9352 = vsel %vm9310, %v9270, %v8338
  %v9353 = vsel %vm9310, %v9271, %v8340
  %v9354 = vsel %vm9310, %v9272, %v8342
  %v9355 = vsel %vm9310, %v9273, %v8344
  %v9356 = vsel %vm9310, %v9274, %v8346
  %v9357 = vsel %vm9310, %v9275, %v8348
  %v9358 = vsel %vm9310, %v9276, %v8350
  %v9359 = vsel %vm9310, %v9277, %v8352
  %v9360 = vsel %vm9310, %v9278, %v8354
  %v9361 = vsel %vm9310, %v9279, %v8356
  %v9362 = vsel %vm9310, %v9280, %v8358
  %v9363 = vsel %vm9310, %v9281, %v8360
  %v9364 = vsel %vm9310, %v9282, %v8362
  %v9365 = vsel %vm9310, %v9283, %v8364
  %v9366 = vsel %vm9310, %v9284, %v8366
  %v9367 = vsel %vm9310, %v9285, %v8368
  %v9368 = vsel %vm9310, %v9286, %v8370
  %v9369 = vsel %vm9310, %v9287, %v8372
  %v9370 = vsel %vm9310, %v9288, %v8374
  %v9371 = vsel %vm9310, %v9289, %v8376
  %v9372 = vsel %vm9310, %v9290, %v8378
  %v9373 = vsel %vm9310, %v9291, %v8380
  %v9374 = vsel %vm9310, %v9292, %v8382
  %v9375 = vsel %vm9310, %v9293, %v8384
  %v9376 = vsel %vm9310, %v9294, %v8386
  %v9377 = vsel %vm9310, %v9295, %v8388
  %v9378 = vsel %vm9310, %v9296, %v8390
  %v9379 = vsel %vm9310, %v9297, %v8392
  %v9380 = vsel %vm9310, %v9298, %v8394
  %v9381 = vsel %vm9310, %v9299, %v8396
  %v9382 = vsel %vm9310, %v9300, %v8398
  %v9383 = vsel %vm9310, %v9301, %v8400
  %v9384 = vsel %vm9310, %v9302, %v8402
  %v9385 = vsel %vm9310, %v9303, %v8404
  %v9386 = vsel %vm9310, %v9304, %v8406
  %v9387 = vsel %vm9310, %v9305, %v8408
  %v9388 = vsel %vm9310, %v9306, %v8410
  %v9389 = vsel %vm9310, %v9307, %v8412
  %v9390 = vsel %vm9310, %v9308, %v8414
  %v9391 = vsel %vm9310, %v9309, %v8416
  %vm9392 = vcmask 523264
  %v9393 = vsel %vm9392, %v9311, %v8580
  %v9394 = vsel %vm9392, %v9312, %v8582
  %v9395 = vsel %vm9392, %v9313, %v8584
  %v9396 = vsel %vm9392, %v9314, %v8586
  %v9397 = vsel %vm9392, %v9315, %v8588
  %v9398 = vsel %vm9392, %v9316, %v8590
  %v9399 = vsel %vm9392, %v9317, %v8592
  %v9400 = vsel %vm9392, %v9318, %v8594
  %v9401 = vsel %vm9392, %v9319, %v8596
  %v9402 = vsel %vm9392, %v9320, %v8598
  %v9403 = vsel %vm9392, %v9321, %v8600
  %v9404 = vsel %vm9392, %v9322, %v8602
  %v9405 = vsel %vm9392, %v9323, %v8604
  %v9406 = vsel %vm9392, %v9324, %v8606
  %v9407 = vsel %vm9392, %v9325, %v8608
  %v9408 = vsel %vm9392, %v9326, %v8610
  %v9409 = vsel %vm9392, %v9327, %v8612
  %v9410 = vsel %vm9392, %v9328, %v8614
  %v9411 = vsel %vm9392, %v9329, %v8616
  %v9412 = vsel %vm9392, %v9330, %v8618
  %v9413 = vsel %vm9392, %v9331, %v8620
  %v9414 = vsel %vm9392, %v9332, %v8622
  %v9415 = vsel %vm9392, %v9333, %v8624
  %v9416 = vsel %vm9392, %v9334, %v8626
  %v9417 = vsel %vm9392, %v9335, %v8628
  %v9418 = vsel %vm9392, %v9336, %v8630
  %v9419 = vsel %vm9392, %v9337, %v8632
  %v9420 = vsel %vm9392, %v9338, %v8634
  %v9421 = vsel %vm9392, %v9339, %v8636
  %v9422 = vsel %vm9392, %v9340, %v8638
  %v9423 = vsel %vm9392, %v9341, %v8640
  %v9424 = vsel %vm9392, %v9342, %v8642
  %v9425 = vsel %vm9392, %v9343, %v8644
  %v9426 = vsel %vm9392, %v9344, %v8646
  %v9427 = vsel %vm9392, %v9345, %v8648
  %v9428 = vsel %vm9392, %v9346, %v8650
  %v9429 = vsel %vm9392, %v9347, %v8652
  %v9430 = vsel %vm9392, %v9348, %v8654
  %v9431 = vsel %vm9392, %v9349, %v8656
  %v9432 = vsel %vm9392, %v9350, %v8658
  %v9433 = vsel %vm9392, %v9351, %v8660
  %v9434 = vsel %vm9392, %v9352, %v8662
  %v9435 = vsel %vm9392, %v9353, %v8664
  %v9436 = vsel %vm9392, %v9354, %v8666
  %v9437 = vsel %vm9392, %v9355, %v8668
  %v9438 = vsel %vm9392, %v9356, %v8670
  %v9439 = vsel %vm9392, %v9357, %v8672
  %v9440 = vsel %vm9392, %v9358, %v8674
  %v9441 = vsel %vm9392, %v9359, %v8676
  %v9442 = vsel %vm9392, %v9360, %v8678
  %v9443 = vsel %vm9392, %v9361, %v8680
  %v9444 = vsel %vm9392, %v9362, %v8682
  %v9445 = vsel %vm9392, %v9363, %v8684
  %v9446 = vsel %vm9392, %v9364, %v8686
  %v9447 = vsel %vm9392, %v9365, %v8688
  %v9448 = vsel %vm9392, %v9366, %v8690
  %v9449 = vsel %vm9392, %v9367, %v8692
  %v9450 = vsel %vm9392, %v9368, %v8694
  %v9451 = vsel %vm9392, %v9369, %v8696
  %v9452 = vsel %vm9392, %v9370, %v8698
  %v9453 = vsel %vm9392, %v9371, %v8700
  %v9454 = vsel %vm9392, %v9372, %v8702
  %v9455 = vsel %vm9392, %v9373, %v8704
  %v9456 = vsel %vm9392, %v9374, %v8706
  %v9457 = vsel %vm9392, %v9375, %v8708
  %v9458 = vsel %vm9392, %v9376, %v8710
  %v9459 = vsel %vm9392, %v9377, %v8712
  %v9460 = vsel %vm9392, %v9378, %v8714
  %v9461 = vsel %vm9392, %v9379, %v8716
  %v9462 = vsel %vm9392, %v9380, %v8718
  %v9463 = vsel %vm9392, %v9381, %v8720
  %v9464 = vsel %vm9392, %v9382, %v8722
  %v9465 = vsel %vm9392, %v9383, %v8724
  %v9466 = vsel %vm9392, %v9384, %v8726
  %v9467 = vsel %vm9392, %v9385, %v8728
  %v9468 = vsel %vm9392, %v9386, %v8730
  %v9469 = vsel %vm9392, %v9387, %v8732
  %v9470 = vsel %vm9392, %v9388, %v8734
  %v9471 = vsel %vm9392, %v9389, %v8736
  %v9472 = vsel %vm9392, %v9390, %v8738
  %v9473 = vsel %vm9392, %v9391, %v8740
  %v9474 = vpack.c.bf16 %v9394, %v9393
  %v9475 = vpack.c.bf16 %v9396, %v9395
  %v9476 = vpack.c.bf16 %v9398, %v9397
  %v9477 = vpack.c.bf16 %v9400, %v9399
  %v9478 = vpack.c.bf16 %v9402, %v9401
  %v9479 = vpack.c.bf16 %v9404, %v9403
  %v9480 = vpack.c.bf16 %v9406, %v9405
  %v9481 = vpack.c.bf16 %v9408, %v9407
  %v9482 = vpack.c.bf16 %v9410, %v9409
  %v9483 = vpack.c.bf16 %v9412, %v9411
  %v9484 = vpack.c.bf16 %v9414, %v9413
  %v9485 = vpack.c.bf16 %v9416, %v9415
  %v9486 = vpack.c.bf16 %v9418, %v9417
  %v9487 = vpack.c.bf16 %v9420, %v9419
  %v9488 = vpack.c.bf16 %v9422, %v9421
  %v9489 = vpack.c.bf16 %v9424, %v9423
  %v9490 = vpack.c.bf16 %v9426, %v9425
  %v9491 = vpack.c.bf16 %v9428, %v9427
  %v9492 = vpack.c.bf16 %v9430, %v9429
  %v9493 = vpack.c.bf16 %v9432, %v9431
  %v9494 = vpack.c.bf16 %v9434, %v9433
  %v9495 = vpack.c.bf16 %v9436, %v9435
  %v9496 = vpack.c.bf16 %v9438, %v9437
  %v9497 = vpack.c.bf16 %v9440, %v9439
  %v9498 = vpack.c.bf16 %v9442, %v9441
  %v9499 = vpack.c.bf16 %v9444, %v9443
  %v9500 = vpack.c.bf16 %v9446, %v9445
  %v9501 = vpack.c.bf16 %v9448, %v9447
  %v9502 = vpack.c.bf16 %v9450, %v9449
  %v9503 = vpack.c.bf16 %v9452, %v9451
  %v9504 = vpack.c.bf16 %v9454, %v9453
  %v9505 = vpack.c.bf16 %v9456, %v9455
  %v9506 = vpack.c.bf16 %v9458, %v9457
  %v9507 = vpack.c.bf16 %v9460, %v9459
  %v9508 = vpack.c.bf16 %v9462, %v9461
  %v9509 = vpack.c.bf16 %v9464, %v9463
  %v9510 = vpack.c.bf16 %v9466, %v9465
  %v9511 = vpack.c.bf16 %v9468, %v9467
  %v9512 = vpack.c.bf16 %v9470, %v9469
  %v9513 = vpack.c.bf16 %v9472, %v9471
  %v9514 = vpack.c.bf16 %v9473, %v9473
  %v9515 = vld [vmem:[%s5] sm:$0xf]
  %v9516 = vld [vmem:[%s5 + $0x4] sm:$0xf]
  %v9517 = vld [vmem:[%s5 + $0x8] sm:$0xf]
  %v9518 = vld [vmem:[%s5 + $0xc] sm:$0xf]
  %v9519 = vld [vmem:[%s5 + $0x10] sm:$0xf]
  %v9520 = vld [vmem:[%s5 + $0x14] sm:$0xf]
  %v9521 = vld [vmem:[%s5 + $0x18] sm:$0xf]
  %v9522 = vld [vmem:[%s5 + $0x1c] sm:$0xf]
  %v9523 = vld [vmem:[%s5 + $0x20] sm:$0xf]
  %v9533 = vunpack.c.l.b16 %v9515
  %v9534 = vunpack.c.l.b16 %v9516
  %v9535 = vunpack.c.l.b16 %v9517
  %v9536 = vunpack.c.l.b16 %v9518
  %v9537 = vunpack.c.l.b16 %v9519
  %v9538 = vunpack.c.l.b16 %v9520
  %v9539 = vunpack.c.l.b16 %v9521
  %v9540 = vunpack.c.l.b16 %v9522
  %v9541 = vunpack.c.l.b16 %v9523
  %v9542 = vpack.c.b16 %v9534, %v9533
  %v9543 = vpack.c.b16 %v9536, %v9535
  %v9544 = vpack.c.b16 %v9538, %v9537
  %v9545 = vpack.c.b16 %v9540, %v9539
  %v9546 = vpack.c.b16 %v9541, %v9541
  %vm9551 = vcmask 588800
  %v9553 = vsel %vm9551, %v9474, 0
  %v9556 = vsel %vm9551, %v9475, 0
  %v9559 = vsel %vm9551, %v9476, 0
  %v9562 = vsel %vm9551, %v9477, 0
  %v9565 = vsel %vm9551, %v9478, 0
  %v9568 = vsel %vm9551, %v9479, 0
  %v9571 = vsel %vm9551, %v9480, 0
  %v9574 = vsel %vm9551, %v9481, 0
  %v9577 = vsel %vm9551, %v9482, 0
  %v9580 = vsel %vm9551, %v9483, 0
  %v9583 = vsel %vm9551, %v9484, 0
  %v9586 = vsel %vm9551, %v9485, 0
  %v9589 = vsel %vm9551, %v9486, 0
  %v9592 = vsel %vm9551, %v9487, 0
  %v9595 = vsel %vm9551, %v9488, 0
  %v9598 = vsel %vm9551, %v9489, 0
  %v9601 = vsel %vm9551, %v9490, 0
  %v9604 = vsel %vm9551, %v9491, 0
  %v9607 = vsel %vm9551, %v9492, 0
  %v9610 = vsel %vm9551, %v9493, 0
  %v9613 = vsel %vm9551, %v9494, 0
  %v9616 = vsel %vm9551, %v9495, 0
  %v9619 = vsel %vm9551, %v9496, 0
  %v9622 = vsel %vm9551, %v9497, 0
  %v9625 = vsel %vm9551, %v9498, 0
  %v9628 = vsel %vm9551, %v9499, 0
  %v9631 = vsel %vm9551, %v9500, 0
  %v9634 = vsel %vm9551, %v9501, 0
  %v9637 = vsel %vm9551, %v9502, 0
  %v9640 = vsel %vm9551, %v9503, 0
  %v9643 = vsel %vm9551, %v9504, 0
  %v9646 = vsel %vm9551, %v9505, 0
  %v9649 = vsel %vm9551, %v9506, 0
  %v9652 = vsel %vm9551, %v9507, 0
  %v9655 = vsel %vm9551, %v9508, 0
  %v9658 = vsel %vm9551, %v9509, 0
  %v9661 = vsel %vm9551, %v9510, 0
  %v9664 = vsel %vm9551, %v9511, 0
  %v9667 = vsel %vm9551, %v9512, 0
  %v9670 = vsel %vm9551, %v9513, 0
  %v9673 = vsel %vm9551, %v9514, 0
  %vm9675 = vcmask 1043456
  %v9677 = vsel %vm9675, %v9546, 0
  %9679 = vmatprep.subr.bf16.mxu0 0
  %9680 = vmatpush1.bf16.msra.mxu0 0
  %9681 = vmatprep.subr.bf16.mxu0 0
  %9682 = vmatpush1.bf16.msra.mxu0 0
  %9683 = vmatprep.subr.bf16.mxu0 0
  %9684 = vmatpush1.bf16.msra.mxu0 0
  %9685 = vmatprep.subr.bf16.mxu0 0
  %9686 = vmatpush1.bf16.msra.mxu0 %v9677
  %9687 = vmatprep.subr.bf16.mxu0 0
  %9688 = vmatpush1.bf16.msra.mxu0 %v9545
  %9689 = vmatprep.subr.bf16.mxu0 0
  %9690 = vmatpush1.bf16.msra.mxu0 %v9544
  %9691 = vmatprep.subr.bf16.mxu0 0
  %9692 = vmatpush1.bf16.msra.mxu0 %v9543
  %9693 = vmatprep.subr.bf16.mxu0 0
  %9694 = vmatpush1.bf16.msra.mxu0 %v9542
  %9695 = vmatprep.subr.bf16.mxu0 0
  %9696 = vmatpush2.bf16.msra.mxu0 0
  %9697 = vmatprep.subr.bf16.mxu0 0
  %9698 = vmatpush2.bf16.msra.mxu0 0
  %9699 = vmatprep.subr.bf16.mxu0 0
  %9700 = vmatpush2.bf16.msra.mxu0 0
  %9701 = vmatprep.subr.bf16.mxu0 0
  %9702 = vmatpush2.bf16.msra.mxu0 0
  %9703 = vmatprep.subr.bf16.mxu0 0
  %9704 = vmatpush2.bf16.msra.mxu0 0
  %9705 = vmatprep.subr.bf16.mxu0 0
  %9706 = vmatpush2.bf16.msra.mxu0 0
  %9707 = vmatprep.subr.bf16.mxu0 0
  %9708 = vmatpush2.bf16.msra.mxu0 0
  %9709 = vmatprep.subr.bf16.mxu0 0
  %9710 = vmatpush2.bf16.msra.mxu0 0
  %9711 = vmatprep.mubr.bf16.mxu0 0
  %9712 = vmatmul.mubr.bf16.gmra.mxu0 %v9553
  %v9713 = vpop.f32.mrf.mxu0
  %v9714 = vadd.f32 0.0, %v9713
  %v9715 = vpop.f32.mrf.mxu0
  %v9716 = vpop.f32.mrf.mxu0
  %v9717 = vadd.f32 0.0, %v9716
  %v9718 = vpop.f32.mrf.mxu0
  %9719 = vmatprep.mubr.bf16.mxu0 0
  %9720 = vmatmul.mubr.bf16.gmra.mxu0 %v9556
  %v9721 = vpop.f32.mrf.mxu0
  %v9722 = vadd.f32 0.0, %v9721
  %v9723 = vpop.f32.mrf.mxu0
  %v9724 = vpop.f32.mrf.mxu0
  %v9725 = vadd.f32 0.0, %v9724
  %v9726 = vpop.f32.mrf.mxu0
  %9727 = vmatprep.mubr.bf16.mxu0 0
  %9728 = vmatmul.mubr.bf16.gmra.mxu0 %v9559
  %v9729 = vpop.f32.mrf.mxu0
  %v9730 = vadd.f32 0.0, %v9729
  %v9731 = vpop.f32.mrf.mxu0
  %v9732 = vpop.f32.mrf.mxu0
  %v9733 = vadd.f32 0.0, %v9732
  %v9734 = vpop.f32.mrf.mxu0
  %9735 = vmatprep.mubr.bf16.mxu0 0
  %9736 = vmatmul.mubr.bf16.gmra.mxu0 %v9562
  %v9737 = vpop.f32.mrf.mxu0
  %v9738 = vadd.f32 0.0, %v9737
  %v9739 = vpop.f32.mrf.mxu0
  %v9740 = vpop.f32.mrf.mxu0
  %v9741 = vadd.f32 0.0, %v9740
  %v9742 = vpop.f32.mrf.mxu0
  %9743 = vmatprep.mubr.bf16.mxu0 0
  %9744 = vmatmul.mubr.bf16.gmra.mxu0 %v9565
  %v9745 = vpop.f32.mrf.mxu0
  %v9746 = vadd.f32 0.0, %v9745
  %v9747 = vpop.f32.mrf.mxu0
  %v9748 = vpop.f32.mrf.mxu0
  %v9749 = vadd.f32 0.0, %v9748
  %v9750 = vpop.f32.mrf.mxu0
  %9751 = vmatprep.mubr.bf16.mxu0 0
  %9752 = vmatmul.mubr.bf16.gmra.mxu0 %v9568
  %v9753 = vpop.f32.mrf.mxu0
  %v9754 = vadd.f32 0.0, %v9753
  %v9755 = vpop.f32.mrf.mxu0
  %v9756 = vpop.f32.mrf.mxu0
  %v9757 = vadd.f32 0.0, %v9756
  %v9758 = vpop.f32.mrf.mxu0
  %9759 = vmatprep.mubr.bf16.mxu0 0
  %9760 = vmatmul.mubr.bf16.gmra.mxu0 %v9571
  %v9761 = vpop.f32.mrf.mxu0
  %v9762 = vadd.f32 0.0, %v9761
  %v9763 = vpop.f32.mrf.mxu0
  %v9764 = vpop.f32.mrf.mxu0
  %v9765 = vadd.f32 0.0, %v9764
  %v9766 = vpop.f32.mrf.mxu0
  %9767 = vmatprep.mubr.bf16.mxu0 0
  %9768 = vmatmul.mubr.bf16.gmra.mxu0 %v9574
  %v9769 = vpop.f32.mrf.mxu0
  %v9770 = vadd.f32 0.0, %v9769
  %v9771 = vpop.f32.mrf.mxu0
  %v9772 = vpop.f32.mrf.mxu0
  %v9773 = vadd.f32 0.0, %v9772
  %v9774 = vpop.f32.mrf.mxu0
  %9775 = vmatprep.mubr.bf16.mxu0 0
  %9776 = vmatmul.mubr.bf16.gmra.mxu0 %v9577
  %v9777 = vpop.f32.mrf.mxu0
  %v9778 = vadd.f32 0.0, %v9777
  %v9779 = vpop.f32.mrf.mxu0
  %v9780 = vpop.f32.mrf.mxu0
  %v9781 = vadd.f32 0.0, %v9780
  %v9782 = vpop.f32.mrf.mxu0
  %9783 = vmatprep.mubr.bf16.mxu0 0
  %9784 = vmatmul.mubr.bf16.gmra.mxu0 %v9580
  %v9785 = vpop.f32.mrf.mxu0
  %v9786 = vadd.f32 0.0, %v9785
  %v9787 = vpop.f32.mrf.mxu0
  %v9788 = vpop.f32.mrf.mxu0
  %v9789 = vadd.f32 0.0, %v9788
  %v9790 = vpop.f32.mrf.mxu0
  %9791 = vmatprep.mubr.bf16.mxu0 0
  %9792 = vmatmul.mubr.bf16.gmra.mxu0 %v9583
  %v9793 = vpop.f32.mrf.mxu0
  %v9794 = vadd.f32 0.0, %v9793
  %v9795 = vpop.f32.mrf.mxu0
  %v9796 = vpop.f32.mrf.mxu0
  %v9797 = vadd.f32 0.0, %v9796
  %v9798 = vpop.f32.mrf.mxu0
  %9799 = vmatprep.mubr.bf16.mxu0 0
  %9800 = vmatmul.mubr.bf16.gmra.mxu0 %v9586
  %v9801 = vpop.f32.mrf.mxu0
  %v9802 = vadd.f32 0.0, %v9801
  %v9803 = vpop.f32.mrf.mxu0
  %v9804 = vpop.f32.mrf.mxu0
  %v9805 = vadd.f32 0.0, %v9804
  %v9806 = vpop.f32.mrf.mxu0
  %9807 = vmatprep.mubr.bf16.mxu0 0
  %9808 = vmatmul.mubr.bf16.gmra.mxu0 %v9589
  %v9809 = vpop.f32.mrf.mxu0
  %v9810 = vadd.f32 0.0, %v9809
  %v9811 = vpop.f32.mrf.mxu0
  %v9812 = vpop.f32.mrf.mxu0
  %v9813 = vadd.f32 0.0, %v9812
  %v9814 = vpop.f32.mrf.mxu0
  %9815 = vmatprep.mubr.bf16.mxu0 0
  %9816 = vmatmul.mubr.bf16.gmra.mxu0 %v9592
  %v9817 = vpop.f32.mrf.mxu0
  %v9818 = vadd.f32 0.0, %v9817
  %v9819 = vpop.f32.mrf.mxu0
  %v9820 = vpop.f32.mrf.mxu0
  %v9821 = vadd.f32 0.0, %v9820
  %v9822 = vpop.f32.mrf.mxu0
  %9823 = vmatprep.mubr.bf16.mxu0 0
  %9824 = vmatmul.mubr.bf16.gmra.mxu0 %v9595
  %v9825 = vpop.f32.mrf.mxu0
  %v9826 = vadd.f32 0.0, %v9825
  %v9827 = vpop.f32.mrf.mxu0
  %v9828 = vpop.f32.mrf.mxu0
  %v9829 = vadd.f32 0.0, %v9828
  %v9830 = vpop.f32.mrf.mxu0
  %9831 = vmatprep.mubr.bf16.mxu0 0
  %9832 = vmatmul.mubr.bf16.gmra.mxu0 %v9598
  %v9833 = vpop.f32.mrf.mxu0
  %v9834 = vadd.f32 0.0, %v9833
  %v9835 = vpop.f32.mrf.mxu0
  %v9836 = vpop.f32.mrf.mxu0
  %v9837 = vadd.f32 0.0, %v9836
  %v9838 = vpop.f32.mrf.mxu0
  %9839 = vmatprep.mubr.bf16.mxu0 0
  %9840 = vmatmul.mubr.bf16.gmra.mxu0 %v9601
  %v9841 = vpop.f32.mrf.mxu0
  %v9842 = vadd.f32 0.0, %v9841
  %v9843 = vpop.f32.mrf.mxu0
  %v9844 = vpop.f32.mrf.mxu0
  %v9845 = vadd.f32 0.0, %v9844
  %v9846 = vpop.f32.mrf.mxu0
  %9847 = vmatprep.mubr.bf16.mxu0 0
  %9848 = vmatmul.mubr.bf16.gmra.mxu0 %v9604
  %v9849 = vpop.f32.mrf.mxu0
  %v9850 = vadd.f32 0.0, %v9849
  %v9851 = vpop.f32.mrf.mxu0
  %v9852 = vpop.f32.mrf.mxu0
  %v9853 = vadd.f32 0.0, %v9852
  %v9854 = vpop.f32.mrf.mxu0
  %9855 = vmatprep.mubr.bf16.mxu0 0
  %9856 = vmatmul.mubr.bf16.gmra.mxu0 %v9607
  %v9857 = vpop.f32.mrf.mxu0
  %v9858 = vadd.f32 0.0, %v9857
  %v9859 = vpop.f32.mrf.mxu0
  %v9860 = vpop.f32.mrf.mxu0
  %v9861 = vadd.f32 0.0, %v9860
  %v9862 = vpop.f32.mrf.mxu0
  %9863 = vmatprep.mubr.bf16.mxu0 0
  %9864 = vmatmul.mubr.bf16.gmra.mxu0 %v9610
  %v9865 = vpop.f32.mrf.mxu0
  %v9866 = vadd.f32 0.0, %v9865
  %v9867 = vpop.f32.mrf.mxu0
  %v9868 = vpop.f32.mrf.mxu0
  %v9869 = vadd.f32 0.0, %v9868
  %v9870 = vpop.f32.mrf.mxu0
  %9871 = vmatprep.mubr.bf16.mxu0 0
  %9872 = vmatmul.mubr.bf16.gmra.mxu0 %v9613
  %v9873 = vpop.f32.mrf.mxu0
  %v9874 = vadd.f32 0.0, %v9873
  %v9875 = vpop.f32.mrf.mxu0
  %v9876 = vpop.f32.mrf.mxu0
  %v9877 = vadd.f32 0.0, %v9876
  %v9878 = vpop.f32.mrf.mxu0
  %9879 = vmatprep.mubr.bf16.mxu0 0
  %9880 = vmatmul.mubr.bf16.gmra.mxu0 %v9616
  %v9881 = vpop.f32.mrf.mxu0
  %v9882 = vadd.f32 0.0, %v9881
  %v9883 = vpop.f32.mrf.mxu0
  %v9884 = vpop.f32.mrf.mxu0
  %v9885 = vadd.f32 0.0, %v9884
  %v9886 = vpop.f32.mrf.mxu0
  %9887 = vmatprep.mubr.bf16.mxu0 0
  %9888 = vmatmul.mubr.bf16.gmra.mxu0 %v9619
  %v9889 = vpop.f32.mrf.mxu0
  %v9890 = vadd.f32 0.0, %v9889
  %v9891 = vpop.f32.mrf.mxu0
  %v9892 = vpop.f32.mrf.mxu0
  %v9893 = vadd.f32 0.0, %v9892
  %v9894 = vpop.f32.mrf.mxu0
  %9895 = vmatprep.mubr.bf16.mxu0 0
  %9896 = vmatmul.mubr.bf16.gmra.mxu0 %v9622
  %v9897 = vpop.f32.mrf.mxu0
  %v9898 = vadd.f32 0.0, %v9897
  %v9899 = vpop.f32.mrf.mxu0
  %v9900 = vpop.f32.mrf.mxu0
  %v9901 = vadd.f32 0.0, %v9900
  %v9902 = vpop.f32.mrf.mxu0
  %9903 = vmatprep.mubr.bf16.mxu0 0
  %9904 = vmatmul.mubr.bf16.gmra.mxu0 %v9625
  %v9905 = vpop.f32.mrf.mxu0
  %v9906 = vadd.f32 0.0, %v9905
  %v9907 = vpop.f32.mrf.mxu0
  %v9908 = vpop.f32.mrf.mxu0
  %v9909 = vadd.f32 0.0, %v9908
  %v9910 = vpop.f32.mrf.mxu0
  %9911 = vmatprep.mubr.bf16.mxu0 0
  %9912 = vmatmul.mubr.bf16.gmra.mxu0 %v9628
  %v9913 = vpop.f32.mrf.mxu0
  %v9914 = vadd.f32 0.0, %v9913
  %v9915 = vpop.f32.mrf.mxu0
  %v9916 = vpop.f32.mrf.mxu0
  %v9917 = vadd.f32 0.0, %v9916
  %v9918 = vpop.f32.mrf.mxu0
  %9919 = vmatprep.mubr.bf16.mxu0 0
  %9920 = vmatmul.mubr.bf16.gmra.mxu0 %v9631
  %v9921 = vpop.f32.mrf.mxu0
  %v9922 = vadd.f32 0.0, %v9921
  %v9923 = vpop.f32.mrf.mxu0
  %v9924 = vpop.f32.mrf.mxu0
  %v9925 = vadd.f32 0.0, %v9924
  %v9926 = vpop.f32.mrf.mxu0
  %9927 = vmatprep.mubr.bf16.mxu0 0
  %9928 = vmatmul.mubr.bf16.gmra.mxu0 %v9634
  %v9929 = vpop.f32.mrf.mxu0
  %v9930 = vadd.f32 0.0, %v9929
  %v9931 = vpop.f32.mrf.mxu0
  %v9932 = vpop.f32.mrf.mxu0
  %v9933 = vadd.f32 0.0, %v9932
  %v9934 = vpop.f32.mrf.mxu0
  %9935 = vmatprep.mubr.bf16.mxu0 0
  %9936 = vmatmul.mubr.bf16.gmra.mxu0 %v9637
  %v9937 = vpop.f32.mrf.mxu0
  %v9938 = vadd.f32 0.0, %v9937
  %v9939 = vpop.f32.mrf.mxu0
  %v9940 = vpop.f32.mrf.mxu0
  %v9941 = vadd.f32 0.0, %v9940
  %v9942 = vpop.f32.mrf.mxu0
  %9943 = vmatprep.mubr.bf16.mxu0 0
  %9944 = vmatmul.mubr.bf16.gmra.mxu0 %v9640
  %v9945 = vpop.f32.mrf.mxu0
  %v9946 = vadd.f32 0.0, %v9945
  %v9947 = vpop.f32.mrf.mxu0
  %v9948 = vpop.f32.mrf.mxu0
  %v9949 = vadd.f32 0.0, %v9948
  %v9950 = vpop.f32.mrf.mxu0
  %9951 = vmatprep.mubr.bf16.mxu0 0
  %9952 = vmatmul.mubr.bf16.gmra.mxu0 %v9643
  %v9953 = vpop.f32.mrf.mxu0
  %v9954 = vadd.f32 0.0, %v9953
  %v9955 = vpop.f32.mrf.mxu0
  %v9956 = vpop.f32.mrf.mxu0
  %v9957 = vadd.f32 0.0, %v9956
  %v9958 = vpop.f32.mrf.mxu0
  %9959 = vmatprep.mubr.bf16.mxu0 0
  %9960 = vmatmul.mubr.bf16.gmra.mxu0 %v9646
  %v9961 = vpop.f32.mrf.mxu0
  %v9962 = vadd.f32 0.0, %v9961
  %v9963 = vpop.f32.mrf.mxu0
  %v9964 = vpop.f32.mrf.mxu0
  %v9965 = vadd.f32 0.0, %v9964
  %v9966 = vpop.f32.mrf.mxu0
  %9967 = vmatprep.mubr.bf16.mxu0 0
  %9968 = vmatmul.mubr.bf16.gmra.mxu0 %v9649
  %v9969 = vpop.f32.mrf.mxu0
  %v9970 = vadd.f32 0.0, %v9969
  %v9971 = vpop.f32.mrf.mxu0
  %v9972 = vpop.f32.mrf.mxu0
  %v9973 = vadd.f32 0.0, %v9972
  %v9974 = vpop.f32.mrf.mxu0
  %9975 = vmatprep.mubr.bf16.mxu0 0
  %9976 = vmatmul.mubr.bf16.gmra.mxu0 %v9652
  %v9977 = vpop.f32.mrf.mxu0
  %v9978 = vadd.f32 0.0, %v9977
  %v9979 = vpop.f32.mrf.mxu0
  %v9980 = vpop.f32.mrf.mxu0
  %v9981 = vadd.f32 0.0, %v9980
  %v9982 = vpop.f32.mrf.mxu0
  %9983 = vmatprep.mubr.bf16.mxu0 0
  %9984 = vmatmul.mubr.bf16.gmra.mxu0 %v9655
  %v9985 = vpop.f32.mrf.mxu0
  %v9986 = vadd.f32 0.0, %v9985
  %v9987 = vpop.f32.mrf.mxu0
  %v9988 = vpop.f32.mrf.mxu0
  %v9989 = vadd.f32 0.0, %v9988
  %v9990 = vpop.f32.mrf.mxu0
  %9991 = vmatprep.mubr.bf16.mxu0 0
  %9992 = vmatmul.mubr.bf16.gmra.mxu0 %v9658
  %v9993 = vpop.f32.mrf.mxu0
  %v9994 = vadd.f32 0.0, %v9993
  %v9995 = vpop.f32.mrf.mxu0
  %v9996 = vpop.f32.mrf.mxu0
  %v9997 = vadd.f32 0.0, %v9996
  %v9998 = vpop.f32.mrf.mxu0
  %9999 = vmatprep.mubr.bf16.mxu0 0
  %10000 = vmatmul.mubr.bf16.gmra.mxu0 %v9661
  %v10001 = vpop.f32.mrf.mxu0
  %v10002 = vadd.f32 0.0, %v10001
  %v10003 = vpop.f32.mrf.mxu0
  %v10004 = vpop.f32.mrf.mxu0
  %v10005 = vadd.f32 0.0, %v10004
  %v10006 = vpop.f32.mrf.mxu0
  %10007 = vmatprep.mubr.bf16.mxu0 0
  %10008 = vmatmul.mubr.bf16.gmra.mxu0 %v9664
  %v10009 = vpop.f32.mrf.mxu0
  %v10010 = vadd.f32 0.0, %v10009
  %v10011 = vpop.f32.mrf.mxu0
  %v10012 = vpop.f32.mrf.mxu0
  %v10013 = vadd.f32 0.0, %v10012
  %v10014 = vpop.f32.mrf.mxu0
  %10015 = vmatprep.mubr.bf16.mxu0 0
  %10016 = vmatmul.mubr.bf16.gmra.mxu0 %v9667
  %v10017 = vpop.f32.mrf.mxu0
  %v10018 = vadd.f32 0.0, %v10017
  %v10019 = vpop.f32.mrf.mxu0
  %v10020 = vpop.f32.mrf.mxu0
  %v10021 = vadd.f32 0.0, %v10020
  %v10022 = vpop.f32.mrf.mxu0
  %10023 = vmatprep.mubr.bf16.mxu0 0
  %10024 = vmatmul.mubr.bf16.gmra.mxu0 %v9670
  %v10025 = vpop.f32.mrf.mxu0
  %v10026 = vadd.f32 0.0, %v10025
  %v10027 = vpop.f32.mrf.mxu0
  %v10028 = vpop.f32.mrf.mxu0
  %v10029 = vadd.f32 0.0, %v10028
  %v10030 = vpop.f32.mrf.mxu0
  %10031 = vmatprep.mubr.bf16.mxu0 0
  %10032 = vmatmul.mubr.bf16.gmra.mxu0 %v9673
  %v10033 = vpop.f32.mrf.mxu0
  %v10034 = vadd.f32 0.0, %v10033
  %v10035 = vpop.f32.mrf.mxu0
  %v10036 = vpop.f32.mrf.mxu0
  %v10037 = vpop.f32.mrf.mxu0
  %10038 = vdwg.mxu0
  %v10039 = vmul.f32 %v9714, %v4324
  %v10040 = vmul.f32 %v9717, %v4329
  %v10041 = vmul.f32 %v9722, %v4334
  %v10042 = vmul.f32 %v9725, %v4339
  %v10043 = vmul.f32 %v9730, %v4344
  %v10044 = vmul.f32 %v9733, %v4349
  %v10045 = vmul.f32 %v9738, %v4354
  %v10046 = vmul.f32 %v9741, %v4359
  %v10047 = vmul.f32 %v9746, %v4364
  %v10048 = vmul.f32 %v9749, %v4369
  %v10049 = vmul.f32 %v9754, %v4374
  %v10050 = vmul.f32 %v9757, %v4379
  %v10051 = vmul.f32 %v9762, %v4384
  %v10052 = vmul.f32 %v9765, %v4389
  %v10053 = vmul.f32 %v9770, %v4394
  %v10054 = vmul.f32 %v9773, %v4399
  %v10055 = vmul.f32 %v9778, %v4404
  %v10056 = vmul.f32 %v9781, %v4409
  %v10057 = vmul.f32 %v9786, %v4414
  %v10058 = vmul.f32 %v9789, %v4419
  %v10059 = vmul.f32 %v9794, %v4424
  %v10060 = vmul.f32 %v9797, %v4429
  %v10061 = vmul.f32 %v9802, %v4434
  %v10062 = vmul.f32 %v9805, %v4439
  %v10063 = vmul.f32 %v9810, %v4444
  %v10064 = vmul.f32 %v9813, %v4449
  %v10065 = vmul.f32 %v9818, %v4454
  %v10066 = vmul.f32 %v9821, %v4459
  %v10067 = vmul.f32 %v9826, %v4464
  %v10068 = vmul.f32 %v9829, %v4469
  %v10069 = vmul.f32 %v9834, %v4474
  %v10070 = vmul.f32 %v9837, %v4479
  %v10071 = vmul.f32 %v9842, %v4484
  %v10072 = vmul.f32 %v9845, %v4489
  %v10073 = vmul.f32 %v9850, %v4494
  %v10074 = vmul.f32 %v9853, %v4499
  %v10075 = vmul.f32 %v9858, %v4504
  %v10076 = vmul.f32 %v9861, %v4509
  %v10077 = vmul.f32 %v9866, %v4514
  %v10078 = vmul.f32 %v9869, %v4519
  %v10079 = vmul.f32 %v9874, %v4524
  %v10080 = vmul.f32 %v9877, %v4529
  %v10081 = vmul.f32 %v9882, %v4534
  %v10082 = vmul.f32 %v9885, %v4539
  %v10083 = vmul.f32 %v9890, %v4544
  %v10084 = vmul.f32 %v9893, %v4549
  %v10085 = vmul.f32 %v9898, %v4554
  %v10086 = vmul.f32 %v9901, %v4559
  %v10087 = vmul.f32 %v9906, %v4564
  %v10088 = vmul.f32 %v9909, %v4569
  %v10089 = vmul.f32 %v9914, %v4574
  %v10090 = vmul.f32 %v9917, %v4579
  %v10091 = vmul.f32 %v9922, %v4584
  %v10092 = vmul.f32 %v9925, %v4589
  %v10093 = vmul.f32 %v9930, %v4594
  %v10094 = vmul.f32 %v9933, %v4599
  %v10095 = vmul.f32 %v9938, %v4604
  %v10096 = vmul.f32 %v9941, %v4609
  %v10097 = vmul.f32 %v9946, %v4614
  %v10098 = vmul.f32 %v9949, %v4619
  %v10099 = vmul.f32 %v9954, %v4624
  %v10100 = vmul.f32 %v9957, %v4629
  %v10101 = vmul.f32 %v9962, %v4634
  %v10102 = vmul.f32 %v9965, %v4639
  %v10103 = vmul.f32 %v9970, %v4644
  %v10104 = vmul.f32 %v9973, %v4649
  %v10105 = vmul.f32 %v9978, %v4654
  %v10106 = vmul.f32 %v9981, %v4659
  %v10107 = vmul.f32 %v9986, %v4664
  %v10108 = vmul.f32 %v9989, %v4669
  %v10109 = vmul.f32 %v9994, %v4674
  %v10110 = vmul.f32 %v9997, %v4679
  %v10111 = vmul.f32 %v10002, %v4684
  %v10112 = vmul.f32 %v10005, %v4689
  %v10113 = vmul.f32 %v10010, %v4694
  %v10114 = vmul.f32 %v10013, %v4699
  %v10115 = vmul.f32 %v10018, %v4704
  %v10116 = vmul.f32 %v10021, %v4709
  %v10117 = vmul.f32 %v10026, %v4714
  %v10118 = vmul.f32 %v10029, %v4719
  %v10119 = vmul.f32 %v10034, %v4724
  %v10120 = vld [vmem:[%s6] sm:$0x1]
  %v10121 = vld [vmem:[%s7] sm:$0x1]
  %v10122 = vsel %vm3198, %v10039, 0.0
  %v10123 = vsel %vm3198, %v10040, 0.0
  %v10124 = vadd.f32 %v10122, %v10123
  %v10125 = vsel %vm3198, %v10041, 0.0
  %v10126 = vadd.f32 %v10124, %v10125
  %v10127 = vsel %vm3198, %v10042, 0.0
  %v10128 = vadd.f32 %v10126, %v10127
  %v10129 = vsel %vm3198, %v10043, 0.0
  %v10130 = vadd.f32 %v10128, %v10129
  %v10131 = vsel %vm3198, %v10044, 0.0
  %v10132 = vadd.f32 %v10130, %v10131
  %v10133 = vsel %vm3198, %v10045, 0.0
  %v10134 = vadd.f32 %v10132, %v10133
  %v10135 = vsel %vm3198, %v10046, 0.0
  %v10136 = vadd.f32 %v10134, %v10135
  %v10137 = vsel %vm3198, %v10047, 0.0
  %v10138 = vadd.f32 %v10136, %v10137
  %v10139 = vsel %vm3198, %v10048, 0.0
  %v10140 = vadd.f32 %v10138, %v10139
  %v10141 = vsel %vm3198, %v10049, 0.0
  %v10142 = vadd.f32 %v10140, %v10141
  %v10143 = vsel %vm3198, %v10050, 0.0
  %v10144 = vadd.f32 %v10142, %v10143
  %v10145 = vsel %vm3198, %v10051, 0.0
  %v10146 = vadd.f32 %v10144, %v10145
  %v10147 = vsel %vm3198, %v10052, 0.0
  %v10148 = vadd.f32 %v10146, %v10147
  %v10149 = vsel %vm3198, %v10053, 0.0
  %v10150 = vadd.f32 %v10148, %v10149
  %v10151 = vsel %vm3198, %v10054, 0.0
  %v10152 = vadd.f32 %v10150, %v10151
  %v10153 = vsel %vm3198, %v10055, 0.0
  %v10154 = vadd.f32 %v10152, %v10153
  %v10155 = vsel %vm3198, %v10056, 0.0
  %v10156 = vadd.f32 %v10154, %v10155
  %v10157 = vsel %vm3198, %v10057, 0.0
  %v10158 = vadd.f32 %v10156, %v10157
  %v10159 = vsel %vm3198, %v10058, 0.0
  %v10160 = vadd.f32 %v10158, %v10159
  %v10161 = vsel %vm3198, %v10059, 0.0
  %v10162 = vadd.f32 %v10160, %v10161
  %v10163 = vsel %vm3198, %v10060, 0.0
  %v10164 = vadd.f32 %v10162, %v10163
  %v10165 = vsel %vm3198, %v10061, 0.0
  %v10166 = vadd.f32 %v10164, %v10165
  %v10167 = vsel %vm3198, %v10062, 0.0
  %v10168 = vadd.f32 %v10166, %v10167
  %v10169 = vsel %vm3198, %v10063, 0.0
  %v10170 = vadd.f32 %v10168, %v10169
  %v10171 = vsel %vm3198, %v10064, 0.0
  %v10172 = vadd.f32 %v10170, %v10171
  %v10173 = vsel %vm3198, %v10065, 0.0
  %v10174 = vadd.f32 %v10172, %v10173
  %v10175 = vsel %vm3198, %v10066, 0.0
  %v10176 = vadd.f32 %v10174, %v10175
  %v10177 = vsel %vm3198, %v10067, 0.0
  %v10178 = vadd.f32 %v10176, %v10177
  %v10179 = vsel %vm3198, %v10068, 0.0
  %v10180 = vadd.f32 %v10178, %v10179
  %v10181 = vsel %vm3198, %v10069, 0.0
  %v10182 = vadd.f32 %v10180, %v10181
  %v10183 = vsel %vm3198, %v10070, 0.0
  %v10184 = vadd.f32 %v10182, %v10183
  %v10185 = vsel %vm3198, %v10071, 0.0
  %v10186 = vadd.f32 %v10184, %v10185
  %v10187 = vsel %vm3198, %v10072, 0.0
  %v10188 = vadd.f32 %v10186, %v10187
  %v10189 = vsel %vm3198, %v10073, 0.0
  %v10190 = vadd.f32 %v10188, %v10189
  %v10191 = vsel %vm3198, %v10074, 0.0
  %v10192 = vadd.f32 %v10190, %v10191
  %v10193 = vsel %vm3198, %v10075, 0.0
  %v10194 = vadd.f32 %v10192, %v10193
  %v10195 = vsel %vm3198, %v10076, 0.0
  %v10196 = vadd.f32 %v10194, %v10195
  %v10197 = vsel %vm3198, %v10077, 0.0
  %v10198 = vadd.f32 %v10196, %v10197
  %v10199 = vsel %vm3198, %v10078, 0.0
  %v10200 = vadd.f32 %v10198, %v10199
  %v10201 = vsel %vm3198, %v10079, 0.0
  %v10202 = vadd.f32 %v10200, %v10201
  %v10203 = vsel %vm3198, %v10080, 0.0
  %v10204 = vadd.f32 %v10202, %v10203
  %v10205 = vsel %vm3198, %v10081, 0.0
  %v10206 = vadd.f32 %v10204, %v10205
  %v10207 = vsel %vm3198, %v10082, 0.0
  %v10208 = vadd.f32 %v10206, %v10207
  %v10209 = vsel %vm3198, %v10083, 0.0
  %v10210 = vadd.f32 %v10208, %v10209
  %v10211 = vsel %vm3198, %v10084, 0.0
  %v10212 = vadd.f32 %v10210, %v10211
  %v10213 = vsel %vm3198, %v10085, 0.0
  %v10214 = vadd.f32 %v10212, %v10213
  %v10215 = vsel %vm3198, %v10086, 0.0
  %v10216 = vadd.f32 %v10214, %v10215
  %v10217 = vsel %vm3198, %v10087, 0.0
  %v10218 = vadd.f32 %v10216, %v10217
  %v10219 = vsel %vm3198, %v10088, 0.0
  %v10220 = vadd.f32 %v10218, %v10219
  %v10221 = vsel %vm3198, %v10089, 0.0
  %v10222 = vadd.f32 %v10220, %v10221
  %v10223 = vsel %vm3198, %v10090, 0.0
  %v10224 = vadd.f32 %v10222, %v10223
  %v10225 = vsel %vm3198, %v10091, 0.0
  %v10226 = vadd.f32 %v10224, %v10225
  %v10227 = vsel %vm3198, %v10092, 0.0
  %v10228 = vadd.f32 %v10226, %v10227
  %v10229 = vsel %vm3198, %v10093, 0.0
  %v10230 = vadd.f32 %v10228, %v10229
  %v10231 = vsel %vm3198, %v10094, 0.0
  %v10232 = vadd.f32 %v10230, %v10231
  %v10233 = vsel %vm3198, %v10095, 0.0
  %v10234 = vadd.f32 %v10232, %v10233
  %v10235 = vsel %vm3198, %v10096, 0.0
  %v10236 = vadd.f32 %v10234, %v10235
  %v10237 = vsel %vm3198, %v10097, 0.0
  %v10238 = vadd.f32 %v10236, %v10237
  %v10239 = vsel %vm3198, %v10098, 0.0
  %v10240 = vadd.f32 %v10238, %v10239
  %v10241 = vsel %vm3198, %v10099, 0.0
  %v10242 = vadd.f32 %v10240, %v10241
  %v10243 = vsel %vm3198, %v10100, 0.0
  %v10244 = vadd.f32 %v10242, %v10243
  %v10245 = vsel %vm3198, %v10101, 0.0
  %v10246 = vadd.f32 %v10244, %v10245
  %v10247 = vsel %vm3198, %v10102, 0.0
  %v10248 = vadd.f32 %v10246, %v10247
  %v10249 = vsel %vm3198, %v10103, 0.0
  %v10250 = vadd.f32 %v10248, %v10249
  %v10251 = vsel %vm3198, %v10104, 0.0
  %v10252 = vadd.f32 %v10250, %v10251
  %v10253 = vsel %vm3198, %v10105, 0.0
  %v10254 = vadd.f32 %v10252, %v10253
  %v10255 = vsel %vm3198, %v10106, 0.0
  %v10256 = vadd.f32 %v10254, %v10255
  %v10257 = vsel %vm3198, %v10107, 0.0
  %v10258 = vadd.f32 %v10256, %v10257
  %v10259 = vsel %vm3198, %v10108, 0.0
  %v10260 = vadd.f32 %v10258, %v10259
  %v10261 = vsel %vm3198, %v10109, 0.0
  %v10262 = vadd.f32 %v10260, %v10261
  %v10263 = vsel %vm3198, %v10110, 0.0
  %v10264 = vadd.f32 %v10262, %v10263
  %v10265 = vsel %vm3198, %v10111, 0.0
  %v10266 = vadd.f32 %v10264, %v10265
  %v10267 = vsel %vm3198, %v10112, 0.0
  %v10268 = vadd.f32 %v10266, %v10267
  %v10269 = vsel %vm3198, %v10113, 0.0
  %v10270 = vadd.f32 %v10268, %v10269
  %v10271 = vsel %vm3198, %v10114, 0.0
  %v10272 = vadd.f32 %v10270, %v10271
  %v10273 = vsel %vm3198, %v10115, 0.0
  %v10274 = vadd.f32 %v10272, %v10273
  %v10275 = vsel %vm3198, %v10116, 0.0
  %v10276 = vadd.f32 %v10274, %v10275
  %v10277 = vsel %vm3198, %v10117, 0.0
  %v10278 = vadd.f32 %v10276, %v10277
  %v10279 = vsel %vm3198, %v10118, 0.0
  %v10280 = vadd.f32 %v10278, %v10279
  %v10281 = vsel %vm3198, %v10119, 0.0
  %v10282 = vadd.f32 %v10280, %v10281
  %v10283 = vrot.slane %v10282, 4
  %v10284 = vadd.f32 %v10282, %v10283
  %v10285 = vrot.slane %v10284, 2
  %v10286 = vadd.f32 %v10284, %v10285
  %v10287 = vrot.slane %v10286, 1
  %v10288 = vadd.f32 %v10286, %v10287
  %v10289 = vmul.f32 %v10039, %v10039
  %v10290 = vmul.f32 %v10040, %v10040
  %v10291 = vmul.f32 %v10041, %v10041
  %v10292 = vmul.f32 %v10042, %v10042
  %v10293 = vmul.f32 %v10043, %v10043
  %v10294 = vmul.f32 %v10044, %v10044
  %v10295 = vmul.f32 %v10045, %v10045
  %v10296 = vmul.f32 %v10046, %v10046
  %v10297 = vmul.f32 %v10047, %v10047
  %v10298 = vmul.f32 %v10048, %v10048
  %v10299 = vmul.f32 %v10049, %v10049
  %v10300 = vmul.f32 %v10050, %v10050
  %v10301 = vmul.f32 %v10051, %v10051
  %v10302 = vmul.f32 %v10052, %v10052
  %v10303 = vmul.f32 %v10053, %v10053
  %v10304 = vmul.f32 %v10054, %v10054
  %v10305 = vmul.f32 %v10055, %v10055
  %v10306 = vmul.f32 %v10056, %v10056
  %v10307 = vmul.f32 %v10057, %v10057
  %v10308 = vmul.f32 %v10058, %v10058
  %v10309 = vmul.f32 %v10059, %v10059
  %v10310 = vmul.f32 %v10060, %v10060
  %v10311 = vmul.f32 %v10061, %v10061
  %v10312 = vmul.f32 %v10062, %v10062
  %v10313 = vmul.f32 %v10063, %v10063
  %v10314 = vmul.f32 %v10064, %v10064
  %v10315 = vmul.f32 %v10065, %v10065
  %v10316 = vmul.f32 %v10066, %v10066
  %v10317 = vmul.f32 %v10067, %v10067
  %v10318 = vmul.f32 %v10068, %v10068
  %v10319 = vmul.f32 %v10069, %v10069
  %v10320 = vmul.f32 %v10070, %v10070
  %v10321 = vmul.f32 %v10071, %v10071
  %v10322 = vmul.f32 %v10072, %v10072
  %v10323 = vmul.f32 %v10073, %v10073
  %v10324 = vmul.f32 %v10074, %v10074
  %v10325 = vmul.f32 %v10075, %v10075
  %v10326 = vmul.f32 %v10076, %v10076
  %v10327 = vmul.f32 %v10077, %v10077
  %v10328 = vmul.f32 %v10078, %v10078
  %v10329 = vmul.f32 %v10079, %v10079
  %v10330 = vmul.f32 %v10080, %v10080
  %v10331 = vmul.f32 %v10081, %v10081
  %v10332 = vmul.f32 %v10082, %v10082
  %v10333 = vmul.f32 %v10083, %v10083
  %v10334 = vmul.f32 %v10084, %v10084
  %v10335 = vmul.f32 %v10085, %v10085
  %v10336 = vmul.f32 %v10086, %v10086
  %v10337 = vmul.f32 %v10087, %v10087
  %v10338 = vmul.f32 %v10088, %v10088
  %v10339 = vmul.f32 %v10089, %v10089
  %v10340 = vmul.f32 %v10090, %v10090
  %v10341 = vmul.f32 %v10091, %v10091
  %v10342 = vmul.f32 %v10092, %v10092
  %v10343 = vmul.f32 %v10093, %v10093
  %v10344 = vmul.f32 %v10094, %v10094
  %v10345 = vmul.f32 %v10095, %v10095
  %v10346 = vmul.f32 %v10096, %v10096
  %v10347 = vmul.f32 %v10097, %v10097
  %v10348 = vmul.f32 %v10098, %v10098
  %v10349 = vmul.f32 %v10099, %v10099
  %v10350 = vmul.f32 %v10100, %v10100
  %v10351 = vmul.f32 %v10101, %v10101
  %v10352 = vmul.f32 %v10102, %v10102
  %v10353 = vmul.f32 %v10103, %v10103
  %v10354 = vmul.f32 %v10104, %v10104
  %v10355 = vmul.f32 %v10105, %v10105
  %v10356 = vmul.f32 %v10106, %v10106
  %v10357 = vmul.f32 %v10107, %v10107
  %v10358 = vmul.f32 %v10108, %v10108
  %v10359 = vmul.f32 %v10109, %v10109
  %v10360 = vmul.f32 %v10110, %v10110
  %v10361 = vmul.f32 %v10111, %v10111
  %v10362 = vmul.f32 %v10112, %v10112
  %v10363 = vmul.f32 %v10113, %v10113
  %v10364 = vmul.f32 %v10114, %v10114
  %v10365 = vmul.f32 %v10115, %v10115
  %v10366 = vmul.f32 %v10116, %v10116
  %v10367 = vmul.f32 %v10117, %v10117
  %v10368 = vmul.f32 %v10118, %v10118
  %v10369 = vmul.f32 %v10119, %v10119
  %v10370 = vsel %vm3198, %v10289, 0.0
  %v10371 = vsel %vm3198, %v10290, 0.0
  %v10372 = vadd.f32 %v10370, %v10371
  %v10373 = vsel %vm3198, %v10291, 0.0
  %v10374 = vadd.f32 %v10372, %v10373
  %v10375 = vsel %vm3198, %v10292, 0.0
  %v10376 = vadd.f32 %v10374, %v10375
  %v10377 = vsel %vm3198, %v10293, 0.0
  %v10378 = vadd.f32 %v10376, %v10377
  %v10379 = vsel %vm3198, %v10294, 0.0
  %v10380 = vadd.f32 %v10378, %v10379
  %v10381 = vsel %vm3198, %v10295, 0.0
  %v10382 = vadd.f32 %v10380, %v10381
  %v10383 = vsel %vm3198, %v10296, 0.0
  %v10384 = vadd.f32 %v10382, %v10383
  %v10385 = vsel %vm3198, %v10297, 0.0
  %v10386 = vadd.f32 %v10384, %v10385
  %v10387 = vsel %vm3198, %v10298, 0.0
  %v10388 = vadd.f32 %v10386, %v10387
  %v10389 = vsel %vm3198, %v10299, 0.0
  %v10390 = vadd.f32 %v10388, %v10389
  %v10391 = vsel %vm3198, %v10300, 0.0
  %v10392 = vadd.f32 %v10390, %v10391
  %v10393 = vsel %vm3198, %v10301, 0.0
  %v10394 = vadd.f32 %v10392, %v10393
  %v10395 = vsel %vm3198, %v10302, 0.0
  %v10396 = vadd.f32 %v10394, %v10395
  %v10397 = vsel %vm3198, %v10303, 0.0
  %v10398 = vadd.f32 %v10396, %v10397
  %v10399 = vsel %vm3198, %v10304, 0.0
  %v10400 = vadd.f32 %v10398, %v10399
  %v10401 = vsel %vm3198, %v10305, 0.0
  %v10402 = vadd.f32 %v10400, %v10401
  %v10403 = vsel %vm3198, %v10306, 0.0
  %v10404 = vadd.f32 %v10402, %v10403
  %v10405 = vsel %vm3198, %v10307, 0.0
  %v10406 = vadd.f32 %v10404, %v10405
  %v10407 = vsel %vm3198, %v10308, 0.0
  %v10408 = vadd.f32 %v10406, %v10407
  %v10409 = vsel %vm3198, %v10309, 0.0
  %v10410 = vadd.f32 %v10408, %v10409
  %v10411 = vsel %vm3198, %v10310, 0.0
  %v10412 = vadd.f32 %v10410, %v10411
  %v10413 = vsel %vm3198, %v10311, 0.0
  %v10414 = vadd.f32 %v10412, %v10413
  %v10415 = vsel %vm3198, %v10312, 0.0
  %v10416 = vadd.f32 %v10414, %v10415
  %v10417 = vsel %vm3198, %v10313, 0.0
  %v10418 = vadd.f32 %v10416, %v10417
  %v10419 = vsel %vm3198, %v10314, 0.0
  %v10420 = vadd.f32 %v10418, %v10419
  %v10421 = vsel %vm3198, %v10315, 0.0
  %v10422 = vadd.f32 %v10420, %v10421
  %v10423 = vsel %vm3198, %v10316, 0.0
  %v10424 = vadd.f32 %v10422, %v10423
  %v10425 = vsel %vm3198, %v10317, 0.0
  %v10426 = vadd.f32 %v10424, %v10425
  %v10427 = vsel %vm3198, %v10318, 0.0
  %v10428 = vadd.f32 %v10426, %v10427
  %v10429 = vsel %vm3198, %v10319, 0.0
  %v10430 = vadd.f32 %v10428, %v10429
  %v10431 = vsel %vm3198, %v10320, 0.0
  %v10432 = vadd.f32 %v10430, %v10431
  %v10433 = vsel %vm3198, %v10321, 0.0
  %v10434 = vadd.f32 %v10432, %v10433
  %v10435 = vsel %vm3198, %v10322, 0.0
  %v10436 = vadd.f32 %v10434, %v10435
  %v10437 = vsel %vm3198, %v10323, 0.0
  %v10438 = vadd.f32 %v10436, %v10437
  %v10439 = vsel %vm3198, %v10324, 0.0
  %v10440 = vadd.f32 %v10438, %v10439
  %v10441 = vsel %vm3198, %v10325, 0.0
  %v10442 = vadd.f32 %v10440, %v10441
  %v10443 = vsel %vm3198, %v10326, 0.0
  %v10444 = vadd.f32 %v10442, %v10443
  %v10445 = vsel %vm3198, %v10327, 0.0
  %v10446 = vadd.f32 %v10444, %v10445
  %v10447 = vsel %vm3198, %v10328, 0.0
  %v10448 = vadd.f32 %v10446, %v10447
  %v10449 = vsel %vm3198, %v10329, 0.0
  %v10450 = vadd.f32 %v10448, %v10449
  %v10451 = vsel %vm3198, %v10330, 0.0
  %v10452 = vadd.f32 %v10450, %v10451
  %v10453 = vsel %vm3198, %v10331, 0.0
  %v10454 = vadd.f32 %v10452, %v10453
  %v10455 = vsel %vm3198, %v10332, 0.0
  %v10456 = vadd.f32 %v10454, %v10455
  %v10457 = vsel %vm3198, %v10333, 0.0
  %v10458 = vadd.f32 %v10456, %v10457
  %v10459 = vsel %vm3198, %v10334, 0.0
  %v10460 = vadd.f32 %v10458, %v10459
  %v10461 = vsel %vm3198, %v10335, 0.0
  %v10462 = vadd.f32 %v10460, %v10461
  %v10463 = vsel %vm3198, %v10336, 0.0
  %v10464 = vadd.f32 %v10462, %v10463
  %v10465 = vsel %vm3198, %v10337, 0.0
  %v10466 = vadd.f32 %v10464, %v10465
  %v10467 = vsel %vm3198, %v10338, 0.0
  %v10468 = vadd.f32 %v10466, %v10467
  %v10469 = vsel %vm3198, %v10339, 0.0
  %v10470 = vadd.f32 %v10468, %v10469
  %v10471 = vsel %vm3198, %v10340, 0.0
  %v10472 = vadd.f32 %v10470, %v10471
  %v10473 = vsel %vm3198, %v10341, 0.0
  %v10474 = vadd.f32 %v10472, %v10473
  %v10475 = vsel %vm3198, %v10342, 0.0
  %v10476 = vadd.f32 %v10474, %v10475
  %v10477 = vsel %vm3198, %v10343, 0.0
  %v10478 = vadd.f32 %v10476, %v10477
  %v10479 = vsel %vm3198, %v10344, 0.0
  %v10480 = vadd.f32 %v10478, %v10479
  %v10481 = vsel %vm3198, %v10345, 0.0
  %v10482 = vadd.f32 %v10480, %v10481
  %v10483 = vsel %vm3198, %v10346, 0.0
  %v10484 = vadd.f32 %v10482, %v10483
  %v10485 = vsel %vm3198, %v10347, 0.0
  %v10486 = vadd.f32 %v10484, %v10485
  %v10487 = vsel %vm3198, %v10348, 0.0
  %v10488 = vadd.f32 %v10486, %v10487
  %v10489 = vsel %vm3198, %v10349, 0.0
  %v10490 = vadd.f32 %v10488, %v10489
  %v10491 = vsel %vm3198, %v10350, 0.0
  %v10492 = vadd.f32 %v10490, %v10491
  %v10493 = vsel %vm3198, %v10351, 0.0
  %v10494 = vadd.f32 %v10492, %v10493
  %v10495 = vsel %vm3198, %v10352, 0.0
  %v10496 = vadd.f32 %v10494, %v10495
  %v10497 = vsel %vm3198, %v10353, 0.0
  %v10498 = vadd.f32 %v10496, %v10497
  %v10499 = vsel %vm3198, %v10354, 0.0
  %v10500 = vadd.f32 %v10498, %v10499
  %v10501 = vsel %vm3198, %v10355, 0.0
  %v10502 = vadd.f32 %v10500, %v10501
  %v10503 = vsel %vm3198, %v10356, 0.0
  %v10504 = vadd.f32 %v10502, %v10503
  %v10505 = vsel %vm3198, %v10357, 0.0
  %v10506 = vadd.f32 %v10504, %v10505
  %v10507 = vsel %vm3198, %v10358, 0.0
  %v10508 = vadd.f32 %v10506, %v10507
  %v10509 = vsel %vm3198, %v10359, 0.0
  %v10510 = vadd.f32 %v10508, %v10509
  %v10511 = vsel %vm3198, %v10360, 0.0
  %v10512 = vadd.f32 %v10510, %v10511
  %v10513 = vsel %vm3198, %v10361, 0.0
  %v10514 = vadd.f32 %v10512, %v10513
  %v10515 = vsel %vm3198, %v10362, 0.0
  %v10516 = vadd.f32 %v10514, %v10515
  %v10517 = vsel %vm3198, %v10363, 0.0
  %v10518 = vadd.f32 %v10516, %v10517
  %v10519 = vsel %vm3198, %v10364, 0.0
  %v10520 = vadd.f32 %v10518, %v10519
  %v10521 = vsel %vm3198, %v10365, 0.0
  %v10522 = vadd.f32 %v10520, %v10521
  %v10523 = vsel %vm3198, %v10366, 0.0
  %v10524 = vadd.f32 %v10522, %v10523
  %v10525 = vsel %vm3198, %v10367, 0.0
  %v10526 = vadd.f32 %v10524, %v10525
  %v10527 = vsel %vm3198, %v10368, 0.0
  %v10528 = vadd.f32 %v10526, %v10527
  %v10529 = vsel %vm3198, %v10369, 0.0
  %v10530 = vadd.f32 %v10528, %v10529
  %v10531 = vrot.slane %v10530, 4
  %v10532 = vadd.f32 %v10530, %v10531
  %v10533 = vrot.slane %v10532, 2
  %v10534 = vadd.f32 %v10532, %v10533
  %v10535 = vrot.slane %v10534, 1
  %v10536 = vadd.f32 %v10534, %v10535
  %v10537 = vmul.f32 %v10288, 0.001953125
  %v10538 = vmul.f32 %v10536, 0.001953125
  %v10539 = vmul.f32 %v10537, %v10537
  %v10540 = vsub.f32 %v10538, %v10539
  %v10541 = vadd.f32 %v10540, 1e-05
  %v10542 = vrsqrt.pop %v10541
  %v10543 = vmul.f32 %v10542, %v10120
  %v10544 = vmul.f32 %v10537, %v10543
  %v10545 = vsub.f32 %v10121, %v10544
  %v10546 = vlaneseq
  %v10547 = vshrl.u32 %v10546, 7
  %v10548 = vsub.s32 0, %v10547
  %v10549 = vrot.slane %v10543, %v10548
  %v10550 = vmul.f32 %v10039, %v10549
  %v10551 = vmul.f32 %v10040, %v10549
  %v10552 = vmul.f32 %v10041, %v10549
  %v10553 = vmul.f32 %v10042, %v10549
  %v10554 = vmul.f32 %v10043, %v10549
  %v10555 = vmul.f32 %v10044, %v10549
  %v10556 = vmul.f32 %v10045, %v10549
  %v10557 = vmul.f32 %v10046, %v10549
  %v10558 = vmul.f32 %v10047, %v10549
  %v10559 = vmul.f32 %v10048, %v10549
  %v10560 = vmul.f32 %v10049, %v10549
  %v10561 = vmul.f32 %v10050, %v10549
  %v10562 = vmul.f32 %v10051, %v10549
  %v10563 = vmul.f32 %v10052, %v10549
  %v10564 = vmul.f32 %v10053, %v10549
  %v10565 = vmul.f32 %v10054, %v10549
  %v10566 = vmul.f32 %v10055, %v10549
  %v10567 = vmul.f32 %v10056, %v10549
  %v10568 = vmul.f32 %v10057, %v10549
  %v10569 = vmul.f32 %v10058, %v10549
  %v10570 = vmul.f32 %v10059, %v10549
  %v10571 = vmul.f32 %v10060, %v10549
  %v10572 = vmul.f32 %v10061, %v10549
  %v10573 = vmul.f32 %v10062, %v10549
  %v10574 = vmul.f32 %v10063, %v10549
  %v10575 = vmul.f32 %v10064, %v10549
  %v10576 = vmul.f32 %v10065, %v10549
  %v10577 = vmul.f32 %v10066, %v10549
  %v10578 = vmul.f32 %v10067, %v10549
  %v10579 = vmul.f32 %v10068, %v10549
  %v10580 = vmul.f32 %v10069, %v10549
  %v10581 = vmul.f32 %v10070, %v10549
  %v10582 = vmul.f32 %v10071, %v10549
  %v10583 = vmul.f32 %v10072, %v10549
  %v10584 = vmul.f32 %v10073, %v10549
  %v10585 = vmul.f32 %v10074, %v10549
  %v10586 = vmul.f32 %v10075, %v10549
  %v10587 = vmul.f32 %v10076, %v10549
  %v10588 = vmul.f32 %v10077, %v10549
  %v10589 = vmul.f32 %v10078, %v10549
  %v10590 = vmul.f32 %v10079, %v10549
  %v10591 = vmul.f32 %v10080, %v10549
  %v10592 = vmul.f32 %v10081, %v10549
  %v10593 = vmul.f32 %v10082, %v10549
  %v10594 = vmul.f32 %v10083, %v10549
  %v10595 = vmul.f32 %v10084, %v10549
  %v10596 = vmul.f32 %v10085, %v10549
  %v10597 = vmul.f32 %v10086, %v10549
  %v10598 = vmul.f32 %v10087, %v10549
  %v10599 = vmul.f32 %v10088, %v10549
  %v10600 = vmul.f32 %v10089, %v10549
  %v10601 = vmul.f32 %v10090, %v10549
  %v10602 = vmul.f32 %v10091, %v10549
  %v10603 = vmul.f32 %v10092, %v10549
  %v10604 = vmul.f32 %v10093, %v10549
  %v10605 = vmul.f32 %v10094, %v10549
  %v10606 = vmul.f32 %v10095, %v10549
  %v10607 = vmul.f32 %v10096, %v10549
  %v10608 = vmul.f32 %v10097, %v10549
  %v10609 = vmul.f32 %v10098, %v10549
  %v10610 = vmul.f32 %v10099, %v10549
  %v10611 = vmul.f32 %v10100, %v10549
  %v10612 = vmul.f32 %v10101, %v10549
  %v10613 = vmul.f32 %v10102, %v10549
  %v10614 = vmul.f32 %v10103, %v10549
  %v10615 = vmul.f32 %v10104, %v10549
  %v10616 = vmul.f32 %v10105, %v10549
  %v10617 = vmul.f32 %v10106, %v10549
  %v10618 = vmul.f32 %v10107, %v10549
  %v10619 = vmul.f32 %v10108, %v10549
  %v10620 = vmul.f32 %v10109, %v10549
  %v10621 = vmul.f32 %v10110, %v10549
  %v10622 = vmul.f32 %v10111, %v10549
  %v10623 = vmul.f32 %v10112, %v10549
  %v10624 = vmul.f32 %v10113, %v10549
  %v10625 = vmul.f32 %v10114, %v10549
  %v10626 = vmul.f32 %v10115, %v10549
  %v10627 = vmul.f32 %v10116, %v10549
  %v10628 = vmul.f32 %v10117, %v10549
  %v10629 = vmul.f32 %v10118, %v10549
  %v10630 = vmul.f32 %v10119, %v10549
  %v10632 = vlaneseq
  %v10633 = vshrl.u32 %v10632, 7
  %v10634 = vsub.s32 0, %v10633
  %v10635 = vrot.slane %v10545, %v10634
  %v10637 = vadd.f32 %v10550, %v10635
  %v10638 = vadd.f32 %v10551, %v10635
  %v10639 = vadd.f32 %v10552, %v10635
  %v10640 = vadd.f32 %v10553, %v10635
  %v10641 = vadd.f32 %v10554, %v10635
  %v10642 = vadd.f32 %v10555, %v10635
  %v10643 = vadd.f32 %v10556, %v10635
  %v10644 = vadd.f32 %v10557, %v10635
  %v10645 = vadd.f32 %v10558, %v10635
  %v10646 = vadd.f32 %v10559, %v10635
  %v10647 = vadd.f32 %v10560, %v10635
  %v10648 = vadd.f32 %v10561, %v10635
  %v10649 = vadd.f32 %v10562, %v10635
  %v10650 = vadd.f32 %v10563, %v10635
  %v10651 = vadd.f32 %v10564, %v10635
  %v10652 = vadd.f32 %v10565, %v10635
  %v10653 = vadd.f32 %v10566, %v10635
  %v10654 = vadd.f32 %v10567, %v10635
  %v10655 = vadd.f32 %v10568, %v10635
  %v10656 = vadd.f32 %v10569, %v10635
  %v10657 = vadd.f32 %v10570, %v10635
  %v10658 = vadd.f32 %v10571, %v10635
  %v10659 = vadd.f32 %v10572, %v10635
  %v10660 = vadd.f32 %v10573, %v10635
  %v10661 = vadd.f32 %v10574, %v10635
  %v10662 = vadd.f32 %v10575, %v10635
  %v10663 = vadd.f32 %v10576, %v10635
  %v10664 = vadd.f32 %v10577, %v10635
  %v10665 = vadd.f32 %v10578, %v10635
  %v10666 = vadd.f32 %v10579, %v10635
  %v10667 = vadd.f32 %v10580, %v10635
  %v10668 = vadd.f32 %v10581, %v10635
  %v10669 = vadd.f32 %v10582, %v10635
  %v10670 = vadd.f32 %v10583, %v10635
  %v10671 = vadd.f32 %v10584, %v10635
  %v10672 = vadd.f32 %v10585, %v10635
  %v10673 = vadd.f32 %v10586, %v10635
  %v10674 = vadd.f32 %v10587, %v10635
  %v10675 = vadd.f32 %v10588, %v10635
  %v10676 = vadd.f32 %v10589, %v10635
  %v10677 = vadd.f32 %v10590, %v10635
  %v10678 = vadd.f32 %v10591, %v10635
  %v10679 = vadd.f32 %v10592, %v10635
  %v10680 = vadd.f32 %v10593, %v10635
  %v10681 = vadd.f32 %v10594, %v10635
  %v10682 = vadd.f32 %v10595, %v10635
  %v10683 = vadd.f32 %v10596, %v10635
  %v10684 = vadd.f32 %v10597, %v10635
  %v10685 = vadd.f32 %v10598, %v10635
  %v10686 = vadd.f32 %v10599, %v10635
  %v10687 = vadd.f32 %v10600, %v10635
  %v10688 = vadd.f32 %v10601, %v10635
  %v10689 = vadd.f32 %v10602, %v10635
  %v10690 = vadd.f32 %v10603, %v10635
  %v10691 = vadd.f32 %v10604, %v10635
  %v10692 = vadd.f32 %v10605, %v10635
  %v10693 = vadd.f32 %v10606, %v10635
  %v10694 = vadd.f32 %v10607, %v10635
  %v10695 = vadd.f32 %v10608, %v10635
  %v10696 = vadd.f32 %v10609, %v10635
  %v10697 = vadd.f32 %v10610, %v10635
  %v10698 = vadd.f32 %v10611, %v10635
  %v10699 = vadd.f32 %v10612, %v10635
  %v10700 = vadd.f32 %v10613, %v10635
  %v10701 = vadd.f32 %v10614, %v10635
  %v10702 = vadd.f32 %v10615, %v10635
  %v10703 = vadd.f32 %v10616, %v10635
  %v10704 = vadd.f32 %v10617, %v10635
  %v10705 = vadd.f32 %v10618, %v10635
  %v10706 = vadd.f32 %v10619, %v10635
  %v10707 = vadd.f32 %v10620, %v10635
  %v10708 = vadd.f32 %v10621, %v10635
  %v10709 = vadd.f32 %v10622, %v10635
  %v10710 = vadd.f32 %v10623, %v10635
  %v10711 = vadd.f32 %v10624, %v10635
  %v10712 = vadd.f32 %v10625, %v10635
  %v10713 = vadd.f32 %v10626, %v10635
  %v10714 = vadd.f32 %v10627, %v10635
  %v10715 = vadd.f32 %v10628, %v10635
  %v10716 = vadd.f32 %v10629, %v10635
  %v10717 = vadd.f32 %v10630, %v10635
  %10799 = vrot.lane.b32.xlu0 %v5324, 120
  %v10800 = vpop.permute.xlu0 %10799
  %10801 = vrot.lane.b32.xlu0 %v5325, 120
  %v10802 = vpop.permute.xlu0 %10801
  %10803 = vrot.lane.b32.xlu0 %v5326, 120
  %v10804 = vpop.permute.xlu0 %10803
  %10805 = vrot.lane.b32.xlu0 %v5327, 120
  %v10806 = vpop.permute.xlu0 %10805
  %10807 = vrot.lane.b32.xlu0 %v5328, 120
  %v10808 = vpop.permute.xlu0 %10807
  %10809 = vrot.lane.b32.xlu0 %v5329, 120
  %v10810 = vpop.permute.xlu0 %10809
  %10811 = vrot.lane.b32.xlu0 %v5330, 120
  %v10812 = vpop.permute.xlu0 %10811
  %10813 = vrot.lane.b32.xlu0 %v5331, 120
  %v10814 = vpop.permute.xlu0 %10813
  %10815 = vrot.lane.b32.xlu0 %v5332, 120
  %v10816 = vpop.permute.xlu0 %10815
  %10817 = vrot.lane.b32.xlu0 %v5333, 120
  %v10818 = vpop.permute.xlu0 %10817
  %10819 = vrot.lane.b32.xlu0 %v5334, 120
  %v10820 = vpop.permute.xlu0 %10819
  %10821 = vrot.lane.b32.xlu0 %v5335, 120
  %v10822 = vpop.permute.xlu0 %10821
  %10823 = vrot.lane.b32.xlu0 %v5336, 120
  %v10824 = vpop.permute.xlu0 %10823
  %10825 = vrot.lane.b32.xlu0 %v5337, 120
  %v10826 = vpop.permute.xlu0 %10825
  %10827 = vrot.lane.b32.xlu0 %v5338, 120
  %v10828 = vpop.permute.xlu0 %10827
  %10829 = vrot.lane.b32.xlu0 %v5339, 120
  %v10830 = vpop.permute.xlu0 %10829
  %10831 = vrot.lane.b32.xlu0 %v5340, 120
  %v10832 = vpop.permute.xlu0 %10831
  %10833 = vrot.lane.b32.xlu0 %v5341, 120
  %v10834 = vpop.permute.xlu0 %10833
  %10835 = vrot.lane.b32.xlu0 %v5342, 120
  %v10836 = vpop.permute.xlu0 %10835
  %10837 = vrot.lane.b32.xlu0 %v5343, 120
  %v10838 = vpop.permute.xlu0 %10837
  %10839 = vrot.lane.b32.xlu0 %v5344, 120
  %v10840 = vpop.permute.xlu0 %10839
  %10841 = vrot.lane.b32.xlu0 %v5345, 120
  %v10842 = vpop.permute.xlu0 %10841
  %10843 = vrot.lane.b32.xlu0 %v5346, 120
  %v10844 = vpop.permute.xlu0 %10843
  %10845 = vrot.lane.b32.xlu0 %v5347, 120
  %v10846 = vpop.permute.xlu0 %10845
  %10847 = vrot.lane.b32.xlu0 %v5348, 120
  %v10848 = vpop.permute.xlu0 %10847
  %10849 = vrot.lane.b32.xlu0 %v5349, 120
  %v10850 = vpop.permute.xlu0 %10849
  %10851 = vrot.lane.b32.xlu0 %v5350, 120
  %v10852 = vpop.permute.xlu0 %10851
  %10853 = vrot.lane.b32.xlu0 %v5351, 120
  %v10854 = vpop.permute.xlu0 %10853
  %10855 = vrot.lane.b32.xlu0 %v5352, 120
  %v10856 = vpop.permute.xlu0 %10855
  %10857 = vrot.lane.b32.xlu0 %v5353, 120
  %v10858 = vpop.permute.xlu0 %10857
  %10859 = vrot.lane.b32.xlu0 %v5354, 120
  %v10860 = vpop.permute.xlu0 %10859
  %10861 = vrot.lane.b32.xlu0 %v5355, 120
  %v10862 = vpop.permute.xlu0 %10861
  %10863 = vrot.lane.b32.xlu0 %v5356, 120
  %v10864 = vpop.permute.xlu0 %10863
  %10865 = vrot.lane.b32.xlu0 %v5357, 120
  %v10866 = vpop.permute.xlu0 %10865
  %10867 = vrot.lane.b32.xlu0 %v5358, 120
  %v10868 = vpop.permute.xlu0 %10867
  %10869 = vrot.lane.b32.xlu0 %v5359, 120
  %v10870 = vpop.permute.xlu0 %10869
  %10871 = vrot.lane.b32.xlu0 %v5360, 120
  %v10872 = vpop.permute.xlu0 %10871
  %10873 = vrot.lane.b32.xlu0 %v5361, 120
  %v10874 = vpop.permute.xlu0 %10873
  %10875 = vrot.lane.b32.xlu0 %v5362, 120
  %v10876 = vpop.permute.xlu0 %10875
  %10877 = vrot.lane.b32.xlu0 %v5363, 120
  %v10878 = vpop.permute.xlu0 %10877
  %10879 = vrot.lane.b32.xlu0 %v5364, 120
  %v10880 = vpop.permute.xlu0 %10879
  %10881 = vrot.lane.b32.xlu0 %v5365, 120
  %v10882 = vpop.permute.xlu0 %10881
  %10883 = vrot.lane.b32.xlu0 %v5366, 120
  %v10884 = vpop.permute.xlu0 %10883
  %10885 = vrot.lane.b32.xlu0 %v5367, 120
  %v10886 = vpop.permute.xlu0 %10885
  %10887 = vrot.lane.b32.xlu0 %v5368, 120
  %v10888 = vpop.permute.xlu0 %10887
  %10889 = vrot.lane.b32.xlu0 %v5369, 120
  %v10890 = vpop.permute.xlu0 %10889
  %10891 = vrot.lane.b32.xlu0 %v5370, 120
  %v10892 = vpop.permute.xlu0 %10891
  %10893 = vrot.lane.b32.xlu0 %v5371, 120
  %v10894 = vpop.permute.xlu0 %10893
  %10895 = vrot.lane.b32.xlu0 %v5372, 120
  %v10896 = vpop.permute.xlu0 %10895
  %10897 = vrot.lane.b32.xlu0 %v5373, 120
  %v10898 = vpop.permute.xlu0 %10897
  %10899 = vrot.lane.b32.xlu0 %v5374, 120
  %v10900 = vpop.permute.xlu0 %10899
  %10901 = vrot.lane.b32.xlu0 %v5375, 120
  %v10902 = vpop.permute.xlu0 %10901
  %10903 = vrot.lane.b32.xlu0 %v5376, 120
  %v10904 = vpop.permute.xlu0 %10903
  %10905 = vrot.lane.b32.xlu0 %v5377, 120
  %v10906 = vpop.permute.xlu0 %10905
  %10907 = vrot.lane.b32.xlu0 %v5378, 120
  %v10908 = vpop.permute.xlu0 %10907
  %10909 = vrot.lane.b32.xlu0 %v5379, 120
  %v10910 = vpop.permute.xlu0 %10909
  %10911 = vrot.lane.b32.xlu0 %v5380, 120
  %v10912 = vpop.permute.xlu0 %10911
  %10913 = vrot.lane.b32.xlu0 %v5381, 120
  %v10914 = vpop.permute.xlu0 %10913
  %10915 = vrot.lane.b32.xlu0 %v5382, 120
  %v10916 = vpop.permute.xlu0 %10915
  %10917 = vrot.lane.b32.xlu0 %v5383, 120
  %v10918 = vpop.permute.xlu0 %10917
  %10919 = vrot.lane.b32.xlu0 %v5384, 120
  %v10920 = vpop.permute.xlu0 %10919
  %10921 = vrot.lane.b32.xlu0 %v5385, 120
  %v10922 = vpop.permute.xlu0 %10921
  %10923 = vrot.lane.b32.xlu0 %v5386, 120
  %v10924 = vpop.permute.xlu0 %10923
  %10925 = vrot.lane.b32.xlu0 %v5387, 120
  %v10926 = vpop.permute.xlu0 %10925
  %10927 = vrot.lane.b32.xlu0 %v5388, 120
  %v10928 = vpop.permute.xlu0 %10927
  %10929 = vrot.lane.b32.xlu0 %v5389, 120
  %v10930 = vpop.permute.xlu0 %10929
  %10931 = vrot.lane.b32.xlu0 %v5390, 120
  %v10932 = vpop.permute.xlu0 %10931
  %10933 = vrot.lane.b32.xlu0 %v5391, 120
  %v10934 = vpop.permute.xlu0 %10933
  %10935 = vrot.lane.b32.xlu0 %v5392, 120
  %v10936 = vpop.permute.xlu0 %10935
  %10937 = vrot.lane.b32.xlu0 %v5393, 120
  %v10938 = vpop.permute.xlu0 %10937
  %10939 = vrot.lane.b32.xlu0 %v5394, 120
  %v10940 = vpop.permute.xlu0 %10939
  %10941 = vrot.lane.b32.xlu0 %v5395, 120
  %v10942 = vpop.permute.xlu0 %10941
  %10943 = vrot.lane.b32.xlu0 %v5396, 120
  %v10944 = vpop.permute.xlu0 %10943
  %10945 = vrot.lane.b32.xlu0 %v5397, 120
  %v10946 = vpop.permute.xlu0 %10945
  %10947 = vrot.lane.b32.xlu0 %v5398, 120
  %v10948 = vpop.permute.xlu0 %10947
  %10949 = vrot.lane.b32.xlu0 %v5399, 120
  %v10950 = vpop.permute.xlu0 %10949
  %10951 = vrot.lane.b32.xlu0 %v5400, 120
  %v10952 = vpop.permute.xlu0 %10951
  %10953 = vrot.lane.b32.xlu0 %v5401, 120
  %v10954 = vpop.permute.xlu0 %10953
  %10955 = vrot.lane.b32.xlu0 %v5402, 120
  %v10956 = vpop.permute.xlu0 %10955
  %10957 = vrot.lane.b32.xlu0 %v5403, 120
  %v10958 = vpop.permute.xlu0 %10957
  %10959 = vrot.lane.b32.xlu0 %v5404, 120
  %v10960 = vpop.permute.xlu0 %10959
  %v11042 = vadd.f32 %v10637, %v10800
  %v11043 = vadd.f32 %v10638, %v10802
  %v11044 = vadd.f32 %v10639, %v10804
  %v11045 = vadd.f32 %v10640, %v10806
  %v11046 = vadd.f32 %v10641, %v10808
  %v11047 = vadd.f32 %v10642, %v10810
  %v11048 = vadd.f32 %v10643, %v10812
  %v11049 = vadd.f32 %v10644, %v10814
  %v11050 = vadd.f32 %v10645, %v10816
  %v11051 = vadd.f32 %v10646, %v10818
  %v11052 = vadd.f32 %v10647, %v10820
  %v11053 = vadd.f32 %v10648, %v10822
  %v11054 = vadd.f32 %v10649, %v10824
  %v11055 = vadd.f32 %v10650, %v10826
  %v11056 = vadd.f32 %v10651, %v10828
  %v11057 = vadd.f32 %v10652, %v10830
  %v11058 = vadd.f32 %v10653, %v10832
  %v11059 = vadd.f32 %v10654, %v10834
  %v11060 = vadd.f32 %v10655, %v10836
  %v11061 = vadd.f32 %v10656, %v10838
  %v11062 = vadd.f32 %v10657, %v10840
  %v11063 = vadd.f32 %v10658, %v10842
  %v11064 = vadd.f32 %v10659, %v10844
  %v11065 = vadd.f32 %v10660, %v10846
  %v11066 = vadd.f32 %v10661, %v10848
  %v11067 = vadd.f32 %v10662, %v10850
  %v11068 = vadd.f32 %v10663, %v10852
  %v11069 = vadd.f32 %v10664, %v10854
  %v11070 = vadd.f32 %v10665, %v10856
  %v11071 = vadd.f32 %v10666, %v10858
  %v11072 = vadd.f32 %v10667, %v10860
  %v11073 = vadd.f32 %v10668, %v10862
  %v11074 = vadd.f32 %v10669, %v10864
  %v11075 = vadd.f32 %v10670, %v10866
  %v11076 = vadd.f32 %v10671, %v10868
  %v11077 = vadd.f32 %v10672, %v10870
  %v11078 = vadd.f32 %v10673, %v10872
  %v11079 = vadd.f32 %v10674, %v10874
  %v11080 = vadd.f32 %v10675, %v10876
  %v11081 = vadd.f32 %v10676, %v10878
  %v11082 = vadd.f32 %v10677, %v10880
  %v11083 = vadd.f32 %v10678, %v10882
  %v11084 = vadd.f32 %v10679, %v10884
  %v11085 = vadd.f32 %v10680, %v10886
  %v11086 = vadd.f32 %v10681, %v10888
  %v11087 = vadd.f32 %v10682, %v10890
  %v11088 = vadd.f32 %v10683, %v10892
  %v11089 = vadd.f32 %v10684, %v10894
  %v11090 = vadd.f32 %v10685, %v10896
  %v11091 = vadd.f32 %v10686, %v10898
  %v11092 = vadd.f32 %v10687, %v10900
  %v11093 = vadd.f32 %v10688, %v10902
  %v11094 = vadd.f32 %v10689, %v10904
  %v11095 = vadd.f32 %v10690, %v10906
  %v11096 = vadd.f32 %v10691, %v10908
  %v11097 = vadd.f32 %v10692, %v10910
  %v11098 = vadd.f32 %v10693, %v10912
  %v11099 = vadd.f32 %v10694, %v10914
  %v11100 = vadd.f32 %v10695, %v10916
  %v11101 = vadd.f32 %v10696, %v10918
  %v11102 = vadd.f32 %v10697, %v10920
  %v11103 = vadd.f32 %v10698, %v10922
  %v11104 = vadd.f32 %v10699, %v10924
  %v11105 = vadd.f32 %v10700, %v10926
  %v11106 = vadd.f32 %v10701, %v10928
  %v11107 = vadd.f32 %v10702, %v10930
  %v11108 = vadd.f32 %v10703, %v10932
  %v11109 = vadd.f32 %v10704, %v10934
  %v11110 = vadd.f32 %v10705, %v10936
  %v11111 = vadd.f32 %v10706, %v10938
  %v11112 = vadd.f32 %v10707, %v10940
  %v11113 = vadd.f32 %v10708, %v10942
  %v11114 = vadd.f32 %v10709, %v10944
  %v11115 = vadd.f32 %v10710, %v10946
  %v11116 = vadd.f32 %v10711, %v10948
  %v11117 = vadd.f32 %v10712, %v10950
  %v11118 = vadd.f32 %v10713, %v10952
  %v11119 = vadd.f32 %v10714, %v10954
  %v11120 = vadd.f32 %v10715, %v10956
  %v11121 = vadd.f32 %v10716, %v10958
  %v11122 = vadd.f32 %v10717, %v10960
  %v11123 = vmax.f32 %v11042, 0.0
  %v11124 = vmax.f32 %v11043, 0.0
  %v11125 = vmax.f32 %v11044, 0.0
  %v11126 = vmax.f32 %v11045, 0.0
  %v11127 = vmax.f32 %v11046, 0.0
  %v11128 = vmax.f32 %v11047, 0.0
  %v11129 = vmax.f32 %v11048, 0.0
  %v11130 = vmax.f32 %v11049, 0.0
  %v11131 = vmax.f32 %v11050, 0.0
  %v11132 = vmax.f32 %v11051, 0.0
  %v11133 = vmax.f32 %v11052, 0.0
  %v11134 = vmax.f32 %v11053, 0.0
  %v11135 = vmax.f32 %v11054, 0.0
  %v11136 = vmax.f32 %v11055, 0.0
  %v11137 = vmax.f32 %v11056, 0.0
  %v11138 = vmax.f32 %v11057, 0.0
  %v11139 = vmax.f32 %v11058, 0.0
  %v11140 = vmax.f32 %v11059, 0.0
  %v11141 = vmax.f32 %v11060, 0.0
  %v11142 = vmax.f32 %v11061, 0.0
  %v11143 = vmax.f32 %v11062, 0.0
  %v11144 = vmax.f32 %v11063, 0.0
  %v11145 = vmax.f32 %v11064, 0.0
  %v11146 = vmax.f32 %v11065, 0.0
  %v11147 = vmax.f32 %v11066, 0.0
  %v11148 = vmax.f32 %v11067, 0.0
  %v11149 = vmax.f32 %v11068, 0.0
  %v11150 = vmax.f32 %v11069, 0.0
  %v11151 = vmax.f32 %v11070, 0.0
  %v11152 = vmax.f32 %v11071, 0.0
  %v11153 = vmax.f32 %v11072, 0.0
  %v11154 = vmax.f32 %v11073, 0.0
  %v11155 = vmax.f32 %v11074, 0.0
  %v11156 = vmax.f32 %v11075, 0.0
  %v11157 = vmax.f32 %v11076, 0.0
  %v11158 = vmax.f32 %v11077, 0.0
  %v11159 = vmax.f32 %v11078, 0.0
  %v11160 = vmax.f32 %v11079, 0.0
  %v11161 = vmax.f32 %v11080, 0.0
  %v11162 = vmax.f32 %v11081, 0.0
  %v11163 = vmax.f32 %v11082, 0.0
  %v11164 = vmax.f32 %v11083, 0.0
  %v11165 = vmax.f32 %v11084, 0.0
  %v11166 = vmax.f32 %v11085, 0.0
  %v11167 = vmax.f32 %v11086, 0.0
  %v11168 = vmax.f32 %v11087, 0.0
  %v11169 = vmax.f32 %v11088, 0.0
  %v11170 = vmax.f32 %v11089, 0.0
  %v11171 = vmax.f32 %v11090, 0.0
  %v11172 = vmax.f32 %v11091, 0.0
  %v11173 = vmax.f32 %v11092, 0.0
  %v11174 = vmax.f32 %v11093, 0.0
  %v11175 = vmax.f32 %v11094, 0.0
  %v11176 = vmax.f32 %v11095, 0.0
  %v11177 = vmax.f32 %v11096, 0.0
  %v11178 = vmax.f32 %v11097, 0.0
  %v11179 = vmax.f32 %v11098, 0.0
  %v11180 = vmax.f32 %v11099, 0.0
  %v11181 = vmax.f32 %v11100, 0.0
  %v11182 = vmax.f32 %v11101, 0.0
  %v11183 = vmax.f32 %v11102, 0.0
  %v11184 = vmax.f32 %v11103, 0.0
  %v11185 = vmax.f32 %v11104, 0.0
  %v11186 = vmax.f32 %v11105, 0.0
  %v11187 = vmax.f32 %v11106, 0.0
  %v11188 = vmax.f32 %v11107, 0.0
  %v11189 = vmax.f32 %v11108, 0.0
  %v11190 = vmax.f32 %v11109, 0.0
  %v11191 = vmax.f32 %v11110, 0.0
  %v11192 = vmax.f32 %v11111, 0.0
  %v11193 = vmax.f32 %v11112, 0.0
  %v11194 = vmax.f32 %v11113, 0.0
  %v11195 = vmax.f32 %v11114, 0.0
  %v11196 = vmax.f32 %v11115, 0.0
  %v11197 = vmax.f32 %v11116, 0.0
  %v11198 = vmax.f32 %v11117, 0.0
  %v11199 = vmax.f32 %v11118, 0.0
  %v11200 = vmax.f32 %v11119, 0.0
  %v11201 = vmax.f32 %v11120, 0.0
  %v11202 = vmax.f32 %v11121, 0.0
  %v11203 = vmax.f32 %v11122, 0.0
  %11204 = vst.msk [vmem:[%s8] sm:$0xff] %vm3198, %v11123
  %11205 = vst.msk [vmem:[%s8 + $0x8] sm:$0xff] %vm3198, %v11124
  %11206 = vst.msk [vmem:[%s8 + $0x10] sm:$0xff] %vm3198, %v11125
  %11207 = vst.msk [vmem:[%s8 + $0x18] sm:$0xff] %vm3198, %v11126
  %11208 = vst.msk [vmem:[%s8 + $0x20] sm:$0xff] %vm3198, %v11127
  %11209 = vst.msk [vmem:[%s8 + $0x28] sm:$0xff] %vm3198, %v11128
  %11210 = vst.msk [vmem:[%s8 + $0x30] sm:$0xff] %vm3198, %v11129
  %11211 = vst.msk [vmem:[%s8 + $0x38] sm:$0xff] %vm3198, %v11130
  %11212 = vst.msk [vmem:[%s8 + $0x40] sm:$0xff] %vm3198, %v11131
  %11213 = vst.msk [vmem:[%s8 + $0x48] sm:$0xff] %vm3198, %v11132
  %11214 = vst.msk [vmem:[%s8 + $0x50] sm:$0xff] %vm3198, %v11133
  %11215 = vst.msk [vmem:[%s8 + $0x58] sm:$0xff] %vm3198, %v11134
  %11216 = vst.msk [vmem:[%s8 + $0x60] sm:$0xff] %vm3198, %v11135
  %11217 = vst.msk [vmem:[%s8 + $0x68] sm:$0xff] %vm3198, %v11136
  %11218 = vst.msk [vmem:[%s8 + $0x70] sm:$0xff] %vm3198, %v11137
  %11219 = vst.msk [vmem:[%s8 + $0x78] sm:$0xff] %vm3198, %v11138
  %11220 = vst.msk [vmem:[%s8 + $0x80] sm:$0xff] %vm3198, %v11139
  %11221 = vst.msk [vmem:[%s8 + $0x88] sm:$0xff] %vm3198, %v11140
  %11222 = vst.msk [vmem:[%s8 + $0x90] sm:$0xff] %vm3198, %v11141
  %11223 = vst.msk [vmem:[%s8 + $0x98] sm:$0xff] %vm3198, %v11142
  %11224 = vst.msk [vmem:[%s8 + $0xa0] sm:$0xff] %vm3198, %v11143
  %11225 = vst.msk [vmem:[%s8 + $0xa8] sm:$0xff] %vm3198, %v11144
  %11226 = vst.msk [vmem:[%s8 + $0xb0] sm:$0xff] %vm3198, %v11145
  %11227 = vst.msk [vmem:[%s8 + $0xb8] sm:$0xff] %vm3198, %v11146
  %11228 = vst.msk [vmem:[%s8 + $0xc0] sm:$0xff] %vm3198, %v11147
  %11229 = vst.msk [vmem:[%s8 + $0xc8] sm:$0xff] %vm3198, %v11148
  %11230 = vst.msk [vmem:[%s8 + $0xd0] sm:$0xff] %vm3198, %v11149
  %11231 = vst.msk [vmem:[%s8 + $0xd8] sm:$0xff] %vm3198, %v11150
  %11232 = vst.msk [vmem:[%s8 + $0xe0] sm:$0xff] %vm3198, %v11151
  %11233 = vst.msk [vmem:[%s8 + $0xe8] sm:$0xff] %vm3198, %v11152
  %11234 = vst.msk [vmem:[%s8 + $0xf0] sm:$0xff] %vm3198, %v11153
  %11235 = vst.msk [vmem:[%s8 + $0xf8] sm:$0xff] %vm3198, %v11154
  %11236 = vst.msk [vmem:[%s8 + $0x100] sm:$0xff] %vm3198, %v11155
  %11237 = vst.msk [vmem:[%s8 + $0x108] sm:$0xff] %vm3198, %v11156
  %11238 = vst.msk [vmem:[%s8 + $0x110] sm:$0xff] %vm3198, %v11157
  %11239 = vst.msk [vmem:[%s8 + $0x118] sm:$0xff] %vm3198, %v11158
  %11240 = vst.msk [vmem:[%s8 + $0x120] sm:$0xff] %vm3198, %v11159
  %11241 = vst.msk [vmem:[%s8 + $0x128] sm:$0xff] %vm3198, %v11160
  %11242 = vst.msk [vmem:[%s8 + $0x130] sm:$0xff] %vm3198, %v11161
  %11243 = vst.msk [vmem:[%s8 + $0x138] sm:$0xff] %vm3198, %v11162
  %11244 = vst.msk [vmem:[%s8 + $0x140] sm:$0xff] %vm3198, %v11163
  %11245 = vst.msk [vmem:[%s8 + $0x148] sm:$0xff] %vm3198, %v11164
  %11246 = vst.msk [vmem:[%s8 + $0x150] sm:$0xff] %vm3198, %v11165
  %11247 = vst.msk [vmem:[%s8 + $0x158] sm:$0xff] %vm3198, %v11166
  %11248 = vst.msk [vmem:[%s8 + $0x160] sm:$0xff] %vm3198, %v11167
  %11249 = vst.msk [vmem:[%s8 + $0x168] sm:$0xff] %vm3198, %v11168
  %11250 = vst.msk [vmem:[%s8 + $0x170] sm:$0xff] %vm3198, %v11169
  %11251 = vst.msk [vmem:[%s8 + $0x178] sm:$0xff] %vm3198, %v11170
  %11252 = vst.msk [vmem:[%s8 + $0x180] sm:$0xff] %vm3198, %v11171
  %11253 = vst.msk [vmem:[%s8 + $0x188] sm:$0xff] %vm3198, %v11172
  %11254 = vst.msk [vmem:[%s8 + $0x190] sm:$0xff] %vm3198, %v11173
  %11255 = vst.msk [vmem:[%s8 + $0x198] sm:$0xff] %vm3198, %v11174
  %11256 = vst.msk [vmem:[%s8 + $0x1a0] sm:$0xff] %vm3198, %v11175
  %11257 = vst.msk [vmem:[%s8 + $0x1a8] sm:$0xff] %vm3198, %v11176
  %11258 = vst.msk [vmem:[%s8 + $0x1b0] sm:$0xff] %vm3198, %v11177
  %11259 = vst.msk [vmem:[%s8 + $0x1b8] sm:$0xff] %vm3198, %v11178
  %11260 = vst.msk [vmem:[%s8 + $0x1c0] sm:$0xff] %vm3198, %v11179
  %11261 = vst.msk [vmem:[%s8 + $0x1c8] sm:$0xff] %vm3198, %v11180
  %11262 = vst.msk [vmem:[%s8 + $0x1d0] sm:$0xff] %vm3198, %v11181
  %11263 = vst.msk [vmem:[%s8 + $0x1d8] sm:$0xff] %vm3198, %v11182
  %11264 = vst.msk [vmem:[%s8 + $0x1e0] sm:$0xff] %vm3198, %v11183
  %11265 = vst.msk [vmem:[%s8 + $0x1e8] sm:$0xff] %vm3198, %v11184
  %11266 = vst.msk [vmem:[%s8 + $0x1f0] sm:$0xff] %vm3198, %v11185
  %11267 = vst.msk [vmem:[%s8 + $0x1f8] sm:$0xff] %vm3198, %v11186
  %11268 = vst.msk [vmem:[%s8 + $0x200] sm:$0xff] %vm3198, %v11187
  %11269 = vst.msk [vmem:[%s8 + $0x208] sm:$0xff] %vm3198, %v11188
  %11270 = vst.msk [vmem:[%s8 + $0x210] sm:$0xff] %vm3198, %v11189
  %11271 = vst.msk [vmem:[%s8 + $0x218] sm:$0xff] %vm3198, %v11190
  %11272 = vst.msk [vmem:[%s8 + $0x220] sm:$0xff] %vm3198, %v11191
  %11273 = vst.msk [vmem:[%s8 + $0x228] sm:$0xff] %vm3198, %v11192
  %11274 = vst.msk [vmem:[%s8 + $0x230] sm:$0xff] %vm3198, %v11193
  %11275 = vst.msk [vmem:[%s8 + $0x238] sm:$0xff] %vm3198, %v11194
  %11276 = vst.msk [vmem:[%s8 + $0x240] sm:$0xff] %vm3198, %v11195
  %11277 = vst.msk [vmem:[%s8 + $0x248] sm:$0xff] %vm3198, %v11196
  %11278 = vst.msk [vmem:[%s8 + $0x250] sm:$0xff] %vm3198, %v11197
  %11279 = vst.msk [vmem:[%s8 + $0x258] sm:$0xff] %vm3198, %v11198
  %11280 = vst.msk [vmem:[%s8 + $0x260] sm:$0xff] %vm3198, %v11199
  %11281 = vst.msk [vmem:[%s8 + $0x268] sm:$0xff] %vm3198, %v11200
  %11282 = vst.msk [vmem:[%s8 + $0x270] sm:$0xff] %vm3198, %v11201
  %11283 = vst.msk [vmem:[%s8 + $0x278] sm:$0xff] %vm3198, %v11202
  %11284 = vst.msk [vmem:[%s8 + $0x280] sm:$0xff] %vm3198, %v11203
  // Predicated region
  $region34: #{tpu_custom_call.1} parent=0 // pred_check
    _
  $region35: #{tpu_custom_call.1} parent=0 // pred_check_branch
    %11286 = sbr.rel (0) target = $region37
  $region36: #{tpu_custom_call.1} parent=0 // pred_region
    _
  $region37: #{tpu_custom_call.1} parent=0 // pred_fallthru
    _
  // Predicated region
  $region38: #{tpu_custom_call.1} parent=0 // pred_check
    _
  $region39: #{tpu_custom_call.1} parent=0 // pred_check_branch
    %11288 = sbr.rel (0) target = $region41
  $region40: #{tpu_custom_call.1} parent=0 // pred_region
    _
  $region41: #{tpu_custom_call.1} parent=0 // pred_fallthru
    _

</llo_original>
